<compile_context>
chip_gen: v6e
topology: v6e:2x2x1
jax: 0.10.0
libtpu: 0.0.40
codegen_flags: <defaults>
</compile_context>

<pallas_src>
import math
import functools

import jax
import jax.numpy as jnp
from jax import lax
from jax.experimental import pallas as pl
from jax.experimental.pallas import tpu as pltpu

NEG = -1e30  # large finite negative instead of -inf (avoids 0/0 NaN softmax rows)


# ---------------------------------------------------------------------------
# Small helpers
# ---------------------------------------------------------------------------

def _nbytes(a):
    return int(a.size) * a.dtype.itemsize


def _pick_batch_block(B, max_bb=8):
    """Largest divisor of B (<= max_bb) that still leaves >= 2 grid blocks (v7x 2 TCs)."""
    for cand in range(min(max_bb, B), 0, -1):
        if B % cand == 0 and (B // cand >= 2 or cand == B == 1):
            return cand
    return 1


def _compiler_params(dims, est_bytes):
    # Explicit scoped-VMEM limit derived from operand sizes; clamp to [32 MiB, 64 MiB]
    # so the fused layer stays viable on v7x (64 MiB physical VMEM per TC).
    vmem = int(min(max(est_bytes, 32 * 1024 * 1024), 64 * 1024 * 1024))
    return pltpu.CompilerParams(dimension_semantics=dims, vmem_limit_bytes=vmem)


# ---------------------------------------------------------------------------
# In-kernel helpers (operate on loaded values)
# ---------------------------------------------------------------------------

def _ln(x, g, b, eps=1e-5):
    mu = jnp.mean(x, axis=-1, keepdims=True)
    var = jnp.mean(jnp.square(x - mu), axis=-1, keepdims=True)
    return (x - mu) * lax.rsqrt(var + eps) * g + b


def _attend_into(scratch, row0, q, k, v, add_mask, nhead):
    """Per-head scaled-dot-product attention for one batch element.

    q: (Lq, E) f32, k/v: (Lk, E) f32, add_mask: (Lq, Lk) or (1, Lk) additive f32.
    Each head's (Lq, hd) output is stored into scratch[row0:row0+Lq, h*hd:(h+1)*hd]
    (static offsets) -- no lane-dim concatenate, one fused out-projection later.
    """
    Lq, E = q.shape
    hd = E // nhead
    scale = 1.0 / math.sqrt(hd)
    bf16 = jnp.bfloat16
    for h in range(nhead):                      # static unroll; scores/PV stay per-head
        lo = h * hd
        qh = (q[:, lo:lo + hd] * scale).astype(bf16)
        kh = k[:, lo:lo + hd].astype(bf16)
        vh = v[:, lo:lo + hd].astype(bf16)
        # NT contraction: no in-kernel transpose of K.
        s = lax.dot_general(qh, kh, (((1,), (1,)), ((), ())),
                            preferred_element_type=jnp.float32)      # (Lq, Lk)
        s = s + add_mask
        s = s - jnp.max(s, axis=-1, keepdims=True)
        p = jnp.exp(s)
        p = p * pl.reciprocal(jnp.sum(p, axis=-1, keepdims=True), approx=True)
        oh = jnp.dot(p.astype(bf16), vh, preferred_element_type=jnp.float32)  # (Lq, hd)
        scratch[row0:row0 + Lq, lo:lo + hd] = oh


# ---------------------------------------------------------------------------
# Fused layer kernels
# ---------------------------------------------------------------------------

def _encoder_layer_kernel(x_ref, am_ref, kp_ref,
                          saw_ref, sab_ref, sawo_ref, sabo_ref,
                          g1_ref, b1_ref,
                          w1_ref, fb1_ref, w2_ref, fb2_ref,
                          g2_ref, b2_ref,
                          fng_ref, fnb_ref,
                          o_ref, attn_sc,
                          *, nhead, bb, final_ln):
    _, L, E = x_ref.shape
    x_bf = x_ref[...].reshape(bb * L, E)                       # bf16 activation rows
    x = x_bf.astype(jnp.float32)

    # Fused QKV projection over all bb*L rows (tall MXU matmul).
    qkv = jnp.dot(x_bf, saw_ref[...], preferred_element_type=jnp.float32) + sab_ref[...]

    b0 = pl.program_id(0) * bb
    for i in range(bb):                                        # static unroll over batch block
        r0 = i * L
        mask = am_ref[...] + kp_ref[pl.ds(b0 + i, 1), :]       # (L, L) additive mask
        _attend_into(attn_sc, r0,
                     qkv[r0:r0 + L, :E], qkv[r0:r0 + L, E:2 * E], qkv[r0:r0 + L, 2 * E:],
                     mask, nhead)

    sa = jnp.dot(attn_sc[...].astype(jnp.bfloat16), sawo_ref[...],
                 preferred_element_type=jnp.float32) + sabo_ref[...]
    y = _ln(x + sa, g1_ref[...], b1_ref[...])                  # residual + LN1

    h = jnp.maximum(jnp.dot(y.astype(jnp.bfloat16), w1_ref[...],
                            preferred_element_type=jnp.float32) + fb1_ref[...], 0.0)
    f = jnp.dot(h.astype(jnp.bfloat16), w2_ref[...],
                preferred_element_type=jnp.float32) + fb2_ref[...]
    out = _ln(y + f, g2_ref[...], b2_ref[...])                 # residual + LN2
    if final_ln:                                               # encoder-stack norm fused in
        out = _ln(out, fng_ref[...], fnb_ref[...])
    o_ref[...] = out.reshape(bb, L, E).astype(o_ref.dtype)


def _decoder_layer_kernel(x_ref, mem_ref, am_ref, tkp_ref, mkp_ref,
                          saw_ref, sab_ref, sawo_ref, sabo_ref,
                          g1_ref, b1_ref,
                          caw_ref, cab_ref, cawo_ref, cabo_ref,
                          g2_ref, b2_ref,
                          w1_ref, fb1_ref, w2_ref, fb2_ref,
                          g3_ref, b3_ref,
                          fng_ref, fnb_ref,
                          o_ref, attn_sc,
                          *, nhead, bb, final_ln):
    _, Lt, E = x_ref.shape
    Ls = mem_ref.shape[1]
    x_bf = x_ref[...].reshape(bb * Lt, E)
    x = x_bf.astype(jnp.float32)
    mem_bf = mem_ref[...].reshape(bb * Ls, E)

    b0 = pl.program_id(0) * bb

    # ---- masked self-attention ----
    qkv = jnp.dot(x_bf, saw_ref[...], preferred_element_type=jnp.float32) + sab_ref[...]
    for i in range(bb):
        r0 = i * Lt
        mask = am_ref[...] + tkp_ref[pl.ds(b0 + i, 1), :]      # (Lt, Lt)
        _attend_into(attn_sc, r0,
                     qkv[r0:r0 + Lt, :E], qkv[r0:r0 + Lt, E:2 * E], qkv[r0:r0 + Lt, 2 * E:],
                     mask, nhead)
    sa = jnp.dot(attn_sc[...].astype(jnp.bfloat16), sawo_ref[...],
                 preferred_element_type=jnp.float32) + sabo_ref[...]
    y = _ln(x + sa, g1_ref[...], b1_ref[...])

    # ---- cross-attention (q from decoder state, k/v from encoder memory) ----
    caw = caw_ref[...]
    cab = cab_ref[...]
    qc = jnp.dot(y.astype(jnp.bfloat16), caw[:, :E],
                 preferred_element_type=jnp.float32) + cab[:, :E]          # (bb*Lt, E)
    kvc = jnp.dot(mem_bf, caw[:, E:],
                  preferred_element_type=jnp.float32) + cab[:, E:]         # (bb*Ls, 2E)
    for i in range(bb):
        rq, rk = i * Lt, i * Ls
        cmask = mkp_ref[pl.ds(b0 + i, 1), :]                               # (1, Ls)
        _attend_into(attn_sc, rq,
                     qc[rq:rq + Lt], kvc[rk:rk + Ls, :E], kvc[rk:rk + Ls, E:],
                     cmask, nhead)
    ca = jnp.dot(attn_sc[...].astype(jnp.bfloat16), cawo_ref[...],
                 preferred_element_type=jnp.float32) + cabo_ref[...]
    z = _ln(y + ca, g2_ref[...], b2_ref[...])

    # ---- FFN ----
    h = jnp.maximum(jnp.dot(z.astype(jnp.bfloat16), w1_ref[...],
                            preferred_element_type=jnp.float32) + fb1_ref[...], 0.0)
    f = jnp.dot(h.astype(jnp.bfloat16), w2_ref[...],
                preferred_element_type=jnp.float32) + fb2_ref[...]
    out = _ln(z + f, g3_ref[...], b3_ref[...])
    if final_ln:                                               # decoder-stack norm fused in
        out = _ln(out, fng_ref[...], fnb_ref[...])
    o_ref[...] = out.reshape(bb, Lt, E).astype(o_ref.dtype)


def _gen_kernel(x_ref, w_ref, wb_ref, o_ref):
    o_ref[...] = jnp.dot(x_ref[...], w_ref[...],
                         preferred_element_type=jnp.float32) + wb_ref[...]


# ---------------------------------------------------------------------------
# pallas_call wrappers
# ---------------------------------------------------------------------------

# Grid-invariant operands: one whole-array VMEM copy, no pipelining / double buffering.
_VMEM_WHOLE = pl.BlockSpec(memory_space=pltpu.MemorySpace.VMEM)


def encoder_layer_call(x, attn_mask, kpad, p, nhead, final_ln=None):
    B, L, E = x.shape
    F = p["w1"].shape[1]
    bb = _pick_batch_block(B)
    has_final = final_ln is not None
    fng, fnb = final_ln if has_final else (p["ln2_g"], p["ln2_b"])  # placeholders if unused
    kernel = functools.partial(_encoder_layer_kernel, nhead=nhead, bb=bb, final_ln=has_final)
    args = (x, attn_mask, kpad,
            p["sa_w"], p["sa_b"], p["sa_wo"], p["sa_bo"],
            p["ln1_g"], p["ln1_b"],
            p["w1"], p["b1"], p["w2"], p["b2"],
            p["ln2_g"], p["ln2_b"],
            fng, fnb)
    in_specs = ([pl.BlockSpec((bb, L, E), lambda b: (b, 0, 0))]
                + [_VMEM_WHOLE] * (len(args) - 1))
    est = 2 * (sum(_nbytes(a) for a in args[1:])        # single-buffered invariants
               + 2 * 2 * bb * L * E * 2                 # double-buffered bf16 in/out blocks
               + 4 * bb * L * (8 * E + F)               # f32 intermediates + scratch slab
               + 4 * bb * nhead * L * L)                # per-head score tiles
    return pl.pallas_call(
        kernel,
        out_shape=jax.ShapeDtypeStruct((B, L, E), jnp.bfloat16),
        grid=(B // bb,),
        in_specs=in_specs,
        out_specs=pl.BlockSpec((bb, L, E), lambda b: (b, 0, 0)),
        scratch_shapes=[pltpu.VMEM((bb * L, E), jnp.float32)],
        compiler_params=_compiler_params(("parallel",), est),
    )(*args)


def decoder_layer_call(x, memory, tgt_am, tgt_kp, mem_kp, p, nhead, final_ln=None):
    B, Lt, E = x.shape
    Ls = memory.shape[1]
    F = p["w1"].shape[1]
    bb = _pick_batch_block(B)
    has_final = final_ln is not None
    fng, fnb = final_ln if has_final else (p["ln3_g"], p["ln3_b"])
    kernel = functools.partial(_decoder_layer_kernel, nhead=nhead, bb=bb, final_ln=has_final)
    args = (x, memory, tgt_am, tgt_kp, mem_kp,
            p["sa_w"], p["sa_b"], p["sa_wo"], p["sa_bo"],
            p["ln1_g"], p["ln1_b"],
            p["ca_w"], p["ca_b"], p["ca_wo"], p["ca_bo"],
            p["ln2_g"], p["ln2_b"],
            p["w1"], p["b1"], p["w2"], p["b2"],
            p["ln3_g"], p["ln3_b"],
            fng, fnb)
    in_specs = ([pl.BlockSpec((bb, Lt, E), lambda b: (b, 0, 0)),
                 pl.BlockSpec((bb, Ls, E), lambda b: (b, 0, 0))]
                + [_VMEM_WHOLE] * (len(args) - 2))
    est = 2 * (sum(_nbytes(a) for a in args[2:])
               + 2 * 2 * bb * (Lt + Ls) * E * 2
               + 4 * bb * Lt * (10 * E + F) + 4 * bb * Ls * 2 * E
               + 4 * bb * nhead * Lt * max(Lt, Ls))
    return pl.pallas_call(
        kernel,
        out_shape=jax.ShapeDtypeStruct((B, Lt, E), jnp.bfloat16),
        grid=(B // bb,),
        in_specs=in_specs,
        out_specs=pl.BlockSpec((bb, Lt, E), lambda b: (b, 0, 0)),
        scratch_shapes=[pltpu.VMEM((bb * Lt, E), jnp.float32)],
        compiler_params=_compiler_params(("parallel",), est),
    )(*args)


def generator_call(x2d, w, wb, *, tm=256, tn=512):
    """Tiled [M,E](bf16) @ [E,Vpad](bf16) + bias.  Grid is (vocab-outer, rows-inner) so each
    weight column block is DMA'd from HBM exactly once (block index constant over the inner
    row sweep); Vpad is a multiple of 128 for unmasked lane-dense stores."""
    M, E = x2d.shape
    Np = w.shape[1]
    tm = min(tm, M)
    tn = min(tn, Np)
    grid = (pl.cdiv(Np, tn), pl.cdiv(M, tm))
    est = 2 * (2 * (tm * E * 2 + E * tn * 2 + tn * 4 + tm * tn * 4))
    return pl.pallas_call(
        _gen_kernel,
        out_shape=jax.ShapeDtypeStruct((M, Np), jnp.float32),
        grid=grid,
        in_specs=[pl.BlockSpec((tm, E), lambda j, i: (i, 0)),
                  pl.BlockSpec((E, tn), lambda j, i: (0, j)),
                  pl.BlockSpec((1, tn), lambda j, i: (0, j))],
        out_specs=pl.BlockSpec((tm, tn), lambda j, i: (i, j)),
        compiler_params=_compiler_params(("parallel", "arbitrary"), est),
    )(x2d, w, wb)


# ---------------------------------------------------------------------------
# Forward pass (glue: embeddings, positional encoding, mask prep)
# ---------------------------------------------------------------------------

def _attn_mask_to_additive(m):
    if m.dtype == jnp.bool_:
        return jnp.where(m, NEG, 0.0).astype(jnp.float32)
    return jnp.maximum(m.astype(jnp.float32), NEG)   # clamp -inf -> -1e30


def _pad_mask_to_additive(m):
    return jnp.where(m, NEG, 0.0).astype(jnp.float32)


def seq2seq_forward(params, cfg, src, trg, src_mask, tgt_mask,
                    src_padding_mask, tgt_padding_mask, memory_key_padding_mask):
    E = cfg["emb_size"]
    nhead = cfg["nhead"]
    V = cfg["tgt_vocab_size"]
    S, B = src.shape
    T = trg.shape[0]

    # TODO(synk): dropout (positional-encoding + sublayer dropouts) is identity (eval mode).
    # Batch-first internal layout (B, L, E); inter-layer activations stored bf16.
    src_emb = (jnp.take(params["src_emb"], src.T, axis=0) * math.sqrt(E)
               + params["pe"][None, :S, :]).astype(jnp.bfloat16)
    tgt_emb = (jnp.take(params["tgt_emb"], trg.T, axis=0) * math.sqrt(E)
               + params["pe"][None, :T, :]).astype(jnp.bfloat16)

    src_am = _attn_mask_to_additive(src_mask)                  # (S, S)
    tgt_am = _attn_mask_to_additive(tgt_mask)                  # (T, T)
    src_kp = _pad_mask_to_additive(src_padding_mask)           # (B, S)
    tgt_kp = _pad_mask_to_additive(tgt_padding_mask)           # (B, T)
    mem_kp = _pad_mask_to_additive(memory_key_padding_mask)    # (B, S)

    # Encoder stack; final encoder LayerNorm fused into the last layer's kernel.
    n_enc = len(params["enc_layers"])
    assert n_enc >= 1 and len(params["dec_layers"]) >= 1
    memory = src_emb
    for li, lp in enumerate(params["enc_layers"]):
        fl = ((params["enc_norm_g"], params["enc_norm_b"]) if li == n_enc - 1 else None)
        memory = encoder_layer_call(memory, src_am, src_kp, lp, nhead, final_ln=fl)

    # Decoder stack; final decoder LayerNorm fused into the last layer's kernel.
    n_dec = len(params["dec_layers"])
    x = tgt_emb
    for li, lp in enumerate(params["dec_layers"]):
        fl = ((params["dec_norm_g"], params["dec_norm_b"]) if li == n_dec - 1 else None)
        x = decoder_layer_call(x, memory, tgt_am, tgt_kp, mem_kp, lp, nhead, final_ln=fl)

    logits = generator_call(x.reshape(B * T, E), params["gen_w"], params["gen_b"])
    logits = logits.reshape(B, T, -1)[:, :, :V]
    return logits.transpose(1, 0, 2)                            # (T, B, V) seq-first


# ---------------------------------------------------------------------------
# Deterministic parameter initialization (synthetic; shapes follow the nn.Module,
# stored pre-transposed as x @ W and pre-cast to bf16 for the MXU)
# ---------------------------------------------------------------------------

def _round_up(x, m):
    return (x + m - 1) // m * m


def positional_encoding_table(maxlen, E):
    den = jnp.exp(-jnp.arange(0, E, 2, dtype=jnp.float32) * math.log(10000.0) / E)
    pos = jnp.arange(maxlen, dtype=jnp.float32).reshape(maxlen, 1)
    pe = jnp.zeros((maxlen, E), jnp.float32)
    pe = pe.at[:, 0::2].set(jnp.sin(pos * den))
    pe = pe.at[:, 1::2].set(jnp.cos(pos * den))
    return pe


def init_params(cfg, key):
    E, F = cfg["emb_size"], cfg["dim_feedforward"]
    Vt = cfg["tgt_vocab_size"]
    Vt_pad = _round_up(Vt, 128)   # lane-dense generator output
    keys = iter(jax.random.split(key, 1024))
    bf16 = jnp.bfloat16

    def nrm(shape, scale=0.05, dtype=jnp.float32):
        return (scale * jax.random.normal(next(keys), shape)).astype(dtype)

    def ones(n):
        return jnp.ones((1, n), jnp.float32)

    def zeros(n):
        return jnp.zeros((1, n), jnp.float32)

    def mha_p(prefix):
        return {prefix + "_w": nrm((E, 3 * E), dtype=bf16),   # fused in_proj (x @ W layout)
                prefix + "_b": nrm((1, 3 * E)),
                prefix + "_wo": nrm((E, E), dtype=bf16),
                prefix + "_bo": nrm((1, E))}

    def ffn_p():
        return dict(w1=nrm((E, F), dtype=bf16), b1=nrm((1, F)),
                    w2=nrm((F, E), dtype=bf16), b2=nrm((1, E)))

    def enc_layer_p():
        d = {}
        d.update(mha_p("sa"))
        d.update(ffn_p())
        d.update(ln1_g=ones(E), ln1_b=zeros(E), ln2_g=ones(E), ln2_b=zeros(E))
        return d

    def dec_layer_p():
        d = {}
        d.update(mha_p("sa"))
        d.update(mha_p("ca"))
        d.update(ffn_p())
        d.update(ln1_g=ones(E), ln1_b=zeros(E),
                 ln2_g=ones(E), ln2_b=zeros(E),
                 ln3_g=ones(E), ln3_b=zeros(E))
        return d

    gen_w = jnp.zeros((E, Vt_pad), jnp.float32).at[:, :Vt].set(nrm((E, Vt))).astype(bf16)
    gen_b = jnp.zeros((1, Vt_pad), jnp.float32).at[:, :Vt].set(nrm((1, Vt)))

    return dict(
        src_emb=nrm((cfg["src_vocab_size"], E), 1.0),
        tgt_emb=nrm((Vt, E), 1.0),
        pe=positional_encoding_table(cfg["maxlen"], E),
        enc_layers=[enc_layer_p() for _ in range(cfg["num_encoder_layers"])],
        dec_layers=[dec_layer_p() for _ in range(cfg["num_decoder_layers"])],
        enc_norm_g=ones(E), enc_norm_b=zeros(E),
        dec_norm_g=ones(E), dec_norm_b=zeros(E),
        gen_w=gen_w, gen_b=gen_b,
    )


# ---------------------------------------------------------------------------
# Demo
# ---------------------------------------------------------------------------

if __name__ == "__main__":
    # NOTE: tiny demo shapes (E=32, hd=8, L<=10) are for functional validation only; for
    # representative perf, E / head_dim / F / seq tiles should be 128-lane / 8-sublane dense.
    cfg = dict(num_encoder_layers=2, num_decoder_layers=2, emb_size=32, nhead=4,
               src_vocab_size=19, tgt_vocab_size=13, dim_feedforward=64,
               dropout=0.1, maxlen=64)

    key = jax.random.PRNGKey(0)
    pkey, skey, tkey = jax.random.split(key, 3)
    params = init_params(cfg, pkey)

    S, T, B = 10, 8, 2
    src = jax.random.randint(skey, (S, B), 0, cfg["src_vocab_size"], dtype=jnp.int32)
    trg = jax.random.randint(tkey, (T, B), 0, cfg["tgt_vocab_size"], dtype=jnp.int32)

    src_mask = jnp.zeros((S, S), jnp.float32)
    tgt_mask = jnp.where(jnp.triu(jnp.ones((T, T), dtype=bool), k=1),
                         -jnp.inf, 0.0).astype(jnp.float32)
    src_padding_mask = jnp.zeros((B, S), dtype=bool).at[0, S - 2:].set(True)
    tgt_padding_mask = jnp.zeros((B, T), dtype=bool).at[0, T - 1:].set(True)
    memory_key_padding_mask = src_padding_mask

    @jax.jit
    def run(p, src, trg, src_mask, tgt_mask, spm, tpm, mkpm):
        return seq2seq_forward(p, cfg, src, trg, src_mask, tgt_mask, spm, tpm, mkpm)

    logits = run(params, src, trg, src_mask, tgt_mask,
                 src_padding_mask, tgt_padding_mask, memory_key_padding_mask)
    logits = jax.block_until_ready(logits)

    assert logits.shape == (T, B, cfg["tgt_vocab_size"]), logits.shape
    assert logits.dtype == jnp.float32
    assert bool(jnp.all(jnp.isfinite(logits)))
    print("KERNEL_OK")
</pallas_src>

<mosaic_0001>
module attributes {stable_mosaic.version = 11 : i64} {
  func.func @_encoder_layer_kernel(%arg0: i32, %arg1: memref<1x10x32xbf16, #tpu.memory_space<vmem>>, %arg2: memref<10x10xf32, #tpu.memory_space<vmem>>, %arg3: memref<2x10xf32, #tpu.memory_space<vmem>>, %arg4: memref<32x96xbf16, #tpu.memory_space<vmem>>, %arg5: memref<1x96xf32, #tpu.memory_space<vmem>>, %arg6: memref<32x32xbf16, #tpu.memory_space<vmem>>, %arg7: memref<1x32xf32, #tpu.memory_space<vmem>>, %arg8: memref<1x32xf32, #tpu.memory_space<vmem>>, %arg9: memref<1x32xf32, #tpu.memory_space<vmem>>, %arg10: memref<32x64xbf16, #tpu.memory_space<vmem>>, %arg11: memref<1x64xf32, #tpu.memory_space<vmem>>, %arg12: memref<64x32xbf16, #tpu.memory_space<vmem>>, %arg13: memref<1x32xf32, #tpu.memory_space<vmem>>, %arg14: memref<1x32xf32, #tpu.memory_space<vmem>>, %arg15: memref<1x32xf32, #tpu.memory_space<vmem>>, %arg16: memref<1x32xf32, #tpu.memory_space<vmem>>, %arg17: memref<1x32xf32, #tpu.memory_space<vmem>>, %arg18: memref<1x10x32xbf16, #tpu.memory_space<vmem>>, %arg19: memref<10x32xf32, #tpu.memory_space<vmem>>) attributes {dimension_semantics = [#tpu.dimension_semantics<parallel>], iteration_bounds = array<i64: 2>, scalar_prefetch = 0 : i64, scratch_operands = 1 : i64, tpu.core_type = #tpu.core_type<tc>, window_params = [{transform_indices = @transform_0, window_bounds = array<i64: 1, 10, 32>}, {pipeline_mode = #tpu.pipeline_mode<synchronous>, transform_indices = @transform_1, window_bounds = array<i64: 10, 10>}, {pipeline_mode = #tpu.pipeline_mode<synchronous>, transform_indices = @transform_2, window_bounds = array<i64: 2, 10>}, {pipeline_mode = #tpu.pipeline_mode<synchronous>, transform_indices = @transform_3, window_bounds = array<i64: 32, 96>}, {pipeline_mode = #tpu.pipeline_mode<synchronous>, transform_indices = @transform_4, window_bounds = array<i64: 1, 96>}, {pipeline_mode = #tpu.pipeline_mode<synchronous>, transform_indices = @transform_5, window_bounds = array<i64: 32, 32>}, {pipeline_mode = #tpu.pipeline_mode<synchronous>, transform_indices = @transform_6, window_bounds = array<i64: 1, 32>}, {pipeline_mode = #tpu.pipeline_mode<synchronous>, transform_indices = @transform_7, window_bounds = array<i64: 1, 32>}, {pipeline_mode = #tpu.pipeline_mode<synchronous>, transform_indices = @transform_8, window_bounds = array<i64: 1, 32>}, {pipeline_mode = #tpu.pipeline_mode<synchronous>, transform_indices = @transform_9, window_bounds = array<i64: 32, 64>}, {pipeline_mode = #tpu.pipeline_mode<synchronous>, transform_indices = @transform_10, window_bounds = array<i64: 1, 64>}, {pipeline_mode = #tpu.pipeline_mode<synchronous>, transform_indices = @transform_11, window_bounds = array<i64: 64, 32>}, {pipeline_mode = #tpu.pipeline_mode<synchronous>, transform_indices = @transform_12, window_bounds = array<i64: 1, 32>}, {pipeline_mode = #tpu.pipeline_mode<synchronous>, transform_indices = @transform_13, window_bounds = array<i64: 1, 32>}, {pipeline_mode = #tpu.pipeline_mode<synchronous>, transform_indices = @transform_14, window_bounds = array<i64: 1, 32>}, {pipeline_mode = #tpu.pipeline_mode<synchronous>, transform_indices = @transform_15, window_bounds = array<i64: 1, 32>}, {pipeline_mode = #tpu.pipeline_mode<synchronous>, transform_indices = @transform_16, window_bounds = array<i64: 1, 32>}, {transform_indices = @transform_17, window_bounds = array<i64: 1, 10, 32>}]} {
    %c0 = arith.constant 0 : index
    %c0_0 = arith.constant 0 : index
    %c0_1 = arith.constant 0 : index
    %0 = vector.load %arg1[%c0, %c0_0, %c0_1] : memref<1x10x32xbf16, #tpu.memory_space<vmem>>, vector<1x10x32xbf16>
    %1 = vector.shape_cast %0 : vector<1x10x32xbf16> to vector<10x32xbf16>
    %2 = arith.extf %1 : vector<10x32xbf16> to vector<10x32xf32>
    %c0_2 = arith.constant 0 : index
    %c0_3 = arith.constant 0 : index
    %3 = vector.load %arg4[%c0_2, %c0_3] : memref<32x96xbf16, #tpu.memory_space<vmem>>, vector<32x96xbf16>
    %cst = arith.constant dense<0.000000e+00> : vector<10x96xf32>
    %4 = tpu.matmul %1, %3, %cst {dimension_numbers = #tpu.dot_dimension_numbers<[1], [0], [0], [1], [0, 0, 1, 1], [], []>} : vector<10x32xbf16>, vector<32x96xbf16>, vector<10x96xf32> -> vector<10x96xf32>
    %c0_4 = arith.constant 0 : index
    %c0_5 = arith.constant 0 : index
    %5 = vector.load %arg5[%c0_4, %c0_5] : memref<1x96xf32, #tpu.memory_space<vmem>>, vector<1x96xf32>
    %6 = vector.broadcast %5 : vector<1x96xf32> to vector<10x96xf32>
    %7 = arith.addf %4, %6 : vector<10x96xf32>
    %c1_i32 = arith.constant 1 : i32
    %8 = arith.muli %arg0, %c1_i32 : i32
    %c0_6 = arith.constant 0 : index
    %c0_7 = arith.constant 0 : index
    %9 = vector.load %arg2[%c0_6, %c0_7] : memref<10x10xf32, #tpu.memory_space<vmem>>, vector<10x10xf32>
    %c0_i32 = arith.constant 0 : i32
    %10 = arith.addi %8, %c0_i32 : i32
    %11 = arith.index_cast %10 : i32 to index
    %c0_8 = arith.constant 0 : index
    %12 = vector.load %arg3[%11, %c0_8] : memref<2x10xf32, #tpu.memory_space<vmem>>, vector<1x10xf32>
    %13 = vector.broadcast %12 : vector<1x10xf32> to vector<10x10xf32>
    %14 = arith.addf %9, %13 : vector<10x10xf32>
    %15 = vector.extract_strided_slice %7 {offsets = [0, 0], sizes = [10, 32], strides = [1, 1]} : vector<10x96xf32> to vector<10x32xf32>
    %16 = vector.extract_strided_slice %7 {offsets = [0, 32], sizes = [10, 32], strides = [1, 1]} : vector<10x96xf32> to vector<10x32xf32>
    %17 = vector.extract_strided_slice %7 {offsets = [0, 64], sizes = [10, 32], strides = [1, 1]} : vector<10x96xf32> to vector<10x32xf32>
    %18 = vector.extract_strided_slice %15 {offsets = [0, 0], sizes = [10, 8], strides = [1, 1]} : vector<10x32xf32> to vector<10x8xf32>
    %cst_9 = arith.constant 0.353553385 : f32
    %19 = vector.broadcast %cst_9 : f32 to vector<10x8xf32>
    %20 = arith.mulf %18, %19 : vector<10x8xf32>
    %21 = arith.truncf %20 : vector<10x8xf32> to vector<10x8xbf16>
    %22 = vector.extract_strided_slice %16 {offsets = [0, 0], sizes = [10, 8], strides = [1, 1]} : vector<10x32xf32> to vector<10x8xf32>
    %23 = arith.truncf %22 : vector<10x8xf32> to vector<10x8xbf16>
    %24 = vector.extract_strided_slice %17 {offsets = [0, 0], sizes = [10, 8], strides = [1, 1]} : vector<10x32xf32> to vector<10x8xf32>
    %25 = arith.truncf %24 : vector<10x8xf32> to vector<10x8xbf16>
    %cst_10 = arith.constant dense<0.000000e+00> : vector<10x10xf32>
    %26 = tpu.matmul %21, %23, %cst_10 {dimension_numbers = #tpu.dot_dimension_numbers<[1], [1], [0], [0], [0, 0, 1, 0], [], []>} : vector<10x8xbf16>, vector<10x8xbf16>, vector<10x10xf32> -> vector<10x10xf32>
    %27 = arith.addf %26, %14 : vector<10x10xf32>
    %cst_11 = arith.constant dense<0xFF800000> : vector<10xf32>
    %28 = vector.multi_reduction <maximumf>, %27, %cst_11 [1] : vector<10x10xf32> to vector<10xf32>
    %29 = vector.shape_cast %28 : vector<10xf32> to vector<10x1xf32>
    %30 = vector.broadcast %29 : vector<10x1xf32> to vector<10x10xf32>
    %31 = arith.subf %27, %30 : vector<10x10xf32>
    %32 = math.exp %31 : vector<10x10xf32>
    %cst_12 = arith.constant dense<0.000000e+00> : vector<10xf32>
    %33 = vector.multi_reduction <add>, %32, %cst_12 [1] : vector<10x10xf32> to vector<10xf32>
    %34 = vector.shape_cast %33 : vector<10xf32> to vector<10x1xf32>
    %35 = tpu.reciprocal %34 {approx = true} : vector<10x1xf32> -> vector<10x1xf32>
    %36 = vector.broadcast %35 : vector<10x1xf32> to vector<10x10xf32>
    %37 = arith.mulf %32, %36 : vector<10x10xf32>
    %38 = arith.truncf %37 : vector<10x10xf32> to vector<10x10xbf16>
    %cst_13 = arith.constant dense<0.000000e+00> : vector<10x8xf32>
    %39 = tpu.matmul %38, %25, %cst_13 {dimension_numbers = #tpu.dot_dimension_numbers<[1], [0], [0], [1], [0, 0, 1, 1], [], []>} : vector<10x10xbf16>, vector<10x8xbf16>, vector<10x8xf32> -> vector<10x8xf32>
    %c0_14 = arith.constant 0 : index
    %c0_15 = arith.constant 0 : index
    %40 = vector.load %arg19[%c0_14, %c0_15] : memref<10x32xf32, #tpu.memory_space<vmem>>, vector<10x8xf32>
    tpu.vector_store %arg19[%c0_14, %c0_15], %39 {strides = array<i32>} : memref<10x32xf32, #tpu.memory_space<vmem>>, vector<10x8xf32>,
    %41 = vector.extract_strided_slice %15 {offsets = [0, 8], sizes = [10, 8], strides = [1, 1]} : vector<10x32xf32> to vector<10x8xf32>
    %cst_16 = arith.constant 0.353553385 : f32
    %42 = vector.broadcast %cst_16 : f32 to vector<10x8xf32>
    %43 = arith.mulf %41, %42 : vector<10x8xf32>
    %44 = arith.truncf %43 : vector<10x8xf32> to vector<10x8xbf16>
    %45 = vector.extract_strided_slice %16 {offsets = [0, 8], sizes = [10, 8], strides = [1, 1]} : vector<10x32xf32> to vector<10x8xf32>
    %46 = arith.truncf %45 : vector<10x8xf32> to vector<10x8xbf16>
    %47 = vector.extract_strided_slice %17 {offsets = [0, 8], sizes = [10, 8], strides = [1, 1]} : vector<10x32xf32> to vector<10x8xf32>
    %48 = arith.truncf %47 : vector<10x8xf32> to vector<10x8xbf16>
    %cst_17 = arith.constant dense<0.000000e+00> : vector<10x10xf32>
    %49 = tpu.matmul %44, %46, %cst_17 {dimension_numbers = #tpu.dot_dimension_numbers<[1], [1], [0], [0], [0, 0, 1, 0], [], []>} : vector<10x8xbf16>, vector<10x8xbf16>, vector<10x10xf32> -> vector<10x10xf32>
    %50 = arith.addf %49, %14 : vector<10x10xf32>
    %cst_18 = arith.constant dense<0xFF800000> : vector<10xf32>
    %51 = vector.multi_reduction <maximumf>, %50, %cst_18 [1] : vector<10x10xf32> to vector<10xf32>
    %52 = vector.shape_cast %51 : vector<10xf32> to vector<10x1xf32>
    %53 = vector.broadcast %52 : vector<10x1xf32> to vector<10x10xf32>
    %54 = arith.subf %50, %53 : vector<10x10xf32>
    %55 = math.exp %54 : vector<10x10xf32>
    %cst_19 = arith.constant dense<0.000000e+00> : vector<10xf32>
    %56 = vector.multi_reduction <add>, %55, %cst_19 [1] : vector<10x10xf32> to vector<10xf32>
    %57 = vector.shape_cast %56 : vector<10xf32> to vector<10x1xf32>
    %58 = tpu.reciprocal %57 {approx = true} : vector<10x1xf32> -> vector<10x1xf32>
    %59 = vector.broadcast %58 : vector<10x1xf32> to vector<10x10xf32>
    %60 = arith.mulf %55, %59 : vector<10x10xf32>
    %61 = arith.truncf %60 : vector<10x10xf32> to vector<10x10xbf16>
    %cst_20 = arith.constant dense<0.000000e+00> : vector<10x8xf32>
    %62 = tpu.matmul %61, %48, %cst_20 {dimension_numbers = #tpu.dot_dimension_numbers<[1], [0], [0], [1], [0, 0, 1, 1], [], []>} : vector<10x10xbf16>, vector<10x8xbf16>, vector<10x8xf32> -> vector<10x8xf32>
    %c0_21 = arith.constant 0 : index
    %c8 = arith.constant 8 : index
    %63 = vector.load %arg19[%c0_21, %c8] : memref<10x32xf32, #tpu.memory_space<vmem>>, vector<10x8xf32>
    tpu.vector_store %arg19[%c0_21, %c8], %62 {strides = array<i32>} : memref<10x32xf32, #tpu.memory_space<vmem>>, vector<10x8xf32>,
    %64 = vector.extract_strided_slice %15 {offsets = [0, 16], sizes = [10, 8], strides = [1, 1]} : vector<10x32xf32> to vector<10x8xf32>
    %cst_22 = arith.constant 0.353553385 : f32
    %65 = vector.broadcast %cst_22 : f32 to vector<10x8xf32>
    %66 = arith.mulf %64, %65 : vector<10x8xf32>
    %67 = arith.truncf %66 : vector<10x8xf32> to vector<10x8xbf16>
    %68 = vector.extract_strided_slice %16 {offsets = [0, 16], sizes = [10, 8], strides = [1, 1]} : vector<10x32xf32> to vector<10x8xf32>
    %69 = arith.truncf %68 : vector<10x8xf32> to vector<10x8xbf16>
    %70 = vector.extract_strided_slice %17 {offsets = [0, 16], sizes = [10, 8], strides = [1, 1]} : vector<10x32xf32> to vector<10x8xf32>
    %71 = arith.truncf %70 : vector<10x8xf32> to vector<10x8xbf16>
    %cst_23 = arith.constant dense<0.000000e+00> : vector<10x10xf32>
    %72 = tpu.matmul %67, %69, %cst_23 {dimension_numbers = #tpu.dot_dimension_numbers<[1], [1], [0], [0], [0, 0, 1, 0], [], []>} : vector<10x8xbf16>, vector<10x8xbf16>, vector<10x10xf32> -> vector<10x10xf32>
    %73 = arith.addf %72, %14 : vector<10x10xf32>
    %cst_24 = arith.constant dense<0xFF800000> : vector<10xf32>
    %74 = vector.multi_reduction <maximumf>, %73, %cst_24 [1] : vector<10x10xf32> to vector<10xf32>
    %75 = vector.shape_cast %74 : vector<10xf32> to vector<10x1xf32>
    %76 = vector.broadcast %75 : vector<10x1xf32> to vector<10x10xf32>
    %77 = arith.subf %73, %76 : vector<10x10xf32>
    %78 = math.exp %77 : vector<10x10xf32>
    %cst_25 = arith.constant dense<0.000000e+00> : vector<10xf32>
    %79 = vector.multi_reduction <add>, %78, %cst_25 [1] : vector<10x10xf32> to vector<10xf32>
    %80 = vector.shape_cast %79 : vector<10xf32> to vector<10x1xf32>
    %81 = tpu.reciprocal %80 {approx = true} : vector<10x1xf32> -> vector<10x1xf32>
    %82 = vector.broadcast %81 : vector<10x1xf32> to vector<10x10xf32>
    %83 = arith.mulf %78, %82 : vector<10x10xf32>
    %84 = arith.truncf %83 : vector<10x10xf32> to vector<10x10xbf16>
    %cst_26 = arith.constant dense<0.000000e+00> : vector<10x8xf32>
    %85 = tpu.matmul %84, %71, %cst_26 {dimension_numbers = #tpu.dot_dimension_numbers<[1], [0], [0], [1], [0, 0, 1, 1], [], []>} : vector<10x10xbf16>, vector<10x8xbf16>, vector<10x8xf32> -> vector<10x8xf32>
    %c0_27 = arith.constant 0 : index
    %c16 = arith.constant 16 : index
    %86 = vector.load %arg19[%c0_27, %c16] : memref<10x32xf32, #tpu.memory_space<vmem>>, vector<10x8xf32>
    tpu.vector_store %arg19[%c0_27, %c16], %85 {strides = array<i32>} : memref<10x32xf32, #tpu.memory_space<vmem>>, vector<10x8xf32>,
    %87 = vector.extract_strided_slice %15 {offsets = [0, 24], sizes = [10, 8], strides = [1, 1]} : vector<10x32xf32> to vector<10x8xf32>
    %cst_28 = arith.constant 0.353553385 : f32
    %88 = vector.broadcast %cst_28 : f32 to vector<10x8xf32>
    %89 = arith.mulf %87, %88 : vector<10x8xf32>
    %90 = arith.truncf %89 : vector<10x8xf32> to vector<10x8xbf16>
    %91 = vector.extract_strided_slice %16 {offsets = [0, 24], sizes = [10, 8], strides = [1, 1]} : vector<10x32xf32> to vector<10x8xf32>
    %92 = arith.truncf %91 : vector<10x8xf32> to vector<10x8xbf16>
    %93 = vector.extract_strided_slice %17 {offsets = [0, 24], sizes = [10, 8], strides = [1, 1]} : vector<10x32xf32> to vector<10x8xf32>
    %94 = arith.truncf %93 : vector<10x8xf32> to vector<10x8xbf16>
    %cst_29 = arith.constant dense<0.000000e+00> : vector<10x10xf32>
    %95 = tpu.matmul %90, %92, %cst_29 {dimension_numbers = #tpu.dot_dimension_numbers<[1], [1], [0], [0], [0, 0, 1, 0], [], []>} : vector<10x8xbf16>, vector<10x8xbf16>, vector<10x10xf32> -> vector<10x10xf32>
    %96 = arith.addf %95, %14 : vector<10x10xf32>
    %cst_30 = arith.constant dense<0xFF800000> : vector<10xf32>
    %97 = vector.multi_reduction <maximumf>, %96, %cst_30 [1] : vector<10x10xf32> to vector<10xf32>
    %98 = vector.shape_cast %97 : vector<10xf32> to vector<10x1xf32>
    %99 = vector.broadcast %98 : vector<10x1xf32> to vector<10x10xf32>
    %100 = arith.subf %96, %99 : vector<10x10xf32>
    %101 = math.exp %100 : vector<10x10xf32>
    %cst_31 = arith.constant dense<0.000000e+00> : vector<10xf32>
    %102 = vector.multi_reduction <add>, %101, %cst_31 [1] : vector<10x10xf32> to vector<10xf32>
    %103 = vector.shape_cast %102 : vector<10xf32> to vector<10x1xf32>
    %104 = tpu.reciprocal %103 {approx = true} : vector<10x1xf32> -> vector<10x1xf32>
    %105 = vector.broadcast %104 : vector<10x1xf32> to vector<10x10xf32>
    %106 = arith.mulf %101, %105 : vector<10x10xf32>
    %107 = arith.truncf %106 : vector<10x10xf32> to vector<10x10xbf16>
    %cst_32 = arith.constant dense<0.000000e+00> : vector<10x8xf32>
    %108 = tpu.matmul %107, %94, %cst_32 {dimension_numbers = #tpu.dot_dimension_numbers<[1], [0], [0], [1], [0, 0, 1, 1], [], []>} : vector<10x10xbf16>, vector<10x8xbf16>, vector<10x8xf32> -> vector<10x8xf32>
    %c0_33 = arith.constant 0 : index
    %c24 = arith.constant 24 : index
    %109 = vector.load %arg19[%c0_33, %c24] : memref<10x32xf32, #tpu.memory_space<vmem>>, vector<10x8xf32>
    tpu.vector_store %arg19[%c0_33, %c24], %108 {strides = array<i32>} : memref<10x32xf32, #tpu.memory_space<vmem>>, vector<10x8xf32>,
    %c0_34 = arith.constant 0 : index
    %c0_35 = arith.constant 0 : index
    %110 = vector.load %arg19[%c0_34, %c0_35] : memref<10x32xf32, #tpu.memory_space<vmem>>, vector<10x32xf32>
    %111 = arith.truncf %110 : vector<10x32xf32> to vector<10x32xbf16>
    %c0_36 = arith.constant 0 : index
    %c0_37 = arith.constant 0 : index
    %112 = vector.load %arg6[%c0_36, %c0_37] : memref<32x32xbf16, #tpu.memory_space<vmem>>, vector<32x32xbf16>
    %cst_38 = arith.constant dense<0.000000e+00> : vector<10x32xf32>
    %113 = tpu.matmul %111, %112, %cst_38 {dimension_numbers = #tpu.dot_dimension_numbers<[1], [0], [0], [1], [0, 0, 1, 1], [], []>} : vector<10x32xbf16>, vector<32x32xbf16>, vector<10x32xf32> -> vector<10x32xf32>
    %c0_39 = arith.constant 0 : index
    %c0_40 = arith.constant 0 : index
    %114 = vector.load %arg7[%c0_39, %c0_40] : memref<1x32xf32, #tpu.memory_space<vmem>>, vector<1x32xf32>
    %115 = vector.broadcast %114 : vector<1x32xf32> to vector<10x32xf32>
    %116 = arith.addf %113, %115 : vector<10x32xf32>
    %117 = arith.addf %2, %116 : vector<10x32xf32>
    %c0_41 = arith.constant 0 : index
    %c0_42 = arith.constant 0 : index
    %118 = vector.load %arg8[%c0_41, %c0_42] : memref<1x32xf32, #tpu.memory_space<vmem>>, vector<1x32xf32>
    %c0_43 = arith.constant 0 : index
    %c0_44 = arith.constant 0 : index
    %119 = vector.load %arg9[%c0_43, %c0_44] : memref<1x32xf32, #tpu.memory_space<vmem>>, vector<1x32xf32>
    %cst_45 = arith.constant dense<0.000000e+00> : vector<10xf32>
    %120 = vector.multi_reduction <add>, %117, %cst_45 [1] : vector<10x32xf32> to vector<10xf32>
    %121 = vector.shape_cast %120 : vector<10xf32> to vector<10x1xf32>
    %cst_46 = arith.constant 3.200000e+01 : f32
    %122 = vector.broadcast %cst_46 : f32 to vector<10x1xf32>
    %123 = arith.divf %121, %122 : vector<10x1xf32>
    %124 = vector.broadcast %123 : vector<10x1xf32> to vector<10x32xf32>
    %125 = arith.subf %117, %124 : vector<10x32xf32>
    %126 = arith.mulf %125, %125 : vector<10x32xf32>
    %cst_47 = arith.constant dense<0.000000e+00> : vector<10xf32>
    %127 = vector.multi_reduction <add>, %126, %cst_47 [1] : vector<10x32xf32> to vector<10xf32>
    %128 = vector.shape_cast %127 : vector<10xf32> to vector<10x1xf32>
    %cst_48 = arith.constant 3.200000e+01 : f32
    %129 = vector.broadcast %cst_48 : f32 to vector<10x1xf32>
    %130 = arith.divf %128, %129 : vector<10x1xf32>
    %131 = vector.broadcast %123 : vector<10x1xf32> to vector<10x32xf32>
    %132 = arith.subf %117, %131 : vector<10x32xf32>
    %cst_49 = arith.constant 9.99999974E-6 : f32
    %133 = vector.broadcast %cst_49 : f32 to vector<10x1xf32>
    %134 = arith.addf %130, %133 : vector<10x1xf32>
    %135 = math.rsqrt %134 : vector<10x1xf32>
    %136 = vector.broadcast %135 : vector<10x1xf32> to vector<10x32xf32>
    %137 = arith.mulf %132, %136 : vector<10x32xf32>
    %138 = vector.broadcast %118 : vector<1x32xf32> to vector<10x32xf32>
    %139 = arith.mulf %137, %138 : vector<10x32xf32>
    %140 = vector.broadcast %119 : vector<1x32xf32> to vector<10x32xf32>
    %141 = arith.addf %139, %140 : vector<10x32xf32>
    %142 = arith.truncf %141 : vector<10x32xf32> to vector<10x32xbf16>
    %c0_50 = arith.constant 0 : index
    %c0_51 = arith.constant 0 : index
    %143 = vector.load %arg10[%c0_50, %c0_51] : memref<32x64xbf16, #tpu.memory_space<vmem>>, vector<32x64xbf16>
    %cst_52 = arith.constant dense<0.000000e+00> : vector<10x64xf32>
    %144 = tpu.matmul %142, %143, %cst_52 {dimension_numbers = #tpu.dot_dimension_numbers<[1], [0], [0], [1], [0, 0, 1, 1], [], []>} : vector<10x32xbf16>, vector<32x64xbf16>, vector<10x64xf32> -> vector<10x64xf32>
    %c0_53 = arith.constant 0 : index
    %c0_54 = arith.constant 0 : index
    %145 = vector.load %arg11[%c0_53, %c0_54] : memref<1x64xf32, #tpu.memory_space<vmem>>, vector<1x64xf32>
    %146 = vector.broadcast %145 : vector<1x64xf32> to vector<10x64xf32>
    %147 = arith.addf %144, %146 : vector<10x64xf32>
    %cst_55 = arith.constant 0.000000e+00 : f32
    %148 = vector.broadcast %cst_55 : f32 to vector<10x64xf32>
    %149 = arith.maximumf %147, %148 : vector<10x64xf32>
    %150 = arith.truncf %149 : vector<10x64xf32> to vector<10x64xbf16>
    %c0_56 = arith.constant 0 : index
    %c0_57 = arith.constant 0 : index
    %151 = vector.load %arg12[%c0_56, %c0_57] : memref<64x32xbf16, #tpu.memory_space<vmem>>, vector<64x32xbf16>
    %cst_58 = arith.constant dense<0.000000e+00> : vector<10x32xf32>
    %152 = tpu.matmul %150, %151, %cst_58 {dimension_numbers = #tpu.dot_dimension_numbers<[1], [0], [0], [1], [0, 0, 1, 1], [], []>} : vector<10x64xbf16>, vector<64x32xbf16>, vector<10x32xf32> -> vector<10x32xf32>
    %c0_59 = arith.constant 0 : index
    %c0_60 = arith.constant 0 : index
    %153 = vector.load %arg13[%c0_59, %c0_60] : memref<1x32xf32, #tpu.memory_space<vmem>>, vector<1x32xf32>
    %154 = vector.broadcast %153 : vector<1x32xf32> to vector<10x32xf32>
    %155 = arith.addf %152, %154 : vector<10x32xf32>
    %156 = arith.addf %141, %155 : vector<10x32xf32>
    %c0_61 = arith.constant 0 : index
    %c0_62 = arith.constant 0 : index
    %157 = vector.load %arg14[%c0_61, %c0_62] : memref<1x32xf32, #tpu.memory_space<vmem>>, vector<1x32xf32>
    %c0_63 = arith.constant 0 : index
    %c0_64 = arith.constant 0 : index
    %158 = vector.load %arg15[%c0_63, %c0_64] : memref<1x32xf32, #tpu.memory_space<vmem>>, vector<1x32xf32>
    %cst_65 = arith.constant dense<0.000000e+00> : vector<10xf32>
    %159 = vector.multi_reduction <add>, %156, %cst_65 [1] : vector<10x32xf32> to vector<10xf32>
    %160 = vector.shape_cast %159 : vector<10xf32> to vector<10x1xf32>
    %cst_66 = arith.constant 3.200000e+01 : f32
    %161 = vector.broadcast %cst_66 : f32 to vector<10x1xf32>
    %162 = arith.divf %160, %161 : vector<10x1xf32>
    %163 = vector.broadcast %162 : vector<10x1xf32> to vector<10x32xf32>
    %164 = arith.subf %156, %163 : vector<10x32xf32>
    %165 = arith.mulf %164, %164 : vector<10x32xf32>
    %cst_67 = arith.constant dense<0.000000e+00> : vector<10xf32>
    %166 = vector.multi_reduction <add>, %165, %cst_67 [1] : vector<10x32xf32> to vector<10xf32>
    %167 = vector.shape_cast %166 : vector<10xf32> to vector<10x1xf32>
    %cst_68 = arith.constant 3.200000e+01 : f32
    %168 = vector.broadcast %cst_68 : f32 to vector<10x1xf32>
    %169 = arith.divf %167, %168 : vector<10x1xf32>
    %170 = vector.broadcast %162 : vector<10x1xf32> to vector<10x32xf32>
    %171 = arith.subf %156, %170 : vector<10x32xf32>
    %cst_69 = arith.constant 9.99999974E-6 : f32
    %172 = vector.broadcast %cst_69 : f32 to vector<10x1xf32>
    %173 = arith.addf %169, %172 : vector<10x1xf32>
    %174 = math.rsqrt %173 : vector<10x1xf32>
    %175 = vector.broadcast %174 : vector<10x1xf32> to vector<10x32xf32>
    %176 = arith.mulf %171, %175 : vector<10x32xf32>
    %177 = vector.broadcast %157 : vector<1x32xf32> to vector<10x32xf32>
    %178 = arith.mulf %176, %177 : vector<10x32xf32>
    %179 = vector.broadcast %158 : vector<1x32xf32> to vector<10x32xf32>
    %180 = arith.addf %178, %179 : vector<10x32xf32>
    %c0_70 = arith.constant 0 : index
    %c0_71 = arith.constant 0 : index
    %181 = vector.load %arg16[%c0_70, %c0_71] : memref<1x32xf32, #tpu.memory_space<vmem>>, vector<1x32xf32>
    %c0_72 = arith.constant 0 : index
    %c0_73 = arith.constant 0 : index
    %182 = vector.load %arg17[%c0_72, %c0_73] : memref<1x32xf32, #tpu.memory_space<vmem>>, vector<1x32xf32>
    %cst_74 = arith.constant dense<0.000000e+00> : vector<10xf32>
    %183 = vector.multi_reduction <add>, %180, %cst_74 [1] : vector<10x32xf32> to vector<10xf32>
    %184 = vector.shape_cast %183 : vector<10xf32> to vector<10x1xf32>
    %cst_75 = arith.constant 3.200000e+01 : f32
    %185 = vector.broadcast %cst_75 : f32 to vector<10x1xf32>
    %186 = arith.divf %184, %185 : vector<10x1xf32>
    %187 = vector.broadcast %186 : vector<10x1xf32> to vector<10x32xf32>
    %188 = arith.subf %180, %187 : vector<10x32xf32>
    %189 = arith.mulf %188, %188 : vector<10x32xf32>
    %cst_76 = arith.constant dense<0.000000e+00> : vector<10xf32>
    %190 = vector.multi_reduction <add>, %189, %cst_76 [1] : vector<10x32xf32> to vector<10xf32>
    %191 = vector.shape_cast %190 : vector<10xf32> to vector<10x1xf32>
    %cst_77 = arith.constant 3.200000e+01 : f32
    %192 = vector.broadcast %cst_77 : f32 to vector<10x1xf32>
    %193 = arith.divf %191, %192 : vector<10x1xf32>
    %194 = vector.broadcast %186 : vector<10x1xf32> to vector<10x32xf32>
    %195 = arith.subf %180, %194 : vector<10x32xf32>
    %cst_78 = arith.constant 9.99999974E-6 : f32
    %196 = vector.broadcast %cst_78 : f32 to vector<10x1xf32>
    %197 = arith.addf %193, %196 : vector<10x1xf32>
    %198 = math.rsqrt %197 : vector<10x1xf32>
    %199 = vector.broadcast %198 : vector<10x1xf32> to vector<10x32xf32>
    %200 = arith.mulf %195, %199 : vector<10x32xf32>
    %201 = vector.broadcast %181 : vector<1x32xf32> to vector<10x32xf32>
    %202 = arith.mulf %200, %201 : vector<10x32xf32>
    %203 = vector.broadcast %182 : vector<1x32xf32> to vector<10x32xf32>
    %204 = arith.addf %202, %203 : vector<10x32xf32>
    %205 = vector.shape_cast %204 : vector<10x32xf32> to vector<1x10x32xf32>
    %206 = arith.truncf %205 : vector<1x10x32xf32> to vector<1x10x32xbf16>
    %c0_79 = arith.constant 0 : index
    %c0_80 = arith.constant 0 : index
    %c0_81 = arith.constant 0 : index
    %207 = vector.load %arg18[%c0_79, %c0_80, %c0_81] : memref<1x10x32xbf16, #tpu.memory_space<vmem>>, vector<1x10x32xbf16>
    tpu.vector_store %arg18[%c0_79, %c0_80, %c0_81], %206 {strides = array<i32>} : memref<1x10x32xbf16, #tpu.memory_space<vmem>>, vector<1x10x32xbf16>,
    return
  }
  func.func @transform_0(%arg0: i32) -> (i32, i32, i32) {
    %c0_i32 = arith.constant 0 : i32
    %c0_i32_0 = arith.constant 0 : i32
    %c0_i32_1 = arith.constant 0 : i32
    return %arg0, %c0_i32, %c0_i32_0 : i32, i32, i32
  }
  func.func @transform_1(%arg0: i32) -> (i32, i32) {
    %c0_i32 = arith.constant 0 : i32
    %c0_i32_0 = arith.constant 0 : i32
    %c0_i32_1 = arith.constant 0 : i32
    return %c0_i32, %c0_i32_0 : i32, i32
  }
  func.func @transform_2(%arg0: i32) -> (i32, i32) {
    %c0_i32 = arith.constant 0 : i32
    %c0_i32_0 = arith.constant 0 : i32
    %c0_i32_1 = arith.constant 0 : i32
    return %c0_i32, %c0_i32_0 : i32, i32
  }
  func.func @transform_3(%arg0: i32) -> (i32, i32) {
    %c0_i32 = arith.constant 0 : i32
    %c0_i32_0 = arith.constant 0 : i32
    %c0_i32_1 = arith.constant 0 : i32
    return %c0_i32, %c0_i32_0 : i32, i32
  }
  func.func @transform_4(%arg0: i32) -> (i32, i32) {
    %c0_i32 = arith.constant 0 : i32
    %c0_i32_0 = arith.constant 0 : i32
    %c0_i32_1 = arith.constant 0 : i32
    return %c0_i32, %c0_i32_0 : i32, i32
  }
  func.func @transform_5(%arg0: i32) -> (i32, i32) {
    %c0_i32 = arith.constant 0 : i32
    %c0_i32_0 = arith.constant 0 : i32
    %c0_i32_1 = arith.constant 0 : i32
    return %c0_i32, %c0_i32_0 : i32, i32
  }
  func.func @transform_6(%arg0: i32) -> (i32, i32) {
    %c0_i32 = arith.constant 0 : i32
    %c0_i32_0 = arith.constant 0 : i32
    %c0_i32_1 = arith.constant 0 : i32
    return %c0_i32, %c0_i32_0 : i32, i32
  }
  func.func @transform_7(%arg0: i32) -> (i32, i32) {
    %c0_i32 = arith.constant 0 : i32
    %c0_i32_0 = arith.constant 0 : i32
    %c0_i32_1 = arith.constant 0 : i32
    return %c0_i32, %c0_i32_0 : i32, i32
  }
  func.func @transform_8(%arg0: i32) -> (i32, i32) {
    %c0_i32 = arith.constant 0 : i32
    %c0_i32_0 = arith.constant 0 : i32
    %c0_i32_1 = arith.constant 0 : i32
    return %c0_i32, %c0_i32_0 : i32, i32
  }
  func.func @transform_9(%arg0: i32) -> (i32, i32) {
    %c0_i32 = arith.constant 0 : i32
    %c0_i32_0 = arith.constant 0 : i32
    %c0_i32_1 = arith.constant 0 : i32
    return %c0_i32, %c0_i32_0 : i32, i32
  }
  func.func @transform_10(%arg0: i32) -> (i32, i32) {
    %c0_i32 = arith.constant 0 : i32
    %c0_i32_0 = arith.constant 0 : i32
    %c0_i32_1 = arith.constant 0 : i32
    return %c0_i32, %c0_i32_0 : i32, i32
  }
  func.func @transform_11(%arg0: i32) -> (i32, i32) {
    %c0_i32 = arith.constant 0 : i32
    %c0_i32_0 = arith.constant 0 : i32
    %c0_i32_1 = arith.constant 0 : i32
    return %c0_i32, %c0_i32_0 : i32, i32
  }
  func.func @transform_12(%arg0: i32) -> (i32, i32) {
    %c0_i32 = arith.constant 0 : i32
    %c0_i32_0 = arith.constant 0 : i32
    %c0_i32_1 = arith.constant 0 : i32
    return %c0_i32, %c0_i32_0 : i32, i32
  }
  func.func @transform_13(%arg0: i32) -> (i32, i32) {
    %c0_i32 = arith.constant 0 : i32
    %c0_i32_0 = arith.constant 0 : i32
    %c0_i32_1 = arith.constant 0 : i32
    return %c0_i32, %c0_i32_0 : i32, i32
  }
  func.func @transform_14(%arg0: i32) -> (i32, i32) {
    %c0_i32 = arith.constant 0 : i32
    %c0_i32_0 = arith.constant 0 : i32
    %c0_i32_1 = arith.constant 0 : i32
    return %c0_i32, %c0_i32_0 : i32, i32
  }
  func.func @transform_15(%arg0: i32) -> (i32, i32) {
    %c0_i32 = arith.constant 0 : i32
    %c0_i32_0 = arith.constant 0 : i32
    %c0_i32_1 = arith.constant 0 : i32
    return %c0_i32, %c0_i32_0 : i32, i32
  }
  func.func @transform_16(%arg0: i32) -> (i32, i32) {
    %c0_i32 = arith.constant 0 : i32
    %c0_i32_0 = arith.constant 0 : i32
    %c0_i32_1 = arith.constant 0 : i32
    return %c0_i32, %c0_i32_0 : i32, i32
  }
  func.func @transform_17(%arg0: i32) -> (i32, i32, i32) {
    %c0_i32 = arith.constant 0 : i32
    %c0_i32_0 = arith.constant 0 : i32
    %c0_i32_1 = arith.constant 0 : i32
    return %arg0, %c0_i32, %c0_i32_0 : i32, i32, i32
  }
}

module attributes {stable_mosaic.version = 11 : i64} {
  func.func @_encoder_layer_kernel(%arg0: i32, %arg1: memref<1x10x32xbf16, #tpu.memory_space<vmem>>, %arg2: memref<10x10xf32, #tpu.memory_space<vmem>>, %arg3: memref<2x10xf32, #tpu.memory_space<vmem>>, %arg4: memref<32x96xbf16, #tpu.memory_space<vmem>>, %arg5: memref<1x96xf32, #tpu.memory_space<vmem>>, %arg6: memref<32x32xbf16, #tpu.memory_space<vmem>>, %arg7: memref<1x32xf32, #tpu.memory_space<vmem>>, %arg8: memref<1x32xf32, #tpu.memory_space<vmem>>, %arg9: memref<1x32xf32, #tpu.memory_space<vmem>>, %arg10: memref<32x64xbf16, #tpu.memory_space<vmem>>, %arg11: memref<1x64xf32, #tpu.memory_space<vmem>>, %arg12: memref<64x32xbf16, #tpu.memory_space<vmem>>, %arg13: memref<1x32xf32, #tpu.memory_space<vmem>>, %arg14: memref<1x32xf32, #tpu.memory_space<vmem>>, %arg15: memref<1x32xf32, #tpu.memory_space<vmem>>, %arg16: memref<1x32xf32, #tpu.memory_space<vmem>>, %arg17: memref<1x32xf32, #tpu.memory_space<vmem>>, %arg18: memref<1x10x32xbf16, #tpu.memory_space<vmem>>, %arg19: memref<10x32xf32, #tpu.memory_space<vmem>>) attributes {dimension_semantics = [#tpu.dimension_semantics<parallel>], iteration_bounds = array<i64: 2>, scalar_prefetch = 0 : i64, scratch_operands = 1 : i64, tpu.core_type = #tpu.core_type<tc>, window_params = [{transform_indices = @transform_0, window_bounds = array<i64: 1, 10, 32>}, {pipeline_mode = #tpu.pipeline_mode<synchronous>, transform_indices = @transform_1, window_bounds = array<i64: 10, 10>}, {pipeline_mode = #tpu.pipeline_mode<synchronous>, transform_indices = @transform_2, window_bounds = array<i64: 2, 10>}, {pipeline_mode = #tpu.pipeline_mode<synchronous>, transform_indices = @transform_3, window_bounds = array<i64: 32, 96>}, {pipeline_mode = #tpu.pipeline_mode<synchronous>, transform_indices = @transform_4, window_bounds = array<i64: 1, 96>}, {pipeline_mode = #tpu.pipeline_mode<synchronous>, transform_indices = @transform_5, window_bounds = array<i64: 32, 32>}, {pipeline_mode = #tpu.pipeline_mode<synchronous>, transform_indices = @transform_6, window_bounds = array<i64: 1, 32>}, {pipeline_mode = #tpu.pipeline_mode<synchronous>, transform_indices = @transform_7, window_bounds = array<i64: 1, 32>}, {pipeline_mode = #tpu.pipeline_mode<synchronous>, transform_indices = @transform_8, window_bounds = array<i64: 1, 32>}, {pipeline_mode = #tpu.pipeline_mode<synchronous>, transform_indices = @transform_9, window_bounds = array<i64: 32, 64>}, {pipeline_mode = #tpu.pipeline_mode<synchronous>, transform_indices = @transform_10, window_bounds = array<i64: 1, 64>}, {pipeline_mode = #tpu.pipeline_mode<synchronous>, transform_indices = @transform_11, window_bounds = array<i64: 64, 32>}, {pipeline_mode = #tpu.pipeline_mode<synchronous>, transform_indices = @transform_12, window_bounds = array<i64: 1, 32>}, {pipeline_mode = #tpu.pipeline_mode<synchronous>, transform_indices = @transform_13, window_bounds = array<i64: 1, 32>}, {pipeline_mode = #tpu.pipeline_mode<synchronous>, transform_indices = @transform_14, window_bounds = array<i64: 1, 32>}, {pipeline_mode = #tpu.pipeline_mode<synchronous>, transform_indices = @transform_15, window_bounds = array<i64: 1, 32>}, {pipeline_mode = #tpu.pipeline_mode<synchronous>, transform_indices = @transform_16, window_bounds = array<i64: 1, 32>}, {transform_indices = @transform_17, window_bounds = array<i64: 1, 10, 32>}]} {
    %c0 = arith.constant 0 : index
    %c0_0 = arith.constant 0 : index
    %c0_1 = arith.constant 0 : index
    %0 = vector.load %arg1[%c0, %c0_0, %c0_1] : memref<1x10x32xbf16, #tpu.memory_space<vmem>>, vector<1x10x32xbf16>
    %1 = vector.shape_cast %0 : vector<1x10x32xbf16> to vector<10x32xbf16>
    %2 = arith.extf %1 : vector<10x32xbf16> to vector<10x32xf32>
    %c0_2 = arith.constant 0 : index
    %c0_3 = arith.constant 0 : index
    %3 = vector.load %arg4[%c0_2, %c0_3] : memref<32x96xbf16, #tpu.memory_space<vmem>>, vector<32x96xbf16>
    %cst = arith.constant dense<0.000000e+00> : vector<10x96xf32>
    %4 = tpu.matmul %1, %3, %cst {dimension_numbers = #tpu.dot_dimension_numbers<[1], [0], [0], [1], [0, 0, 1, 1], [], []>} : vector<10x32xbf16>, vector<32x96xbf16>, vector<10x96xf32> -> vector<10x96xf32>
    %c0_4 = arith.constant 0 : index
    %c0_5 = arith.constant 0 : index
    %5 = vector.load %arg5[%c0_4, %c0_5] : memref<1x96xf32, #tpu.memory_space<vmem>>, vector<1x96xf32>
    %6 = vector.broadcast %5 : vector<1x96xf32> to vector<10x96xf32>
    %7 = arith.addf %4, %6 : vector<10x96xf32>
    %c1_i32 = arith.constant 1 : i32
    %8 = arith.muli %arg0, %c1_i32 : i32
    %c0_6 = arith.constant 0 : index
    %c0_7 = arith.constant 0 : index
    %9 = vector.load %arg2[%c0_6, %c0_7] : memref<10x10xf32, #tpu.memory_space<vmem>>, vector<10x10xf32>
    %c0_i32 = arith.constant 0 : i32
    %10 = arith.addi %8, %c0_i32 : i32
    %11 = arith.index_cast %10 : i32 to index
    %c0_8 = arith.constant 0 : index
    %12 = vector.load %arg3[%11, %c0_8] : memref<2x10xf32, #tpu.memory_space<vmem>>, vector<1x10xf32>
    %13 = vector.broadcast %12 : vector<1x10xf32> to vector<10x10xf32>
    %14 = arith.addf %9, %13 : vector<10x10xf32>
    %15 = vector.extract_strided_slice %7 {offsets = [0, 0], sizes = [10, 32], strides = [1, 1]} : vector<10x96xf32> to vector<10x32xf32>
    %16 = vector.extract_strided_slice %7 {offsets = [0, 32], sizes = [10, 32], strides = [1, 1]} : vector<10x96xf32> to vector<10x32xf32>
    %17 = vector.extract_strided_slice %7 {offsets = [0, 64], sizes = [10, 32], strides = [1, 1]} : vector<10x96xf32> to vector<10x32xf32>
    %18 = vector.extract_strided_slice %15 {offsets = [0, 0], sizes = [10, 8], strides = [1, 1]} : vector<10x32xf32> to vector<10x8xf32>
    %cst_9 = arith.constant 0.353553385 : f32
    %19 = vector.broadcast %cst_9 : f32 to vector<10x8xf32>
    %20 = arith.mulf %18, %19 : vector<10x8xf32>
    %21 = arith.truncf %20 : vector<10x8xf32> to vector<10x8xbf16>
    %22 = vector.extract_strided_slice %16 {offsets = [0, 0], sizes = [10, 8], strides = [1, 1]} : vector<10x32xf32> to vector<10x8xf32>
    %23 = arith.truncf %22 : vector<10x8xf32> to vector<10x8xbf16>
    %24 = vector.extract_strided_slice %17 {offsets = [0, 0], sizes = [10, 8], strides = [1, 1]} : vector<10x32xf32> to vector<10x8xf32>
    %25 = arith.truncf %24 : vector<10x8xf32> to vector<10x8xbf16>
    %cst_10 = arith.constant dense<0.000000e+00> : vector<10x10xf32>
    %26 = tpu.matmul %21, %23, %cst_10 {dimension_numbers = #tpu.dot_dimension_numbers<[1], [1], [0], [0], [0, 0, 1, 0], [], []>} : vector<10x8xbf16>, vector<10x8xbf16>, vector<10x10xf32> -> vector<10x10xf32>
    %27 = arith.addf %26, %14 : vector<10x10xf32>
    %cst_11 = arith.constant dense<0xFF800000> : vector<10xf32>
    %28 = vector.multi_reduction <maximumf>, %27, %cst_11 [1] : vector<10x10xf32> to vector<10xf32>
    %29 = vector.shape_cast %28 : vector<10xf32> to vector<10x1xf32>
    %30 = vector.broadcast %29 : vector<10x1xf32> to vector<10x10xf32>
    %31 = arith.subf %27, %30 : vector<10x10xf32>
    %32 = math.exp %31 : vector<10x10xf32>
    %cst_12 = arith.constant dense<0.000000e+00> : vector<10xf32>
    %33 = vector.multi_reduction <add>, %32, %cst_12 [1] : vector<10x10xf32> to vector<10xf32>
    %34 = vector.shape_cast %33 : vector<10xf32> to vector<10x1xf32>
    %35 = tpu.reciprocal %34 {approx = true} : vector<10x1xf32> -> vector<10x1xf32>
    %36 = vector.broadcast %35 : vector<10x1xf32> to vector<10x10xf32>
    %37 = arith.mulf %32, %36 : vector<10x10xf32>
    %38 = arith.truncf %37 : vector<10x10xf32> to vector<10x10xbf16>
    %cst_13 = arith.constant dense<0.000000e+00> : vector<10x8xf32>
    %39 = tpu.matmul %38, %25, %cst_13 {dimension_numbers = #tpu.dot_dimension_numbers<[1], [0], [0], [1], [0, 0, 1, 1], [], []>} : vector<10x10xbf16>, vector<10x8xbf16>, vector<10x8xf32> -> vector<10x8xf32>
    %c0_14 = arith.constant 0 : index
    %c0_15 = arith.constant 0 : index
    %40 = vector.load %arg19[%c0_14, %c0_15] : memref<10x32xf32, #tpu.memory_space<vmem>>, vector<10x8xf32>
    tpu.vector_store %arg19[%c0_14, %c0_15], %39 {strides = array<i32>} : memref<10x32xf32, #tpu.memory_space<vmem>>, vector<10x8xf32>,
    %41 = vector.extract_strided_slice %15 {offsets = [0, 8], sizes = [10, 8], strides = [1, 1]} : vector<10x32xf32> to vector<10x8xf32>
    %cst_16 = arith.constant 0.353553385 : f32
    %42 = vector.broadcast %cst_16 : f32 to vector<10x8xf32>
    %43 = arith.mulf %41, %42 : vector<10x8xf32>
    %44 = arith.truncf %43 : vector<10x8xf32> to vector<10x8xbf16>
    %45 = vector.extract_strided_slice %16 {offsets = [0, 8], sizes = [10, 8], strides = [1, 1]} : vector<10x32xf32> to vector<10x8xf32>
    %46 = arith.truncf %45 : vector<10x8xf32> to vector<10x8xbf16>
    %47 = vector.extract_strided_slice %17 {offsets = [0, 8], sizes = [10, 8], strides = [1, 1]} : vector<10x32xf32> to vector<10x8xf32>
    %48 = arith.truncf %47 : vector<10x8xf32> to vector<10x8xbf16>
    %cst_17 = arith.constant dense<0.000000e+00> : vector<10x10xf32>
    %49 = tpu.matmul %44, %46, %cst_17 {dimension_numbers = #tpu.dot_dimension_numbers<[1], [1], [0], [0], [0, 0, 1, 0], [], []>} : vector<10x8xbf16>, vector<10x8xbf16>, vector<10x10xf32> -> vector<10x10xf32>
    %50 = arith.addf %49, %14 : vector<10x10xf32>
    %cst_18 = arith.constant dense<0xFF800000> : vector<10xf32>
    %51 = vector.multi_reduction <maximumf>, %50, %cst_18 [1] : vector<10x10xf32> to vector<10xf32>
    %52 = vector.shape_cast %51 : vector<10xf32> to vector<10x1xf32>
    %53 = vector.broadcast %52 : vector<10x1xf32> to vector<10x10xf32>
    %54 = arith.subf %50, %53 : vector<10x10xf32>
    %55 = math.exp %54 : vector<10x10xf32>
    %cst_19 = arith.constant dense<0.000000e+00> : vector<10xf32>
    %56 = vector.multi_reduction <add>, %55, %cst_19 [1] : vector<10x10xf32> to vector<10xf32>
    %57 = vector.shape_cast %56 : vector<10xf32> to vector<10x1xf32>
    %58 = tpu.reciprocal %57 {approx = true} : vector<10x1xf32> -> vector<10x1xf32>
    %59 = vector.broadcast %58 : vector<10x1xf32> to vector<10x10xf32>
    %60 = arith.mulf %55, %59 : vector<10x10xf32>
    %61 = arith.truncf %60 : vector<10x10xf32> to vector<10x10xbf16>
    %cst_20 = arith.constant dense<0.000000e+00> : vector<10x8xf32>
    %62 = tpu.matmul %61, %48, %cst_20 {dimension_numbers = #tpu.dot_dimension_numbers<[1], [0], [0], [1], [0, 0, 1, 1], [], []>} : vector<10x10xbf16>, vector<10x8xbf16>, vector<10x8xf32> -> vector<10x8xf32>
    %c0_21 = arith.constant 0 : index
    %c8 = arith.constant 8 : index
    %63 = vector.load %arg19[%c0_21, %c8] : memref<10x32xf32, #tpu.memory_space<vmem>>, vector<10x8xf32>
    tpu.vector_store %arg19[%c0_21, %c8], %62 {strides = array<i32>} : memref<10x32xf32, #tpu.memory_space<vmem>>, vector<10x8xf32>,
    %64 = vector.extract_strided_slice %15 {offsets = [0, 16], sizes = [10, 8], strides = [1, 1]} : vector<10x32xf32> to vector<10x8xf32>
    %cst_22 = arith.constant 0.353553385 : f32
    %65 = vector.broadcast %cst_22 : f32 to vector<10x8xf32>
    %66 = arith.mulf %64, %65 : vector<10x8xf32>
    %67 = arith.truncf %66 : vector<10x8xf32> to vector<10x8xbf16>
    %68 = vector.extract_strided_slice %16 {offsets = [0, 16], sizes = [10, 8], strides = [1, 1]} : vector<10x32xf32> to vector<10x8xf32>
    %69 = arith.truncf %68 : vector<10x8xf32> to vector<10x8xbf16>
    %70 = vector.extract_strided_slice %17 {offsets = [0, 16], sizes = [10, 8], strides = [1, 1]} : vector<10x32xf32> to vector<10x8xf32>
    %71 = arith.truncf %70 : vector<10x8xf32> to vector<10x8xbf16>
    %cst_23 = arith.constant dense<0.000000e+00> : vector<10x10xf32>
    %72 = tpu.matmul %67, %69, %cst_23 {dimension_numbers = #tpu.dot_dimension_numbers<[1], [1], [0], [0], [0, 0, 1, 0], [], []>} : vector<10x8xbf16>, vector<10x8xbf16>, vector<10x10xf32> -> vector<10x10xf32>
    %73 = arith.addf %72, %14 : vector<10x10xf32>
    %cst_24 = arith.constant dense<0xFF800000> : vector<10xf32>
    %74 = vector.multi_reduction <maximumf>, %73, %cst_24 [1] : vector<10x10xf32> to vector<10xf32>
    %75 = vector.shape_cast %74 : vector<10xf32> to vector<10x1xf32>
    %76 = vector.broadcast %75 : vector<10x1xf32> to vector<10x10xf32>
    %77 = arith.subf %73, %76 : vector<10x10xf32>
    %78 = math.exp %77 : vector<10x10xf32>
    %cst_25 = arith.constant dense<0.000000e+00> : vector<10xf32>
    %79 = vector.multi_reduction <add>, %78, %cst_25 [1] : vector<10x10xf32> to vector<10xf32>
    %80 = vector.shape_cast %79 : vector<10xf32> to vector<10x1xf32>
    %81 = tpu.reciprocal %80 {approx = true} : vector<10x1xf32> -> vector<10x1xf32>
    %82 = vector.broadcast %81 : vector<10x1xf32> to vector<10x10xf32>
    %83 = arith.mulf %78, %82 : vector<10x10xf32>
    %84 = arith.truncf %83 : vector<10x10xf32> to vector<10x10xbf16>
    %cst_26 = arith.constant dense<0.000000e+00> : vector<10x8xf32>
    %85 = tpu.matmul %84, %71, %cst_26 {dimension_numbers = #tpu.dot_dimension_numbers<[1], [0], [0], [1], [0, 0, 1, 1], [], []>} : vector<10x10xbf16>, vector<10x8xbf16>, vector<10x8xf32> -> vector<10x8xf32>
    %c0_27 = arith.constant 0 : index
    %c16 = arith.constant 16 : index
    %86 = vector.load %arg19[%c0_27, %c16] : memref<10x32xf32, #tpu.memory_space<vmem>>, vector<10x8xf32>
    tpu.vector_store %arg19[%c0_27, %c16], %85 {strides = array<i32>} : memref<10x32xf32, #tpu.memory_space<vmem>>, vector<10x8xf32>,
    %87 = vector.extract_strided_slice %15 {offsets = [0, 24], sizes = [10, 8], strides = [1, 1]} : vector<10x32xf32> to vector<10x8xf32>
    %cst_28 = arith.constant 0.353553385 : f32
    %88 = vector.broadcast %cst_28 : f32 to vector<10x8xf32>
    %89 = arith.mulf %87, %88 : vector<10x8xf32>
    %90 = arith.truncf %89 : vector<10x8xf32> to vector<10x8xbf16>
    %91 = vector.extract_strided_slice %16 {offsets = [0, 24], sizes = [10, 8], strides = [1, 1]} : vector<10x32xf32> to vector<10x8xf32>
    %92 = arith.truncf %91 : vector<10x8xf32> to vector<10x8xbf16>
    %93 = vector.extract_strided_slice %17 {offsets = [0, 24], sizes = [10, 8], strides = [1, 1]} : vector<10x32xf32> to vector<10x8xf32>
    %94 = arith.truncf %93 : vector<10x8xf32> to vector<10x8xbf16>
    %cst_29 = arith.constant dense<0.000000e+00> : vector<10x10xf32>
    %95 = tpu.matmul %90, %92, %cst_29 {dimension_numbers = #tpu.dot_dimension_numbers<[1], [1], [0], [0], [0, 0, 1, 0], [], []>} : vector<10x8xbf16>, vector<10x8xbf16>, vector<10x10xf32> -> vector<10x10xf32>
    %96 = arith.addf %95, %14 : vector<10x10xf32>
    %cst_30 = arith.constant dense<0xFF800000> : vector<10xf32>
    %97 = vector.multi_reduction <maximumf>, %96, %cst_30 [1] : vector<10x10xf32> to vector<10xf32>
    %98 = vector.shape_cast %97 : vector<10xf32> to vector<10x1xf32>
    %99 = vector.broadcast %98 : vector<10x1xf32> to vector<10x10xf32>
    %100 = arith.subf %96, %99 : vector<10x10xf32>
    %101 = math.exp %100 : vector<10x10xf32>
    %cst_31 = arith.constant dense<0.000000e+00> : vector<10xf32>
    %102 = vector.multi_reduction <add>, %101, %cst_31 [1] : vector<10x10xf32> to vector<10xf32>
    %103 = vector.shape_cast %102 : vector<10xf32> to vector<10x1xf32>
    %104 = tpu.reciprocal %103 {approx = true} : vector<10x1xf32> -> vector<10x1xf32>
    %105 = vector.broadcast %104 : vector<10x1xf32> to vector<10x10xf32>
    %106 = arith.mulf %101, %105 : vector<10x10xf32>
    %107 = arith.truncf %106 : vector<10x10xf32> to vector<10x10xbf16>
    %cst_32 = arith.constant dense<0.000000e+00> : vector<10x8xf32>
    %108 = tpu.matmul %107, %94, %cst_32 {dimension_numbers = #tpu.dot_dimension_numbers<[1], [0], [0], [1], [0, 0, 1, 1], [], []>} : vector<10x10xbf16>, vector<10x8xbf16>, vector<10x8xf32> -> vector<10x8xf32>
    %c0_33 = arith.constant 0 : index
    %c24 = arith.constant 24 : index
    %109 = vector.load %arg19[%c0_33, %c24] : memref<10x32xf32, #tpu.memory_space<vmem>>, vector<10x8xf32>
    tpu.vector_store %arg19[%c0_33, %c24], %108 {strides = array<i32>} : memref<10x32xf32, #tpu.memory_space<vmem>>, vector<10x8xf32>,
    %c0_34 = arith.constant 0 : index
    %c0_35 = arith.constant 0 : index
    %110 = vector.load %arg19[%c0_34, %c0_35] : memref<10x32xf32, #tpu.memory_space<vmem>>, vector<10x32xf32>
    %111 = arith.truncf %110 : vector<10x32xf32> to vector<10x32xbf16>
    %c0_36 = arith.constant 0 : index
    %c0_37 = arith.constant 0 : index
    %112 = vector.load %arg6[%c0_36, %c0_37] : memref<32x32xbf16, #tpu.memory_space<vmem>>, vector<32x32xbf16>
    %cst_38 = arith.constant dense<0.000000e+00> : vector<10x32xf32>
    %113 = tpu.matmul %111, %112, %cst_38 {dimension_numbers = #tpu.dot_dimension_numbers<[1], [0], [0], [1], [0, 0, 1, 1], [], []>} : vector<10x32xbf16>, vector<32x32xbf16>, vector<10x32xf32> -> vector<10x32xf32>
    %c0_39 = arith.constant 0 : index
    %c0_40 = arith.constant 0 : index
    %114 = vector.load %arg7[%c0_39, %c0_40] : memref<1x32xf32, #tpu.memory_space<vmem>>, vector<1x32xf32>
    %115 = vector.broadcast %114 : vector<1x32xf32> to vector<10x32xf32>
    %116 = arith.addf %113, %115 : vector<10x32xf32>
    %117 = arith.addf %2, %116 : vector<10x32xf32>
    %c0_41 = arith.constant 0 : index
    %c0_42 = arith.constant 0 : index
    %118 = vector.load %arg8[%c0_41, %c0_42] : memref<1x32xf32, #tpu.memory_space<vmem>>, vector<1x32xf32>
    %c0_43 = arith.constant 0 : index
    %c0_44 = arith.constant 0 : index
    %119 = vector.load %arg9[%c0_43, %c0_44] : memref<1x32xf32, #tpu.memory_space<vmem>>, vector<1x32xf32>
    %cst_45 = arith.constant dense<0.000000e+00> : vector<10xf32>
    %120 = vector.multi_reduction <add>, %117, %cst_45 [1] : vector<10x32xf32> to vector<10xf32>
    %121 = vector.shape_cast %120 : vector<10xf32> to vector<10x1xf32>
    %cst_46 = arith.constant 3.200000e+01 : f32
    %122 = vector.broadcast %cst_46 : f32 to vector<10x1xf32>
    %123 = arith.divf %121, %122 : vector<10x1xf32>
    %124 = vector.broadcast %123 : vector<10x1xf32> to vector<10x32xf32>
    %125 = arith.subf %117, %124 : vector<10x32xf32>
    %126 = arith.mulf %125, %125 : vector<10x32xf32>
    %cst_47 = arith.constant dense<0.000000e+00> : vector<10xf32>
    %127 = vector.multi_reduction <add>, %126, %cst_47 [1] : vector<10x32xf32> to vector<10xf32>
    %128 = vector.shape_cast %127 : vector<10xf32> to vector<10x1xf32>
    %cst_48 = arith.constant 3.200000e+01 : f32
    %129 = vector.broadcast %cst_48 : f32 to vector<10x1xf32>
    %130 = arith.divf %128, %129 : vector<10x1xf32>
    %131 = vector.broadcast %123 : vector<10x1xf32> to vector<10x32xf32>
    %132 = arith.subf %117, %131 : vector<10x32xf32>
    %cst_49 = arith.constant 9.99999974E-6 : f32
    %133 = vector.broadcast %cst_49 : f32 to vector<10x1xf32>
    %134 = arith.addf %130, %133 : vector<10x1xf32>
    %135 = math.rsqrt %134 : vector<10x1xf32>
    %136 = vector.broadcast %135 : vector<10x1xf32> to vector<10x32xf32>
    %137 = arith.mulf %132, %136 : vector<10x32xf32>
    %138 = vector.broadcast %118 : vector<1x32xf32> to vector<10x32xf32>
    %139 = arith.mulf %137, %138 : vector<10x32xf32>
    %140 = vector.broadcast %119 : vector<1x32xf32> to vector<10x32xf32>
    %141 = arith.addf %139, %140 : vector<10x32xf32>
    %142 = arith.truncf %141 : vector<10x32xf32> to vector<10x32xbf16>
    %c0_50 = arith.constant 0 : index
    %c0_51 = arith.constant 0 : index
    %143 = vector.load %arg10[%c0_50, %c0_51] : memref<32x64xbf16, #tpu.memory_space<vmem>>, vector<32x64xbf16>
    %cst_52 = arith.constant dense<0.000000e+00> : vector<10x64xf32>
    %144 = tpu.matmul %142, %143, %cst_52 {dimension_numbers = #tpu.dot_dimension_numbers<[1], [0], [0], [1], [0, 0, 1, 1], [], []>} : vector<10x32xbf16>, vector<32x64xbf16>, vector<10x64xf32> -> vector<10x64xf32>
    %c0_53 = arith.constant 0 : index
    %c0_54 = arith.constant 0 : index
    %145 = vector.load %arg11[%c0_53, %c0_54] : memref<1x64xf32, #tpu.memory_space<vmem>>, vector<1x64xf32>
    %146 = vector.broadcast %145 : vector<1x64xf32> to vector<10x64xf32>
    %147 = arith.addf %144, %146 : vector<10x64xf32>
    %cst_55 = arith.constant 0.000000e+00 : f32
    %148 = vector.broadcast %cst_55 : f32 to vector<10x64xf32>
    %149 = arith.maximumf %147, %148 : vector<10x64xf32>
    %150 = arith.truncf %149 : vector<10x64xf32> to vector<10x64xbf16>
    %c0_56 = arith.constant 0 : index
    %c0_57 = arith.constant 0 : index
    %151 = vector.load %arg12[%c0_56, %c0_57] : memref<64x32xbf16, #tpu.memory_space<vmem>>, vector<64x32xbf16>
    %cst_58 = arith.constant dense<0.000000e+00> : vector<10x32xf32>
    %152 = tpu.matmul %150, %151, %cst_58 {dimension_numbers = #tpu.dot_dimension_numbers<[1], [0], [0], [1], [0, 0, 1, 1], [], []>} : vector<10x64xbf16>, vector<64x32xbf16>, vector<10x32xf32> -> vector<10x32xf32>
    %c0_59 = arith.constant 0 : index
    %c0_60 = arith.constant 0 : index
    %153 = vector.load %arg13[%c0_59, %c0_60] : memref<1x32xf32, #tpu.memory_space<vmem>>, vector<1x32xf32>
    %154 = vector.broadcast %153 : vector<1x32xf32> to vector<10x32xf32>
    %155 = arith.addf %152, %154 : vector<10x32xf32>
    %156 = arith.addf %141, %155 : vector<10x32xf32>
    %c0_61 = arith.constant 0 : index
    %c0_62 = arith.constant 0 : index
    %157 = vector.load %arg14[%c0_61, %c0_62] : memref<1x32xf32, #tpu.memory_space<vmem>>, vector<1x32xf32>
    %c0_63 = arith.constant 0 : index
    %c0_64 = arith.constant 0 : index
    %158 = vector.load %arg15[%c0_63, %c0_64] : memref<1x32xf32, #tpu.memory_space<vmem>>, vector<1x32xf32>
    %cst_65 = arith.constant dense<0.000000e+00> : vector<10xf32>
    %159 = vector.multi_reduction <add>, %156, %cst_65 [1] : vector<10x32xf32> to vector<10xf32>
    %160 = vector.shape_cast %159 : vector<10xf32> to vector<10x1xf32>
    %cst_66 = arith.constant 3.200000e+01 : f32
    %161 = vector.broadcast %cst_66 : f32 to vector<10x1xf32>
    %162 = arith.divf %160, %161 : vector<10x1xf32>
    %163 = vector.broadcast %162 : vector<10x1xf32> to vector<10x32xf32>
    %164 = arith.subf %156, %163 : vector<10x32xf32>
    %165 = arith.mulf %164, %164 : vector<10x32xf32>
    %cst_67 = arith.constant dense<0.000000e+00> : vector<10xf32>
    %166 = vector.multi_reduction <add>, %165, %cst_67 [1] : vector<10x32xf32> to vector<10xf32>
    %167 = vector.shape_cast %166 : vector<10xf32> to vector<10x1xf32>
    %cst_68 = arith.constant 3.200000e+01 : f32
    %168 = vector.broadcast %cst_68 : f32 to vector<10x1xf32>
    %169 = arith.divf %167, %168 : vector<10x1xf32>
    %170 = vector.broadcast %162 : vector<10x1xf32> to vector<10x32xf32>
    %171 = arith.subf %156, %170 : vector<10x32xf32>
    %cst_69 = arith.constant 9.99999974E-6 : f32
    %172 = vector.broadcast %cst_69 : f32 to vector<10x1xf32>
    %173 = arith.addf %169, %172 : vector<10x1xf32>
    %174 = math.rsqrt %173 : vector<10x1xf32>
    %175 = vector.broadcast %174 : vector<10x1xf32> to vector<10x32xf32>
    %176 = arith.mulf %171, %175 : vector<10x32xf32>
    %177 = vector.broadcast %157 : vector<1x32xf32> to vector<10x32xf32>
    %178 = arith.mulf %176, %177 : vector<10x32xf32>
    %179 = vector.broadcast %158 : vector<1x32xf32> to vector<10x32xf32>
    %180 = arith.addf %178, %179 : vector<10x32xf32>
    %181 = vector.shape_cast %180 : vector<10x32xf32> to vector<1x10x32xf32>
    %182 = arith.truncf %181 : vector<1x10x32xf32> to vector<1x10x32xbf16>
    %c0_70 = arith.constant 0 : index
    %c0_71 = arith.constant 0 : index
    %c0_72 = arith.constant 0 : index
    %183 = vector.load %arg18[%c0_70, %c0_71, %c0_72] : memref<1x10x32xbf16, #tpu.memory_space<vmem>>, vector<1x10x32xbf16>
    tpu.vector_store %arg18[%c0_70, %c0_71, %c0_72], %182 {strides = array<i32>} : memref<1x10x32xbf16, #tpu.memory_space<vmem>>, vector<1x10x32xbf16>,
    return
  }
  func.func @transform_0(%arg0: i32) -> (i32, i32, i32) {
    %c0_i32 = arith.constant 0 : i32
    %c0_i32_0 = arith.constant 0 : i32
    %c0_i32_1 = arith.constant 0 : i32
    return %arg0, %c0_i32, %c0_i32_0 : i32, i32, i32
  }
  func.func @transform_1(%arg0: i32) -> (i32, i32) {
    %c0_i32 = arith.constant 0 : i32
    %c0_i32_0 = arith.constant 0 : i32
    %c0_i32_1 = arith.constant 0 : i32
    return %c0_i32, %c0_i32_0 : i32, i32
  }
  func.func @transform_2(%arg0: i32) -> (i32, i32) {
    %c0_i32 = arith.constant 0 : i32
    %c0_i32_0 = arith.constant 0 : i32
    %c0_i32_1 = arith.constant 0 : i32
    return %c0_i32, %c0_i32_0 : i32, i32
  }
  func.func @transform_3(%arg0: i32) -> (i32, i32) {
    %c0_i32 = arith.constant 0 : i32
    %c0_i32_0 = arith.constant 0 : i32
    %c0_i32_1 = arith.constant 0 : i32
    return %c0_i32, %c0_i32_0 : i32, i32
  }
  func.func @transform_4(%arg0: i32) -> (i32, i32) {
    %c0_i32 = arith.constant 0 : i32
    %c0_i32_0 = arith.constant 0 : i32
    %c0_i32_1 = arith.constant 0 : i32
    return %c0_i32, %c0_i32_0 : i32, i32
  }
  func.func @transform_5(%arg0: i32) -> (i32, i32) {
    %c0_i32 = arith.constant 0 : i32
    %c0_i32_0 = arith.constant 0 : i32
    %c0_i32_1 = arith.constant 0 : i32
    return %c0_i32, %c0_i32_0 : i32, i32
  }
  func.func @transform_6(%arg0: i32) -> (i32, i32) {
    %c0_i32 = arith.constant 0 : i32
    %c0_i32_0 = arith.constant 0 : i32
    %c0_i32_1 = arith.constant 0 : i32
    return %c0_i32, %c0_i32_0 : i32, i32
  }
  func.func @transform_7(%arg0: i32) -> (i32, i32) {
    %c0_i32 = arith.constant 0 : i32
    %c0_i32_0 = arith.constant 0 : i32
    %c0_i32_1 = arith.constant 0 : i32
    return %c0_i32, %c0_i32_0 : i32, i32
  }
  func.func @transform_8(%arg0: i32) -> (i32, i32) {
    %c0_i32 = arith.constant 0 : i32
    %c0_i32_0 = arith.constant 0 : i32
    %c0_i32_1 = arith.constant 0 : i32
    return %c0_i32, %c0_i32_0 : i32, i32
  }
  func.func @transform_9(%arg0: i32) -> (i32, i32) {
    %c0_i32 = arith.constant 0 : i32
    %c0_i32_0 = arith.constant 0 : i32
    %c0_i32_1 = arith.constant 0 : i32
    return %c0_i32, %c0_i32_0 : i32, i32
  }
  func.func @transform_10(%arg0: i32) -> (i32, i32) {
    %c0_i32 = arith.constant 0 : i32
    %c0_i32_0 = arith.constant 0 : i32
    %c0_i32_1 = arith.constant 0 : i32
    return %c0_i32, %c0_i32_0 : i32, i32
  }
  func.func @transform_11(%arg0: i32) -> (i32, i32) {
    %c0_i32 = arith.constant 0 : i32
    %c0_i32_0 = arith.constant 0 : i32
    %c0_i32_1 = arith.constant 0 : i32
    return %c0_i32, %c0_i32_0 : i32, i32
  }
  func.func @transform_12(%arg0: i32) -> (i32, i32) {
    %c0_i32 = arith.constant 0 : i32
    %c0_i32_0 = arith.constant 0 : i32
    %c0_i32_1 = arith.constant 0 : i32
    return %c0_i32, %c0_i32_0 : i32, i32
  }
  func.func @transform_13(%arg0: i32) -> (i32, i32) {
    %c0_i32 = arith.constant 0 : i32
    %c0_i32_0 = arith.constant 0 : i32
    %c0_i32_1 = arith.constant 0 : i32
    return %c0_i32, %c0_i32_0 : i32, i32
  }
  func.func @transform_14(%arg0: i32) -> (i32, i32) {
    %c0_i32 = arith.constant 0 : i32
    %c0_i32_0 = arith.constant 0 : i32
    %c0_i32_1 = arith.constant 0 : i32
    return %c0_i32, %c0_i32_0 : i32, i32
  }
  func.func @transform_15(%arg0: i32) -> (i32, i32) {
    %c0_i32 = arith.constant 0 : i32
    %c0_i32_0 = arith.constant 0 : i32
    %c0_i32_1 = arith.constant 0 : i32
    return %c0_i32, %c0_i32_0 : i32, i32
  }
  func.func @transform_16(%arg0: i32) -> (i32, i32) {
    %c0_i32 = arith.constant 0 : i32
    %c0_i32_0 = arith.constant 0 : i32
    %c0_i32_1 = arith.constant 0 : i32
    return %c0_i32, %c0_i32_0 : i32, i32
  }
  func.func @transform_17(%arg0: i32) -> (i32, i32, i32) {
    %c0_i32 = arith.constant 0 : i32
    %c0_i32_0 = arith.constant 0 : i32
    %c0_i32_1 = arith.constant 0 : i32
    return %arg0, %c0_i32, %c0_i32_0 : i32, i32, i32
  }
}

module attributes {stable_mosaic.version = 11 : i64} {
  func.func @_decoder_layer_kernel(%arg0: i32, %arg1: memref<1x8x32xbf16, #tpu.memory_space<vmem>>, %arg2: memref<1x10x32xbf16, #tpu.memory_space<vmem>>, %arg3: memref<8x8xf32, #tpu.memory_space<vmem>>, %arg4: memref<2x8xf32, #tpu.memory_space<vmem>>, %arg5: memref<2x10xf32, #tpu.memory_space<vmem>>, %arg6: memref<32x96xbf16, #tpu.memory_space<vmem>>, %arg7: memref<1x96xf32, #tpu.memory_space<vmem>>, %arg8: memref<32x32xbf16, #tpu.memory_space<vmem>>, %arg9: memref<1x32xf32, #tpu.memory_space<vmem>>, %arg10: memref<1x32xf32, #tpu.memory_space<vmem>>, %arg11: memref<1x32xf32, #tpu.memory_space<vmem>>, %arg12: memref<32x96xbf16, #tpu.memory_space<vmem>>, %arg13: memref<1x96xf32, #tpu.memory_space<vmem>>, %arg14: memref<32x32xbf16, #tpu.memory_space<vmem>>, %arg15: memref<1x32xf32, #tpu.memory_space<vmem>>, %arg16: memref<1x32xf32, #tpu.memory_space<vmem>>, %arg17: memref<1x32xf32, #tpu.memory_space<vmem>>, %arg18: memref<32x64xbf16, #tpu.memory_space<vmem>>, %arg19: memref<1x64xf32, #tpu.memory_space<vmem>>, %arg20: memref<64x32xbf16, #tpu.memory_space<vmem>>, %arg21: memref<1x32xf32, #tpu.memory_space<vmem>>, %arg22: memref<1x32xf32, #tpu.memory_space<vmem>>, %arg23: memref<1x32xf32, #tpu.memory_space<vmem>>, %arg24: memref<1x32xf32, #tpu.memory_space<vmem>>, %arg25: memref<1x32xf32, #tpu.memory_space<vmem>>, %arg26: memref<1x8x32xbf16, #tpu.memory_space<vmem>>, %arg27: memref<8x32xf32, #tpu.memory_space<vmem>>) attributes {dimension_semantics = [#tpu.dimension_semantics<parallel>], iteration_bounds = array<i64: 2>, scalar_prefetch = 0 : i64, scratch_operands = 1 : i64, tpu.core_type = #tpu.core_type<tc>, window_params = [{transform_indices = @transform_0, window_bounds = array<i64: 1, 8, 32>}, {transform_indices = @transform_1, window_bounds = array<i64: 1, 10, 32>}, {pipeline_mode = #tpu.pipeline_mode<synchronous>, transform_indices = @transform_2, window_bounds = array<i64: 8, 8>}, {pipeline_mode = #tpu.pipeline_mode<synchronous>, transform_indices = @transform_3, window_bounds = array<i64: 2, 8>}, {pipeline_mode = #tpu.pipeline_mode<synchronous>, transform_indices = @transform_4, window_bounds = array<i64: 2, 10>}, {pipeline_mode = #tpu.pipeline_mode<synchronous>, transform_indices = @transform_5, window_bounds = array<i64: 32, 96>}, {pipeline_mode = #tpu.pipeline_mode<synchronous>, transform_indices = @transform_6, window_bounds = array<i64: 1, 96>}, {pipeline_mode = #tpu.pipeline_mode<synchronous>, transform_indices = @transform_7, window_bounds = array<i64: 32, 32>}, {pipeline_mode = #tpu.pipeline_mode<synchronous>, transform_indices = @transform_8, window_bounds = array<i64: 1, 32>}, {pipeline_mode = #tpu.pipeline_mode<synchronous>, transform_indices = @transform_9, window_bounds = array<i64: 1, 32>}, {pipeline_mode = #tpu.pipeline_mode<synchronous>, transform_indices = @transform_10, window_bounds = array<i64: 1, 32>}, {pipeline_mode = #tpu.pipeline_mode<synchronous>, transform_indices = @transform_11, window_bounds = array<i64: 32, 96>}, {pipeline_mode = #tpu.pipeline_mode<synchronous>, transform_indices = @transform_12, window_bounds = array<i64: 1, 96>}, {pipeline_mode = #tpu.pipeline_mode<synchronous>, transform_indices = @transform_13, window_bounds = array<i64: 32, 32>}, {pipeline_mode = #tpu.pipeline_mode<synchronous>, transform_indices = @transform_14, window_bounds = array<i64: 1, 32>}, {pipeline_mode = #tpu.pipeline_mode<synchronous>, transform_indices = @transform_15, window_bounds = array<i64: 1, 32>}, {pipeline_mode = #tpu.pipeline_mode<synchronous>, transform_indices = @transform_16, window_bounds = array<i64: 1, 32>}, {pipeline_mode = #tpu.pipeline_mode<synchronous>, transform_indices = @transform_17, window_bounds = array<i64: 32, 64>}, {pipeline_mode = #tpu.pipeline_mode<synchronous>, transform_indices = @transform_18, window_bounds = array<i64: 1, 64>}, {pipeline_mode = #tpu.pipeline_mode<synchronous>, transform_indices = @transform_19, window_bounds = array<i64: 64, 32>}, {pipeline_mode = #tpu.pipeline_mode<synchronous>, transform_indices = @transform_20, window_bounds = array<i64: 1, 32>}, {pipeline_mode = #tpu.pipeline_mode<synchronous>, transform_indices = @transform_21, window_bounds = array<i64: 1, 32>}, {pipeline_mode = #tpu.pipeline_mode<synchronous>, transform_indices = @transform_22, window_bounds = array<i64: 1, 32>}, {pipeline_mode = #tpu.pipeline_mode<synchronous>, transform_indices = @transform_23, window_bounds = array<i64: 1, 32>}, {pipeline_mode = #tpu.pipeline_mode<synchronous>, transform_indices = @transform_24, window_bounds = array<i64: 1, 32>}, {transform_indices = @transform_25, window_bounds = array<i64: 1, 8, 32>}]} {
    %c0 = arith.constant 0 : index
    %c0_0 = arith.constant 0 : index
    %c0_1 = arith.constant 0 : index
    %0 = vector.load %arg1[%c0, %c0_0, %c0_1] : memref<1x8x32xbf16, #tpu.memory_space<vmem>>, vector<1x8x32xbf16>
    %1 = vector.shape_cast %0 : vector<1x8x32xbf16> to vector<8x32xbf16>
    %2 = arith.extf %1 : vector<8x32xbf16> to vector<8x32xf32>
    %c0_2 = arith.constant 0 : index
    %c0_3 = arith.constant 0 : index
    %c0_4 = arith.constant 0 : index
    %3 = vector.load %arg2[%c0_2, %c0_3, %c0_4] : memref<1x10x32xbf16, #tpu.memory_space<vmem>>, vector<1x10x32xbf16>
    %4 = vector.shape_cast %3 : vector<1x10x32xbf16> to vector<10x32xbf16>
    %c1_i32 = arith.constant 1 : i32
    %5 = arith.muli %arg0, %c1_i32 : i32
    %c0_5 = arith.constant 0 : index
    %c0_6 = arith.constant 0 : index
    %6 = vector.load %arg6[%c0_5, %c0_6] : memref<32x96xbf16, #tpu.memory_space<vmem>>, vector<32x96xbf16>
    %cst = arith.constant dense<0.000000e+00> : vector<8x96xf32>
    %7 = tpu.matmul %1, %6, %cst {dimension_numbers = #tpu.dot_dimension_numbers<[1], [0], [0], [1], [0, 0, 1, 1], [], []>} : vector<8x32xbf16>, vector<32x96xbf16>, vector<8x96xf32> -> vector<8x96xf32>
    %c0_7 = arith.constant 0 : index
    %c0_8 = arith.constant 0 : index
    %8 = vector.load %arg7[%c0_7, %c0_8] : memref<1x96xf32, #tpu.memory_space<vmem>>, vector<1x96xf32>
    %9 = vector.broadcast %8 : vector<1x96xf32> to vector<8x96xf32>
    %10 = arith.addf %7, %9 : vector<8x96xf32>
    %c0_9 = arith.constant 0 : index
    %c0_10 = arith.constant 0 : index
    %11 = vector.load %arg3[%c0_9, %c0_10] : memref<8x8xf32, #tpu.memory_space<vmem>>, vector<8x8xf32>
    %c0_i32 = arith.constant 0 : i32
    %12 = arith.addi %5, %c0_i32 : i32
    %13 = arith.index_cast %12 : i32 to index
    %c0_11 = arith.constant 0 : index
    %14 = vector.load %arg4[%13, %c0_11] : memref<2x8xf32, #tpu.memory_space<vmem>>, vector<1x8xf32>
    %15 = vector.broadcast %14 : vector<1x8xf32> to vector<8x8xf32>
    %16 = arith.addf %11, %15 : vector<8x8xf32>
    %17 = vector.extract_strided_slice %10 {offsets = [0, 0], sizes = [8, 32], strides = [1, 1]} : vector<8x96xf32> to vector<8x32xf32>
    %18 = vector.extract_strided_slice %10 {offsets = [0, 32], sizes = [8, 32], strides = [1, 1]} : vector<8x96xf32> to vector<8x32xf32>
    %19 = vector.extract_strided_slice %10 {offsets = [0, 64], sizes = [8, 32], strides = [1, 1]} : vector<8x96xf32> to vector<8x32xf32>
    %20 = vector.extract_strided_slice %17 {offsets = [0, 0], sizes = [8, 8], strides = [1, 1]} : vector<8x32xf32> to vector<8x8xf32>
    %cst_12 = arith.constant 0.353553385 : f32
    %21 = vector.broadcast %cst_12 : f32 to vector<8x8xf32>
    %22 = arith.mulf %20, %21 : vector<8x8xf32>
    %23 = arith.truncf %22 : vector<8x8xf32> to vector<8x8xbf16>
    %24 = vector.extract_strided_slice %18 {offsets = [0, 0], sizes = [8, 8], strides = [1, 1]} : vector<8x32xf32> to vector<8x8xf32>
    %25 = arith.truncf %24 : vector<8x8xf32> to vector<8x8xbf16>
    %26 = vector.extract_strided_slice %19 {offsets = [0, 0], sizes = [8, 8], strides = [1, 1]} : vector<8x32xf32> to vector<8x8xf32>
    %27 = arith.truncf %26 : vector<8x8xf32> to vector<8x8xbf16>
    %cst_13 = arith.constant dense<0.000000e+00> : vector<8x8xf32>
    %28 = tpu.matmul %23, %25, %cst_13 {dimension_numbers = #tpu.dot_dimension_numbers<[1], [1], [0], [0], [0, 0, 1, 0], [], []>} : vector<8x8xbf16>, vector<8x8xbf16>, vector<8x8xf32> -> vector<8x8xf32>
    %29 = arith.addf %28, %16 : vector<8x8xf32>
    %cst_14 = arith.constant dense<0xFF800000> : vector<8xf32>
    %30 = vector.multi_reduction <maximumf>, %29, %cst_14 [1] : vector<8x8xf32> to vector<8xf32>
    %31 = vector.shape_cast %30 : vector<8xf32> to vector<8x1xf32>
    %32 = vector.broadcast %31 : vector<8x1xf32> to vector<8x8xf32>
    %33 = arith.subf %29, %32 : vector<8x8xf32>
    %34 = math.exp %33 : vector<8x8xf32>
    %cst_15 = arith.constant dense<0.000000e+00> : vector<8xf32>
    %35 = vector.multi_reduction <add>, %34, %cst_15 [1] : vector<8x8xf32> to vector<8xf32>
    %36 = vector.shape_cast %35 : vector<8xf32> to vector<8x1xf32>
    %37 = tpu.reciprocal %36 {approx = true} : vector<8x1xf32> -> vector<8x1xf32>
    %38 = vector.broadcast %37 : vector<8x1xf32> to vector<8x8xf32>
    %39 = arith.mulf %34, %38 : vector<8x8xf32>
    %40 = arith.truncf %39 : vector<8x8xf32> to vector<8x8xbf16>
    %cst_16 = arith.constant dense<0.000000e+00> : vector<8x8xf32>
    %41 = tpu.matmul %40, %27, %cst_16 {dimension_numbers = #tpu.dot_dimension_numbers<[1], [0], [0], [1], [0, 0, 1, 1], [], []>} : vector<8x8xbf16>, vector<8x8xbf16>, vector<8x8xf32> -> vector<8x8xf32>
    %c0_17 = arith.constant 0 : index
    %c0_18 = arith.constant 0 : index
    %42 = vector.load %arg27[%c0_17, %c0_18] : memref<8x32xf32, #tpu.memory_space<vmem>>, vector<8x8xf32>
    tpu.vector_store %arg27[%c0_17, %c0_18], %41 {strides = array<i32>} : memref<8x32xf32, #tpu.memory_space<vmem>>, vector<8x8xf32>,
    %43 = vector.extract_strided_slice %17 {offsets = [0, 8], sizes = [8, 8], strides = [1, 1]} : vector<8x32xf32> to vector<8x8xf32>
    %cst_19 = arith.constant 0.353553385 : f32
    %44 = vector.broadcast %cst_19 : f32 to vector<8x8xf32>
    %45 = arith.mulf %43, %44 : vector<8x8xf32>
    %46 = arith.truncf %45 : vector<8x8xf32> to vector<8x8xbf16>
    %47 = vector.extract_strided_slice %18 {offsets = [0, 8], sizes = [8, 8], strides = [1, 1]} : vector<8x32xf32> to vector<8x8xf32>
    %48 = arith.truncf %47 : vector<8x8xf32> to vector<8x8xbf16>
    %49 = vector.extract_strided_slice %19 {offsets = [0, 8], sizes = [8, 8], strides = [1, 1]} : vector<8x32xf32> to vector<8x8xf32>
    %50 = arith.truncf %49 : vector<8x8xf32> to vector<8x8xbf16>
    %cst_20 = arith.constant dense<0.000000e+00> : vector<8x8xf32>
    %51 = tpu.matmul %46, %48, %cst_20 {dimension_numbers = #tpu.dot_dimension_numbers<[1], [1], [0], [0], [0, 0, 1, 0], [], []>} : vector<8x8xbf16>, vector<8x8xbf16>, vector<8x8xf32> -> vector<8x8xf32>
    %52 = arith.addf %51, %16 : vector<8x8xf32>
    %cst_21 = arith.constant dense<0xFF800000> : vector<8xf32>
    %53 = vector.multi_reduction <maximumf>, %52, %cst_21 [1] : vector<8x8xf32> to vector<8xf32>
    %54 = vector.shape_cast %53 : vector<8xf32> to vector<8x1xf32>
    %55 = vector.broadcast %54 : vector<8x1xf32> to vector<8x8xf32>
    %56 = arith.subf %52, %55 : vector<8x8xf32>
    %57 = math.exp %56 : vector<8x8xf32>
    %cst_22 = arith.constant dense<0.000000e+00> : vector<8xf32>
    %58 = vector.multi_reduction <add>, %57, %cst_22 [1] : vector<8x8xf32> to vector<8xf32>
    %59 = vector.shape_cast %58 : vector<8xf32> to vector<8x1xf32>
    %60 = tpu.reciprocal %59 {approx = true} : vector<8x1xf32> -> vector<8x1xf32>
    %61 = vector.broadcast %60 : vector<8x1xf32> to vector<8x8xf32>
    %62 = arith.mulf %57, %61 : vector<8x8xf32>
    %63 = arith.truncf %62 : vector<8x8xf32> to vector<8x8xbf16>
    %cst_23 = arith.constant dense<0.000000e+00> : vector<8x8xf32>
    %64 = tpu.matmul %63, %50, %cst_23 {dimension_numbers = #tpu.dot_dimension_numbers<[1], [0], [0], [1], [0, 0, 1, 1], [], []>} : vector<8x8xbf16>, vector<8x8xbf16>, vector<8x8xf32> -> vector<8x8xf32>
    %c0_24 = arith.constant 0 : index
    %c8 = arith.constant 8 : index
    %65 = vector.load %arg27[%c0_24, %c8] : memref<8x32xf32, #tpu.memory_space<vmem>>, vector<8x8xf32>
    tpu.vector_store %arg27[%c0_24, %c8], %64 {strides = array<i32>} : memref<8x32xf32, #tpu.memory_space<vmem>>, vector<8x8xf32>,
    %66 = vector.extract_strided_slice %17 {offsets = [0, 16], sizes = [8, 8], strides = [1, 1]} : vector<8x32xf32> to vector<8x8xf32>
    %cst_25 = arith.constant 0.353553385 : f32
    %67 = vector.broadcast %cst_25 : f32 to vector<8x8xf32>
    %68 = arith.mulf %66, %67 : vector<8x8xf32>
    %69 = arith.truncf %68 : vector<8x8xf32> to vector<8x8xbf16>
    %70 = vector.extract_strided_slice %18 {offsets = [0, 16], sizes = [8, 8], strides = [1, 1]} : vector<8x32xf32> to vector<8x8xf32>
    %71 = arith.truncf %70 : vector<8x8xf32> to vector<8x8xbf16>
    %72 = vector.extract_strided_slice %19 {offsets = [0, 16], sizes = [8, 8], strides = [1, 1]} : vector<8x32xf32> to vector<8x8xf32>
    %73 = arith.truncf %72 : vector<8x8xf32> to vector<8x8xbf16>
    %cst_26 = arith.constant dense<0.000000e+00> : vector<8x8xf32>
    %74 = tpu.matmul %69, %71, %cst_26 {dimension_numbers = #tpu.dot_dimension_numbers<[1], [1], [0], [0], [0, 0, 1, 0], [], []>} : vector<8x8xbf16>, vector<8x8xbf16>, vector<8x8xf32> -> vector<8x8xf32>
    %75 = arith.addf %74, %16 : vector<8x8xf32>
    %cst_27 = arith.constant dense<0xFF800000> : vector<8xf32>
    %76 = vector.multi_reduction <maximumf>, %75, %cst_27 [1] : vector<8x8xf32> to vector<8xf32>
    %77 = vector.shape_cast %76 : vector<8xf32> to vector<8x1xf32>
    %78 = vector.broadcast %77 : vector<8x1xf32> to vector<8x8xf32>
    %79 = arith.subf %75, %78 : vector<8x8xf32>
    %80 = math.exp %79 : vector<8x8xf32>
    %cst_28 = arith.constant dense<0.000000e+00> : vector<8xf32>
    %81 = vector.multi_reduction <add>, %80, %cst_28 [1] : vector<8x8xf32> to vector<8xf32>
    %82 = vector.shape_cast %81 : vector<8xf32> to vector<8x1xf32>
    %83 = tpu.reciprocal %82 {approx = true} : vector<8x1xf32> -> vector<8x1xf32>
    %84 = vector.broadcast %83 : vector<8x1xf32> to vector<8x8xf32>
    %85 = arith.mulf %80, %84 : vector<8x8xf32>
    %86 = arith.truncf %85 : vector<8x8xf32> to vector<8x8xbf16>
    %cst_29 = arith.constant dense<0.000000e+00> : vector<8x8xf32>
    %87 = tpu.matmul %86, %73, %cst_29 {dimension_numbers = #tpu.dot_dimension_numbers<[1], [0], [0], [1], [0, 0, 1, 1], [], []>} : vector<8x8xbf16>, vector<8x8xbf16>, vector<8x8xf32> -> vector<8x8xf32>
    %c0_30 = arith.constant 0 : index
    %c16 = arith.constant 16 : index
    %88 = vector.load %arg27[%c0_30, %c16] : memref<8x32xf32, #tpu.memory_space<vmem>>, vector<8x8xf32>
    tpu.vector_store %arg27[%c0_30, %c16], %87 {strides = array<i32>} : memref<8x32xf32, #tpu.memory_space<vmem>>, vector<8x8xf32>,
    %89 = vector.extract_strided_slice %17 {offsets = [0, 24], sizes = [8, 8], strides = [1, 1]} : vector<8x32xf32> to vector<8x8xf32>
    %cst_31 = arith.constant 0.353553385 : f32
    %90 = vector.broadcast %cst_31 : f32 to vector<8x8xf32>
    %91 = arith.mulf %89, %90 : vector<8x8xf32>
    %92 = arith.truncf %91 : vector<8x8xf32> to vector<8x8xbf16>
    %93 = vector.extract_strided_slice %18 {offsets = [0, 24], sizes = [8, 8], strides = [1, 1]} : vector<8x32xf32> to vector<8x8xf32>
    %94 = arith.truncf %93 : vector<8x8xf32> to vector<8x8xbf16>
    %95 = vector.extract_strided_slice %19 {offsets = [0, 24], sizes = [8, 8], strides = [1, 1]} : vector<8x32xf32> to vector<8x8xf32>
    %96 = arith.truncf %95 : vector<8x8xf32> to vector<8x8xbf16>
    %cst_32 = arith.constant dense<0.000000e+00> : vector<8x8xf32>
    %97 = tpu.matmul %92, %94, %cst_32 {dimension_numbers = #tpu.dot_dimension_numbers<[1], [1], [0], [0], [0, 0, 1, 0], [], []>} : vector<8x8xbf16>, vector<8x8xbf16>, vector<8x8xf32> -> vector<8x8xf32>
    %98 = arith.addf %97, %16 : vector<8x8xf32>
    %cst_33 = arith.constant dense<0xFF800000> : vector<8xf32>
    %99 = vector.multi_reduction <maximumf>, %98, %cst_33 [1] : vector<8x8xf32> to vector<8xf32>
    %100 = vector.shape_cast %99 : vector<8xf32> to vector<8x1xf32>
    %101 = vector.broadcast %100 : vector<8x1xf32> to vector<8x8xf32>
    %102 = arith.subf %98, %101 : vector<8x8xf32>
    %103 = math.exp %102 : vector<8x8xf32>
    %cst_34 = arith.constant dense<0.000000e+00> : vector<8xf32>
    %104 = vector.multi_reduction <add>, %103, %cst_34 [1] : vector<8x8xf32> to vector<8xf32>
    %105 = vector.shape_cast %104 : vector<8xf32> to vector<8x1xf32>
    %106 = tpu.reciprocal %105 {approx = true} : vector<8x1xf32> -> vector<8x1xf32>
    %107 = vector.broadcast %106 : vector<8x1xf32> to vector<8x8xf32>
    %108 = arith.mulf %103, %107 : vector<8x8xf32>
    %109 = arith.truncf %108 : vector<8x8xf32> to vector<8x8xbf16>
    %cst_35 = arith.constant dense<0.000000e+00> : vector<8x8xf32>
    %110 = tpu.matmul %109, %96, %cst_35 {dimension_numbers = #tpu.dot_dimension_numbers<[1], [0], [0], [1], [0, 0, 1, 1], [], []>} : vector<8x8xbf16>, vector<8x8xbf16>, vector<8x8xf32> -> vector<8x8xf32>
    %c0_36 = arith.constant 0 : index
    %c24 = arith.constant 24 : index
    %111 = vector.load %arg27[%c0_36, %c24] : memref<8x32xf32, #tpu.memory_space<vmem>>, vector<8x8xf32>
    tpu.vector_store %arg27[%c0_36, %c24], %110 {strides = array<i32>} : memref<8x32xf32, #tpu.memory_space<vmem>>, vector<8x8xf32>,
    %c0_37 = arith.constant 0 : index
    %c0_38 = arith.constant 0 : index
    %112 = vector.load %arg27[%c0_37, %c0_38] : memref<8x32xf32, #tpu.memory_space<vmem>>, vector<8x32xf32>
    %113 = arith.truncf %112 : vector<8x32xf32> to vector<8x32xbf16>
    %c0_39 = arith.constant 0 : index
    %c0_40 = arith.constant 0 : index
    %114 = vector.load %arg8[%c0_39, %c0_40] : memref<32x32xbf16, #tpu.memory_space<vmem>>, vector<32x32xbf16>
    %cst_41 = arith.constant dense<0.000000e+00> : vector<8x32xf32>
    %115 = tpu.matmul %113, %114, %cst_41 {dimension_numbers = #tpu.dot_dimension_numbers<[1], [0], [0], [1], [0, 0, 1, 1], [], []>} : vector<8x32xbf16>, vector<32x32xbf16>, vector<8x32xf32> -> vector<8x32xf32>
    %c0_42 = arith.constant 0 : index
    %c0_43 = arith.constant 0 : index
    %116 = vector.load %arg9[%c0_42, %c0_43] : memref<1x32xf32, #tpu.memory_space<vmem>>, vector<1x32xf32>
    %117 = vector.broadcast %116 : vector<1x32xf32> to vector<8x32xf32>
    %118 = arith.addf %115, %117 : vector<8x32xf32>
    %119 = arith.addf %2, %118 : vector<8x32xf32>
    %c0_44 = arith.constant 0 : index
    %c0_45 = arith.constant 0 : index
    %120 = vector.load %arg10[%c0_44, %c0_45] : memref<1x32xf32, #tpu.memory_space<vmem>>, vector<1x32xf32>
    %c0_46 = arith.constant 0 : index
    %c0_47 = arith.constant 0 : index
    %121 = vector.load %arg11[%c0_46, %c0_47] : memref<1x32xf32, #tpu.memory_space<vmem>>, vector<1x32xf32>
    %cst_48 = arith.constant dense<0.000000e+00> : vector<8xf32>
    %122 = vector.multi_reduction <add>, %119, %cst_48 [1] : vector<8x32xf32> to vector<8xf32>
    %123 = vector.shape_cast %122 : vector<8xf32> to vector<8x1xf32>
    %cst_49 = arith.constant 3.200000e+01 : f32
    %124 = vector.broadcast %cst_49 : f32 to vector<8x1xf32>
    %125 = arith.divf %123, %124 : vector<8x1xf32>
    %126 = vector.broadcast %125 : vector<8x1xf32> to vector<8x32xf32>
    %127 = arith.subf %119, %126 : vector<8x32xf32>
    %128 = arith.mulf %127, %127 : vector<8x32xf32>
    %cst_50 = arith.constant dense<0.000000e+00> : vector<8xf32>
    %129 = vector.multi_reduction <add>, %128, %cst_50 [1] : vector<8x32xf32> to vector<8xf32>
    %130 = vector.shape_cast %129 : vector<8xf32> to vector<8x1xf32>
    %cst_51 = arith.constant 3.200000e+01 : f32
    %131 = vector.broadcast %cst_51 : f32 to vector<8x1xf32>
    %132 = arith.divf %130, %131 : vector<8x1xf32>
    %133 = vector.broadcast %125 : vector<8x1xf32> to vector<8x32xf32>
    %134 = arith.subf %119, %133 : vector<8x32xf32>
    %cst_52 = arith.constant 9.99999974E-6 : f32
    %135 = vector.broadcast %cst_52 : f32 to vector<8x1xf32>
    %136 = arith.addf %132, %135 : vector<8x1xf32>
    %137 = math.rsqrt %136 : vector<8x1xf32>
    %138 = vector.broadcast %137 : vector<8x1xf32> to vector<8x32xf32>
    %139 = arith.mulf %134, %138 : vector<8x32xf32>
    %140 = vector.broadcast %120 : vector<1x32xf32> to vector<8x32xf32>
    %141 = arith.mulf %139, %140 : vector<8x32xf32>
    %142 = vector.broadcast %121 : vector<1x32xf32> to vector<8x32xf32>
    %143 = arith.addf %141, %142 : vector<8x32xf32>
    %c0_53 = arith.constant 0 : index
    %c0_54 = arith.constant 0 : index
    %144 = vector.load %arg12[%c0_53, %c0_54] : memref<32x96xbf16, #tpu.memory_space<vmem>>, vector<32x96xbf16>
    %c0_55 = arith.constant 0 : index
    %c0_56 = arith.constant 0 : index
    %145 = vector.load %arg13[%c0_55, %c0_56] : memref<1x96xf32, #tpu.memory_space<vmem>>, vector<1x96xf32>
    %146 = arith.truncf %143 : vector<8x32xf32> to vector<8x32xbf16>
    %147 = vector.extract_strided_slice %144 {offsets = [0, 0], sizes = [32, 32], strides = [1, 1]} : vector<32x96xbf16> to vector<32x32xbf16>
    %cst_57 = arith.constant dense<0.000000e+00> : vector<8x32xf32>
    %148 = tpu.matmul %146, %147, %cst_57 {dimension_numbers = #tpu.dot_dimension_numbers<[1], [0], [0], [1], [0, 0, 1, 1], [], []>} : vector<8x32xbf16>, vector<32x32xbf16>, vector<8x32xf32> -> vector<8x32xf32>
    %149 = vector.extract_strided_slice %145 {offsets = [0, 0], sizes = [1, 32], strides = [1, 1]} : vector<1x96xf32> to vector<1x32xf32>
    %150 = vector.broadcast %149 : vector<1x32xf32> to vector<8x32xf32>
    %151 = arith.addf %148, %150 : vector<8x32xf32>
    %152 = vector.extract_strided_slice %144 {offsets = [0, 32], sizes = [32, 64], strides = [1, 1]} : vector<32x96xbf16> to vector<32x64xbf16>
    %cst_58 = arith.constant dense<0.000000e+00> : vector<10x64xf32>
    %153 = tpu.matmul %4, %152, %cst_58 {dimension_numbers = #tpu.dot_dimension_numbers<[1], [0], [0], [1], [0, 0, 1, 1], [], []>} : vector<10x32xbf16>, vector<32x64xbf16>, vector<10x64xf32> -> vector<10x64xf32>
    %154 = vector.extract_strided_slice %145 {offsets = [0, 32], sizes = [1, 64], strides = [1, 1]} : vector<1x96xf32> to vector<1x64xf32>
    %155 = vector.broadcast %154 : vector<1x64xf32> to vector<10x64xf32>
    %156 = arith.addf %153, %155 : vector<10x64xf32>
    %c0_i32_59 = arith.constant 0 : i32
    %157 = arith.addi %5, %c0_i32_59 : i32
    %158 = arith.index_cast %157 : i32 to index
    %c0_60 = arith.constant 0 : index
    %159 = vector.load %arg5[%158, %c0_60] : memref<2x10xf32, #tpu.memory_space<vmem>>, vector<1x10xf32>
    %160 = vector.extract_strided_slice %156 {offsets = [0, 0], sizes = [10, 32], strides = [1, 1]} : vector<10x64xf32> to vector<10x32xf32>
    %161 = vector.extract_strided_slice %156 {offsets = [0, 32], sizes = [10, 32], strides = [1, 1]} : vector<10x64xf32> to vector<10x32xf32>
    %162 = vector.extract_strided_slice %151 {offsets = [0, 0], sizes = [8, 8], strides = [1, 1]} : vector<8x32xf32> to vector<8x8xf32>
    %cst_61 = arith.constant 0.353553385 : f32
    %163 = vector.broadcast %cst_61 : f32 to vector<8x8xf32>
    %164 = arith.mulf %162, %163 : vector<8x8xf32>
    %165 = arith.truncf %164 : vector<8x8xf32> to vector<8x8xbf16>
    %166 = vector.extract_strided_slice %160 {offsets = [0, 0], sizes = [10, 8], strides = [1, 1]} : vector<10x32xf32> to vector<10x8xf32>
    %167 = arith.truncf %166 : vector<10x8xf32> to vector<10x8xbf16>
    %168 = vector.extract_strided_slice %161 {offsets = [0, 0], sizes = [10, 8], strides = [1, 1]} : vector<10x32xf32> to vector<10x8xf32>
    %169 = arith.truncf %168 : vector<10x8xf32> to vector<10x8xbf16>
    %cst_62 = arith.constant dense<0.000000e+00> : vector<8x10xf32>
    %170 = tpu.matmul %165, %167, %cst_62 {dimension_numbers = #tpu.dot_dimension_numbers<[1], [1], [0], [0], [0, 0, 1, 0], [], []>} : vector<8x8xbf16>, vector<10x8xbf16>, vector<8x10xf32> -> vector<8x10xf32>
    %171 = vector.broadcast %159 : vector<1x10xf32> to vector<8x10xf32>
    %172 = arith.addf %170, %171 : vector<8x10xf32>
    %cst_63 = arith.constant dense<0xFF800000> : vector<8xf32>
    %173 = vector.multi_reduction <maximumf>, %172, %cst_63 [1] : vector<8x10xf32> to vector<8xf32>
    %174 = vector.shape_cast %173 : vector<8xf32> to vector<8x1xf32>
    %175 = vector.broadcast %174 : vector<8x1xf32> to vector<8x10xf32>
    %176 = arith.subf %172, %175 : vector<8x10xf32>
    %177 = math.exp %176 : vector<8x10xf32>
    %cst_64 = arith.constant dense<0.000000e+00> : vector<8xf32>
    %178 = vector.multi_reduction <add>, %177, %cst_64 [1] : vector<8x10xf32> to vector<8xf32>
    %179 = vector.shape_cast %178 : vector<8xf32> to vector<8x1xf32>
    %180 = tpu.reciprocal %179 {approx = true} : vector<8x1xf32> -> vector<8x1xf32>
    %181 = vector.broadcast %180 : vector<8x1xf32> to vector<8x10xf32>
    %182 = arith.mulf %177, %181 : vector<8x10xf32>
    %183 = arith.truncf %182 : vector<8x10xf32> to vector<8x10xbf16>
    %cst_65 = arith.constant dense<0.000000e+00> : vector<8x8xf32>
    %184 = tpu.matmul %183, %169, %cst_65 {dimension_numbers = #tpu.dot_dimension_numbers<[1], [0], [0], [1], [0, 0, 1, 1], [], []>} : vector<8x10xbf16>, vector<10x8xbf16>, vector<8x8xf32> -> vector<8x8xf32>
    %c0_66 = arith.constant 0 : index
    %c0_67 = arith.constant 0 : index
    %185 = vector.load %arg27[%c0_66, %c0_67] : memref<8x32xf32, #tpu.memory_space<vmem>>, vector<8x8xf32>
    tpu.vector_store %arg27[%c0_66, %c0_67], %184 {strides = array<i32>} : memref<8x32xf32, #tpu.memory_space<vmem>>, vector<8x8xf32>,
    %186 = vector.extract_strided_slice %151 {offsets = [0, 8], sizes = [8, 8], strides = [1, 1]} : vector<8x32xf32> to vector<8x8xf32>
    %cst_68 = arith.constant 0.353553385 : f32
    %187 = vector.broadcast %cst_68 : f32 to vector<8x8xf32>
    %188 = arith.mulf %186, %187 : vector<8x8xf32>
    %189 = arith.truncf %188 : vector<8x8xf32> to vector<8x8xbf16>
    %190 = vector.extract_strided_slice %160 {offsets = [0, 8], sizes = [10, 8], strides = [1, 1]} : vector<10x32xf32> to vector<10x8xf32>
    %191 = arith.truncf %190 : vector<10x8xf32> to vector<10x8xbf16>
    %192 = vector.extract_strided_slice %161 {offsets = [0, 8], sizes = [10, 8], strides = [1, 1]} : vector<10x32xf32> to vector<10x8xf32>
    %193 = arith.truncf %192 : vector<10x8xf32> to vector<10x8xbf16>
    %cst_69 = arith.constant dense<0.000000e+00> : vector<8x10xf32>
    %194 = tpu.matmul %189, %191, %cst_69 {dimension_numbers = #tpu.dot_dimension_numbers<[1], [1], [0], [0], [0, 0, 1, 0], [], []>} : vector<8x8xbf16>, vector<10x8xbf16>, vector<8x10xf32> -> vector<8x10xf32>
    %195 = vector.broadcast %159 : vector<1x10xf32> to vector<8x10xf32>
    %196 = arith.addf %194, %195 : vector<8x10xf32>
    %cst_70 = arith.constant dense<0xFF800000> : vector<8xf32>
    %197 = vector.multi_reduction <maximumf>, %196, %cst_70 [1] : vector<8x10xf32> to vector<8xf32>
    %198 = vector.shape_cast %197 : vector<8xf32> to vector<8x1xf32>
    %199 = vector.broadcast %198 : vector<8x1xf32> to vector<8x10xf32>
    %200 = arith.subf %196, %199 : vector<8x10xf32>
    %201 = math.exp %200 : vector<8x10xf32>
    %cst_71 = arith.constant dense<0.000000e+00> : vector<8xf32>
    %202 = vector.multi_reduction <add>, %201, %cst_71 [1] : vector<8x10xf32> to vector<8xf32>
    %203 = vector.shape_cast %202 : vector<8xf32> to vector<8x1xf32>
    %204 = tpu.reciprocal %203 {approx = true} : vector<8x1xf32> -> vector<8x1xf32>
    %205 = vector.broadcast %204 : vector<8x1xf32> to vector<8x10xf32>
    %206 = arith.mulf %201, %205 : vector<8x10xf32>
    %207 = arith.truncf %206 : vector<8x10xf32> to vector<8x10xbf16>
    %cst_72 = arith.constant dense<0.000000e+00> : vector<8x8xf32>
    %208 = tpu.matmul %207, %193, %cst_72 {dimension_numbers = #tpu.dot_dimension_numbers<[1], [0], [0], [1], [0, 0, 1, 1], [], []>} : vector<8x10xbf16>, vector<10x8xbf16>, vector<8x8xf32> -> vector<8x8xf32>
    %c0_73 = arith.constant 0 : index
    %c8_74 = arith.constant 8 : index
    %209 = vector.load %arg27[%c0_73, %c8_74] : memref<8x32xf32, #tpu.memory_space<vmem>>, vector<8x8xf32>
    tpu.vector_store %arg27[%c0_73, %c8_74], %208 {strides = array<i32>} : memref<8x32xf32, #tpu.memory_space<vmem>>, vector<8x8xf32>,
    %210 = vector.extract_strided_slice %151 {offsets = [0, 16], sizes = [8, 8], strides = [1, 1]} : vector<8x32xf32> to vector<8x8xf32>
    %cst_75 = arith.constant 0.353553385 : f32
    %211 = vector.broadcast %cst_75 : f32 to vector<8x8xf32>
    %212 = arith.mulf %210, %211 : vector<8x8xf32>
    %213 = arith.truncf %212 : vector<8x8xf32> to vector<8x8xbf16>
    %214 = vector.extract_strided_slice %160 {offsets = [0, 16], sizes = [10, 8], strides = [1, 1]} : vector<10x32xf32> to vector<10x8xf32>
    %215 = arith.truncf %214 : vector<10x8xf32> to vector<10x8xbf16>
    %216 = vector.extract_strided_slice %161 {offsets = [0, 16], sizes = [10, 8], strides = [1, 1]} : vector<10x32xf32> to vector<10x8xf32>
    %217 = arith.truncf %216 : vector<10x8xf32> to vector<10x8xbf16>
    %cst_76 = arith.constant dense<0.000000e+00> : vector<8x10xf32>
    %218 = tpu.matmul %213, %215, %cst_76 {dimension_numbers = #tpu.dot_dimension_numbers<[1], [1], [0], [0], [0, 0, 1, 0], [], []>} : vector<8x8xbf16>, vector<10x8xbf16>, vector<8x10xf32> -> vector<8x10xf32>
    %219 = vector.broadcast %159 : vector<1x10xf32> to vector<8x10xf32>
    %220 = arith.addf %218, %219 : vector<8x10xf32>
    %cst_77 = arith.constant dense<0xFF800000> : vector<8xf32>
    %221 = vector.multi_reduction <maximumf>, %220, %cst_77 [1] : vector<8x10xf32> to vector<8xf32>
    %222 = vector.shape_cast %221 : vector<8xf32> to vector<8x1xf32>
    %223 = vector.broadcast %222 : vector<8x1xf32> to vector<8x10xf32>
    %224 = arith.subf %220, %223 : vector<8x10xf32>
    %225 = math.exp %224 : vector<8x10xf32>
    %cst_78 = arith.constant dense<0.000000e+00> : vector<8xf32>
    %226 = vector.multi_reduction <add>, %225, %cst_78 [1] : vector<8x10xf32> to vector<8xf32>
    %227 = vector.shape_cast %226 : vector<8xf32> to vector<8x1xf32>
    %228 = tpu.reciprocal %227 {approx = true} : vector<8x1xf32> -> vector<8x1xf32>
    %229 = vector.broadcast %228 : vector<8x1xf32> to vector<8x10xf32>
    %230 = arith.mulf %225, %229 : vector<8x10xf32>
    %231 = arith.truncf %230 : vector<8x10xf32> to vector<8x10xbf16>
    %cst_79 = arith.constant dense<0.000000e+00> : vector<8x8xf32>
    %232 = tpu.matmul %231, %217, %cst_79 {dimension_numbers = #tpu.dot_dimension_numbers<[1], [0], [0], [1], [0, 0, 1, 1], [], []>} : vector<8x10xbf16>, vector<10x8xbf16>, vector<8x8xf32> -> vector<8x8xf32>
    %c0_80 = arith.constant 0 : index
    %c16_81 = arith.constant 16 : index
    %233 = vector.load %arg27[%c0_80, %c16_81] : memref<8x32xf32, #tpu.memory_space<vmem>>, vector<8x8xf32>
    tpu.vector_store %arg27[%c0_80, %c16_81], %232 {strides = array<i32>} : memref<8x32xf32, #tpu.memory_space<vmem>>, vector<8x8xf32>,
    %234 = vector.extract_strided_slice %151 {offsets = [0, 24], sizes = [8, 8], strides = [1, 1]} : vector<8x32xf32> to vector<8x8xf32>
    %cst_82 = arith.constant 0.353553385 : f32
    %235 = vector.broadcast %cst_82 : f32 to vector<8x8xf32>
    %236 = arith.mulf %234, %235 : vector<8x8xf32>
    %237 = arith.truncf %236 : vector<8x8xf32> to vector<8x8xbf16>
    %238 = vector.extract_strided_slice %160 {offsets = [0, 24], sizes = [10, 8], strides = [1, 1]} : vector<10x32xf32> to vector<10x8xf32>
    %239 = arith.truncf %238 : vector<10x8xf32> to vector<10x8xbf16>
    %240 = vector.extract_strided_slice %161 {offsets = [0, 24], sizes = [10, 8], strides = [1, 1]} : vector<10x32xf32> to vector<10x8xf32>
    %241 = arith.truncf %240 : vector<10x8xf32> to vector<10x8xbf16>
    %cst_83 = arith.constant dense<0.000000e+00> : vector<8x10xf32>
    %242 = tpu.matmul %237, %239, %cst_83 {dimension_numbers = #tpu.dot_dimension_numbers<[1], [1], [0], [0], [0, 0, 1, 0], [], []>} : vector<8x8xbf16>, vector<10x8xbf16>, vector<8x10xf32> -> vector<8x10xf32>
    %243 = vector.broadcast %159 : vector<1x10xf32> to vector<8x10xf32>
    %244 = arith.addf %242, %243 : vector<8x10xf32>
    %cst_84 = arith.constant dense<0xFF800000> : vector<8xf32>
    %245 = vector.multi_reduction <maximumf>, %244, %cst_84 [1] : vector<8x10xf32> to vector<8xf32>
    %246 = vector.shape_cast %245 : vector<8xf32> to vector<8x1xf32>
    %247 = vector.broadcast %246 : vector<8x1xf32> to vector<8x10xf32>
    %248 = arith.subf %244, %247 : vector<8x10xf32>
    %249 = math.exp %248 : vector<8x10xf32>
    %cst_85 = arith.constant dense<0.000000e+00> : vector<8xf32>
    %250 = vector.multi_reduction <add>, %249, %cst_85 [1] : vector<8x10xf32> to vector<8xf32>
    %251 = vector.shape_cast %250 : vector<8xf32> to vector<8x1xf32>
    %252 = tpu.reciprocal %251 {approx = true} : vector<8x1xf32> -> vector<8x1xf32>
    %253 = vector.broadcast %252 : vector<8x1xf32> to vector<8x10xf32>
    %254 = arith.mulf %249, %253 : vector<8x10xf32>
    %255 = arith.truncf %254 : vector<8x10xf32> to vector<8x10xbf16>
    %cst_86 = arith.constant dense<0.000000e+00> : vector<8x8xf32>
    %256 = tpu.matmul %255, %241, %cst_86 {dimension_numbers = #tpu.dot_dimension_numbers<[1], [0], [0], [1], [0, 0, 1, 1], [], []>} : vector<8x10xbf16>, vector<10x8xbf16>, vector<8x8xf32> -> vector<8x8xf32>
    %c0_87 = arith.constant 0 : index
    %c24_88 = arith.constant 24 : index
    %257 = vector.load %arg27[%c0_87, %c24_88] : memref<8x32xf32, #tpu.memory_space<vmem>>, vector<8x8xf32>
    tpu.vector_store %arg27[%c0_87, %c24_88], %256 {strides = array<i32>} : memref<8x32xf32, #tpu.memory_space<vmem>>, vector<8x8xf32>,
    %c0_89 = arith.constant 0 : index
    %c0_90 = arith.constant 0 : index
    %258 = vector.load %arg27[%c0_89, %c0_90] : memref<8x32xf32, #tpu.memory_space<vmem>>, vector<8x32xf32>
    %259 = arith.truncf %258 : vector<8x32xf32> to vector<8x32xbf16>
    %c0_91 = arith.constant 0 : index
    %c0_92 = arith.constant 0 : index
    %260 = vector.load %arg14[%c0_91, %c0_92] : memref<32x32xbf16, #tpu.memory_space<vmem>>, vector<32x32xbf16>
    %cst_93 = arith.constant dense<0.000000e+00> : vector<8x32xf32>
    %261 = tpu.matmul %259, %260, %cst_93 {dimension_numbers = #tpu.dot_dimension_numbers<[1], [0], [0], [1], [0, 0, 1, 1], [], []>} : vector<8x32xbf16>, vector<32x32xbf16>, vector<8x32xf32> -> vector<8x32xf32>
    %c0_94 = arith.constant 0 : index
    %c0_95 = arith.constant 0 : index
    %262 = vector.load %arg15[%c0_94, %c0_95] : memref<1x32xf32, #tpu.memory_space<vmem>>, vector<1x32xf32>
    %263 = vector.broadcast %262 : vector<1x32xf32> to vector<8x32xf32>
    %264 = arith.addf %261, %263 : vector<8x32xf32>
    %265 = arith.addf %143, %264 : vector<8x32xf32>
    %c0_96 = arith.constant 0 : index
    %c0_97 = arith.constant 0 : index
    %266 = vector.load %arg16[%c0_96, %c0_97] : memref<1x32xf32, #tpu.memory_space<vmem>>, vector<1x32xf32>
    %c0_98 = arith.constant 0 : index
    %c0_99 = arith.constant 0 : index
    %267 = vector.load %arg17[%c0_98, %c0_99] : memref<1x32xf32, #tpu.memory_space<vmem>>, vector<1x32xf32>
    %cst_100 = arith.constant dense<0.000000e+00> : vector<8xf32>
    %268 = vector.multi_reduction <add>, %265, %cst_100 [1] : vector<8x32xf32> to vector<8xf32>
    %269 = vector.shape_cast %268 : vector<8xf32> to vector<8x1xf32>
    %cst_101 = arith.constant 3.200000e+01 : f32
    %270 = vector.broadcast %cst_101 : f32 to vector<8x1xf32>
    %271 = arith.divf %269, %270 : vector<8x1xf32>
    %272 = vector.broadcast %271 : vector<8x1xf32> to vector<8x32xf32>
    %273 = arith.subf %265, %272 : vector<8x32xf32>
    %274 = arith.mulf %273, %273 : vector<8x32xf32>
    %cst_102 = arith.constant dense<0.000000e+00> : vector<8xf32>
    %275 = vector.multi_reduction <add>, %274, %cst_102 [1] : vector<8x32xf32> to vector<8xf32>
    %276 = vector.shape_cast %275 : vector<8xf32> to vector<8x1xf32>
    %cst_103 = arith.constant 3.200000e+01 : f32
    %277 = vector.broadcast %cst_103 : f32 to vector<8x1xf32>
    %278 = arith.divf %276, %277 : vector<8x1xf32>
    %279 = vector.broadcast %271 : vector<8x1xf32> to vector<8x32xf32>
    %280 = arith.subf %265, %279 : vector<8x32xf32>
    %cst_104 = arith.constant 9.99999974E-6 : f32
    %281 = vector.broadcast %cst_104 : f32 to vector<8x1xf32>
    %282 = arith.addf %278, %281 : vector<8x1xf32>
    %283 = math.rsqrt %282 : vector<8x1xf32>
    %284 = vector.broadcast %283 : vector<8x1xf32> to vector<8x32xf32>
    %285 = arith.mulf %280, %284 : vector<8x32xf32>
    %286 = vector.broadcast %266 : vector<1x32xf32> to vector<8x32xf32>
    %287 = arith.mulf %285, %286 : vector<8x32xf32>
    %288 = vector.broadcast %267 : vector<1x32xf32> to vector<8x32xf32>
    %289 = arith.addf %287, %288 : vector<8x32xf32>
    %290 = arith.truncf %289 : vector<8x32xf32> to vector<8x32xbf16>
    %c0_105 = arith.constant 0 : index
    %c0_106 = arith.constant 0 : index
    %291 = vector.load %arg18[%c0_105, %c0_106] : memref<32x64xbf16, #tpu.memory_space<vmem>>, vector<32x64xbf16>
    %cst_107 = arith.constant dense<0.000000e+00> : vector<8x64xf32>
    %292 = tpu.matmul %290, %291, %cst_107 {dimension_numbers = #tpu.dot_dimension_numbers<[1], [0], [0], [1], [0, 0, 1, 1], [], []>} : vector<8x32xbf16>, vector<32x64xbf16>, vector<8x64xf32> -> vector<8x64xf32>
    %c0_108 = arith.constant 0 : index
    %c0_109 = arith.constant 0 : index
    %293 = vector.load %arg19[%c0_108, %c0_109] : memref<1x64xf32, #tpu.memory_space<vmem>>, vector<1x64xf32>
    %294 = vector.broadcast %293 : vector<1x64xf32> to vector<8x64xf32>
    %295 = arith.addf %292, %294 : vector<8x64xf32>
    %cst_110 = arith.constant 0.000000e+00 : f32
    %296 = vector.broadcast %cst_110 : f32 to vector<8x64xf32>
    %297 = arith.maximumf %295, %296 : vector<8x64xf32>
    %298 = arith.truncf %297 : vector<8x64xf32> to vector<8x64xbf16>
    %c0_111 = arith.constant 0 : index
    %c0_112 = arith.constant 0 : index
    %299 = vector.load %arg20[%c0_111, %c0_112] : memref<64x32xbf16, #tpu.memory_space<vmem>>, vector<64x32xbf16>
    %cst_113 = arith.constant dense<0.000000e+00> : vector<8x32xf32>
    %300 = tpu.matmul %298, %299, %cst_113 {dimension_numbers = #tpu.dot_dimension_numbers<[1], [0], [0], [1], [0, 0, 1, 1], [], []>} : vector<8x64xbf16>, vector<64x32xbf16>, vector<8x32xf32> -> vector<8x32xf32>
    %c0_114 = arith.constant 0 : index
    %c0_115 = arith.constant 0 : index
    %301 = vector.load %arg21[%c0_114, %c0_115] : memref<1x32xf32, #tpu.memory_space<vmem>>, vector<1x32xf32>
    %302 = vector.broadcast %301 : vector<1x32xf32> to vector<8x32xf32>
    %303 = arith.addf %300, %302 : vector<8x32xf32>
    %304 = arith.addf %289, %303 : vector<8x32xf32>
    %c0_116 = arith.constant 0 : index
    %c0_117 = arith.constant 0 : index
    %305 = vector.load %arg22[%c0_116, %c0_117] : memref<1x32xf32, #tpu.memory_space<vmem>>, vector<1x32xf32>
    %c0_118 = arith.constant 0 : index
    %c0_119 = arith.constant 0 : index
    %306 = vector.load %arg23[%c0_118, %c0_119] : memref<1x32xf32, #tpu.memory_space<vmem>>, vector<1x32xf32>
    %cst_120 = arith.constant dense<0.000000e+00> : vector<8xf32>
    %307 = vector.multi_reduction <add>, %304, %cst_120 [1] : vector<8x32xf32> to vector<8xf32>
    %308 = vector.shape_cast %307 : vector<8xf32> to vector<8x1xf32>
    %cst_121 = arith.constant 3.200000e+01 : f32
    %309 = vector.broadcast %cst_121 : f32 to vector<8x1xf32>
    %310 = arith.divf %308, %309 : vector<8x1xf32>
    %311 = vector.broadcast %310 : vector<8x1xf32> to vector<8x32xf32>
    %312 = arith.subf %304, %311 : vector<8x32xf32>
    %313 = arith.mulf %312, %312 : vector<8x32xf32>
    %cst_122 = arith.constant dense<0.000000e+00> : vector<8xf32>
    %314 = vector.multi_reduction <add>, %313, %cst_122 [1] : vector<8x32xf32> to vector<8xf32>
    %315 = vector.shape_cast %314 : vector<8xf32> to vector<8x1xf32>
    %cst_123 = arith.constant 3.200000e+01 : f32
    %316 = vector.broadcast %cst_123 : f32 to vector<8x1xf32>
    %317 = arith.divf %315, %316 : vector<8x1xf32>
    %318 = vector.broadcast %310 : vector<8x1xf32> to vector<8x32xf32>
    %319 = arith.subf %304, %318 : vector<8x32xf32>
    %cst_124 = arith.constant 9.99999974E-6 : f32
    %320 = vector.broadcast %cst_124 : f32 to vector<8x1xf32>
    %321 = arith.addf %317, %320 : vector<8x1xf32>
    %322 = math.rsqrt %321 : vector<8x1xf32>
    %323 = vector.broadcast %322 : vector<8x1xf32> to vector<8x32xf32>
    %324 = arith.mulf %319, %323 : vector<8x32xf32>
    %325 = vector.broadcast %305 : vector<1x32xf32> to vector<8x32xf32>
    %326 = arith.mulf %324, %325 : vector<8x32xf32>
    %327 = vector.broadcast %306 : vector<1x32xf32> to vector<8x32xf32>
    %328 = arith.addf %326, %327 : vector<8x32xf32>
    %329 = vector.shape_cast %328 : vector<8x32xf32> to vector<1x8x32xf32>
    %330 = arith.truncf %329 : vector<1x8x32xf32> to vector<1x8x32xbf16>
    %c0_125 = arith.constant 0 : index
    %c0_126 = arith.constant 0 : index
    %c0_127 = arith.constant 0 : index
    %331 = vector.load %arg26[%c0_125, %c0_126, %c0_127] : memref<1x8x32xbf16, #tpu.memory_space<vmem>>, vector<1x8x32xbf16>
    tpu.vector_store %arg26[%c0_125, %c0_126, %c0_127], %330 {strides = array<i32>} : memref<1x8x32xbf16, #tpu.memory_space<vmem>>, vector<1x8x32xbf16>,
    return
  }
  func.func @transform_0(%arg0: i32) -> (i32, i32, i32) {
    %c0_i32 = arith.constant 0 : i32
    %c0_i32_0 = arith.constant 0 : i32
    %c0_i32_1 = arith.constant 0 : i32
    return %arg0, %c0_i32, %c0_i32_0 : i32, i32, i32
  }
  func.func @transform_1(%arg0: i32) -> (i32, i32, i32) {
    %c0_i32 = arith.constant 0 : i32
    %c0_i32_0 = arith.constant 0 : i32
    %c0_i32_1 = arith.constant 0 : i32
    return %arg0, %c0_i32, %c0_i32_0 : i32, i32, i32
  }
  func.func @transform_2(%arg0: i32) -> (i32, i32) {
    %c0_i32 = arith.constant 0 : i32
    %c0_i32_0 = arith.constant 0 : i32
    %c0_i32_1 = arith.constant 0 : i32
    return %c0_i32, %c0_i32_0 : i32, i32
  }
  func.func @transform_3(%arg0: i32) -> (i32, i32) {
    %c0_i32 = arith.constant 0 : i32
    %c0_i32_0 = arith.constant 0 : i32
    %c0_i32_1 = arith.constant 0 : i32
    return %c0_i32, %c0_i32_0 : i32, i32
  }
  func.func @transform_4(%arg0: i32) -> (i32, i32) {
    %c0_i32 = arith.constant 0 : i32
    %c0_i32_0 = arith.constant 0 : i32
    %c0_i32_1 = arith.constant 0 : i32
    return %c0_i32, %c0_i32_0 : i32, i32
  }
  func.func @transform_5(%arg0: i32) -> (i32, i32) {
    %c0_i32 = arith.constant 0 : i32
    %c0_i32_0 = arith.constant 0 : i32
    %c0_i32_1 = arith.constant 0 : i32
    return %c0_i32, %c0_i32_0 : i32, i32
  }
  func.func @transform_6(%arg0: i32) -> (i32, i32) {
    %c0_i32 = arith.constant 0 : i32
    %c0_i32_0 = arith.constant 0 : i32
    %c0_i32_1 = arith.constant 0 : i32
    return %c0_i32, %c0_i32_0 : i32, i32
  }
  func.func @transform_7(%arg0: i32) -> (i32, i32) {
    %c0_i32 = arith.constant 0 : i32
    %c0_i32_0 = arith.constant 0 : i32
    %c0_i32_1 = arith.constant 0 : i32
    return %c0_i32, %c0_i32_0 : i32, i32
  }
  func.func @transform_8(%arg0: i32) -> (i32, i32) {
    %c0_i32 = arith.constant 0 : i32
    %c0_i32_0 = arith.constant 0 : i32
    %c0_i32_1 = arith.constant 0 : i32
    return %c0_i32, %c0_i32_0 : i32, i32
  }
  func.func @transform_9(%arg0: i32) -> (i32, i32) {
    %c0_i32 = arith.constant 0 : i32
    %c0_i32_0 = arith.constant 0 : i32
    %c0_i32_1 = arith.constant 0 : i32
    return %c0_i32, %c0_i32_0 : i32, i32
  }
  func.func @transform_10(%arg0: i32) -> (i32, i32) {
    %c0_i32 = arith.constant 0 : i32
    %c0_i32_0 = arith.constant 0 : i32
    %c0_i32_1 = arith.constant 0 : i32
    return %c0_i32, %c0_i32_0 : i32, i32
  }
  func.func @transform_11(%arg0: i32) -> (i32, i32) {
    %c0_i32 = arith.constant 0 : i32
    %c0_i32_0 = arith.constant 0 : i32
    %c0_i32_1 = arith.constant 0 : i32
    return %c0_i32, %c0_i32_0 : i32, i32
  }
  func.func @transform_12(%arg0: i32) -> (i32, i32) {
    %c0_i32 = arith.constant 0 : i32
    %c0_i32_0 = arith.constant 0 : i32
    %c0_i32_1 = arith.constant 0 : i32
    return %c0_i32, %c0_i32_0 : i32, i32
  }
  func.func @transform_13(%arg0: i32) -> (i32, i32) {
    %c0_i32 = arith.constant 0 : i32
    %c0_i32_0 = arith.constant 0 : i32
    %c0_i32_1 = arith.constant 0 : i32
    return %c0_i32, %c0_i32_0 : i32, i32
  }
  func.func @transform_14(%arg0: i32) -> (i32, i32) {
    %c0_i32 = arith.constant 0 : i32
    %c0_i32_0 = arith.constant 0 : i32
    %c0_i32_1 = arith.constant 0 : i32
    return %c0_i32, %c0_i32_0 : i32, i32
  }
  func.func @transform_15(%arg0: i32) -> (i32, i32) {
    %c0_i32 = arith.constant 0 : i32
    %c0_i32_0 = arith.constant 0 : i32
    %c0_i32_1 = arith.constant 0 : i32
    return %c0_i32, %c0_i32_0 : i32, i32
  }
  func.func @transform_16(%arg0: i32) -> (i32, i32) {
    %c0_i32 = arith.constant 0 : i32
    %c0_i32_0 = arith.constant 0 : i32
    %c0_i32_1 = arith.constant 0 : i32
    return %c0_i32, %c0_i32_0 : i32, i32
  }
  func.func @transform_17(%arg0: i32) -> (i32, i32) {
    %c0_i32 = arith.constant 0 : i32
    %c0_i32_0 = arith.constant 0 : i32
    %c0_i32_1 = arith.constant 0 : i32
    return %c0_i32, %c0_i32_0 : i32, i32
  }
  func.func @transform_18(%arg0: i32) -> (i32, i32) {
    %c0_i32 = arith.constant 0 : i32
    %c0_i32_0 = arith.constant 0 : i32
    %c0_i32_1 = arith.constant 0 : i32
    return %c0_i32, %c0_i32_0 : i32, i32
  }
  func.func @transform_19(%arg0: i32) -> (i32, i32) {
    %c0_i32 = arith.constant 0 : i32
    %c0_i32_0 = arith.constant 0 : i32
    %c0_i32_1 = arith.constant 0 : i32
    return %c0_i32, %c0_i32_0 : i32, i32
  }
  func.func @transform_20(%arg0: i32) -> (i32, i32) {
    %c0_i32 = arith.constant 0 : i32
    %c0_i32_0 = arith.constant 0 : i32
    %c0_i32_1 = arith.constant 0 : i32
    return %c0_i32, %c0_i32_0 : i32, i32
  }
  func.func @transform_21(%arg0: i32) -> (i32, i32) {
    %c0_i32 = arith.constant 0 : i32
    %c0_i32_0 = arith.constant 0 : i32
    %c0_i32_1 = arith.constant 0 : i32
    return %c0_i32, %c0_i32_0 : i32, i32
  }
  func.func @transform_22(%arg0: i32) -> (i32, i32) {
    %c0_i32 = arith.constant 0 : i32
    %c0_i32_0 = arith.constant 0 : i32
    %c0_i32_1 = arith.constant 0 : i32
    return %c0_i32, %c0_i32_0 : i32, i32
  }
  func.func @transform_23(%arg0: i32) -> (i32, i32) {
    %c0_i32 = arith.constant 0 : i32
    %c0_i32_0 = arith.constant 0 : i32
    %c0_i32_1 = arith.constant 0 : i32
    return %c0_i32, %c0_i32_0 : i32, i32
  }
  func.func @transform_24(%arg0: i32) -> (i32, i32) {
    %c0_i32 = arith.constant 0 : i32
    %c0_i32_0 = arith.constant 0 : i32
    %c0_i32_1 = arith.constant 0 : i32
    return %c0_i32, %c0_i32_0 : i32, i32
  }
  func.func @transform_25(%arg0: i32) -> (i32, i32, i32) {
    %c0_i32 = arith.constant 0 : i32
    %c0_i32_0 = arith.constant 0 : i32
    %c0_i32_1 = arith.constant 0 : i32
    return %arg0, %c0_i32, %c0_i32_0 : i32, i32, i32
  }
}

module attributes {stable_mosaic.version = 11 : i64} {
  func.func @_decoder_layer_kernel(%arg0: i32, %arg1: memref<1x8x32xbf16, #tpu.memory_space<vmem>>, %arg2: memref<1x10x32xbf16, #tpu.memory_space<vmem>>, %arg3: memref<8x8xf32, #tpu.memory_space<vmem>>, %arg4: memref<2x8xf32, #tpu.memory_space<vmem>>, %arg5: memref<2x10xf32, #tpu.memory_space<vmem>>, %arg6: memref<32x96xbf16, #tpu.memory_space<vmem>>, %arg7: memref<1x96xf32, #tpu.memory_space<vmem>>, %arg8: memref<32x32xbf16, #tpu.memory_space<vmem>>, %arg9: memref<1x32xf32, #tpu.memory_space<vmem>>, %arg10: memref<1x32xf32, #tpu.memory_space<vmem>>, %arg11: memref<1x32xf32, #tpu.memory_space<vmem>>, %arg12: memref<32x96xbf16, #tpu.memory_space<vmem>>, %arg13: memref<1x96xf32, #tpu.memory_space<vmem>>, %arg14: memref<32x32xbf16, #tpu.memory_space<vmem>>, %arg15: memref<1x32xf32, #tpu.memory_space<vmem>>, %arg16: memref<1x32xf32, #tpu.memory_space<vmem>>, %arg17: memref<1x32xf32, #tpu.memory_space<vmem>>, %arg18: memref<32x64xbf16, #tpu.memory_space<vmem>>, %arg19: memref<1x64xf32, #tpu.memory_space<vmem>>, %arg20: memref<64x32xbf16, #tpu.memory_space<vmem>>, %arg21: memref<1x32xf32, #tpu.memory_space<vmem>>, %arg22: memref<1x32xf32, #tpu.memory_space<vmem>>, %arg23: memref<1x32xf32, #tpu.memory_space<vmem>>, %arg24: memref<1x32xf32, #tpu.memory_space<vmem>>, %arg25: memref<1x32xf32, #tpu.memory_space<vmem>>, %arg26: memref<1x8x32xbf16, #tpu.memory_space<vmem>>, %arg27: memref<8x32xf32, #tpu.memory_space<vmem>>) attributes {dimension_semantics = [#tpu.dimension_semantics<parallel>], iteration_bounds = array<i64: 2>, scalar_prefetch = 0 : i64, scratch_operands = 1 : i64, tpu.core_type = #tpu.core_type<tc>, window_params = [{transform_indices = @transform_0, window_bounds = array<i64: 1, 8, 32>}, {transform_indices = @transform_1, window_bounds = array<i64: 1, 10, 32>}, {pipeline_mode = #tpu.pipeline_mode<synchronous>, transform_indices = @transform_2, window_bounds = array<i64: 8, 8>}, {pipeline_mode = #tpu.pipeline_mode<synchronous>, transform_indices = @transform_3, window_bounds = array<i64: 2, 8>}, {pipeline_mode = #tpu.pipeline_mode<synchronous>, transform_indices = @transform_4, window_bounds = array<i64: 2, 10>}, {pipeline_mode = #tpu.pipeline_mode<synchronous>, transform_indices = @transform_5, window_bounds = array<i64: 32, 96>}, {pipeline_mode = #tpu.pipeline_mode<synchronous>, transform_indices = @transform_6, window_bounds = array<i64: 1, 96>}, {pipeline_mode = #tpu.pipeline_mode<synchronous>, transform_indices = @transform_7, window_bounds = array<i64: 32, 32>}, {pipeline_mode = #tpu.pipeline_mode<synchronous>, transform_indices = @transform_8, window_bounds = array<i64: 1, 32>}, {pipeline_mode = #tpu.pipeline_mode<synchronous>, transform_indices = @transform_9, window_bounds = array<i64: 1, 32>}, {pipeline_mode = #tpu.pipeline_mode<synchronous>, transform_indices = @transform_10, window_bounds = array<i64: 1, 32>}, {pipeline_mode = #tpu.pipeline_mode<synchronous>, transform_indices = @transform_11, window_bounds = array<i64: 32, 96>}, {pipeline_mode = #tpu.pipeline_mode<synchronous>, transform_indices = @transform_12, window_bounds = array<i64: 1, 96>}, {pipeline_mode = #tpu.pipeline_mode<synchronous>, transform_indices = @transform_13, window_bounds = array<i64: 32, 32>}, {pipeline_mode = #tpu.pipeline_mode<synchronous>, transform_indices = @transform_14, window_bounds = array<i64: 1, 32>}, {pipeline_mode = #tpu.pipeline_mode<synchronous>, transform_indices = @transform_15, window_bounds = array<i64: 1, 32>}, {pipeline_mode = #tpu.pipeline_mode<synchronous>, transform_indices = @transform_16, window_bounds = array<i64: 1, 32>}, {pipeline_mode = #tpu.pipeline_mode<synchronous>, transform_indices = @transform_17, window_bounds = array<i64: 32, 64>}, {pipeline_mode = #tpu.pipeline_mode<synchronous>, transform_indices = @transform_18, window_bounds = array<i64: 1, 64>}, {pipeline_mode = #tpu.pipeline_mode<synchronous>, transform_indices = @transform_19, window_bounds = array<i64: 64, 32>}, {pipeline_mode = #tpu.pipeline_mode<synchronous>, transform_indices = @transform_20, window_bounds = array<i64: 1, 32>}, {pipeline_mode = #tpu.pipeline_mode<synchronous>, transform_indices = @transform_21, window_bounds = array<i64: 1, 32>}, {pipeline_mode = #tpu.pipeline_mode<synchronous>, transform_indices = @transform_22, window_bounds = array<i64: 1, 32>}, {pipeline_mode = #tpu.pipeline_mode<synchronous>, transform_indices = @transform_23, window_bounds = array<i64: 1, 32>}, {pipeline_mode = #tpu.pipeline_mode<synchronous>, transform_indices = @transform_24, window_bounds = array<i64: 1, 32>}, {transform_indices = @transform_25, window_bounds = array<i64: 1, 8, 32>}]} {
    %c0 = arith.constant 0 : index
    %c0_0 = arith.constant 0 : index
    %c0_1 = arith.constant 0 : index
    %0 = vector.load %arg1[%c0, %c0_0, %c0_1] : memref<1x8x32xbf16, #tpu.memory_space<vmem>>, vector<1x8x32xbf16>
    %1 = vector.shape_cast %0 : vector<1x8x32xbf16> to vector<8x32xbf16>
    %2 = arith.extf %1 : vector<8x32xbf16> to vector<8x32xf32>
    %c0_2 = arith.constant 0 : index
    %c0_3 = arith.constant 0 : index
    %c0_4 = arith.constant 0 : index
    %3 = vector.load %arg2[%c0_2, %c0_3, %c0_4] : memref<1x10x32xbf16, #tpu.memory_space<vmem>>, vector<1x10x32xbf16>
    %4 = vector.shape_cast %3 : vector<1x10x32xbf16> to vector<10x32xbf16>
    %c1_i32 = arith.constant 1 : i32
    %5 = arith.muli %arg0, %c1_i32 : i32
    %c0_5 = arith.constant 0 : index
    %c0_6 = arith.constant 0 : index
    %6 = vector.load %arg6[%c0_5, %c0_6] : memref<32x96xbf16, #tpu.memory_space<vmem>>, vector<32x96xbf16>
    %cst = arith.constant dense<0.000000e+00> : vector<8x96xf32>
    %7 = tpu.matmul %1, %6, %cst {dimension_numbers = #tpu.dot_dimension_numbers<[1], [0], [0], [1], [0, 0, 1, 1], [], []>} : vector<8x32xbf16>, vector<32x96xbf16>, vector<8x96xf32> -> vector<8x96xf32>
    %c0_7 = arith.constant 0 : index
    %c0_8 = arith.constant 0 : index
    %8 = vector.load %arg7[%c0_7, %c0_8] : memref<1x96xf32, #tpu.memory_space<vmem>>, vector<1x96xf32>
    %9 = vector.broadcast %8 : vector<1x96xf32> to vector<8x96xf32>
    %10 = arith.addf %7, %9 : vector<8x96xf32>
    %c0_9 = arith.constant 0 : index
    %c0_10 = arith.constant 0 : index
    %11 = vector.load %arg3[%c0_9, %c0_10] : memref<8x8xf32, #tpu.memory_space<vmem>>, vector<8x8xf32>
    %c0_i32 = arith.constant 0 : i32
    %12 = arith.addi %5, %c0_i32 : i32
    %13 = arith.index_cast %12 : i32 to index
    %c0_11 = arith.constant 0 : index
    %14 = vector.load %arg4[%13, %c0_11] : memref<2x8xf32, #tpu.memory_space<vmem>>, vector<1x8xf32>
    %15 = vector.broadcast %14 : vector<1x8xf32> to vector<8x8xf32>
    %16 = arith.addf %11, %15 : vector<8x8xf32>
    %17 = vector.extract_strided_slice %10 {offsets = [0, 0], sizes = [8, 32], strides = [1, 1]} : vector<8x96xf32> to vector<8x32xf32>
    %18 = vector.extract_strided_slice %10 {offsets = [0, 32], sizes = [8, 32], strides = [1, 1]} : vector<8x96xf32> to vector<8x32xf32>
    %19 = vector.extract_strided_slice %10 {offsets = [0, 64], sizes = [8, 32], strides = [1, 1]} : vector<8x96xf32> to vector<8x32xf32>
    %20 = vector.extract_strided_slice %17 {offsets = [0, 0], sizes = [8, 8], strides = [1, 1]} : vector<8x32xf32> to vector<8x8xf32>
    %cst_12 = arith.constant 0.353553385 : f32
    %21 = vector.broadcast %cst_12 : f32 to vector<8x8xf32>
    %22 = arith.mulf %20, %21 : vector<8x8xf32>
    %23 = arith.truncf %22 : vector<8x8xf32> to vector<8x8xbf16>
    %24 = vector.extract_strided_slice %18 {offsets = [0, 0], sizes = [8, 8], strides = [1, 1]} : vector<8x32xf32> to vector<8x8xf32>
    %25 = arith.truncf %24 : vector<8x8xf32> to vector<8x8xbf16>
    %26 = vector.extract_strided_slice %19 {offsets = [0, 0], sizes = [8, 8], strides = [1, 1]} : vector<8x32xf32> to vector<8x8xf32>
    %27 = arith.truncf %26 : vector<8x8xf32> to vector<8x8xbf16>
    %cst_13 = arith.constant dense<0.000000e+00> : vector<8x8xf32>
    %28 = tpu.matmul %23, %25, %cst_13 {dimension_numbers = #tpu.dot_dimension_numbers<[1], [1], [0], [0], [0, 0, 1, 0], [], []>} : vector<8x8xbf16>, vector<8x8xbf16>, vector<8x8xf32> -> vector<8x8xf32>
    %29 = arith.addf %28, %16 : vector<8x8xf32>
    %cst_14 = arith.constant dense<0xFF800000> : vector<8xf32>
    %30 = vector.multi_reduction <maximumf>, %29, %cst_14 [1] : vector<8x8xf32> to vector<8xf32>
    %31 = vector.shape_cast %30 : vector<8xf32> to vector<8x1xf32>
    %32 = vector.broadcast %31 : vector<8x1xf32> to vector<8x8xf32>
    %33 = arith.subf %29, %32 : vector<8x8xf32>
    %34 = math.exp %33 : vector<8x8xf32>
    %cst_15 = arith.constant dense<0.000000e+00> : vector<8xf32>
    %35 = vector.multi_reduction <add>, %34, %cst_15 [1] : vector<8x8xf32> to vector<8xf32>
    %36 = vector.shape_cast %35 : vector<8xf32> to vector<8x1xf32>
    %37 = tpu.reciprocal %36 {approx = true} : vector<8x1xf32> -> vector<8x1xf32>
    %38 = vector.broadcast %37 : vector<8x1xf32> to vector<8x8xf32>
    %39 = arith.mulf %34, %38 : vector<8x8xf32>
    %40 = arith.truncf %39 : vector<8x8xf32> to vector<8x8xbf16>
    %cst_16 = arith.constant dense<0.000000e+00> : vector<8x8xf32>
    %41 = tpu.matmul %40, %27, %cst_16 {dimension_numbers = #tpu.dot_dimension_numbers<[1], [0], [0], [1], [0, 0, 1, 1], [], []>} : vector<8x8xbf16>, vector<8x8xbf16>, vector<8x8xf32> -> vector<8x8xf32>
    %c0_17 = arith.constant 0 : index
    %c0_18 = arith.constant 0 : index
    %42 = vector.load %arg27[%c0_17, %c0_18] : memref<8x32xf32, #tpu.memory_space<vmem>>, vector<8x8xf32>
    tpu.vector_store %arg27[%c0_17, %c0_18], %41 {strides = array<i32>} : memref<8x32xf32, #tpu.memory_space<vmem>>, vector<8x8xf32>,
    %43 = vector.extract_strided_slice %17 {offsets = [0, 8], sizes = [8, 8], strides = [1, 1]} : vector<8x32xf32> to vector<8x8xf32>
    %cst_19 = arith.constant 0.353553385 : f32
    %44 = vector.broadcast %cst_19 : f32 to vector<8x8xf32>
    %45 = arith.mulf %43, %44 : vector<8x8xf32>
    %46 = arith.truncf %45 : vector<8x8xf32> to vector<8x8xbf16>
    %47 = vector.extract_strided_slice %18 {offsets = [0, 8], sizes = [8, 8], strides = [1, 1]} : vector<8x32xf32> to vector<8x8xf32>
    %48 = arith.truncf %47 : vector<8x8xf32> to vector<8x8xbf16>
    %49 = vector.extract_strided_slice %19 {offsets = [0, 8], sizes = [8, 8], strides = [1, 1]} : vector<8x32xf32> to vector<8x8xf32>
    %50 = arith.truncf %49 : vector<8x8xf32> to vector<8x8xbf16>
    %cst_20 = arith.constant dense<0.000000e+00> : vector<8x8xf32>
    %51 = tpu.matmul %46, %48, %cst_20 {dimension_numbers = #tpu.dot_dimension_numbers<[1], [1], [0], [0], [0, 0, 1, 0], [], []>} : vector<8x8xbf16>, vector<8x8xbf16>, vector<8x8xf32> -> vector<8x8xf32>
    %52 = arith.addf %51, %16 : vector<8x8xf32>
    %cst_21 = arith.constant dense<0xFF800000> : vector<8xf32>
    %53 = vector.multi_reduction <maximumf>, %52, %cst_21 [1] : vector<8x8xf32> to vector<8xf32>
    %54 = vector.shape_cast %53 : vector<8xf32> to vector<8x1xf32>
    %55 = vector.broadcast %54 : vector<8x1xf32> to vector<8x8xf32>
    %56 = arith.subf %52, %55 : vector<8x8xf32>
    %57 = math.exp %56 : vector<8x8xf32>
    %cst_22 = arith.constant dense<0.000000e+00> : vector<8xf32>
    %58 = vector.multi_reduction <add>, %57, %cst_22 [1] : vector<8x8xf32> to vector<8xf32>
    %59 = vector.shape_cast %58 : vector<8xf32> to vector<8x1xf32>
    %60 = tpu.reciprocal %59 {approx = true} : vector<8x1xf32> -> vector<8x1xf32>
    %61 = vector.broadcast %60 : vector<8x1xf32> to vector<8x8xf32>
    %62 = arith.mulf %57, %61 : vector<8x8xf32>
    %63 = arith.truncf %62 : vector<8x8xf32> to vector<8x8xbf16>
    %cst_23 = arith.constant dense<0.000000e+00> : vector<8x8xf32>
    %64 = tpu.matmul %63, %50, %cst_23 {dimension_numbers = #tpu.dot_dimension_numbers<[1], [0], [0], [1], [0, 0, 1, 1], [], []>} : vector<8x8xbf16>, vector<8x8xbf16>, vector<8x8xf32> -> vector<8x8xf32>
    %c0_24 = arith.constant 0 : index
    %c8 = arith.constant 8 : index
    %65 = vector.load %arg27[%c0_24, %c8] : memref<8x32xf32, #tpu.memory_space<vmem>>, vector<8x8xf32>
    tpu.vector_store %arg27[%c0_24, %c8], %64 {strides = array<i32>} : memref<8x32xf32, #tpu.memory_space<vmem>>, vector<8x8xf32>,
    %66 = vector.extract_strided_slice %17 {offsets = [0, 16], sizes = [8, 8], strides = [1, 1]} : vector<8x32xf32> to vector<8x8xf32>
    %cst_25 = arith.constant 0.353553385 : f32
    %67 = vector.broadcast %cst_25 : f32 to vector<8x8xf32>
    %68 = arith.mulf %66, %67 : vector<8x8xf32>
    %69 = arith.truncf %68 : vector<8x8xf32> to vector<8x8xbf16>
    %70 = vector.extract_strided_slice %18 {offsets = [0, 16], sizes = [8, 8], strides = [1, 1]} : vector<8x32xf32> to vector<8x8xf32>
    %71 = arith.truncf %70 : vector<8x8xf32> to vector<8x8xbf16>
    %72 = vector.extract_strided_slice %19 {offsets = [0, 16], sizes = [8, 8], strides = [1, 1]} : vector<8x32xf32> to vector<8x8xf32>
    %73 = arith.truncf %72 : vector<8x8xf32> to vector<8x8xbf16>
    %cst_26 = arith.constant dense<0.000000e+00> : vector<8x8xf32>
    %74 = tpu.matmul %69, %71, %cst_26 {dimension_numbers = #tpu.dot_dimension_numbers<[1], [1], [0], [0], [0, 0, 1, 0], [], []>} : vector<8x8xbf16>, vector<8x8xbf16>, vector<8x8xf32> -> vector<8x8xf32>
    %75 = arith.addf %74, %16 : vector<8x8xf32>
    %cst_27 = arith.constant dense<0xFF800000> : vector<8xf32>
    %76 = vector.multi_reduction <maximumf>, %75, %cst_27 [1] : vector<8x8xf32> to vector<8xf32>
    %77 = vector.shape_cast %76 : vector<8xf32> to vector<8x1xf32>
    %78 = vector.broadcast %77 : vector<8x1xf32> to vector<8x8xf32>
    %79 = arith.subf %75, %78 : vector<8x8xf32>
    %80 = math.exp %79 : vector<8x8xf32>
    %cst_28 = arith.constant dense<0.000000e+00> : vector<8xf32>
    %81 = vector.multi_reduction <add>, %80, %cst_28 [1] : vector<8x8xf32> to vector<8xf32>
    %82 = vector.shape_cast %81 : vector<8xf32> to vector<8x1xf32>
    %83 = tpu.reciprocal %82 {approx = true} : vector<8x1xf32> -> vector<8x1xf32>
    %84 = vector.broadcast %83 : vector<8x1xf32> to vector<8x8xf32>
    %85 = arith.mulf %80, %84 : vector<8x8xf32>
    %86 = arith.truncf %85 : vector<8x8xf32> to vector<8x8xbf16>
    %cst_29 = arith.constant dense<0.000000e+00> : vector<8x8xf32>
    %87 = tpu.matmul %86, %73, %cst_29 {dimension_numbers = #tpu.dot_dimension_numbers<[1], [0], [0], [1], [0, 0, 1, 1], [], []>} : vector<8x8xbf16>, vector<8x8xbf16>, vector<8x8xf32> -> vector<8x8xf32>
    %c0_30 = arith.constant 0 : index
    %c16 = arith.constant 16 : index
    %88 = vector.load %arg27[%c0_30, %c16] : memref<8x32xf32, #tpu.memory_space<vmem>>, vector<8x8xf32>
    tpu.vector_store %arg27[%c0_30, %c16], %87 {strides = array<i32>} : memref<8x32xf32, #tpu.memory_space<vmem>>, vector<8x8xf32>,
    %89 = vector.extract_strided_slice %17 {offsets = [0, 24], sizes = [8, 8], strides = [1, 1]} : vector<8x32xf32> to vector<8x8xf32>
    %cst_31 = arith.constant 0.353553385 : f32
    %90 = vector.broadcast %cst_31 : f32 to vector<8x8xf32>
    %91 = arith.mulf %89, %90 : vector<8x8xf32>
    %92 = arith.truncf %91 : vector<8x8xf32> to vector<8x8xbf16>
    %93 = vector.extract_strided_slice %18 {offsets = [0, 24], sizes = [8, 8], strides = [1, 1]} : vector<8x32xf32> to vector<8x8xf32>
    %94 = arith.truncf %93 : vector<8x8xf32> to vector<8x8xbf16>
    %95 = vector.extract_strided_slice %19 {offsets = [0, 24], sizes = [8, 8], strides = [1, 1]} : vector<8x32xf32> to vector<8x8xf32>
    %96 = arith.truncf %95 : vector<8x8xf32> to vector<8x8xbf16>
    %cst_32 = arith.constant dense<0.000000e+00> : vector<8x8xf32>
    %97 = tpu.matmul %92, %94, %cst_32 {dimension_numbers = #tpu.dot_dimension_numbers<[1], [1], [0], [0], [0, 0, 1, 0], [], []>} : vector<8x8xbf16>, vector<8x8xbf16>, vector<8x8xf32> -> vector<8x8xf32>
    %98 = arith.addf %97, %16 : vector<8x8xf32>
    %cst_33 = arith.constant dense<0xFF800000> : vector<8xf32>
    %99 = vector.multi_reduction <maximumf>, %98, %cst_33 [1] : vector<8x8xf32> to vector<8xf32>
    %100 = vector.shape_cast %99 : vector<8xf32> to vector<8x1xf32>
    %101 = vector.broadcast %100 : vector<8x1xf32> to vector<8x8xf32>
    %102 = arith.subf %98, %101 : vector<8x8xf32>
    %103 = math.exp %102 : vector<8x8xf32>
    %cst_34 = arith.constant dense<0.000000e+00> : vector<8xf32>
    %104 = vector.multi_reduction <add>, %103, %cst_34 [1] : vector<8x8xf32> to vector<8xf32>
    %105 = vector.shape_cast %104 : vector<8xf32> to vector<8x1xf32>
    %106 = tpu.reciprocal %105 {approx = true} : vector<8x1xf32> -> vector<8x1xf32>
    %107 = vector.broadcast %106 : vector<8x1xf32> to vector<8x8xf32>
    %108 = arith.mulf %103, %107 : vector<8x8xf32>
    %109 = arith.truncf %108 : vector<8x8xf32> to vector<8x8xbf16>
    %cst_35 = arith.constant dense<0.000000e+00> : vector<8x8xf32>
    %110 = tpu.matmul %109, %96, %cst_35 {dimension_numbers = #tpu.dot_dimension_numbers<[1], [0], [0], [1], [0, 0, 1, 1], [], []>} : vector<8x8xbf16>, vector<8x8xbf16>, vector<8x8xf32> -> vector<8x8xf32>
    %c0_36 = arith.constant 0 : index
    %c24 = arith.constant 24 : index
    %111 = vector.load %arg27[%c0_36, %c24] : memref<8x32xf32, #tpu.memory_space<vmem>>, vector<8x8xf32>
    tpu.vector_store %arg27[%c0_36, %c24], %110 {strides = array<i32>} : memref<8x32xf32, #tpu.memory_space<vmem>>, vector<8x8xf32>,
    %c0_37 = arith.constant 0 : index
    %c0_38 = arith.constant 0 : index
    %112 = vector.load %arg27[%c0_37, %c0_38] : memref<8x32xf32, #tpu.memory_space<vmem>>, vector<8x32xf32>
    %113 = arith.truncf %112 : vector<8x32xf32> to vector<8x32xbf16>
    %c0_39 = arith.constant 0 : index
    %c0_40 = arith.constant 0 : index
    %114 = vector.load %arg8[%c0_39, %c0_40] : memref<32x32xbf16, #tpu.memory_space<vmem>>, vector<32x32xbf16>
    %cst_41 = arith.constant dense<0.000000e+00> : vector<8x32xf32>
    %115 = tpu.matmul %113, %114, %cst_41 {dimension_numbers = #tpu.dot_dimension_numbers<[1], [0], [0], [1], [0, 0, 1, 1], [], []>} : vector<8x32xbf16>, vector<32x32xbf16>, vector<8x32xf32> -> vector<8x32xf32>
    %c0_42 = arith.constant 0 : index
    %c0_43 = arith.constant 0 : index
    %116 = vector.load %arg9[%c0_42, %c0_43] : memref<1x32xf32, #tpu.memory_space<vmem>>, vector<1x32xf32>
    %117 = vector.broadcast %116 : vector<1x32xf32> to vector<8x32xf32>
    %118 = arith.addf %115, %117 : vector<8x32xf32>
    %119 = arith.addf %2, %118 : vector<8x32xf32>
    %c0_44 = arith.constant 0 : index
    %c0_45 = arith.constant 0 : index
    %120 = vector.load %arg10[%c0_44, %c0_45] : memref<1x32xf32, #tpu.memory_space<vmem>>, vector<1x32xf32>
    %c0_46 = arith.constant 0 : index
    %c0_47 = arith.constant 0 : index
    %121 = vector.load %arg11[%c0_46, %c0_47] : memref<1x32xf32, #tpu.memory_space<vmem>>, vector<1x32xf32>
    %cst_48 = arith.constant dense<0.000000e+00> : vector<8xf32>
    %122 = vector.multi_reduction <add>, %119, %cst_48 [1] : vector<8x32xf32> to vector<8xf32>
    %123 = vector.shape_cast %122 : vector<8xf32> to vector<8x1xf32>
    %cst_49 = arith.constant 3.200000e+01 : f32
    %124 = vector.broadcast %cst_49 : f32 to vector<8x1xf32>
    %125 = arith.divf %123, %124 : vector<8x1xf32>
    %126 = vector.broadcast %125 : vector<8x1xf32> to vector<8x32xf32>
    %127 = arith.subf %119, %126 : vector<8x32xf32>
    %128 = arith.mulf %127, %127 : vector<8x32xf32>
    %cst_50 = arith.constant dense<0.000000e+00> : vector<8xf32>
    %129 = vector.multi_reduction <add>, %128, %cst_50 [1] : vector<8x32xf32> to vector<8xf32>
    %130 = vector.shape_cast %129 : vector<8xf32> to vector<8x1xf32>
    %cst_51 = arith.constant 3.200000e+01 : f32
    %131 = vector.broadcast %cst_51 : f32 to vector<8x1xf32>
    %132 = arith.divf %130, %131 : vector<8x1xf32>
    %133 = vector.broadcast %125 : vector<8x1xf32> to vector<8x32xf32>
    %134 = arith.subf %119, %133 : vector<8x32xf32>
    %cst_52 = arith.constant 9.99999974E-6 : f32
    %135 = vector.broadcast %cst_52 : f32 to vector<8x1xf32>
    %136 = arith.addf %132, %135 : vector<8x1xf32>
    %137 = math.rsqrt %136 : vector<8x1xf32>
    %138 = vector.broadcast %137 : vector<8x1xf32> to vector<8x32xf32>
    %139 = arith.mulf %134, %138 : vector<8x32xf32>
    %140 = vector.broadcast %120 : vector<1x32xf32> to vector<8x32xf32>
    %141 = arith.mulf %139, %140 : vector<8x32xf32>
    %142 = vector.broadcast %121 : vector<1x32xf32> to vector<8x32xf32>
    %143 = arith.addf %141, %142 : vector<8x32xf32>
    %c0_53 = arith.constant 0 : index
    %c0_54 = arith.constant 0 : index
    %144 = vector.load %arg12[%c0_53, %c0_54] : memref<32x96xbf16, #tpu.memory_space<vmem>>, vector<32x96xbf16>
    %c0_55 = arith.constant 0 : index
    %c0_56 = arith.constant 0 : index
    %145 = vector.load %arg13[%c0_55, %c0_56] : memref<1x96xf32, #tpu.memory_space<vmem>>, vector<1x96xf32>
    %146 = arith.truncf %143 : vector<8x32xf32> to vector<8x32xbf16>
    %147 = vector.extract_strided_slice %144 {offsets = [0, 0], sizes = [32, 32], strides = [1, 1]} : vector<32x96xbf16> to vector<32x32xbf16>
    %cst_57 = arith.constant dense<0.000000e+00> : vector<8x32xf32>
    %148 = tpu.matmul %146, %147, %cst_57 {dimension_numbers = #tpu.dot_dimension_numbers<[1], [0], [0], [1], [0, 0, 1, 1], [], []>} : vector<8x32xbf16>, vector<32x32xbf16>, vector<8x32xf32> -> vector<8x32xf32>
    %149 = vector.extract_strided_slice %145 {offsets = [0, 0], sizes = [1, 32], strides = [1, 1]} : vector<1x96xf32> to vector<1x32xf32>
    %150 = vector.broadcast %149 : vector<1x32xf32> to vector<8x32xf32>
    %151 = arith.addf %148, %150 : vector<8x32xf32>
    %152 = vector.extract_strided_slice %144 {offsets = [0, 32], sizes = [32, 64], strides = [1, 1]} : vector<32x96xbf16> to vector<32x64xbf16>
    %cst_58 = arith.constant dense<0.000000e+00> : vector<10x64xf32>
    %153 = tpu.matmul %4, %152, %cst_58 {dimension_numbers = #tpu.dot_dimension_numbers<[1], [0], [0], [1], [0, 0, 1, 1], [], []>} : vector<10x32xbf16>, vector<32x64xbf16>, vector<10x64xf32> -> vector<10x64xf32>
    %154 = vector.extract_strided_slice %145 {offsets = [0, 32], sizes = [1, 64], strides = [1, 1]} : vector<1x96xf32> to vector<1x64xf32>
    %155 = vector.broadcast %154 : vector<1x64xf32> to vector<10x64xf32>
    %156 = arith.addf %153, %155 : vector<10x64xf32>
    %c0_i32_59 = arith.constant 0 : i32
    %157 = arith.addi %5, %c0_i32_59 : i32
    %158 = arith.index_cast %157 : i32 to index
    %c0_60 = arith.constant 0 : index
    %159 = vector.load %arg5[%158, %c0_60] : memref<2x10xf32, #tpu.memory_space<vmem>>, vector<1x10xf32>
    %160 = vector.extract_strided_slice %156 {offsets = [0, 0], sizes = [10, 32], strides = [1, 1]} : vector<10x64xf32> to vector<10x32xf32>
    %161 = vector.extract_strided_slice %156 {offsets = [0, 32], sizes = [10, 32], strides = [1, 1]} : vector<10x64xf32> to vector<10x32xf32>
    %162 = vector.extract_strided_slice %151 {offsets = [0, 0], sizes = [8, 8], strides = [1, 1]} : vector<8x32xf32> to vector<8x8xf32>
    %cst_61 = arith.constant 0.353553385 : f32
    %163 = vector.broadcast %cst_61 : f32 to vector<8x8xf32>
    %164 = arith.mulf %162, %163 : vector<8x8xf32>
    %165 = arith.truncf %164 : vector<8x8xf32> to vector<8x8xbf16>
    %166 = vector.extract_strided_slice %160 {offsets = [0, 0], sizes = [10, 8], strides = [1, 1]} : vector<10x32xf32> to vector<10x8xf32>
    %167 = arith.truncf %166 : vector<10x8xf32> to vector<10x8xbf16>
    %168 = vector.extract_strided_slice %161 {offsets = [0, 0], sizes = [10, 8], strides = [1, 1]} : vector<10x32xf32> to vector<10x8xf32>
    %169 = arith.truncf %168 : vector<10x8xf32> to vector<10x8xbf16>
    %cst_62 = arith.constant dense<0.000000e+00> : vector<8x10xf32>
    %170 = tpu.matmul %165, %167, %cst_62 {dimension_numbers = #tpu.dot_dimension_numbers<[1], [1], [0], [0], [0, 0, 1, 0], [], []>} : vector<8x8xbf16>, vector<10x8xbf16>, vector<8x10xf32> -> vector<8x10xf32>
    %171 = vector.broadcast %159 : vector<1x10xf32> to vector<8x10xf32>
    %172 = arith.addf %170, %171 : vector<8x10xf32>
    %cst_63 = arith.constant dense<0xFF800000> : vector<8xf32>
    %173 = vector.multi_reduction <maximumf>, %172, %cst_63 [1] : vector<8x10xf32> to vector<8xf32>
    %174 = vector.shape_cast %173 : vector<8xf32> to vector<8x1xf32>
    %175 = vector.broadcast %174 : vector<8x1xf32> to vector<8x10xf32>
    %176 = arith.subf %172, %175 : vector<8x10xf32>
    %177 = math.exp %176 : vector<8x10xf32>
    %cst_64 = arith.constant dense<0.000000e+00> : vector<8xf32>
    %178 = vector.multi_reduction <add>, %177, %cst_64 [1] : vector<8x10xf32> to vector<8xf32>
    %179 = vector.shape_cast %178 : vector<8xf32> to vector<8x1xf32>
    %180 = tpu.reciprocal %179 {approx = true} : vector<8x1xf32> -> vector<8x1xf32>
    %181 = vector.broadcast %180 : vector<8x1xf32> to vector<8x10xf32>
    %182 = arith.mulf %177, %181 : vector<8x10xf32>
    %183 = arith.truncf %182 : vector<8x10xf32> to vector<8x10xbf16>
    %cst_65 = arith.constant dense<0.000000e+00> : vector<8x8xf32>
    %184 = tpu.matmul %183, %169, %cst_65 {dimension_numbers = #tpu.dot_dimension_numbers<[1], [0], [0], [1], [0, 0, 1, 1], [], []>} : vector<8x10xbf16>, vector<10x8xbf16>, vector<8x8xf32> -> vector<8x8xf32>
    %c0_66 = arith.constant 0 : index
    %c0_67 = arith.constant 0 : index
    %185 = vector.load %arg27[%c0_66, %c0_67] : memref<8x32xf32, #tpu.memory_space<vmem>>, vector<8x8xf32>
    tpu.vector_store %arg27[%c0_66, %c0_67], %184 {strides = array<i32>} : memref<8x32xf32, #tpu.memory_space<vmem>>, vector<8x8xf32>,
    %186 = vector.extract_strided_slice %151 {offsets = [0, 8], sizes = [8, 8], strides = [1, 1]} : vector<8x32xf32> to vector<8x8xf32>
    %cst_68 = arith.constant 0.353553385 : f32
    %187 = vector.broadcast %cst_68 : f32 to vector<8x8xf32>
    %188 = arith.mulf %186, %187 : vector<8x8xf32>
    %189 = arith.truncf %188 : vector<8x8xf32> to vector<8x8xbf16>
    %190 = vector.extract_strided_slice %160 {offsets = [0, 8], sizes = [10, 8], strides = [1, 1]} : vector<10x32xf32> to vector<10x8xf32>
    %191 = arith.truncf %190 : vector<10x8xf32> to vector<10x8xbf16>
    %192 = vector.extract_strided_slice %161 {offsets = [0, 8], sizes = [10, 8], strides = [1, 1]} : vector<10x32xf32> to vector<10x8xf32>
    %193 = arith.truncf %192 : vector<10x8xf32> to vector<10x8xbf16>
    %cst_69 = arith.constant dense<0.000000e+00> : vector<8x10xf32>
    %194 = tpu.matmul %189, %191, %cst_69 {dimension_numbers = #tpu.dot_dimension_numbers<[1], [1], [0], [0], [0, 0, 1, 0], [], []>} : vector<8x8xbf16>, vector<10x8xbf16>, vector<8x10xf32> -> vector<8x10xf32>
    %195 = vector.broadcast %159 : vector<1x10xf32> to vector<8x10xf32>
    %196 = arith.addf %194, %195 : vector<8x10xf32>
    %cst_70 = arith.constant dense<0xFF800000> : vector<8xf32>
    %197 = vector.multi_reduction <maximumf>, %196, %cst_70 [1] : vector<8x10xf32> to vector<8xf32>
    %198 = vector.shape_cast %197 : vector<8xf32> to vector<8x1xf32>
    %199 = vector.broadcast %198 : vector<8x1xf32> to vector<8x10xf32>
    %200 = arith.subf %196, %199 : vector<8x10xf32>
    %201 = math.exp %200 : vector<8x10xf32>
    %cst_71 = arith.constant dense<0.000000e+00> : vector<8xf32>
    %202 = vector.multi_reduction <add>, %201, %cst_71 [1] : vector<8x10xf32> to vector<8xf32>
    %203 = vector.shape_cast %202 : vector<8xf32> to vector<8x1xf32>
    %204 = tpu.reciprocal %203 {approx = true} : vector<8x1xf32> -> vector<8x1xf32>
    %205 = vector.broadcast %204 : vector<8x1xf32> to vector<8x10xf32>
    %206 = arith.mulf %201, %205 : vector<8x10xf32>
    %207 = arith.truncf %206 : vector<8x10xf32> to vector<8x10xbf16>
    %cst_72 = arith.constant dense<0.000000e+00> : vector<8x8xf32>
    %208 = tpu.matmul %207, %193, %cst_72 {dimension_numbers = #tpu.dot_dimension_numbers<[1], [0], [0], [1], [0, 0, 1, 1], [], []>} : vector<8x10xbf16>, vector<10x8xbf16>, vector<8x8xf32> -> vector<8x8xf32>
    %c0_73 = arith.constant 0 : index
    %c8_74 = arith.constant 8 : index
    %209 = vector.load %arg27[%c0_73, %c8_74] : memref<8x32xf32, #tpu.memory_space<vmem>>, vector<8x8xf32>
    tpu.vector_store %arg27[%c0_73, %c8_74], %208 {strides = array<i32>} : memref<8x32xf32, #tpu.memory_space<vmem>>, vector<8x8xf32>,
    %210 = vector.extract_strided_slice %151 {offsets = [0, 16], sizes = [8, 8], strides = [1, 1]} : vector<8x32xf32> to vector<8x8xf32>
    %cst_75 = arith.constant 0.353553385 : f32
    %211 = vector.broadcast %cst_75 : f32 to vector<8x8xf32>
    %212 = arith.mulf %210, %211 : vector<8x8xf32>
    %213 = arith.truncf %212 : vector<8x8xf32> to vector<8x8xbf16>
    %214 = vector.extract_strided_slice %160 {offsets = [0, 16], sizes = [10, 8], strides = [1, 1]} : vector<10x32xf32> to vector<10x8xf32>
    %215 = arith.truncf %214 : vector<10x8xf32> to vector<10x8xbf16>
    %216 = vector.extract_strided_slice %161 {offsets = [0, 16], sizes = [10, 8], strides = [1, 1]} : vector<10x32xf32> to vector<10x8xf32>
    %217 = arith.truncf %216 : vector<10x8xf32> to vector<10x8xbf16>
    %cst_76 = arith.constant dense<0.000000e+00> : vector<8x10xf32>
    %218 = tpu.matmul %213, %215, %cst_76 {dimension_numbers = #tpu.dot_dimension_numbers<[1], [1], [0], [0], [0, 0, 1, 0], [], []>} : vector<8x8xbf16>, vector<10x8xbf16>, vector<8x10xf32> -> vector<8x10xf32>
    %219 = vector.broadcast %159 : vector<1x10xf32> to vector<8x10xf32>
    %220 = arith.addf %218, %219 : vector<8x10xf32>
    %cst_77 = arith.constant dense<0xFF800000> : vector<8xf32>
    %221 = vector.multi_reduction <maximumf>, %220, %cst_77 [1] : vector<8x10xf32> to vector<8xf32>
    %222 = vector.shape_cast %221 : vector<8xf32> to vector<8x1xf32>
    %223 = vector.broadcast %222 : vector<8x1xf32> to vector<8x10xf32>
    %224 = arith.subf %220, %223 : vector<8x10xf32>
    %225 = math.exp %224 : vector<8x10xf32>
    %cst_78 = arith.constant dense<0.000000e+00> : vector<8xf32>
    %226 = vector.multi_reduction <add>, %225, %cst_78 [1] : vector<8x10xf32> to vector<8xf32>
    %227 = vector.shape_cast %226 : vector<8xf32> to vector<8x1xf32>
    %228 = tpu.reciprocal %227 {approx = true} : vector<8x1xf32> -> vector<8x1xf32>
    %229 = vector.broadcast %228 : vector<8x1xf32> to vector<8x10xf32>
    %230 = arith.mulf %225, %229 : vector<8x10xf32>
    %231 = arith.truncf %230 : vector<8x10xf32> to vector<8x10xbf16>
    %cst_79 = arith.constant dense<0.000000e+00> : vector<8x8xf32>
    %232 = tpu.matmul %231, %217, %cst_79 {dimension_numbers = #tpu.dot_dimension_numbers<[1], [0], [0], [1], [0, 0, 1, 1], [], []>} : vector<8x10xbf16>, vector<10x8xbf16>, vector<8x8xf32> -> vector<8x8xf32>
    %c0_80 = arith.constant 0 : index
    %c16_81 = arith.constant 16 : index
    %233 = vector.load %arg27[%c0_80, %c16_81] : memref<8x32xf32, #tpu.memory_space<vmem>>, vector<8x8xf32>
    tpu.vector_store %arg27[%c0_80, %c16_81], %232 {strides = array<i32>} : memref<8x32xf32, #tpu.memory_space<vmem>>, vector<8x8xf32>,
    %234 = vector.extract_strided_slice %151 {offsets = [0, 24], sizes = [8, 8], strides = [1, 1]} : vector<8x32xf32> to vector<8x8xf32>
    %cst_82 = arith.constant 0.353553385 : f32
    %235 = vector.broadcast %cst_82 : f32 to vector<8x8xf32>
    %236 = arith.mulf %234, %235 : vector<8x8xf32>
    %237 = arith.truncf %236 : vector<8x8xf32> to vector<8x8xbf16>
    %238 = vector.extract_strided_slice %160 {offsets = [0, 24], sizes = [10, 8], strides = [1, 1]} : vector<10x32xf32> to vector<10x8xf32>
    %239 = arith.truncf %238 : vector<10x8xf32> to vector<10x8xbf16>
    %240 = vector.extract_strided_slice %161 {offsets = [0, 24], sizes = [10, 8], strides = [1, 1]} : vector<10x32xf32> to vector<10x8xf32>
    %241 = arith.truncf %240 : vector<10x8xf32> to vector<10x8xbf16>
    %cst_83 = arith.constant dense<0.000000e+00> : vector<8x10xf32>
    %242 = tpu.matmul %237, %239, %cst_83 {dimension_numbers = #tpu.dot_dimension_numbers<[1], [1], [0], [0], [0, 0, 1, 0], [], []>} : vector<8x8xbf16>, vector<10x8xbf16>, vector<8x10xf32> -> vector<8x10xf32>
    %243 = vector.broadcast %159 : vector<1x10xf32> to vector<8x10xf32>
    %244 = arith.addf %242, %243 : vector<8x10xf32>
    %cst_84 = arith.constant dense<0xFF800000> : vector<8xf32>
    %245 = vector.multi_reduction <maximumf>, %244, %cst_84 [1] : vector<8x10xf32> to vector<8xf32>
    %246 = vector.shape_cast %245 : vector<8xf32> to vector<8x1xf32>
    %247 = vector.broadcast %246 : vector<8x1xf32> to vector<8x10xf32>
    %248 = arith.subf %244, %247 : vector<8x10xf32>
    %249 = math.exp %248 : vector<8x10xf32>
    %cst_85 = arith.constant dense<0.000000e+00> : vector<8xf32>
    %250 = vector.multi_reduction <add>, %249, %cst_85 [1] : vector<8x10xf32> to vector<8xf32>
    %251 = vector.shape_cast %250 : vector<8xf32> to vector<8x1xf32>
    %252 = tpu.reciprocal %251 {approx = true} : vector<8x1xf32> -> vector<8x1xf32>
    %253 = vector.broadcast %252 : vector<8x1xf32> to vector<8x10xf32>
    %254 = arith.mulf %249, %253 : vector<8x10xf32>
    %255 = arith.truncf %254 : vector<8x10xf32> to vector<8x10xbf16>
    %cst_86 = arith.constant dense<0.000000e+00> : vector<8x8xf32>
    %256 = tpu.matmul %255, %241, %cst_86 {dimension_numbers = #tpu.dot_dimension_numbers<[1], [0], [0], [1], [0, 0, 1, 1], [], []>} : vector<8x10xbf16>, vector<10x8xbf16>, vector<8x8xf32> -> vector<8x8xf32>
    %c0_87 = arith.constant 0 : index
    %c24_88 = arith.constant 24 : index
    %257 = vector.load %arg27[%c0_87, %c24_88] : memref<8x32xf32, #tpu.memory_space<vmem>>, vector<8x8xf32>
    tpu.vector_store %arg27[%c0_87, %c24_88], %256 {strides = array<i32>} : memref<8x32xf32, #tpu.memory_space<vmem>>, vector<8x8xf32>,
    %c0_89 = arith.constant 0 : index
    %c0_90 = arith.constant 0 : index
    %258 = vector.load %arg27[%c0_89, %c0_90] : memref<8x32xf32, #tpu.memory_space<vmem>>, vector<8x32xf32>
    %259 = arith.truncf %258 : vector<8x32xf32> to vector<8x32xbf16>
    %c0_91 = arith.constant 0 : index
    %c0_92 = arith.constant 0 : index
    %260 = vector.load %arg14[%c0_91, %c0_92] : memref<32x32xbf16, #tpu.memory_space<vmem>>, vector<32x32xbf16>
    %cst_93 = arith.constant dense<0.000000e+00> : vector<8x32xf32>
    %261 = tpu.matmul %259, %260, %cst_93 {dimension_numbers = #tpu.dot_dimension_numbers<[1], [0], [0], [1], [0, 0, 1, 1], [], []>} : vector<8x32xbf16>, vector<32x32xbf16>, vector<8x32xf32> -> vector<8x32xf32>
    %c0_94 = arith.constant 0 : index
    %c0_95 = arith.constant 0 : index
    %262 = vector.load %arg15[%c0_94, %c0_95] : memref<1x32xf32, #tpu.memory_space<vmem>>, vector<1x32xf32>
    %263 = vector.broadcast %262 : vector<1x32xf32> to vector<8x32xf32>
    %264 = arith.addf %261, %263 : vector<8x32xf32>
    %265 = arith.addf %143, %264 : vector<8x32xf32>
    %c0_96 = arith.constant 0 : index
    %c0_97 = arith.constant 0 : index
    %266 = vector.load %arg16[%c0_96, %c0_97] : memref<1x32xf32, #tpu.memory_space<vmem>>, vector<1x32xf32>
    %c0_98 = arith.constant 0 : index
    %c0_99 = arith.constant 0 : index
    %267 = vector.load %arg17[%c0_98, %c0_99] : memref<1x32xf32, #tpu.memory_space<vmem>>, vector<1x32xf32>
    %cst_100 = arith.constant dense<0.000000e+00> : vector<8xf32>
    %268 = vector.multi_reduction <add>, %265, %cst_100 [1] : vector<8x32xf32> to vector<8xf32>
    %269 = vector.shape_cast %268 : vector<8xf32> to vector<8x1xf32>
    %cst_101 = arith.constant 3.200000e+01 : f32
    %270 = vector.broadcast %cst_101 : f32 to vector<8x1xf32>
    %271 = arith.divf %269, %270 : vector<8x1xf32>
    %272 = vector.broadcast %271 : vector<8x1xf32> to vector<8x32xf32>
    %273 = arith.subf %265, %272 : vector<8x32xf32>
    %274 = arith.mulf %273, %273 : vector<8x32xf32>
    %cst_102 = arith.constant dense<0.000000e+00> : vector<8xf32>
    %275 = vector.multi_reduction <add>, %274, %cst_102 [1] : vector<8x32xf32> to vector<8xf32>
    %276 = vector.shape_cast %275 : vector<8xf32> to vector<8x1xf32>
    %cst_103 = arith.constant 3.200000e+01 : f32
    %277 = vector.broadcast %cst_103 : f32 to vector<8x1xf32>
    %278 = arith.divf %276, %277 : vector<8x1xf32>
    %279 = vector.broadcast %271 : vector<8x1xf32> to vector<8x32xf32>
    %280 = arith.subf %265, %279 : vector<8x32xf32>
    %cst_104 = arith.constant 9.99999974E-6 : f32
    %281 = vector.broadcast %cst_104 : f32 to vector<8x1xf32>
    %282 = arith.addf %278, %281 : vector<8x1xf32>
    %283 = math.rsqrt %282 : vector<8x1xf32>
    %284 = vector.broadcast %283 : vector<8x1xf32> to vector<8x32xf32>
    %285 = arith.mulf %280, %284 : vector<8x32xf32>
    %286 = vector.broadcast %266 : vector<1x32xf32> to vector<8x32xf32>
    %287 = arith.mulf %285, %286 : vector<8x32xf32>
    %288 = vector.broadcast %267 : vector<1x32xf32> to vector<8x32xf32>
    %289 = arith.addf %287, %288 : vector<8x32xf32>
    %290 = arith.truncf %289 : vector<8x32xf32> to vector<8x32xbf16>
    %c0_105 = arith.constant 0 : index
    %c0_106 = arith.constant 0 : index
    %291 = vector.load %arg18[%c0_105, %c0_106] : memref<32x64xbf16, #tpu.memory_space<vmem>>, vector<32x64xbf16>
    %cst_107 = arith.constant dense<0.000000e+00> : vector<8x64xf32>
    %292 = tpu.matmul %290, %291, %cst_107 {dimension_numbers = #tpu.dot_dimension_numbers<[1], [0], [0], [1], [0, 0, 1, 1], [], []>} : vector<8x32xbf16>, vector<32x64xbf16>, vector<8x64xf32> -> vector<8x64xf32>
    %c0_108 = arith.constant 0 : index
    %c0_109 = arith.constant 0 : index
    %293 = vector.load %arg19[%c0_108, %c0_109] : memref<1x64xf32, #tpu.memory_space<vmem>>, vector<1x64xf32>
    %294 = vector.broadcast %293 : vector<1x64xf32> to vector<8x64xf32>
    %295 = arith.addf %292, %294 : vector<8x64xf32>
    %cst_110 = arith.constant 0.000000e+00 : f32
    %296 = vector.broadcast %cst_110 : f32 to vector<8x64xf32>
    %297 = arith.maximumf %295, %296 : vector<8x64xf32>
    %298 = arith.truncf %297 : vector<8x64xf32> to vector<8x64xbf16>
    %c0_111 = arith.constant 0 : index
    %c0_112 = arith.constant 0 : index
    %299 = vector.load %arg20[%c0_111, %c0_112] : memref<64x32xbf16, #tpu.memory_space<vmem>>, vector<64x32xbf16>
    %cst_113 = arith.constant dense<0.000000e+00> : vector<8x32xf32>
    %300 = tpu.matmul %298, %299, %cst_113 {dimension_numbers = #tpu.dot_dimension_numbers<[1], [0], [0], [1], [0, 0, 1, 1], [], []>} : vector<8x64xbf16>, vector<64x32xbf16>, vector<8x32xf32> -> vector<8x32xf32>
    %c0_114 = arith.constant 0 : index
    %c0_115 = arith.constant 0 : index
    %301 = vector.load %arg21[%c0_114, %c0_115] : memref<1x32xf32, #tpu.memory_space<vmem>>, vector<1x32xf32>
    %302 = vector.broadcast %301 : vector<1x32xf32> to vector<8x32xf32>
    %303 = arith.addf %300, %302 : vector<8x32xf32>
    %304 = arith.addf %289, %303 : vector<8x32xf32>
    %c0_116 = arith.constant 0 : index
    %c0_117 = arith.constant 0 : index
    %305 = vector.load %arg22[%c0_116, %c0_117] : memref<1x32xf32, #tpu.memory_space<vmem>>, vector<1x32xf32>
    %c0_118 = arith.constant 0 : index
    %c0_119 = arith.constant 0 : index
    %306 = vector.load %arg23[%c0_118, %c0_119] : memref<1x32xf32, #tpu.memory_space<vmem>>, vector<1x32xf32>
    %cst_120 = arith.constant dense<0.000000e+00> : vector<8xf32>
    %307 = vector.multi_reduction <add>, %304, %cst_120 [1] : vector<8x32xf32> to vector<8xf32>
    %308 = vector.shape_cast %307 : vector<8xf32> to vector<8x1xf32>
    %cst_121 = arith.constant 3.200000e+01 : f32
    %309 = vector.broadcast %cst_121 : f32 to vector<8x1xf32>
    %310 = arith.divf %308, %309 : vector<8x1xf32>
    %311 = vector.broadcast %310 : vector<8x1xf32> to vector<8x32xf32>
    %312 = arith.subf %304, %311 : vector<8x32xf32>
    %313 = arith.mulf %312, %312 : vector<8x32xf32>
    %cst_122 = arith.constant dense<0.000000e+00> : vector<8xf32>
    %314 = vector.multi_reduction <add>, %313, %cst_122 [1] : vector<8x32xf32> to vector<8xf32>
    %315 = vector.shape_cast %314 : vector<8xf32> to vector<8x1xf32>
    %cst_123 = arith.constant 3.200000e+01 : f32
    %316 = vector.broadcast %cst_123 : f32 to vector<8x1xf32>
    %317 = arith.divf %315, %316 : vector<8x1xf32>
    %318 = vector.broadcast %310 : vector<8x1xf32> to vector<8x32xf32>
    %319 = arith.subf %304, %318 : vector<8x32xf32>
    %cst_124 = arith.constant 9.99999974E-6 : f32
    %320 = vector.broadcast %cst_124 : f32 to vector<8x1xf32>
    %321 = arith.addf %317, %320 : vector<8x1xf32>
    %322 = math.rsqrt %321 : vector<8x1xf32>
    %323 = vector.broadcast %322 : vector<8x1xf32> to vector<8x32xf32>
    %324 = arith.mulf %319, %323 : vector<8x32xf32>
    %325 = vector.broadcast %305 : vector<1x32xf32> to vector<8x32xf32>
    %326 = arith.mulf %324, %325 : vector<8x32xf32>
    %327 = vector.broadcast %306 : vector<1x32xf32> to vector<8x32xf32>
    %328 = arith.addf %326, %327 : vector<8x32xf32>
    %c0_125 = arith.constant 0 : index
    %c0_126 = arith.constant 0 : index
    %329 = vector.load %arg24[%c0_125, %c0_126] : memref<1x32xf32, #tpu.memory_space<vmem>>, vector<1x32xf32>
    %c0_127 = arith.constant 0 : index
    %c0_128 = arith.constant 0 : index
    %330 = vector.load %arg25[%c0_127, %c0_128] : memref<1x32xf32, #tpu.memory_space<vmem>>, vector<1x32xf32>
    %cst_129 = arith.constant dense<0.000000e+00> : vector<8xf32>
    %331 = vector.multi_reduction <add>, %328, %cst_129 [1] : vector<8x32xf32> to vector<8xf32>
    %332 = vector.shape_cast %331 : vector<8xf32> to vector<8x1xf32>
    %cst_130 = arith.constant 3.200000e+01 : f32
    %333 = vector.broadcast %cst_130 : f32 to vector<8x1xf32>
    %334 = arith.divf %332, %333 : vector<8x1xf32>
    %335 = vector.broadcast %334 : vector<8x1xf32> to vector<8x32xf32>
    %336 = arith.subf %328, %335 : vector<8x32xf32>
    %337 = arith.mulf %336, %336 : vector<8x32xf32>
    %cst_131 = arith.constant dense<0.000000e+00> : vector<8xf32>
    %338 = vector.multi_reduction <add>, %337, %cst_131 [1] : vector<8x32xf32> to vector<8xf32>
    %339 = vector.shape_cast %338 : vector<8xf32> to vector<8x1xf32>
    %cst_132 = arith.constant 3.200000e+01 : f32
    %340 = vector.broadcast %cst_132 : f32 to vector<8x1xf32>
    %341 = arith.divf %339, %340 : vector<8x1xf32>
    %342 = vector.broadcast %334 : vector<8x1xf32> to vector<8x32xf32>
    %343 = arith.subf %328, %342 : vector<8x32xf32>
    %cst_133 = arith.constant 9.99999974E-6 : f32
    %344 = vector.broadcast %cst_133 : f32 to vector<8x1xf32>
    %345 = arith.addf %341, %344 : vector<8x1xf32>
    %346 = math.rsqrt %345 : vector<8x1xf32>
    %347 = vector.broadcast %346 : vector<8x1xf32> to vector<8x32xf32>
    %348 = arith.mulf %343, %347 : vector<8x32xf32>
    %349 = vector.broadcast %329 : vector<1x32xf32> to vector<8x32xf32>
    %350 = arith.mulf %348, %349 : vector<8x32xf32>
    %351 = vector.broadcast %330 : vector<1x32xf32> to vector<8x32xf32>
    %352 = arith.addf %350, %351 : vector<8x32xf32>
    %353 = vector.shape_cast %352 : vector<8x32xf32> to vector<1x8x32xf32>
    %354 = arith.truncf %353 : vector<1x8x32xf32> to vector<1x8x32xbf16>
    %c0_134 = arith.constant 0 : index
    %c0_135 = arith.constant 0 : index
    %c0_136 = arith.constant 0 : index
    %355 = vector.load %arg26[%c0_134, %c0_135, %c0_136] : memref<1x8x32xbf16, #tpu.memory_space<vmem>>, vector<1x8x32xbf16>
    tpu.vector_store %arg26[%c0_134, %c0_135, %c0_136], %354 {strides = array<i32>} : memref<1x8x32xbf16, #tpu.memory_space<vmem>>, vector<1x8x32xbf16>,
    return
  }
  func.func @transform_0(%arg0: i32) -> (i32, i32, i32) {
    %c0_i32 = arith.constant 0 : i32
    %c0_i32_0 = arith.constant 0 : i32
    %c0_i32_1 = arith.constant 0 : i32
    return %arg0, %c0_i32, %c0_i32_0 : i32, i32, i32
  }
  func.func @transform_1(%arg0: i32) -> (i32, i32, i32) {
    %c0_i32 = arith.constant 0 : i32
    %c0_i32_0 = arith.constant 0 : i32
    %c0_i32_1 = arith.constant 0 : i32
    return %arg0, %c0_i32, %c0_i32_0 : i32, i32, i32
  }
  func.func @transform_2(%arg0: i32) -> (i32, i32) {
    %c0_i32 = arith.constant 0 : i32
    %c0_i32_0 = arith.constant 0 : i32
    %c0_i32_1 = arith.constant 0 : i32
    return %c0_i32, %c0_i32_0 : i32, i32
  }
  func.func @transform_3(%arg0: i32) -> (i32, i32) {
    %c0_i32 = arith.constant 0 : i32
    %c0_i32_0 = arith.constant 0 : i32
    %c0_i32_1 = arith.constant 0 : i32
    return %c0_i32, %c0_i32_0 : i32, i32
  }
  func.func @transform_4(%arg0: i32) -> (i32, i32) {
    %c0_i32 = arith.constant 0 : i32
    %c0_i32_0 = arith.constant 0 : i32
    %c0_i32_1 = arith.constant 0 : i32
    return %c0_i32, %c0_i32_0 : i32, i32
  }
  func.func @transform_5(%arg0: i32) -> (i32, i32) {
    %c0_i32 = arith.constant 0 : i32
    %c0_i32_0 = arith.constant 0 : i32
    %c0_i32_1 = arith.constant 0 : i32
    return %c0_i32, %c0_i32_0 : i32, i32
  }
  func.func @transform_6(%arg0: i32) -> (i32, i32) {
    %c0_i32 = arith.constant 0 : i32
    %c0_i32_0 = arith.constant 0 : i32
    %c0_i32_1 = arith.constant 0 : i32
    return %c0_i32, %c0_i32_0 : i32, i32
  }
  func.func @transform_7(%arg0: i32) -> (i32, i32) {
    %c0_i32 = arith.constant 0 : i32
    %c0_i32_0 = arith.constant 0 : i32
    %c0_i32_1 = arith.constant 0 : i32
    return %c0_i32, %c0_i32_0 : i32, i32
  }
  func.func @transform_8(%arg0: i32) -> (i32, i32) {
    %c0_i32 = arith.constant 0 : i32
    %c0_i32_0 = arith.constant 0 : i32
    %c0_i32_1 = arith.constant 0 : i32
    return %c0_i32, %c0_i32_0 : i32, i32
  }
  func.func @transform_9(%arg0: i32) -> (i32, i32) {
    %c0_i32 = arith.constant 0 : i32
    %c0_i32_0 = arith.constant 0 : i32
    %c0_i32_1 = arith.constant 0 : i32
    return %c0_i32, %c0_i32_0 : i32, i32
  }
  func.func @transform_10(%arg0: i32) -> (i32, i32) {
    %c0_i32 = arith.constant 0 : i32
    %c0_i32_0 = arith.constant 0 : i32
    %c0_i32_1 = arith.constant 0 : i32
    return %c0_i32, %c0_i32_0 : i32, i32
  }
  func.func @transform_11(%arg0: i32) -> (i32, i32) {
    %c0_i32 = arith.constant 0 : i32
    %c0_i32_0 = arith.constant 0 : i32
    %c0_i32_1 = arith.constant 0 : i32
    return %c0_i32, %c0_i32_0 : i32, i32
  }
  func.func @transform_12(%arg0: i32) -> (i32, i32) {
    %c0_i32 = arith.constant 0 : i32
    %c0_i32_0 = arith.constant 0 : i32
    %c0_i32_1 = arith.constant 0 : i32
    return %c0_i32, %c0_i32_0 : i32, i32
  }
  func.func @transform_13(%arg0: i32) -> (i32, i32) {
    %c0_i32 = arith.constant 0 : i32
    %c0_i32_0 = arith.constant 0 : i32
    %c0_i32_1 = arith.constant 0 : i32
    return %c0_i32, %c0_i32_0 : i32, i32
  }
  func.func @transform_14(%arg0: i32) -> (i32, i32) {
    %c0_i32 = arith.constant 0 : i32
    %c0_i32_0 = arith.constant 0 : i32
    %c0_i32_1 = arith.constant 0 : i32
    return %c0_i32, %c0_i32_0 : i32, i32
  }
  func.func @transform_15(%arg0: i32) -> (i32, i32) {
    %c0_i32 = arith.constant 0 : i32
    %c0_i32_0 = arith.constant 0 : i32
    %c0_i32_1 = arith.constant 0 : i32
    return %c0_i32, %c0_i32_0 : i32, i32
  }
  func.func @transform_16(%arg0: i32) -> (i32, i32) {
    %c0_i32 = arith.constant 0 : i32
    %c0_i32_0 = arith.constant 0 : i32
    %c0_i32_1 = arith.constant 0 : i32
    return %c0_i32, %c0_i32_0 : i32, i32
  }
  func.func @transform_17(%arg0: i32) -> (i32, i32) {
    %c0_i32 = arith.constant 0 : i32
    %c0_i32_0 = arith.constant 0 : i32
    %c0_i32_1 = arith.constant 0 : i32
    return %c0_i32, %c0_i32_0 : i32, i32
  }
  func.func @transform_18(%arg0: i32) -> (i32, i32) {
    %c0_i32 = arith.constant 0 : i32
    %c0_i32_0 = arith.constant 0 : i32
    %c0_i32_1 = arith.constant 0 : i32
    return %c0_i32, %c0_i32_0 : i32, i32
  }
  func.func @transform_19(%arg0: i32) -> (i32, i32) {
    %c0_i32 = arith.constant 0 : i32
    %c0_i32_0 = arith.constant 0 : i32
    %c0_i32_1 = arith.constant 0 : i32
    return %c0_i32, %c0_i32_0 : i32, i32
  }
  func.func @transform_20(%arg0: i32) -> (i32, i32) {
    %c0_i32 = arith.constant 0 : i32
    %c0_i32_0 = arith.constant 0 : i32
    %c0_i32_1 = arith.constant 0 : i32
    return %c0_i32, %c0_i32_0 : i32, i32
  }
  func.func @transform_21(%arg0: i32) -> (i32, i32) {
    %c0_i32 = arith.constant 0 : i32
    %c0_i32_0 = arith.constant 0 : i32
    %c0_i32_1 = arith.constant 0 : i32
    return %c0_i32, %c0_i32_0 : i32, i32
  }
  func.func @transform_22(%arg0: i32) -> (i32, i32) {
    %c0_i32 = arith.constant 0 : i32
    %c0_i32_0 = arith.constant 0 : i32
    %c0_i32_1 = arith.constant 0 : i32
    return %c0_i32, %c0_i32_0 : i32, i32
  }
  func.func @transform_23(%arg0: i32) -> (i32, i32) {
    %c0_i32 = arith.constant 0 : i32
    %c0_i32_0 = arith.constant 0 : i32
    %c0_i32_1 = arith.constant 0 : i32
    return %c0_i32, %c0_i32_0 : i32, i32
  }
  func.func @transform_24(%arg0: i32) -> (i32, i32) {
    %c0_i32 = arith.constant 0 : i32
    %c0_i32_0 = arith.constant 0 : i32
    %c0_i32_1 = arith.constant 0 : i32
    return %c0_i32, %c0_i32_0 : i32, i32
  }
  func.func @transform_25(%arg0: i32) -> (i32, i32, i32) {
    %c0_i32 = arith.constant 0 : i32
    %c0_i32_0 = arith.constant 0 : i32
    %c0_i32_1 = arith.constant 0 : i32
    return %arg0, %c0_i32, %c0_i32_0 : i32, i32, i32
  }
}

module attributes {stable_mosaic.version = 11 : i64} {
  func.func @_gen_kernel(%arg0: i32, %arg1: i32, %arg2: memref<16x32xbf16, #tpu.memory_space<vmem>>, %arg3: memref<32x128xbf16, #tpu.memory_space<vmem>>, %arg4: memref<1x128xf32, #tpu.memory_space<vmem>>, %arg5: memref<16x128xf32, #tpu.memory_space<vmem>>) attributes {dimension_semantics = [#tpu.dimension_semantics<parallel>, #tpu.dimension_semantics<arbitrary>], iteration_bounds = array<i64: 1, 1>, scalar_prefetch = 0 : i64, scratch_operands = 0 : i64, tpu.core_type = #tpu.core_type<tc>, window_params = [{transform_indices = @transform_0, window_bounds = array<i64: 16, 32>}, {transform_indices = @transform_1, window_bounds = array<i64: 32, 128>}, {transform_indices = @transform_2, window_bounds = array<i64: 1, 128>}, {transform_indices = @transform_3, window_bounds = array<i64: 16, 128>}]} {
    %c0 = arith.constant 0 : index
    %c0_0 = arith.constant 0 : index
    %0 = vector.load %arg2[%c0, %c0_0] : memref<16x32xbf16, #tpu.memory_space<vmem>>, vector<16x32xbf16>
    %c0_1 = arith.constant 0 : index
    %c0_2 = arith.constant 0 : index
    %1 = vector.load %arg3[%c0_1, %c0_2] : memref<32x128xbf16, #tpu.memory_space<vmem>>, vector<32x128xbf16>
    %cst = arith.constant dense<0.000000e+00> : vector<16x128xf32>
    %2 = tpu.matmul %0, %1, %cst {dimension_numbers = #tpu.dot_dimension_numbers<[1], [0], [0], [1], [0, 0, 1, 1], [], []>} : vector<16x32xbf16>, vector<32x128xbf16>, vector<16x128xf32> -> vector<16x128xf32>
    %c0_3 = arith.constant 0 : index
    %c0_4 = arith.constant 0 : index
    %3 = vector.load %arg4[%c0_3, %c0_4] : memref<1x128xf32, #tpu.memory_space<vmem>>, vector<1x128xf32>
    %4 = vector.broadcast %3 : vector<1x128xf32> to vector<16x128xf32>
    %5 = arith.addf %2, %4 : vector<16x128xf32>
    %c0_5 = arith.constant 0 : index
    %c0_6 = arith.constant 0 : index
    %6 = vector.load %arg5[%c0_5, %c0_6] : memref<16x128xf32, #tpu.memory_space<vmem>>, vector<16x128xf32>
    tpu.vector_store %arg5[%c0_5, %c0_6], %5 {strides = array<i32>} : memref<16x128xf32, #tpu.memory_space<vmem>>, vector<16x128xf32>,
    return
  }
  func.func @transform_0(%arg0: i32, %arg1: i32) -> (i32, i32) {
    %c0_i32 = arith.constant 0 : i32
    %c0_i32_0 = arith.constant 0 : i32
    return %arg1, %c0_i32 : i32, i32
  }
  func.func @transform_1(%arg0: i32, %arg1: i32) -> (i32, i32) {
    %c0_i32 = arith.constant 0 : i32
    %c0_i32_0 = arith.constant 0 : i32
    return %c0_i32, %arg0 : i32, i32
  }
  func.func @transform_2(%arg0: i32, %arg1: i32) -> (i32, i32) {
    %c0_i32 = arith.constant 0 : i32
    %c0_i32_0 = arith.constant 0 : i32
    return %c0_i32, %arg0 : i32, i32
  }
  func.func @transform_3(%arg0: i32, %arg1: i32) -> (i32, i32) {
    %c0_i32 = arith.constant 0 : i32
    return %arg1, %arg0 : i32, i32
  }
}

</mosaic_0001>

<llo_original>
// kernel: run.6
$region0: #{run.6}
  #allocation0 [shape = 'u32[]', space=smem, size = 0x4, offset = 0x4, fixed_abs, tag = 'smem constant byte address 0x4 - core index']
  #allocation1 [shape = 'u32[144,128]{1,0:T(1,128)}', space=vmem, size = 0x12000, scoped, tag = 'internal scratch']
  #allocation2 [shape = 'f32[10,32]{1,0:T(8,128)}', space=vmem, size = 0x2000, scoped, tag = 'scratch operand']
  %s0 = inlined_call_operand.vmem [shape: bf16[2,10,32], index: 0, kind: input, shape index: {}]
  %s1 = inlined_call_operand.vmem [shape: f32[10,10], index: 1, kind: input, shape index: {}]
  %s2 = inlined_call_operand.vmem [shape: f32[2,10], index: 2, kind: input, shape index: {}]
  %s3 = inlined_call_operand.vmem [shape: bf16[32,96], index: 3, kind: input, shape index: {}]
  %s4 = inlined_call_operand.vmem [shape: f32[1,96], index: 4, kind: input, shape index: {}]
  %s5 = inlined_call_operand.vmem [shape: bf16[32,32], index: 5, kind: input, shape index: {}]
  %s6 = inlined_call_operand.vmem [shape: f32[1,32], index: 6, kind: input, shape index: {}]
  %s7 = inlined_call_operand.vmem [shape: f32[1,32], index: 7, kind: input, shape index: {}]
  %s8 = inlined_call_operand.vmem [shape: f32[1,32], index: 8, kind: input, shape index: {}]
  %s9 = inlined_call_operand.vmem [shape: bf16[32,64], index: 9, kind: input, shape index: {}]
  %s10 = inlined_call_operand.vmem [shape: f32[1,64], index: 10, kind: input, shape index: {}]
  %s11 = inlined_call_operand.vmem [shape: bf16[64,32], index: 11, kind: input, shape index: {}]
  %s12 = inlined_call_operand.vmem [shape: f32[1,32], index: 12, kind: input, shape index: {}]
  %s13 = inlined_call_operand.vmem [shape: f32[1,32], index: 13, kind: input, shape index: {}]
  %s14 = inlined_call_operand.vmem [shape: f32[1,32], index: 14, kind: input, shape index: {}]
  %s15 = inlined_call_operand.vmem [shape: f32[1,32], index: 15, kind: input, shape index: {}]
  %s16 = inlined_call_operand.vmem [shape: f32[1,32], index: 16, kind: input, shape index: {}]
  %s17 = inlined_call_operand.vmem [shape: bf16[2,10,32], index: 17, kind: output, shape index: {}]
  %s18 = sld [smem:[#allocation0]]
  $region101: #{run.6} parent=0
    _
  %s20 = ssub.s32 1, %s18
  %s21 = scalar_select 0, %s20, %s18
  loop: start=0, step=1, limit=4
  $region2: #{run.6} parent=0 // loop_pre_header
    _
  $region3: #{run.6} parent=0 // loop_header
    %s23 = sphi 0, %s27
    %p24 = scmp.ge.s32.totalorder %s23, 4
    %s33 = sphi 0, %s35
    %s36 = sphi 0, %s33
    %s37 = sphi 0, %s36
    %s53 = sphi 0, %s37
    %s57 = sphi 0, %s57
    %s59 = sphi 0, %s57
    %s60 = sphi 0, %s59
    %s74 = sphi 0, %s60
    %s78 = sphi 0, %s78
    %s80 = sphi 0, %s78
    %s81 = sphi 0, %s80
    %s95 = sphi 0, %s81
    %s99 = sphi 0, %s99
    %s101 = sphi 0, %s99
    %s102 = sphi 0, %s101
    %s116 = sphi 0, %s102
    %s120 = sphi 0, %s120
    %s122 = sphi 0, %s120
    %s123 = sphi 0, %s122
    %s137 = sphi 0, %s123
    %s141 = sphi 0, %s141
    %s143 = sphi 0, %s141
    %s144 = sphi 0, %s143
    %s158 = sphi 0, %s144
    %s162 = sphi 0, %s162
    %s164 = sphi 0, %s162
    %s165 = sphi 0, %s164
    %s179 = sphi 0, %s165
    %s183 = sphi 0, %s183
    %s185 = sphi 0, %s183
    %s186 = sphi 0, %s185
    %s200 = sphi 0, %s186
    %s204 = sphi 0, %s204
    %s206 = sphi 0, %s204
    %s207 = sphi 0, %s206
    %s221 = sphi 0, %s207
    %s225 = sphi 0, %s225
    %s227 = sphi 0, %s225
    %s228 = sphi 0, %s227
    %s242 = sphi 0, %s228
    %s246 = sphi 0, %s246
    %s248 = sphi 0, %s246
    %s249 = sphi 0, %s248
    %s263 = sphi 0, %s249
    %s267 = sphi 0, %s267
    %s269 = sphi 0, %s267
    %s270 = sphi 0, %s269
    %s284 = sphi 0, %s270
    %s288 = sphi 0, %s288
    %s290 = sphi 0, %s288
    %s291 = sphi 0, %s290
    %s305 = sphi 0, %s291
    %s309 = sphi 0, %s309
    %s311 = sphi 0, %s309
    %s312 = sphi 0, %s311
    %s326 = sphi 0, %s312
    %s330 = sphi 0, %s330
    %s332 = sphi 0, %s330
    %s333 = sphi 0, %s332
    %s347 = sphi 0, %s333
    %s351 = sphi 0, %s351
    %s353 = sphi 0, %s351
    %s354 = sphi 0, %s353
    %s368 = sphi 0, %s354
    %s372 = sphi 0, %s372
    %s374 = sphi 0, %s372
    %s375 = sphi 0, %s374
    %s389 = sphi 0, %s375
    %s395 = sphi 0, %s397
    %s398 = sphi 0, %s395
    %s399 = sphi 0, %s398
    %s415 = sphi 0, %s399
  $region4: #{run.6} parent=0 // loop_header_branch
    %26 = sbr.rel (%p24) target = $region8
  $region5: #{run.6} parent=0 // loop_body
    %s28 = ssub.s32 %s23, 1
    %s29 = ssub.s32 %s23, 2
    %s30 = sadd.s32 %s23, 1
    %s31 = ssub.s32 %s23, %s30
    %p32 = scmp.eq.s32.totalorder %s31, 0
    %s34 = sadd.s32 %s33, 1
    %s35 = scalar_select %p32, %s33, %s34
    %p38 = pneg %p32
    %p39 = scmp.eq.s32.totalorder %s23, 1
    %p40 = por %p38, %p39
    %p41 = scmp.ne.s32.totalorder %s33, %s36
    %p42 = scmp.eq.s32.totalorder %s23, 0
    %p43 = por %p41, %p42
    %p44 = scmp.ne.s32.totalorder %s33, %s36
    %p45 = scmp.eq.s32.totalorder %s28, 1
    %p46 = por %p44, %p45
    %p47 = scmp.ne.s32.totalorder %s36, %s37
    %p48 = scmp.eq.s32.totalorder %s28, 0
    %p49 = por %p47, %p48
    %p50 = scmp.ne.s32.totalorder %s36, %s37
    %p51 = scmp.eq.s32.totalorder %s29, 1
    %p52 = por %p50, %p51
    %p54 = scmp.ne.s32.totalorder %s37, %s53
    %p55 = scmp.eq.s32.totalorder %s29, 0
    %p56 = por %p54, %p55
    %s58 = sadd.s32 %s57, 1
    %p61 = scmp.eq.s32.totalorder %s23, 1
    %p62 = scmp.ne.s32.totalorder %s57, %s59
    %p63 = scmp.eq.s32.totalorder %s23, 0
    %p64 = por %p62, %p63
    %p65 = scmp.ne.s32.totalorder %s57, %s59
    %p66 = scmp.eq.s32.totalorder %s28, 1
    %p67 = por %p65, %p66
    %p68 = scmp.ne.s32.totalorder %s59, %s60
    %p69 = scmp.eq.s32.totalorder %s28, 0
    %p70 = por %p68, %p69
    %p71 = scmp.ne.s32.totalorder %s59, %s60
    %p72 = scmp.eq.s32.totalorder %s29, 1
    %p73 = por %p71, %p72
    %p75 = scmp.ne.s32.totalorder %s60, %s74
    %p76 = scmp.eq.s32.totalorder %s29, 0
    %p77 = por %p75, %p76
    %s79 = sadd.s32 %s78, 1
    %p82 = scmp.eq.s32.totalorder %s23, 1
    %p83 = scmp.ne.s32.totalorder %s78, %s80
    %p84 = scmp.eq.s32.totalorder %s23, 0
    %p85 = por %p83, %p84
    %p86 = scmp.ne.s32.totalorder %s78, %s80
    %p87 = scmp.eq.s32.totalorder %s28, 1
    %p88 = por %p86, %p87
    %p89 = scmp.ne.s32.totalorder %s80, %s81
    %p90 = scmp.eq.s32.totalorder %s28, 0
    %p91 = por %p89, %p90
    %p92 = scmp.ne.s32.totalorder %s80, %s81
    %p93 = scmp.eq.s32.totalorder %s29, 1
    %p94 = por %p92, %p93
    %p96 = scmp.ne.s32.totalorder %s81, %s95
    %p97 = scmp.eq.s32.totalorder %s29, 0
    %p98 = por %p96, %p97
    %s100 = sadd.s32 %s99, 1
    %p103 = scmp.eq.s32.totalorder %s23, 1
    %p104 = scmp.ne.s32.totalorder %s99, %s101
    %p105 = scmp.eq.s32.totalorder %s23, 0
    %p106 = por %p104, %p105
    %p107 = scmp.ne.s32.totalorder %s99, %s101
    %p108 = scmp.eq.s32.totalorder %s28, 1
    %p109 = por %p107, %p108
    %p110 = scmp.ne.s32.totalorder %s101, %s102
    %p111 = scmp.eq.s32.totalorder %s28, 0
    %p112 = por %p110, %p111
    %p113 = scmp.ne.s32.totalorder %s101, %s102
    %p114 = scmp.eq.s32.totalorder %s29, 1
    %p115 = por %p113, %p114
    %p117 = scmp.ne.s32.totalorder %s102, %s116
    %p118 = scmp.eq.s32.totalorder %s29, 0
    %p119 = por %p117, %p118
    %s121 = sadd.s32 %s120, 1
    %p124 = scmp.eq.s32.totalorder %s23, 1
    %p125 = scmp.ne.s32.totalorder %s120, %s122
    %p126 = scmp.eq.s32.totalorder %s23, 0
    %p127 = por %p125, %p126
    %p128 = scmp.ne.s32.totalorder %s120, %s122
    %p129 = scmp.eq.s32.totalorder %s28, 1
    %p130 = por %p128, %p129
    %p131 = scmp.ne.s32.totalorder %s122, %s123
    %p132 = scmp.eq.s32.totalorder %s28, 0
    %p133 = por %p131, %p132
    %p134 = scmp.ne.s32.totalorder %s122, %s123
    %p135 = scmp.eq.s32.totalorder %s29, 1
    %p136 = por %p134, %p135
    %p138 = scmp.ne.s32.totalorder %s123, %s137
    %p139 = scmp.eq.s32.totalorder %s29, 0
    %p140 = por %p138, %p139
    %s142 = sadd.s32 %s141, 1
    %p145 = scmp.eq.s32.totalorder %s23, 1
    %p146 = scmp.ne.s32.totalorder %s141, %s143
    %p147 = scmp.eq.s32.totalorder %s23, 0
    %p148 = por %p146, %p147
    %p149 = scmp.ne.s32.totalorder %s141, %s143
    %p150 = scmp.eq.s32.totalorder %s28, 1
    %p151 = por %p149, %p150
    %p152 = scmp.ne.s32.totalorder %s143, %s144
    %p153 = scmp.eq.s32.totalorder %s28, 0
    %p154 = por %p152, %p153
    %p155 = scmp.ne.s32.totalorder %s143, %s144
    %p156 = scmp.eq.s32.totalorder %s29, 1
    %p157 = por %p155, %p156
    %p159 = scmp.ne.s32.totalorder %s144, %s158
    %p160 = scmp.eq.s32.totalorder %s29, 0
    %p161 = por %p159, %p160
    %s163 = sadd.s32 %s162, 1
    %p166 = scmp.eq.s32.totalorder %s23, 1
    %p167 = scmp.ne.s32.totalorder %s162, %s164
    %p168 = scmp.eq.s32.totalorder %s23, 0
    %p169 = por %p167, %p168
    %p170 = scmp.ne.s32.totalorder %s162, %s164
    %p171 = scmp.eq.s32.totalorder %s28, 1
    %p172 = por %p170, %p171
    %p173 = scmp.ne.s32.totalorder %s164, %s165
    %p174 = scmp.eq.s32.totalorder %s28, 0
    %p175 = por %p173, %p174
    %p176 = scmp.ne.s32.totalorder %s164, %s165
    %p177 = scmp.eq.s32.totalorder %s29, 1
    %p178 = por %p176, %p177
    %p180 = scmp.ne.s32.totalorder %s165, %s179
    %p181 = scmp.eq.s32.totalorder %s29, 0
    %p182 = por %p180, %p181
    %s184 = sadd.s32 %s183, 1
    %p187 = scmp.eq.s32.totalorder %s23, 1
    %p188 = scmp.ne.s32.totalorder %s183, %s185
    %p189 = scmp.eq.s32.totalorder %s23, 0
    %p190 = por %p188, %p189
    %p191 = scmp.ne.s32.totalorder %s183, %s185
    %p192 = scmp.eq.s32.totalorder %s28, 1
    %p193 = por %p191, %p192
    %p194 = scmp.ne.s32.totalorder %s185, %s186
    %p195 = scmp.eq.s32.totalorder %s28, 0
    %p196 = por %p194, %p195
    %p197 = scmp.ne.s32.totalorder %s185, %s186
    %p198 = scmp.eq.s32.totalorder %s29, 1
    %p199 = por %p197, %p198
    %p201 = scmp.ne.s32.totalorder %s186, %s200
    %p202 = scmp.eq.s32.totalorder %s29, 0
    %p203 = por %p201, %p202
    %s205 = sadd.s32 %s204, 1
    %p208 = scmp.eq.s32.totalorder %s23, 1
    %p209 = scmp.ne.s32.totalorder %s204, %s206
    %p210 = scmp.eq.s32.totalorder %s23, 0
    %p211 = por %p209, %p210
    %p212 = scmp.ne.s32.totalorder %s204, %s206
    %p213 = scmp.eq.s32.totalorder %s28, 1
    %p214 = por %p212, %p213
    %p215 = scmp.ne.s32.totalorder %s206, %s207
    %p216 = scmp.eq.s32.totalorder %s28, 0
    %p217 = por %p215, %p216
    %p218 = scmp.ne.s32.totalorder %s206, %s207
    %p219 = scmp.eq.s32.totalorder %s29, 1
    %p220 = por %p218, %p219
    %p222 = scmp.ne.s32.totalorder %s207, %s221
    %p223 = scmp.eq.s32.totalorder %s29, 0
    %p224 = por %p222, %p223
    %s226 = sadd.s32 %s225, 1
    %p229 = scmp.eq.s32.totalorder %s23, 1
    %p230 = scmp.ne.s32.totalorder %s225, %s227
    %p231 = scmp.eq.s32.totalorder %s23, 0
    %p232 = por %p230, %p231
    %p233 = scmp.ne.s32.totalorder %s225, %s227
    %p234 = scmp.eq.s32.totalorder %s28, 1
    %p235 = por %p233, %p234
    %p236 = scmp.ne.s32.totalorder %s227, %s228
    %p237 = scmp.eq.s32.totalorder %s28, 0
    %p238 = por %p236, %p237
    %p239 = scmp.ne.s32.totalorder %s227, %s228
    %p240 = scmp.eq.s32.totalorder %s29, 1
    %p241 = por %p239, %p240
    %p243 = scmp.ne.s32.totalorder %s228, %s242
    %p244 = scmp.eq.s32.totalorder %s29, 0
    %p245 = por %p243, %p244
    %s247 = sadd.s32 %s246, 1
    %p250 = scmp.eq.s32.totalorder %s23, 1
    %p251 = scmp.ne.s32.totalorder %s246, %s248
    %p252 = scmp.eq.s32.totalorder %s23, 0
    %p253 = por %p251, %p252
    %p254 = scmp.ne.s32.totalorder %s246, %s248
    %p255 = scmp.eq.s32.totalorder %s28, 1
    %p256 = por %p254, %p255
    %p257 = scmp.ne.s32.totalorder %s248, %s249
    %p258 = scmp.eq.s32.totalorder %s28, 0
    %p259 = por %p257, %p258
    %p260 = scmp.ne.s32.totalorder %s248, %s249
    %p261 = scmp.eq.s32.totalorder %s29, 1
    %p262 = por %p260, %p261
    %p264 = scmp.ne.s32.totalorder %s249, %s263
    %p265 = scmp.eq.s32.totalorder %s29, 0
    %p266 = por %p264, %p265
    %s268 = sadd.s32 %s267, 1
    %p271 = scmp.eq.s32.totalorder %s23, 1
    %p272 = scmp.ne.s32.totalorder %s267, %s269
    %p273 = scmp.eq.s32.totalorder %s23, 0
    %p274 = por %p272, %p273
    %p275 = scmp.ne.s32.totalorder %s267, %s269
    %p276 = scmp.eq.s32.totalorder %s28, 1
    %p277 = por %p275, %p276
    %p278 = scmp.ne.s32.totalorder %s269, %s270
    %p279 = scmp.eq.s32.totalorder %s28, 0
    %p280 = por %p278, %p279
    %p281 = scmp.ne.s32.totalorder %s269, %s270
    %p282 = scmp.eq.s32.totalorder %s29, 1
    %p283 = por %p281, %p282
    %p285 = scmp.ne.s32.totalorder %s270, %s284
    %p286 = scmp.eq.s32.totalorder %s29, 0
    %p287 = por %p285, %p286
    %s289 = sadd.s32 %s288, 1
    %p292 = scmp.eq.s32.totalorder %s23, 1
    %p293 = scmp.ne.s32.totalorder %s288, %s290
    %p294 = scmp.eq.s32.totalorder %s23, 0
    %p295 = por %p293, %p294
    %p296 = scmp.ne.s32.totalorder %s288, %s290
    %p297 = scmp.eq.s32.totalorder %s28, 1
    %p298 = por %p296, %p297
    %p299 = scmp.ne.s32.totalorder %s290, %s291
    %p300 = scmp.eq.s32.totalorder %s28, 0
    %p301 = por %p299, %p300
    %p302 = scmp.ne.s32.totalorder %s290, %s291
    %p303 = scmp.eq.s32.totalorder %s29, 1
    %p304 = por %p302, %p303
    %p306 = scmp.ne.s32.totalorder %s291, %s305
    %p307 = scmp.eq.s32.totalorder %s29, 0
    %p308 = por %p306, %p307
    %s310 = sadd.s32 %s309, 1
    %p313 = scmp.eq.s32.totalorder %s23, 1
    %p314 = scmp.ne.s32.totalorder %s309, %s311
    %p315 = scmp.eq.s32.totalorder %s23, 0
    %p316 = por %p314, %p315
    %p317 = scmp.ne.s32.totalorder %s309, %s311
    %p318 = scmp.eq.s32.totalorder %s28, 1
    %p319 = por %p317, %p318
    %p320 = scmp.ne.s32.totalorder %s311, %s312
    %p321 = scmp.eq.s32.totalorder %s28, 0
    %p322 = por %p320, %p321
    %p323 = scmp.ne.s32.totalorder %s311, %s312
    %p324 = scmp.eq.s32.totalorder %s29, 1
    %p325 = por %p323, %p324
    %p327 = scmp.ne.s32.totalorder %s312, %s326
    %p328 = scmp.eq.s32.totalorder %s29, 0
    %p329 = por %p327, %p328
    %s331 = sadd.s32 %s330, 1
    %p334 = scmp.eq.s32.totalorder %s23, 1
    %p335 = scmp.ne.s32.totalorder %s330, %s332
    %p336 = scmp.eq.s32.totalorder %s23, 0
    %p337 = por %p335, %p336
    %p338 = scmp.ne.s32.totalorder %s330, %s332
    %p339 = scmp.eq.s32.totalorder %s28, 1
    %p340 = por %p338, %p339
    %p341 = scmp.ne.s32.totalorder %s332, %s333
    %p342 = scmp.eq.s32.totalorder %s28, 0
    %p343 = por %p341, %p342
    %p344 = scmp.ne.s32.totalorder %s332, %s333
    %p345 = scmp.eq.s32.totalorder %s29, 1
    %p346 = por %p344, %p345
    %p348 = scmp.ne.s32.totalorder %s333, %s347
    %p349 = scmp.eq.s32.totalorder %s29, 0
    %p350 = por %p348, %p349
    %s352 = sadd.s32 %s351, 1
    %p355 = scmp.eq.s32.totalorder %s23, 1
    %p356 = scmp.ne.s32.totalorder %s351, %s353
    %p357 = scmp.eq.s32.totalorder %s23, 0
    %p358 = por %p356, %p357
    %p359 = scmp.ne.s32.totalorder %s351, %s353
    %p360 = scmp.eq.s32.totalorder %s28, 1
    %p361 = por %p359, %p360
    %p362 = scmp.ne.s32.totalorder %s353, %s354
    %p363 = scmp.eq.s32.totalorder %s28, 0
    %p364 = por %p362, %p363
    %p365 = scmp.ne.s32.totalorder %s353, %s354
    %p366 = scmp.eq.s32.totalorder %s29, 1
    %p367 = por %p365, %p366
    %p369 = scmp.ne.s32.totalorder %s354, %s368
    %p370 = scmp.eq.s32.totalorder %s29, 0
    %p371 = por %p369, %p370
    %s373 = sadd.s32 %s372, 1
    %p376 = scmp.eq.s32.totalorder %s23, 1
    %p377 = scmp.ne.s32.totalorder %s372, %s374
    %p378 = scmp.eq.s32.totalorder %s23, 0
    %p379 = por %p377, %p378
    %p380 = scmp.ne.s32.totalorder %s372, %s374
    %p381 = scmp.eq.s32.totalorder %s28, 1
    %p382 = por %p380, %p381
    %p383 = scmp.ne.s32.totalorder %s374, %s375
    %p384 = scmp.eq.s32.totalorder %s28, 0
    %p385 = por %p383, %p384
    %p386 = scmp.ne.s32.totalorder %s374, %s375
    %p387 = scmp.eq.s32.totalorder %s29, 1
    %p388 = por %p386, %p387
    %p390 = scmp.ne.s32.totalorder %s375, %s389
    %p391 = scmp.eq.s32.totalorder %s29, 0
    %p392 = por %p390, %p391
    %s393 = ssub.s32 %s23, %s30
    %p394 = scmp.eq.s32.totalorder %s393, 0
    %s396 = sadd.s32 %s395, 1
    %s397 = scalar_select %p394, %s395, %s396
    %p400 = pneg %p394
    %p401 = scmp.eq.s32.totalorder %s23, 1
    %p402 = por %p400, %p401
    %p403 = scmp.ne.s32.totalorder %s395, %s398
    %p404 = scmp.eq.s32.totalorder %s23, 0
    %p405 = por %p403, %p404
    %p406 = scmp.ne.s32.totalorder %s395, %s398
    %p407 = scmp.eq.s32.totalorder %s28, 1
    %p408 = por %p406, %p407
    %p409 = scmp.ne.s32.totalorder %s398, %s399
    %p410 = scmp.eq.s32.totalorder %s28, 0
    %p411 = por %p409, %p410
    %p412 = scmp.ne.s32.totalorder %s398, %s399
    %p413 = scmp.eq.s32.totalorder %s29, 1
    %p414 = por %p412, %p413
    %p416 = scmp.ne.s32.totalorder %s399, %s415
    %p417 = scmp.eq.s32.totalorder %s29, 0
    %p418 = por %p416, %p417
    %p419 = scmp.le.s32.totalorder 1, %s23
    %p420 = scmp.lt.s32.totalorder %s23, 3
    %p421 = pnand %p419, %p420
    %p422 = pneg %p421
    // Predicated region
    $region9: #{run.6} parent=5 // pred_check
      _
    $region10: #{run.6} parent=5 // pred_check_branch
      %424 = sbr.rel (%p421) target = $region12
    $region11: #{run.6} parent=5 // pred_region
      %s425 = ssub.s32 %s23, 1
      // Predicated region
      $region13: #{run.6} parent=11 // pred_check
        %p426 = pneg %p70
      $region14: #{run.6} parent=11 // pred_check_branch
        %428 = sbr.rel (%p426) target = $region16
      $region15: #{run.6} parent=11 // pred_region
        _
      $region16: #{run.6} parent=11 // pred_fallthru
        _
      // Predicated region
      $region17: #{run.6} parent=11 // pred_check
        %p429 = pneg %p91
      $region18: #{run.6} parent=11 // pred_check_branch
        %431 = sbr.rel (%p429) target = $region20
      $region19: #{run.6} parent=11 // pred_region
        _
      $region20: #{run.6} parent=11 // pred_fallthru
        _
      // Predicated region
      $region21: #{run.6} parent=11 // pred_check
        %p432 = pneg %p112
      $region22: #{run.6} parent=11 // pred_check_branch
        %434 = sbr.rel (%p432) target = $region24
      $region23: #{run.6} parent=11 // pred_region
        _
      $region24: #{run.6} parent=11 // pred_fallthru
        _
      // Predicated region
      $region25: #{run.6} parent=11 // pred_check
        %p435 = pneg %p133
      $region26: #{run.6} parent=11 // pred_check_branch
        %437 = sbr.rel (%p435) target = $region28
      $region27: #{run.6} parent=11 // pred_region
        _
      $region28: #{run.6} parent=11 // pred_fallthru
        _
      // Predicated region
      $region29: #{run.6} parent=11 // pred_check
        %p438 = pneg %p154
      $region30: #{run.6} parent=11 // pred_check_branch
        %440 = sbr.rel (%p438) target = $region32
      $region31: #{run.6} parent=11 // pred_region
        _
      $region32: #{run.6} parent=11 // pred_fallthru
        _
      // Predicated region
      $region33: #{run.6} parent=11 // pred_check
        %p441 = pneg %p175
      $region34: #{run.6} parent=11 // pred_check_branch
        %443 = sbr.rel (%p441) target = $region36
      $region35: #{run.6} parent=11 // pred_region
        _
      $region36: #{run.6} parent=11 // pred_fallthru
        _
      // Predicated region
      $region37: #{run.6} parent=11 // pred_check
        %p444 = pneg %p196
      $region38: #{run.6} parent=11 // pred_check_branch
        %446 = sbr.rel (%p444) target = $region40
      $region39: #{run.6} parent=11 // pred_region
        _
      $region40: #{run.6} parent=11 // pred_fallthru
        _
      // Predicated region
      $region41: #{run.6} parent=11 // pred_check
        %p447 = pneg %p217
      $region42: #{run.6} parent=11 // pred_check_branch
        %449 = sbr.rel (%p447) target = $region44
      $region43: #{run.6} parent=11 // pred_region
        _
      $region44: #{run.6} parent=11 // pred_fallthru
        _
      // Predicated region
      $region45: #{run.6} parent=11 // pred_check
        %p450 = pneg %p238
      $region46: #{run.6} parent=11 // pred_check_branch
        %452 = sbr.rel (%p450) target = $region48
      $region47: #{run.6} parent=11 // pred_region
        _
      $region48: #{run.6} parent=11 // pred_fallthru
        _
      // Predicated region
      $region49: #{run.6} parent=11 // pred_check
        %p453 = pneg %p259
      $region50: #{run.6} parent=11 // pred_check_branch
        %455 = sbr.rel (%p453) target = $region52
      $region51: #{run.6} parent=11 // pred_region
        _
      $region52: #{run.6} parent=11 // pred_fallthru
        _
      // Predicated region
      $region53: #{run.6} parent=11 // pred_check
        %p456 = pneg %p280
      $region54: #{run.6} parent=11 // pred_check_branch
        %458 = sbr.rel (%p456) target = $region56
      $region55: #{run.6} parent=11 // pred_region
        _
      $region56: #{run.6} parent=11 // pred_fallthru
        _
      // Predicated region
      $region57: #{run.6} parent=11 // pred_check
        %p459 = pneg %p301
      $region58: #{run.6} parent=11 // pred_check_branch
        %461 = sbr.rel (%p459) target = $region60
      $region59: #{run.6} parent=11 // pred_region
        _
      $region60: #{run.6} parent=11 // pred_fallthru
        _
      // Predicated region
      $region61: #{run.6} parent=11 // pred_check
        %p462 = pneg %p322
      $region62: #{run.6} parent=11 // pred_check_branch
        %464 = sbr.rel (%p462) target = $region64
      $region63: #{run.6} parent=11 // pred_region
        _
      $region64: #{run.6} parent=11 // pred_fallthru
        _
      // Predicated region
      $region65: #{run.6} parent=11 // pred_check
        %p465 = pneg %p343
      $region66: #{run.6} parent=11 // pred_check_branch
        %467 = sbr.rel (%p465) target = $region68
      $region67: #{run.6} parent=11 // pred_region
        _
      $region68: #{run.6} parent=11 // pred_fallthru
        _
      // Predicated region
      $region69: #{run.6} parent=11 // pred_check
        %p468 = pneg %p364
      $region70: #{run.6} parent=11 // pred_check_branch
        %470 = sbr.rel (%p468) target = $region72
      $region71: #{run.6} parent=11 // pred_region
        _
      $region72: #{run.6} parent=11 // pred_fallthru
        _
      // Predicated region
      $region73: #{run.6} parent=11 // pred_check
        %p471 = pneg %p385
      $region74: #{run.6} parent=11 // pred_check_branch
        %473 = sbr.rel (%p471) target = $region76
      $region75: #{run.6} parent=11 // pred_region
        _
      $region76: #{run.6} parent=11 // pred_fallthru
        _
    $region12: #{run.6} parent=5 // pred_fallthru
      _
    %p474 = scmp.lt.s32.totalorder %s23, 2
    // Predicated region
    $region77: #{run.6} parent=5 // pred_check
      %p475 = pneg %p474
    $region78: #{run.6} parent=5 // pred_check_branch
      %477 = sbr.rel (%p475) target = $region80
    $region79: #{run.6} parent=5 // pred_region
      // Predicated region
      $region81: #{run.6} parent=79 // pred_check
        %p478 = pneg %p43
      $region82: #{run.6} parent=79 // pred_check_branch
        %480 = sbr.rel (%p478) target = $region84
      $region83: #{run.6} parent=79 // pred_region
        %p481 = scmp.lt.s32.totalorder %s23, 1
        %s482 = scalar_select %p481, %s23, 1
        %s483 = smul.addr %s482, 2
        %s484 = smul.addr %s483, 4
        %s485 = scalar_lea.vmem %s0, %s484
      $region84: #{run.6} parent=79 // pred_fallthru
        _
    $region80: #{run.6} parent=5 // pred_fallthru
      _
    %p486 = scmp.le.s32.totalorder 1, %s23
    %p487 = scmp.lt.s32.totalorder %s23, 3
    %p488 = pnand %p486, %p487
    %p489 = pneg %p488
    // Predicated region
    $region85: #{run.6} parent=5 // pred_check
      _
    $region86: #{run.6} parent=5 // pred_check_branch
      %491 = sbr.rel (%p488) target = $region88
    $region87: #{run.6} parent=5 // pred_region
      %s492 = ssub.s32 %s23, 1
      %p493 = scmp.lt.s32.totalorder %s28, 1
      %s494 = scalar_select %p493, %s28, 1
      %s495 = smul.addr %s494, 2
      %s496 = smul.addr %s495, 4
      %s497 = scalar_lea.vmem %s0, %s496
      %p498 = pneg %p49
      %p499 = pneg %p46
      %p500 = pneg %p70
      %p501 = pneg %p67
      %p502 = pneg %p91
      %p503 = pneg %p88
      %p504 = pneg %p112
      %p505 = pneg %p109
      %p506 = pneg %p133
      %p507 = pneg %p130
      %p508 = pneg %p154
      %p509 = pneg %p151
      %p510 = pneg %p175
      %p511 = pneg %p172
      %p512 = pneg %p196
      %p513 = pneg %p193
      %p514 = pneg %p217
      %p515 = pneg %p214
      %p516 = pneg %p238
      %p517 = pneg %p235
      %p518 = pneg %p259
      %p519 = pneg %p256
      %p520 = pneg %p280
      %p521 = pneg %p277
      %p522 = pneg %p301
      %p523 = pneg %p298
      %p524 = pneg %p322
      %p525 = pneg %p319
      %p526 = pneg %p343
      %p527 = pneg %p340
      %p528 = pneg %p364
      %p529 = pneg %p361
      %p530 = pneg %p385
      %p531 = pneg %p382
      %p532 = pneg %p411
      %p533 = pneg %p408
      %p534 = scmp.lt.s32.totalorder %s28, 1
      %s535 = scalar_select %p534, %s28, 1
      %s536 = smul.addr %s535, 2
      %s537 = smul.addr %s536, 4
      %s538 = scalar_lea.vmem %s17, %s537
      %p539 = scmp.lt.s32.totalorder %s28, 1
      %s540 = scalar_select %p539, %s28, 1
      %s541 = smul.addr %s540, 2
      %s542 = smul.addr %s541, 4
      %s543 = scalar_lea.vmem %s0, %s542
      %p544 = scmp.lt.s32.totalorder %s28, 1
      %s545 = scalar_select %p544, %s28, 1
      %s546 = smul.addr %s545, 2
      %s547 = smul.addr %s546, 4
      %s548 = scalar_lea.vmem %s17, %s547
      %v550 = vld [vmem:[%s543] sm:$0xf]
      %v551 = vld [vmem:[%s543 + $0x4] sm:$0x1]
      %v552 = vunpack.c.l.bf16 %v550
      %v553 = vunpack.c.l.bf16 %v551
      %v554 = vld [vmem:[%s3] sm:$0xf]
      %v555 = vld [vmem:[%s3 + $0x4] sm:$0xf]
      %v556 = vld [vmem:[%s3 + $0x8] sm:$0xf]
      %v557 = vld [vmem:[%s3 + $0xc] sm:$0xf]
      %v558 = vld [vmem:[%s4] sm:$0x1]
      %v560 = vlaneseq
      %v561 = vshrl.u32 %v560, 7
      %v562 = vsub.s32 0, %v561
      %v563 = vrot.slane %v558, %v562
      %v567 = vunpack.c.l.b16 %v550
      %v568 = vunpack.c.l.b16 %v551
      %v569 = vpack.c.b16 %v568, %v567
      %v574 = vunpack.c.l.b16 %v554
      %v575 = vunpack.c.l.b16 %v555
      %v576 = vunpack.c.l.b16 %v556
      %v577 = vunpack.c.l.b16 %v557
      %v578 = vpack.c.b16 %v575, %v574
      %v579 = vpack.c.b16 %v577, %v576
      %vm582 = vcmask 261120
      %v584 = vsel %vm582, %v569, 0
      %586 = vmatprep.subr.bf16.mxu0 0
      %587 = vmatpush1.bf16.msra.mxu0 0
      %588 = vmatprep.subr.bf16.mxu0 0
      %589 = vmatpush1.bf16.msra.mxu0 0
      %590 = vmatprep.subr.bf16.mxu0 0
      %591 = vmatpush1.bf16.msra.mxu0 0
      %592 = vmatprep.subr.bf16.mxu0 0
      %593 = vmatpush1.bf16.msra.mxu0 0
      %594 = vmatprep.subr.bf16.mxu0 0
      %595 = vmatpush1.bf16.msra.mxu0 0
      %596 = vmatprep.subr.bf16.mxu0 0
      %597 = vmatpush1.bf16.msra.mxu0 0
      %598 = vmatprep.subr.bf16.mxu0 0
      %599 = vmatpush1.bf16.msra.mxu0 %v579
      %600 = vmatprep.subr.bf16.mxu0 0
      %601 = vmatpush1.bf16.msra.mxu0 %v578
      %602 = vmatprep.subr.bf16.mxu0 0
      %603 = vmatpush2.bf16.msra.mxu0 0
      %604 = vmatprep.subr.bf16.mxu0 0
      %605 = vmatpush2.bf16.msra.mxu0 0
      %606 = vmatprep.subr.bf16.mxu0 0
      %607 = vmatpush2.bf16.msra.mxu0 0
      %608 = vmatprep.subr.bf16.mxu0 0
      %609 = vmatpush2.bf16.msra.mxu0 0
      %610 = vmatprep.subr.bf16.mxu0 0
      %611 = vmatpush2.bf16.msra.mxu0 0
      %612 = vmatprep.subr.bf16.mxu0 0
      %613 = vmatpush2.bf16.msra.mxu0 0
      %614 = vmatprep.subr.bf16.mxu0 0
      %615 = vmatpush2.bf16.msra.mxu0 0
      %616 = vmatprep.subr.bf16.mxu0 0
      %617 = vmatpush2.bf16.msra.mxu0 0
      %618 = vmatprep.mubr.bf16.mxu0 0
      %619 = vmatmul.mubr.bf16.gmra.mxu0 %v584
      %v620 = vpop.f32.mrf.mxu0
      %v621 = vadd.f32 %v563, %v620
      %v622 = vpop.f32.mrf.mxu0
      %v623 = vpop.f32.mrf.mxu0
      %v624 = vadd.f32 %v563, %v623
      %v625 = vpop.f32.mrf.mxu0
      %626 = vdwg.mxu0
      %v627 = vld [vmem:[%s1] sm:$0xff]
      %v628 = vld [vmem:[%s1 + $0x8] sm:$0x3]
      %s629 = scalar_lea.vmem %s2, %s28
      %v630 = vld [vmem:[%s629] sm:$0x1]
      %v631 = vlaneseq
      %v632 = vshrl.u32 %v631, 7
      %v633 = vsub.s32 0, %v632
      %v634 = vrot.slane %v630, %v633
      %v635 = vadd.f32 %v627, %v634
      %v636 = vadd.f32 %v628, %v634
      %v637 = vmul.f32 %v621, 0.35355338
      %v638 = vmul.f32 %v624, 0.35355338
      %v639 = vpack.c.bf16 %v638, %v637
      %v640 = vpack.c.bf16 %v624, %v621
      %642 = vrot.lane.b32.xlu0 %v640, 96
      %v643 = vpop.permute.xlu0 %642
      %vm644 = vcmask 64512
      %v646 = vsel %vm644, %v639, 0
      %v649 = vsel %vm644, %v643, 0
      %651 = vmatprep.subr.bf16.mxu0 0
      %652 = vmatpush1.bf16.xpose.msra.mxu0 0
      %653 = vmatprep.subr.bf16.mxu0 0
      %654 = vmatpush1.bf16.xpose.msra.mxu0 0
      %655 = vmatprep.subr.bf16.mxu0 0
      %656 = vmatpush1.bf16.xpose.msra.mxu0 0
      %657 = vmatprep.subr.bf16.mxu0 0
      %658 = vmatpush1.bf16.xpose.msra.mxu0 0
      %659 = vmatprep.subr.bf16.mxu0 0
      %660 = vmatpush1.bf16.xpose.msra.mxu0 0
      %661 = vmatprep.subr.bf16.mxu0 0
      %662 = vmatpush1.bf16.xpose.msra.mxu0 0
      %663 = vmatprep.subr.bf16.mxu0 0
      %664 = vmatpush1.bf16.xpose.msra.mxu0 0
      %665 = vmatprep.subr.bf16.mxu0 0
      %666 = vmatpush1.bf16.xpose.msra.mxu0 %v649
      %667 = vmatprep.subr.bf16.mxu0 0
      %668 = vmatpush2.bf16.xpose.msra.mxu0 0
      %669 = vmatprep.subr.bf16.mxu0 0
      %670 = vmatpush2.bf16.xpose.msra.mxu0 0
      %671 = vmatprep.subr.bf16.mxu0 0
      %672 = vmatpush2.bf16.xpose.msra.mxu0 0
      %673 = vmatprep.subr.bf16.mxu0 0
      %674 = vmatpush2.bf16.xpose.msra.mxu0 0
      %675 = vmatprep.subr.bf16.mxu0 0
      %676 = vmatpush2.bf16.xpose.msra.mxu0 0
      %677 = vmatprep.subr.bf16.mxu0 0
      %678 = vmatpush2.bf16.xpose.msra.mxu0 0
      %679 = vmatprep.subr.bf16.mxu0 0
      %680 = vmatpush2.bf16.xpose.msra.mxu0 0
      %681 = vmatprep.subr.bf16.mxu0 0
      %682 = vmatpush2.bf16.xpose.msra.mxu0 0
      %683 = vmatprep.mubr.bf16.mxu0 0
      %684 = vmatmul.mubr.bf16.gmra.mxu0 %v646
      %v685 = vpop.f32.mrf.mxu0
      %v686 = vadd.f32 %v635, %v685
      %v687 = vpop.f32.mrf.mxu0
      %v688 = vpop.f32.mrf.mxu0
      %v689 = vadd.f32 %v636, %v688
      %v690 = vpop.f32.mrf.mxu0
      %691 = vdwg.mxu0
      %vm692 = vcmask 80896
      %v693 = vsel %vm692, %v686, -inf
      %694 = vmax.xlane.f32.xlu0 %v693
      %v695 = vpop.xlane.xlu0 %694
      %vm696 = vcmask 74752
      %v697 = vsel %vm696, %v689, -inf
      %698 = vmax.xlane.f32.xlu0 %v697
      %v699 = vpop.xlane.xlu0 %698
      %v700 = vsub.f32 %v686, %v695
      %v701 = vsub.f32 %v689, %v699
      %v702 = vmul.f32 %v700, 1.442695
      %v703 = vpow.pop %v702
      %v704 = vmul.f32 %v701, 1.442695
      %v705 = vpow.pop %v704
      %v706 = vsel %vm692, %v703, 0.0
      %707 = vadd.xlane.f32.xlu0 %v706
      %v708 = vpop.xlane.xlu0 %707
      %v709 = vsel %vm696, %v705, 0.0
      %710 = vadd.xlane.f32.xlu0 %v709
      %v711 = vpop.xlane.xlu0 %710
      %v712 = vrcp.pop %v708
      %v713 = vrcp.pop %v711
      %v714 = vmul.f32 %v703, %v712
      %v715 = vmul.f32 %v705, %v713
      %v716 = vpack.c.bf16 %v715, %v714
      %717 = vrot.lane.b32.xlu0 %v640, 64
      %v718 = vpop.permute.xlu0 %717
      %v720 = vsel %vm692, %v716, 0
      %vm722 = vcmask 1044480
      %v724 = vsel %vm722, %v718, 0
      %726 = vmatprep.subr.bf16.mxu0 0
      %727 = vmatpush1.bf16.msra.mxu0 0
      %728 = vmatprep.subr.bf16.mxu0 0
      %729 = vmatpush1.bf16.msra.mxu0 0
      %730 = vmatprep.subr.bf16.mxu0 0
      %731 = vmatpush1.bf16.msra.mxu0 0
      %732 = vmatprep.subr.bf16.mxu0 0
      %733 = vmatpush1.bf16.msra.mxu0 0
      %734 = vmatprep.subr.bf16.mxu0 0
      %735 = vmatpush1.bf16.msra.mxu0 0
      %736 = vmatprep.subr.bf16.mxu0 0
      %737 = vmatpush1.bf16.msra.mxu0 0
      %738 = vmatprep.subr.bf16.mxu0 0
      %739 = vmatpush1.bf16.msra.mxu0 0
      %740 = vmatprep.subr.bf16.mxu0 0
      %741 = vmatpush1.bf16.msra.mxu0 %v724
      %742 = vmatprep.subr.bf16.mxu0 0
      %743 = vmatpush2.bf16.msra.mxu0 0
      %744 = vmatprep.subr.bf16.mxu0 0
      %745 = vmatpush2.bf16.msra.mxu0 0
      %746 = vmatprep.subr.bf16.mxu0 0
      %747 = vmatpush2.bf16.msra.mxu0 0
      %748 = vmatprep.subr.bf16.mxu0 0
      %749 = vmatpush2.bf16.msra.mxu0 0
      %750 = vmatprep.subr.bf16.mxu0 0
      %751 = vmatpush2.bf16.msra.mxu0 0
      %752 = vmatprep.subr.bf16.mxu0 0
      %753 = vmatpush2.bf16.msra.mxu0 0
      %754 = vmatprep.subr.bf16.mxu0 0
      %755 = vmatpush2.bf16.msra.mxu0 0
      %756 = vmatprep.subr.bf16.mxu0 0
      %757 = vmatpush2.bf16.msra.mxu0 0
      %758 = vmatprep.mubr.bf16.mxu0 0
      %759 = vmatmul.mubr.bf16.gmra.mxu0 %v720
      %v760 = vpop.f32.mrf.mxu0
      %v761 = vadd.f32 0.0, %v760
      %v762 = vpop.f32.mrf.mxu0
      %v763 = vpop.f32.mrf.mxu0
      %v764 = vadd.f32 0.0, %v763
      %v765 = vpop.f32.mrf.mxu0
      %766 = vdwg.mxu0
      %767 = vst.msk [vmem:[#allocation2] sm:$0xff] %vm644, %v761
      %vm768 = vcmask 58368
      %769 = vst.msk [vmem:[#allocation2 + $0x8] sm:$0x3] %vm768, %v764
      %771 = vrot.lane.b32.xlu0 %v639, 120
      %v772 = vpop.permute.xlu0 %771
      %773 = vrot.lane.b32.xlu0 %v640, 88
      %v774 = vpop.permute.xlu0 %773
      %v776 = vsel %vm644, %v772, 0
      %v779 = vsel %vm644, %v774, 0
      %781 = vmatprep.subr.bf16.mxu0 0
      %782 = vmatpush1.bf16.xpose.msra.mxu0 0
      %783 = vmatprep.subr.bf16.mxu0 0
      %784 = vmatpush1.bf16.xpose.msra.mxu0 0
      %785 = vmatprep.subr.bf16.mxu0 0
      %786 = vmatpush1.bf16.xpose.msra.mxu0 0
      %787 = vmatprep.subr.bf16.mxu0 0
      %788 = vmatpush1.bf16.xpose.msra.mxu0 0
      %789 = vmatprep.subr.bf16.mxu0 0
      %790 = vmatpush1.bf16.xpose.msra.mxu0 0
      %791 = vmatprep.subr.bf16.mxu0 0
      %792 = vmatpush1.bf16.xpose.msra.mxu0 0
      %793 = vmatprep.subr.bf16.mxu0 0
      %794 = vmatpush1.bf16.xpose.msra.mxu0 0
      %795 = vmatprep.subr.bf16.mxu0 0
      %796 = vmatpush1.bf16.xpose.msra.mxu0 %v779
      %797 = vmatprep.subr.bf16.mxu0 0
      %798 = vmatpush2.bf16.xpose.msra.mxu0 0
      %799 = vmatprep.subr.bf16.mxu0 0
      %800 = vmatpush2.bf16.xpose.msra.mxu0 0
      %801 = vmatprep.subr.bf16.mxu0 0
      %802 = vmatpush2.bf16.xpose.msra.mxu0 0
      %803 = vmatprep.subr.bf16.mxu0 0
      %804 = vmatpush2.bf16.xpose.msra.mxu0 0
      %805 = vmatprep.subr.bf16.mxu0 0
      %806 = vmatpush2.bf16.xpose.msra.mxu0 0
      %807 = vmatprep.subr.bf16.mxu0 0
      %808 = vmatpush2.bf16.xpose.msra.mxu0 0
      %809 = vmatprep.subr.bf16.mxu0 0
      %810 = vmatpush2.bf16.xpose.msra.mxu0 0
      %811 = vmatprep.subr.bf16.mxu0 0
      %812 = vmatpush2.bf16.xpose.msra.mxu0 0
      %813 = vmatprep.mubr.bf16.mxu0 0
      %814 = vmatmul.mubr.bf16.gmra.mxu0 %v776
      %v815 = vpop.f32.mrf.mxu0
      %v816 = vadd.f32 %v635, %v815
      %v817 = vpop.f32.mrf.mxu0
      %v818 = vpop.f32.mrf.mxu0
      %v819 = vadd.f32 %v636, %v818
      %v820 = vpop.f32.mrf.mxu0
      %821 = vdwg.mxu0
      %v822 = vsel %vm692, %v816, -inf
      %823 = vmax.xlane.f32.xlu0 %v822
      %v824 = vpop.xlane.xlu0 %823
      %v825 = vsel %vm696, %v819, -inf
      %826 = vmax.xlane.f32.xlu0 %v825
      %v827 = vpop.xlane.xlu0 %826
      %v828 = vsub.f32 %v816, %v824
      %v829 = vsub.f32 %v819, %v827
      %v830 = vmul.f32 %v828, 1.442695
      %v831 = vpow.pop %v830
      %v832 = vmul.f32 %v829, 1.442695
      %v833 = vpow.pop %v832
      %v834 = vsel %vm692, %v831, 0.0
      %835 = vadd.xlane.f32.xlu0 %v834
      %v836 = vpop.xlane.xlu0 %835
      %v837 = vsel %vm696, %v833, 0.0
      %838 = vadd.xlane.f32.xlu0 %v837
      %v839 = vpop.xlane.xlu0 %838
      %v840 = vrcp.pop %v836
      %v841 = vrcp.pop %v839
      %v842 = vmul.f32 %v831, %v840
      %v843 = vmul.f32 %v833, %v841
      %v844 = vpack.c.bf16 %v843, %v842
      %845 = vrot.lane.b32.xlu0 %v640, 56
      %v846 = vpop.permute.xlu0 %845
      %v848 = vsel %vm692, %v844, 0
      %v851 = vsel %vm722, %v846, 0
      %853 = vmatprep.subr.bf16.mxu0 0
      %854 = vmatpush1.bf16.msra.mxu0 0
      %855 = vmatprep.subr.bf16.mxu0 0
      %856 = vmatpush1.bf16.msra.mxu0 0
      %857 = vmatprep.subr.bf16.mxu0 0
      %858 = vmatpush1.bf16.msra.mxu0 0
      %859 = vmatprep.subr.bf16.mxu0 0
      %860 = vmatpush1.bf16.msra.mxu0 0
      %861 = vmatprep.subr.bf16.mxu0 0
      %862 = vmatpush1.bf16.msra.mxu0 0
      %863 = vmatprep.subr.bf16.mxu0 0
      %864 = vmatpush1.bf16.msra.mxu0 0
      %865 = vmatprep.subr.bf16.mxu0 0
      %866 = vmatpush1.bf16.msra.mxu0 0
      %867 = vmatprep.subr.bf16.mxu0 0
      %868 = vmatpush1.bf16.msra.mxu0 %v851
      %869 = vmatprep.subr.bf16.mxu0 0
      %870 = vmatpush2.bf16.msra.mxu0 0
      %871 = vmatprep.subr.bf16.mxu0 0
      %872 = vmatpush2.bf16.msra.mxu0 0
      %873 = vmatprep.subr.bf16.mxu0 0
      %874 = vmatpush2.bf16.msra.mxu0 0
      %875 = vmatprep.subr.bf16.mxu0 0
      %876 = vmatpush2.bf16.msra.mxu0 0
      %877 = vmatprep.subr.bf16.mxu0 0
      %878 = vmatpush2.bf16.msra.mxu0 0
      %879 = vmatprep.subr.bf16.mxu0 0
      %880 = vmatpush2.bf16.msra.mxu0 0
      %881 = vmatprep.subr.bf16.mxu0 0
      %882 = vmatpush2.bf16.msra.mxu0 0
      %883 = vmatprep.subr.bf16.mxu0 0
      %884 = vmatpush2.bf16.msra.mxu0 0
      %885 = vmatprep.mubr.bf16.mxu0 0
      %886 = vmatmul.mubr.bf16.gmra.mxu0 %v848
      %v887 = vpop.f32.mrf.mxu0
      %v888 = vadd.f32 0.0, %v887
      %v889 = vpop.f32.mrf.mxu0
      %v890 = vpop.f32.mrf.mxu0
      %v891 = vadd.f32 0.0, %v890
      %v892 = vpop.f32.mrf.mxu0
      %893 = vdwg.mxu0
      %896 = vrot.lane.b32.xlu0 %v888, 8
      %v897 = vpop.permute.xlu0 %896
      %898 = vrot.lane.b32.xlu0 %v891, 8
      %v899 = vpop.permute.xlu0 %898
      %vm902 = vcmask 130112
      %903 = vst.msk [vmem:[#allocation2] sm:$0xff] %vm902, %v897
      %vm904 = vcmask 123968
      %905 = vst.msk [vmem:[#allocation2 + $0x8] sm:$0x3] %vm904, %v899
      %906 = vrot.lane.b32.xlu0 %v639, 112
      %v907 = vpop.permute.xlu0 %906
      %908 = vrot.lane.b32.xlu0 %v640, 80
      %v909 = vpop.permute.xlu0 %908
      %v911 = vsel %vm644, %v907, 0
      %v914 = vsel %vm644, %v909, 0
      %916 = vmatprep.subr.bf16.mxu0 0
      %917 = vmatpush1.bf16.xpose.msra.mxu0 0
      %918 = vmatprep.subr.bf16.mxu0 0
      %919 = vmatpush1.bf16.xpose.msra.mxu0 0
      %920 = vmatprep.subr.bf16.mxu0 0
      %921 = vmatpush1.bf16.xpose.msra.mxu0 0
      %922 = vmatprep.subr.bf16.mxu0 0
      %923 = vmatpush1.bf16.xpose.msra.mxu0 0
      %924 = vmatprep.subr.bf16.mxu0 0
      %925 = vmatpush1.bf16.xpose.msra.mxu0 0
      %926 = vmatprep.subr.bf16.mxu0 0
      %927 = vmatpush1.bf16.xpose.msra.mxu0 0
      %928 = vmatprep.subr.bf16.mxu0 0
      %929 = vmatpush1.bf16.xpose.msra.mxu0 0
      %930 = vmatprep.subr.bf16.mxu0 0
      %931 = vmatpush1.bf16.xpose.msra.mxu0 %v914
      %932 = vmatprep.subr.bf16.mxu0 0
      %933 = vmatpush2.bf16.xpose.msra.mxu0 0
      %934 = vmatprep.subr.bf16.mxu0 0
      %935 = vmatpush2.bf16.xpose.msra.mxu0 0
      %936 = vmatprep.subr.bf16.mxu0 0
      %937 = vmatpush2.bf16.xpose.msra.mxu0 0
      %938 = vmatprep.subr.bf16.mxu0 0
      %939 = vmatpush2.bf16.xpose.msra.mxu0 0
      %940 = vmatprep.subr.bf16.mxu0 0
      %941 = vmatpush2.bf16.xpose.msra.mxu0 0
      %942 = vmatprep.subr.bf16.mxu0 0
      %943 = vmatpush2.bf16.xpose.msra.mxu0 0
      %944 = vmatprep.subr.bf16.mxu0 0
      %945 = vmatpush2.bf16.xpose.msra.mxu0 0
      %946 = vmatprep.subr.bf16.mxu0 0
      %947 = vmatpush2.bf16.xpose.msra.mxu0 0
      %948 = vmatprep.mubr.bf16.mxu0 0
      %949 = vmatmul.mubr.bf16.gmra.mxu0 %v911
      %v950 = vpop.f32.mrf.mxu0
      %v951 = vadd.f32 %v635, %v950
      %v952 = vpop.f32.mrf.mxu0
      %v953 = vpop.f32.mrf.mxu0
      %v954 = vadd.f32 %v636, %v953
      %v955 = vpop.f32.mrf.mxu0
      %956 = vdwg.mxu0
      %v957 = vsel %vm692, %v951, -inf
      %958 = vmax.xlane.f32.xlu0 %v957
      %v959 = vpop.xlane.xlu0 %958
      %v960 = vsel %vm696, %v954, -inf
      %961 = vmax.xlane.f32.xlu0 %v960
      %v962 = vpop.xlane.xlu0 %961
      %v963 = vsub.f32 %v951, %v959
      %v964 = vsub.f32 %v954, %v962
      %v965 = vmul.f32 %v963, 1.442695
      %v966 = vpow.pop %v965
      %v967 = vmul.f32 %v964, 1.442695
      %v968 = vpow.pop %v967
      %v969 = vsel %vm692, %v966, 0.0
      %970 = vadd.xlane.f32.xlu0 %v969
      %v971 = vpop.xlane.xlu0 %970
      %v972 = vsel %vm696, %v968, 0.0
      %973 = vadd.xlane.f32.xlu0 %v972
      %v974 = vpop.xlane.xlu0 %973
      %v975 = vrcp.pop %v971
      %v976 = vrcp.pop %v974
      %v977 = vmul.f32 %v966, %v975
      %v978 = vmul.f32 %v968, %v976
      %v979 = vpack.c.bf16 %v978, %v977
      %980 = vrot.lane.b32.xlu0 %v640, 48
      %v981 = vpop.permute.xlu0 %980
      %v983 = vsel %vm692, %v979, 0
      %v986 = vsel %vm722, %v981, 0
      %988 = vmatprep.subr.bf16.mxu0 0
      %989 = vmatpush1.bf16.msra.mxu0 0
      %990 = vmatprep.subr.bf16.mxu0 0
      %991 = vmatpush1.bf16.msra.mxu0 0
      %992 = vmatprep.subr.bf16.mxu0 0
      %993 = vmatpush1.bf16.msra.mxu0 0
      %994 = vmatprep.subr.bf16.mxu0 0
      %995 = vmatpush1.bf16.msra.mxu0 0
      %996 = vmatprep.subr.bf16.mxu0 0
      %997 = vmatpush1.bf16.msra.mxu0 0
      %998 = vmatprep.subr.bf16.mxu0 0
      %999 = vmatpush1.bf16.msra.mxu0 0
      %1000 = vmatprep.subr.bf16.mxu0 0
      %1001 = vmatpush1.bf16.msra.mxu0 0
      %1002 = vmatprep.subr.bf16.mxu0 0
      %1003 = vmatpush1.bf16.msra.mxu0 %v986
      %1004 = vmatprep.subr.bf16.mxu0 0
      %1005 = vmatpush2.bf16.msra.mxu0 0
      %1006 = vmatprep.subr.bf16.mxu0 0
      %1007 = vmatpush2.bf16.msra.mxu0 0
      %1008 = vmatprep.subr.bf16.mxu0 0
      %1009 = vmatpush2.bf16.msra.mxu0 0
      %1010 = vmatprep.subr.bf16.mxu0 0
      %1011 = vmatpush2.bf16.msra.mxu0 0
      %1012 = vmatprep.subr.bf16.mxu0 0
      %1013 = vmatpush2.bf16.msra.mxu0 0
      %1014 = vmatprep.subr.bf16.mxu0 0
      %1015 = vmatpush2.bf16.msra.mxu0 0
      %1016 = vmatprep.subr.bf16.mxu0 0
      %1017 = vmatpush2.bf16.msra.mxu0 0
      %1018 = vmatprep.subr.bf16.mxu0 0
      %1019 = vmatpush2.bf16.msra.mxu0 0
      %1020 = vmatprep.mubr.bf16.mxu0 0
      %1021 = vmatmul.mubr.bf16.gmra.mxu0 %v983
      %v1022 = vpop.f32.mrf.mxu0
      %v1023 = vadd.f32 0.0, %v1022
      %v1024 = vpop.f32.mrf.mxu0
      %v1025 = vpop.f32.mrf.mxu0
      %v1026 = vadd.f32 0.0, %v1025
      %v1027 = vpop.f32.mrf.mxu0
      %1028 = vdwg.mxu0
      %1031 = vrot.lane.b32.xlu0 %v1023, 16
      %v1032 = vpop.permute.xlu0 %1031
      %1033 = vrot.lane.b32.xlu0 %v1026, 16
      %v1034 = vpop.permute.xlu0 %1033
      %vm1037 = vcmask 195712
      %1038 = vst.msk [vmem:[#allocation2] sm:$0xff] %vm1037, %v1032
      %vm1039 = vcmask 189568
      %1040 = vst.msk [vmem:[#allocation2 + $0x8] sm:$0x3] %vm1039, %v1034
      %1041 = vrot.lane.b32.xlu0 %v639, 104
      %v1042 = vpop.permute.xlu0 %1041
      %1043 = vrot.lane.b32.xlu0 %v640, 72
      %v1044 = vpop.permute.xlu0 %1043
      %v1046 = vsel %vm644, %v1042, 0
      %v1049 = vsel %vm644, %v1044, 0
      %1051 = vmatprep.subr.bf16.mxu0 0
      %1052 = vmatpush1.bf16.xpose.msra.mxu0 0
      %1053 = vmatprep.subr.bf16.mxu0 0
      %1054 = vmatpush1.bf16.xpose.msra.mxu0 0
      %1055 = vmatprep.subr.bf16.mxu0 0
      %1056 = vmatpush1.bf16.xpose.msra.mxu0 0
      %1057 = vmatprep.subr.bf16.mxu0 0
      %1058 = vmatpush1.bf16.xpose.msra.mxu0 0
      %1059 = vmatprep.subr.bf16.mxu0 0
      %1060 = vmatpush1.bf16.xpose.msra.mxu0 0
      %1061 = vmatprep.subr.bf16.mxu0 0
      %1062 = vmatpush1.bf16.xpose.msra.mxu0 0
      %1063 = vmatprep.subr.bf16.mxu0 0
      %1064 = vmatpush1.bf16.xpose.msra.mxu0 0
      %1065 = vmatprep.subr.bf16.mxu0 0
      %1066 = vmatpush1.bf16.xpose.msra.mxu0 %v1049
      %1067 = vmatprep.subr.bf16.mxu0 0
      %1068 = vmatpush2.bf16.xpose.msra.mxu0 0
      %1069 = vmatprep.subr.bf16.mxu0 0
      %1070 = vmatpush2.bf16.xpose.msra.mxu0 0
      %1071 = vmatprep.subr.bf16.mxu0 0
      %1072 = vmatpush2.bf16.xpose.msra.mxu0 0
      %1073 = vmatprep.subr.bf16.mxu0 0
      %1074 = vmatpush2.bf16.xpose.msra.mxu0 0
      %1075 = vmatprep.subr.bf16.mxu0 0
      %1076 = vmatpush2.bf16.xpose.msra.mxu0 0
      %1077 = vmatprep.subr.bf16.mxu0 0
      %1078 = vmatpush2.bf16.xpose.msra.mxu0 0
      %1079 = vmatprep.subr.bf16.mxu0 0
      %1080 = vmatpush2.bf16.xpose.msra.mxu0 0
      %1081 = vmatprep.subr.bf16.mxu0 0
      %1082 = vmatpush2.bf16.xpose.msra.mxu0 0
      %1083 = vmatprep.mubr.bf16.mxu0 0
      %1084 = vmatmul.mubr.bf16.gmra.mxu0 %v1046
      %v1085 = vpop.f32.mrf.mxu0
      %v1086 = vadd.f32 %v635, %v1085
      %v1087 = vpop.f32.mrf.mxu0
      %v1088 = vpop.f32.mrf.mxu0
      %v1089 = vadd.f32 %v636, %v1088
      %v1090 = vpop.f32.mrf.mxu0
      %1091 = vdwg.mxu0
      %v1092 = vsel %vm692, %v1086, -inf
      %1093 = vmax.xlane.f32.xlu0 %v1092
      %v1094 = vpop.xlane.xlu0 %1093
      %v1095 = vsel %vm696, %v1089, -inf
      %1096 = vmax.xlane.f32.xlu0 %v1095
      %v1097 = vpop.xlane.xlu0 %1096
      %v1098 = vsub.f32 %v1086, %v1094
      %v1099 = vsub.f32 %v1089, %v1097
      %v1100 = vmul.f32 %v1098, 1.442695
      %v1101 = vpow.pop %v1100
      %v1102 = vmul.f32 %v1099, 1.442695
      %v1103 = vpow.pop %v1102
      %v1104 = vsel %vm692, %v1101, 0.0
      %1105 = vadd.xlane.f32.xlu0 %v1104
      %v1106 = vpop.xlane.xlu0 %1105
      %v1107 = vsel %vm696, %v1103, 0.0
      %1108 = vadd.xlane.f32.xlu0 %v1107
      %v1109 = vpop.xlane.xlu0 %1108
      %v1110 = vrcp.pop %v1106
      %v1111 = vrcp.pop %v1109
      %v1112 = vmul.f32 %v1101, %v1110
      %v1113 = vmul.f32 %v1103, %v1111
      %v1114 = vpack.c.bf16 %v1113, %v1112
      %1115 = vrot.lane.b32.xlu0 %v640, 40
      %v1116 = vpop.permute.xlu0 %1115
      %v1118 = vsel %vm692, %v1114, 0
      %v1121 = vsel %vm722, %v1116, 0
      %1123 = vmatprep.subr.bf16.mxu0 0
      %1124 = vmatpush1.bf16.msra.mxu0 0
      %1125 = vmatprep.subr.bf16.mxu0 0
      %1126 = vmatpush1.bf16.msra.mxu0 0
      %1127 = vmatprep.subr.bf16.mxu0 0
      %1128 = vmatpush1.bf16.msra.mxu0 0
      %1129 = vmatprep.subr.bf16.mxu0 0
      %1130 = vmatpush1.bf16.msra.mxu0 0
      %1131 = vmatprep.subr.bf16.mxu0 0
      %1132 = vmatpush1.bf16.msra.mxu0 0
      %1133 = vmatprep.subr.bf16.mxu0 0
      %1134 = vmatpush1.bf16.msra.mxu0 0
      %1135 = vmatprep.subr.bf16.mxu0 0
      %1136 = vmatpush1.bf16.msra.mxu0 0
      %1137 = vmatprep.subr.bf16.mxu0 0
      %1138 = vmatpush1.bf16.msra.mxu0 %v1121
      %1139 = vmatprep.subr.bf16.mxu0 0
      %1140 = vmatpush2.bf16.msra.mxu0 0
      %1141 = vmatprep.subr.bf16.mxu0 0
      %1142 = vmatpush2.bf16.msra.mxu0 0
      %1143 = vmatprep.subr.bf16.mxu0 0
      %1144 = vmatpush2.bf16.msra.mxu0 0
      %1145 = vmatprep.subr.bf16.mxu0 0
      %1146 = vmatpush2.bf16.msra.mxu0 0
      %1147 = vmatprep.subr.bf16.mxu0 0
      %1148 = vmatpush2.bf16.msra.mxu0 0
      %1149 = vmatprep.subr.bf16.mxu0 0
      %1150 = vmatpush2.bf16.msra.mxu0 0
      %1151 = vmatprep.subr.bf16.mxu0 0
      %1152 = vmatpush2.bf16.msra.mxu0 0
      %1153 = vmatprep.subr.bf16.mxu0 0
      %1154 = vmatpush2.bf16.msra.mxu0 0
      %1155 = vmatprep.mubr.bf16.mxu0 0
      %1156 = vmatmul.mubr.bf16.gmra.mxu0 %v1118
      %v1157 = vpop.f32.mrf.mxu0
      %v1158 = vadd.f32 0.0, %v1157
      %v1159 = vpop.f32.mrf.mxu0
      %v1160 = vpop.f32.mrf.mxu0
      %v1161 = vadd.f32 0.0, %v1160
      %v1162 = vpop.f32.mrf.mxu0
      %1163 = vdwg.mxu0
      %1166 = vrot.lane.b32.xlu0 %v1158, 24
      %v1167 = vpop.permute.xlu0 %1166
      %1168 = vrot.lane.b32.xlu0 %v1161, 24
      %v1169 = vpop.permute.xlu0 %1168
      %vm1172 = vcmask 261312
      %1173 = vst.msk [vmem:[#allocation2] sm:$0xff] %vm1172, %v1167
      %vm1174 = vcmask 255168
      %1175 = vst.msk [vmem:[#allocation2 + $0x8] sm:$0x3] %vm1174, %v1169
      %v1176 = vld [vmem:[#allocation2] sm:$0xff]
      %v1177 = vld [vmem:[#allocation2 + $0x8] sm:$0x3]
      %v1178 = vpack.c.bf16 %v1177, %v1176
      %v1179 = vld [vmem:[%s5] sm:$0xf]
      %v1180 = vld [vmem:[%s5 + $0x4] sm:$0xf]
      %v1181 = vld [vmem:[%s5 + $0x8] sm:$0xf]
      %v1182 = vld [vmem:[%s5 + $0xc] sm:$0xf]
      %v1183 = vld [vmem:[%s6] sm:$0x1]
      %v1185 = vlaneseq
      %v1186 = vshrl.u32 %v1185, 7
      %v1187 = vsub.s32 0, %v1186
      %v1188 = vrot.slane %v1183, %v1187
      %v1194 = vunpack.c.l.b16 %v1179
      %v1195 = vunpack.c.l.b16 %v1180
      %v1196 = vunpack.c.l.b16 %v1181
      %v1197 = vunpack.c.l.b16 %v1182
      %v1198 = vpack.c.b16 %v1195, %v1194
      %v1199 = vpack.c.b16 %v1197, %v1196
      %v1203 = vsel %vm582, %v1178, 0
      %1205 = vmatprep.subr.bf16.mxu0 0
      %1206 = vmatpush1.bf16.msra.mxu0 0
      %1207 = vmatprep.subr.bf16.mxu0 0
      %1208 = vmatpush1.bf16.msra.mxu0 0
      %1209 = vmatprep.subr.bf16.mxu0 0
      %1210 = vmatpush1.bf16.msra.mxu0 0
      %1211 = vmatprep.subr.bf16.mxu0 0
      %1212 = vmatpush1.bf16.msra.mxu0 0
      %1213 = vmatprep.subr.bf16.mxu0 0
      %1214 = vmatpush1.bf16.msra.mxu0 0
      %1215 = vmatprep.subr.bf16.mxu0 0
      %1216 = vmatpush1.bf16.msra.mxu0 0
      %1217 = vmatprep.subr.bf16.mxu0 0
      %1218 = vmatpush1.bf16.msra.mxu0 %v1199
      %1219 = vmatprep.subr.bf16.mxu0 0
      %1220 = vmatpush1.bf16.msra.mxu0 %v1198
      %1221 = vmatprep.subr.bf16.mxu0 0
      %1222 = vmatpush2.bf16.msra.mxu0 0
      %1223 = vmatprep.subr.bf16.mxu0 0
      %1224 = vmatpush2.bf16.msra.mxu0 0
      %1225 = vmatprep.subr.bf16.mxu0 0
      %1226 = vmatpush2.bf16.msra.mxu0 0
      %1227 = vmatprep.subr.bf16.mxu0 0
      %1228 = vmatpush2.bf16.msra.mxu0 0
      %1229 = vmatprep.subr.bf16.mxu0 0
      %1230 = vmatpush2.bf16.msra.mxu0 0
      %1231 = vmatprep.subr.bf16.mxu0 0
      %1232 = vmatpush2.bf16.msra.mxu0 0
      %1233 = vmatprep.subr.bf16.mxu0 0
      %1234 = vmatpush2.bf16.msra.mxu0 0
      %1235 = vmatprep.subr.bf16.mxu0 0
      %1236 = vmatpush2.bf16.msra.mxu0 0
      %1237 = vmatprep.mubr.bf16.mxu0 0
      %1238 = vmatmul.mubr.bf16.gmra.mxu0 %v1203
      %v1239 = vpop.f32.mrf.mxu0
      %v1240 = vadd.f32 %v1188, %v1239
      %v1241 = vpop.f32.mrf.mxu0
      %v1242 = vpop.f32.mrf.mxu0
      %v1243 = vadd.f32 %v1188, %v1242
      %v1244 = vpop.f32.mrf.mxu0
      %1245 = vdwg.mxu0
      %v1246 = vadd.f32 %v552, %v1240
      %v1247 = vadd.f32 %v553, %v1243
      %v1248 = vld [vmem:[%s7] sm:$0x1]
      %v1249 = vld [vmem:[%s8] sm:$0x1]
      %v1250 = vsel %vm582, %v1246, 0.0
      %1251 = vadd.xlane.f32.xlu0 %v1250
      %v1252 = vpop.xlane.xlu0 %1251
      %vm1253 = vcmask 254976
      %v1254 = vsel %vm1253, %v1247, 0.0
      %1255 = vadd.xlane.f32.xlu0 %v1254
      %v1256 = vpop.xlane.xlu0 %1255
      %v1257 = vrcp.pop 32.0
      %v1258 = vmul.f32 %v1252, %v1257
      %v1259 = vmul.f32 %v1256, %v1257
      %v1260 = vsub.f32 %v1246, %v1258
      %v1261 = vsub.f32 %v1247, %v1259
      %v1262 = vmul.f32 %v1260, %v1260
      %v1263 = vmul.f32 %v1261, %v1261
      %v1264 = vsel %vm582, %v1262, 0.0
      %1265 = vadd.xlane.f32.xlu0 %v1264
      %v1266 = vpop.xlane.xlu0 %1265
      %v1267 = vsel %vm1253, %v1263, 0.0
      %1268 = vadd.xlane.f32.xlu0 %v1267
      %v1269 = vpop.xlane.xlu0 %1268
      %v1270 = vmul.f32 %v1266, %v1257
      %v1271 = vmul.f32 %v1269, %v1257
      %v1272 = vadd.f32 %v1270, 1e-05
      %v1273 = vadd.f32 %v1271, 1e-05
      %v1274 = vrsqrt.pop %v1272
      %v1275 = vrsqrt.pop %v1273
      %v1276 = vmul.f32 %v1260, %v1274
      %v1277 = vmul.f32 %v1261, %v1275
      %v1279 = vlaneseq
      %v1280 = vshrl.u32 %v1279, 7
      %v1281 = vsub.s32 0, %v1280
      %v1282 = vrot.slane %v1248, %v1281
      %v1284 = vmul.f32 %v1276, %v1282
      %v1285 = vmul.f32 %v1277, %v1282
      %v1287 = vlaneseq
      %v1288 = vshrl.u32 %v1287, 7
      %v1289 = vsub.s32 0, %v1288
      %v1290 = vrot.slane %v1249, %v1289
      %v1292 = vadd.f32 %v1284, %v1290
      %v1293 = vadd.f32 %v1285, %v1290
      %v1294 = vpack.c.bf16 %v1293, %v1292
      %v1295 = vld [vmem:[%s9] sm:$0xf]
      %v1296 = vld [vmem:[%s9 + $0x4] sm:$0xf]
      %v1297 = vld [vmem:[%s9 + $0x8] sm:$0xf]
      %v1298 = vld [vmem:[%s9 + $0xc] sm:$0xf]
      %v1299 = vld [vmem:[%s10] sm:$0x1]
      %v1301 = vlaneseq
      %v1302 = vshrl.u32 %v1301, 7
      %v1303 = vsub.s32 0, %v1302
      %v1304 = vrot.slane %v1299, %v1303
      %v1310 = vunpack.c.l.b16 %v1295
      %v1311 = vunpack.c.l.b16 %v1296
      %v1312 = vunpack.c.l.b16 %v1297
      %v1313 = vunpack.c.l.b16 %v1298
      %v1314 = vpack.c.b16 %v1311, %v1310
      %v1315 = vpack.c.b16 %v1313, %v1312
      %v1319 = vsel %vm582, %v1294, 0
      %1321 = vmatprep.subr.bf16.mxu0 0
      %1322 = vmatpush1.bf16.msra.mxu0 0
      %1323 = vmatprep.subr.bf16.mxu0 0
      %1324 = vmatpush1.bf16.msra.mxu0 0
      %1325 = vmatprep.subr.bf16.mxu0 0
      %1326 = vmatpush1.bf16.msra.mxu0 0
      %1327 = vmatprep.subr.bf16.mxu0 0
      %1328 = vmatpush1.bf16.msra.mxu0 0
      %1329 = vmatprep.subr.bf16.mxu0 0
      %1330 = vmatpush1.bf16.msra.mxu0 0
      %1331 = vmatprep.subr.bf16.mxu0 0
      %1332 = vmatpush1.bf16.msra.mxu0 0
      %1333 = vmatprep.subr.bf16.mxu0 0
      %1334 = vmatpush1.bf16.msra.mxu0 %v1315
      %1335 = vmatprep.subr.bf16.mxu0 0
      %1336 = vmatpush1.bf16.msra.mxu0 %v1314
      %1337 = vmatprep.subr.bf16.mxu0 0
      %1338 = vmatpush2.bf16.msra.mxu0 0
      %1339 = vmatprep.subr.bf16.mxu0 0
      %1340 = vmatpush2.bf16.msra.mxu0 0
      %1341 = vmatprep.subr.bf16.mxu0 0
      %1342 = vmatpush2.bf16.msra.mxu0 0
      %1343 = vmatprep.subr.bf16.mxu0 0
      %1344 = vmatpush2.bf16.msra.mxu0 0
      %1345 = vmatprep.subr.bf16.mxu0 0
      %1346 = vmatpush2.bf16.msra.mxu0 0
      %1347 = vmatprep.subr.bf16.mxu0 0
      %1348 = vmatpush2.bf16.msra.mxu0 0
      %1349 = vmatprep.subr.bf16.mxu0 0
      %1350 = vmatpush2.bf16.msra.mxu0 0
      %1351 = vmatprep.subr.bf16.mxu0 0
      %1352 = vmatpush2.bf16.msra.mxu0 0
      %1353 = vmatprep.mubr.bf16.mxu0 0
      %1354 = vmatmul.mubr.bf16.gmra.mxu0 %v1319
      %v1355 = vpop.f32.mrf.mxu0
      %v1356 = vadd.f32 %v1304, %v1355
      %v1357 = vpop.f32.mrf.mxu0
      %v1358 = vpop.f32.mrf.mxu0
      %v1359 = vadd.f32 %v1304, %v1358
      %v1360 = vpop.f32.mrf.mxu0
      %1361 = vdwg.mxu0
      %v1362 = vmax.f32 %v1356, 0.0
      %v1363 = vmax.f32 %v1359, 0.0
      %v1364 = vpack.c.bf16 %v1363, %v1362
      %v1365 = vld [vmem:[%s11] sm:$0xf]
      %v1366 = vld [vmem:[%s11 + $0x4] sm:$0xf]
      %v1367 = vld [vmem:[%s11 + $0x8] sm:$0xf]
      %v1368 = vld [vmem:[%s11 + $0xc] sm:$0xf]
      %v1369 = vld [vmem:[%s11 + $0x10] sm:$0xf]
      %v1370 = vld [vmem:[%s11 + $0x14] sm:$0xf]
      %v1371 = vld [vmem:[%s11 + $0x18] sm:$0xf]
      %v1372 = vld [vmem:[%s11 + $0x1c] sm:$0xf]
      %v1373 = vld [vmem:[%s12] sm:$0x1]
      %v1375 = vlaneseq
      %v1376 = vshrl.u32 %v1375, 7
      %v1377 = vsub.s32 0, %v1376
      %v1378 = vrot.slane %v1373, %v1377
      %v1388 = vunpack.c.l.b16 %v1365
      %v1389 = vunpack.c.l.b16 %v1366
      %v1390 = vunpack.c.l.b16 %v1367
      %v1391 = vunpack.c.l.b16 %v1368
      %v1392 = vunpack.c.l.b16 %v1369
      %v1393 = vunpack.c.l.b16 %v1370
      %v1394 = vunpack.c.l.b16 %v1371
      %v1395 = vunpack.c.l.b16 %v1372
      %v1396 = vpack.c.b16 %v1389, %v1388
      %v1397 = vpack.c.b16 %v1391, %v1390
      %v1398 = vpack.c.b16 %v1393, %v1392
      %v1399 = vpack.c.b16 %v1395, %v1394
      %vm1404 = vcmask 523264
      %v1406 = vsel %vm1404, %v1364, 0
      %1408 = vmatprep.subr.bf16.mxu0 0
      %1409 = vmatpush1.bf16.msra.mxu0 0
      %1410 = vmatprep.subr.bf16.mxu0 0
      %1411 = vmatpush1.bf16.msra.mxu0 0
      %1412 = vmatprep.subr.bf16.mxu0 0
      %1413 = vmatpush1.bf16.msra.mxu0 0
      %1414 = vmatprep.subr.bf16.mxu0 0
      %1415 = vmatpush1.bf16.msra.mxu0 0
      %1416 = vmatprep.subr.bf16.mxu0 0
      %1417 = vmatpush1.bf16.msra.mxu0 %v1399
      %1418 = vmatprep.subr.bf16.mxu0 0
      %1419 = vmatpush1.bf16.msra.mxu0 %v1398
      %1420 = vmatprep.subr.bf16.mxu0 0
      %1421 = vmatpush1.bf16.msra.mxu0 %v1397
      %1422 = vmatprep.subr.bf16.mxu0 0
      %1423 = vmatpush1.bf16.msra.mxu0 %v1396
      %1424 = vmatprep.subr.bf16.mxu0 0
      %1425 = vmatpush2.bf16.msra.mxu0 0
      %1426 = vmatprep.subr.bf16.mxu0 0
      %1427 = vmatpush2.bf16.msra.mxu0 0
      %1428 = vmatprep.subr.bf16.mxu0 0
      %1429 = vmatpush2.bf16.msra.mxu0 0
      %1430 = vmatprep.subr.bf16.mxu0 0
      %1431 = vmatpush2.bf16.msra.mxu0 0
      %1432 = vmatprep.subr.bf16.mxu0 0
      %1433 = vmatpush2.bf16.msra.mxu0 0
      %1434 = vmatprep.subr.bf16.mxu0 0
      %1435 = vmatpush2.bf16.msra.mxu0 0
      %1436 = vmatprep.subr.bf16.mxu0 0
      %1437 = vmatpush2.bf16.msra.mxu0 0
      %1438 = vmatprep.subr.bf16.mxu0 0
      %1439 = vmatpush2.bf16.msra.mxu0 0
      %1440 = vmatprep.mubr.bf16.mxu0 0
      %1441 = vmatmul.mubr.bf16.gmra.mxu0 %v1406
      %v1442 = vpop.f32.mrf.mxu0
      %v1443 = vadd.f32 %v1378, %v1442
      %v1444 = vpop.f32.mrf.mxu0
      %v1445 = vpop.f32.mrf.mxu0
      %v1446 = vadd.f32 %v1378, %v1445
      %v1447 = vpop.f32.mrf.mxu0
      %1448 = vdwg.mxu0
      %v1449 = vadd.f32 %v1292, %v1443
      %v1450 = vadd.f32 %v1293, %v1446
      %v1451 = vld [vmem:[%s13] sm:$0x1]
      %v1452 = vld [vmem:[%s14] sm:$0x1]
      %v1453 = vsel %vm582, %v1449, 0.0
      %1454 = vadd.xlane.f32.xlu0 %v1453
      %v1455 = vpop.xlane.xlu0 %1454
      %v1456 = vsel %vm1253, %v1450, 0.0
      %1457 = vadd.xlane.f32.xlu0 %v1456
      %v1458 = vpop.xlane.xlu0 %1457
      %v1459 = vmul.f32 %v1455, %v1257
      %v1460 = vmul.f32 %v1458, %v1257
      %v1461 = vsub.f32 %v1449, %v1459
      %v1462 = vsub.f32 %v1450, %v1460
      %v1463 = vmul.f32 %v1461, %v1461
      %v1464 = vmul.f32 %v1462, %v1462
      %v1465 = vsel %vm582, %v1463, 0.0
      %1466 = vadd.xlane.f32.xlu0 %v1465
      %v1467 = vpop.xlane.xlu0 %1466
      %v1468 = vsel %vm1253, %v1464, 0.0
      %1469 = vadd.xlane.f32.xlu0 %v1468
      %v1470 = vpop.xlane.xlu0 %1469
      %v1471 = vmul.f32 %v1467, %v1257
      %v1472 = vmul.f32 %v1470, %v1257
      %v1473 = vadd.f32 %v1471, 1e-05
      %v1474 = vadd.f32 %v1472, 1e-05
      %v1475 = vrsqrt.pop %v1473
      %v1476 = vrsqrt.pop %v1474
      %v1477 = vmul.f32 %v1461, %v1475
      %v1478 = vmul.f32 %v1462, %v1476
      %v1480 = vlaneseq
      %v1481 = vshrl.u32 %v1480, 7
      %v1482 = vsub.s32 0, %v1481
      %v1483 = vrot.slane %v1451, %v1482
      %v1485 = vmul.f32 %v1477, %v1483
      %v1486 = vmul.f32 %v1478, %v1483
      %v1488 = vlaneseq
      %v1489 = vshrl.u32 %v1488, 7
      %v1490 = vsub.s32 0, %v1489
      %v1491 = vrot.slane %v1452, %v1490
      %v1493 = vadd.f32 %v1485, %v1491
      %v1494 = vadd.f32 %v1486, %v1491
      %v1495 = vld [vmem:[%s15] sm:$0x1]
      %v1496 = vld [vmem:[%s16] sm:$0x1]
      %v1497 = vsel %vm582, %v1493, 0.0
      %1498 = vadd.xlane.f32.xlu0 %v1497
      %v1499 = vpop.xlane.xlu0 %1498
      %v1500 = vsel %vm1253, %v1494, 0.0
      %1501 = vadd.xlane.f32.xlu0 %v1500
      %v1502 = vpop.xlane.xlu0 %1501
      %v1503 = vmul.f32 %v1499, %v1257
      %v1504 = vmul.f32 %v1502, %v1257
      %v1505 = vsub.f32 %v1493, %v1503
      %v1506 = vsub.f32 %v1494, %v1504
      %v1507 = vmul.f32 %v1505, %v1505
      %v1508 = vmul.f32 %v1506, %v1506
      %v1509 = vsel %vm582, %v1507, 0.0
      %1510 = vadd.xlane.f32.xlu0 %v1509
      %v1511 = vpop.xlane.xlu0 %1510
      %v1512 = vsel %vm1253, %v1508, 0.0
      %1513 = vadd.xlane.f32.xlu0 %v1512
      %v1514 = vpop.xlane.xlu0 %1513
      %v1515 = vmul.f32 %v1511, %v1257
      %v1516 = vmul.f32 %v1514, %v1257
      %v1517 = vadd.f32 %v1515, 1e-05
      %v1518 = vadd.f32 %v1516, 1e-05
      %v1519 = vrsqrt.pop %v1517
      %v1520 = vrsqrt.pop %v1518
      %v1521 = vmul.f32 %v1505, %v1519
      %v1522 = vmul.f32 %v1506, %v1520
      %v1524 = vlaneseq
      %v1525 = vshrl.u32 %v1524, 7
      %v1526 = vsub.s32 0, %v1525
      %v1527 = vrot.slane %v1495, %v1526
      %v1529 = vmul.f32 %v1521, %v1527
      %v1530 = vmul.f32 %v1522, %v1527
      %v1532 = vlaneseq
      %v1533 = vshrl.u32 %v1532, 7
      %v1534 = vsub.s32 0, %v1533
      %v1535 = vrot.slane %v1496, %v1534
      %v1537 = vadd.f32 %v1529, %v1535
      %v1538 = vadd.f32 %v1530, %v1535
      %v1539 = vpack.c.bf16 %v1538, %v1537
      %v1541 = vunpack.c.l.b16 %v1539
      %v1542 = vunpack.c.h.b16 %v1539
      %v1543 = vpack.c.b16 %v1541, %v1541
      %v1544 = vpack.c.b16 %v1542, %v1542
      %vm1547 = vcmask 257024
      %1548 = vst.msk [vmem:[%s548] sm:$0xf] %vm1547, %v1543
      %vm1549 = vcmask 253952
      %1550 = vst.msk [vmem:[%s548 + $0x4] sm:$0x1] %vm1549, %v1544
      %p1551 = scmp.lt.s32.totalorder %s28, 1
      %s1552 = scalar_select %p1551, %s28, 1
      %s1553 = smul.addr %s1552, 2
      %s1554 = smul.addr %s1553, 4
      %s1555 = scalar_lea.vmem %s17, %s1554
      // Predicated region
      $region89: #{run.6} parent=87 // pred_check
        %p1556 = pneg %p408
      $region90: #{run.6} parent=87 // pred_check_branch
        %1558 = sbr.rel (%p1556) target = $region92
      $region91: #{run.6} parent=87 // pred_region
        _
      $region92: #{run.6} parent=87 // pred_fallthru
        _
    $region88: #{run.6} parent=5 // pred_fallthru
      _
    %p1559 = scmp.le.s32.totalorder 2, %s23
    // Predicated region
    $region93: #{run.6} parent=5 // pred_check
      %p1560 = pneg %p1559
    $region94: #{run.6} parent=5 // pred_check_branch
      %1562 = sbr.rel (%p1560) target = $region96
    $region95: #{run.6} parent=5 // pred_region
      %s1563 = ssub.s32 %s23, 2
      // Predicated region
      $region97: #{run.6} parent=95 // pred_check
        %p1564 = pneg %p414
      $region98: #{run.6} parent=95 // pred_check_branch
        %1566 = sbr.rel (%p1564) target = $region100
      $region99: #{run.6} parent=95 // pred_region
        %p1567 = scmp.lt.s32.totalorder %s29, 1
        %s1568 = scalar_select %p1567, %s29, 1
        %s1569 = smul.addr %s1568, 2
        %s1570 = smul.addr %s1569, 4
        %s1571 = scalar_lea.vmem %s17, %s1570
      $region100: #{run.6} parent=95 // pred_fallthru
        _
    $region96: #{run.6} parent=5 // pred_fallthru
      _
  $region6: #{run.6} parent=0 // loop_footer
    %s27 = sadd.s32 1, %s23
  $region7: #{run.6} parent=0 // loop_footer_branch
    %22 = sbr.rel target = $region3
  $region8: #{run.6} parent=0 // loop_exit
    _

// kernel: run.5
$region0: #{run.5}
  #allocation0 [shape = 'u32[]', space=smem, size = 0x4, offset = 0x4, fixed_abs, tag = 'smem constant byte address 0x4 - core index']
  #allocation1 [shape = 'u32[144,128]{1,0:T(1,128)}', space=vmem, size = 0x12000, scoped, tag = 'internal scratch']
  #allocation2 [shape = 'f32[10,32]{1,0:T(8,128)}', space=vmem, size = 0x2000, scoped, tag = 'scratch operand']
  %s0 = inlined_call_operand.vmem [shape: bf16[2,10,32], index: 0, kind: input, shape index: {}]
  %s1 = inlined_call_operand.vmem [shape: f32[10,10], index: 1, kind: input, shape index: {}]
  %s2 = inlined_call_operand.vmem [shape: f32[2,10], index: 2, kind: input, shape index: {}]
  %s3 = inlined_call_operand.vmem [shape: bf16[32,96], index: 3, kind: input, shape index: {}]
  %s4 = inlined_call_operand.vmem [shape: f32[1,96], index: 4, kind: input, shape index: {}]
  %s5 = inlined_call_operand.vmem [shape: bf16[32,32], index: 5, kind: input, shape index: {}]
  %s6 = inlined_call_operand.vmem [shape: f32[1,32], index: 6, kind: input, shape index: {}]
  %s7 = inlined_call_operand.vmem [shape: f32[1,32], index: 7, kind: input, shape index: {}]
  %s8 = inlined_call_operand.vmem [shape: f32[1,32], index: 8, kind: input, shape index: {}]
  %s9 = inlined_call_operand.vmem [shape: bf16[32,64], index: 9, kind: input, shape index: {}]
  %s10 = inlined_call_operand.vmem [shape: f32[1,64], index: 10, kind: input, shape index: {}]
  %s11 = inlined_call_operand.vmem [shape: bf16[64,32], index: 11, kind: input, shape index: {}]
  %s12 = inlined_call_operand.vmem [shape: f32[1,32], index: 12, kind: input, shape index: {}]
  %s13 = inlined_call_operand.vmem [shape: f32[1,32], index: 13, kind: input, shape index: {}, may-alias: {13,15}]
  %s14 = inlined_call_operand.vmem [shape: f32[1,32], index: 14, kind: input, shape index: {}, may-alias: {14,16}]
  %s15 = inlined_call_operand.vmem [shape: f32[1,32], index: 15, kind: input, shape index: {}, may-alias: {13,15}]
  %s16 = inlined_call_operand.vmem [shape: f32[1,32], index: 16, kind: input, shape index: {}, may-alias: {14,16}]
  %s17 = inlined_call_operand.vmem [shape: bf16[2,10,32], index: 17, kind: output, shape index: {}]
  %s18 = sld [smem:[#allocation0]]
  $region101: #{run.5} parent=0
    _
  %s20 = ssub.s32 1, %s18
  %s21 = scalar_select 0, %s20, %s18
  loop: start=0, step=1, limit=4
  $region2: #{run.5} parent=0 // loop_pre_header
    _
  $region3: #{run.5} parent=0 // loop_header
    %s23 = sphi 0, %s27
    %p24 = scmp.ge.s32.totalorder %s23, 4
    %s33 = sphi 0, %s35
    %s36 = sphi 0, %s33
    %s37 = sphi 0, %s36
    %s53 = sphi 0, %s37
    %s57 = sphi 0, %s57
    %s59 = sphi 0, %s57
    %s60 = sphi 0, %s59
    %s74 = sphi 0, %s60
    %s78 = sphi 0, %s78
    %s80 = sphi 0, %s78
    %s81 = sphi 0, %s80
    %s95 = sphi 0, %s81
    %s99 = sphi 0, %s99
    %s101 = sphi 0, %s99
    %s102 = sphi 0, %s101
    %s116 = sphi 0, %s102
    %s120 = sphi 0, %s120
    %s122 = sphi 0, %s120
    %s123 = sphi 0, %s122
    %s137 = sphi 0, %s123
    %s141 = sphi 0, %s141
    %s143 = sphi 0, %s141
    %s144 = sphi 0, %s143
    %s158 = sphi 0, %s144
    %s162 = sphi 0, %s162
    %s164 = sphi 0, %s162
    %s165 = sphi 0, %s164
    %s179 = sphi 0, %s165
    %s183 = sphi 0, %s183
    %s185 = sphi 0, %s183
    %s186 = sphi 0, %s185
    %s200 = sphi 0, %s186
    %s204 = sphi 0, %s204
    %s206 = sphi 0, %s204
    %s207 = sphi 0, %s206
    %s221 = sphi 0, %s207
    %s225 = sphi 0, %s225
    %s227 = sphi 0, %s225
    %s228 = sphi 0, %s227
    %s242 = sphi 0, %s228
    %s246 = sphi 0, %s246
    %s248 = sphi 0, %s246
    %s249 = sphi 0, %s248
    %s263 = sphi 0, %s249
    %s267 = sphi 0, %s267
    %s269 = sphi 0, %s267
    %s270 = sphi 0, %s269
    %s284 = sphi 0, %s270
    %s288 = sphi 0, %s288
    %s290 = sphi 0, %s288
    %s291 = sphi 0, %s290
    %s305 = sphi 0, %s291
    %s309 = sphi 0, %s309
    %s311 = sphi 0, %s309
    %s312 = sphi 0, %s311
    %s326 = sphi 0, %s312
    %s330 = sphi 0, %s330
    %s332 = sphi 0, %s330
    %s333 = sphi 0, %s332
    %s347 = sphi 0, %s333
    %s351 = sphi 0, %s351
    %s353 = sphi 0, %s351
    %s354 = sphi 0, %s353
    %s368 = sphi 0, %s354
    %s372 = sphi 0, %s372
    %s374 = sphi 0, %s372
    %s375 = sphi 0, %s374
    %s389 = sphi 0, %s375
    %s395 = sphi 0, %s397
    %s398 = sphi 0, %s395
    %s399 = sphi 0, %s398
    %s415 = sphi 0, %s399
  $region4: #{run.5} parent=0 // loop_header_branch
    %26 = sbr.rel (%p24) target = $region8
  $region5: #{run.5} parent=0 // loop_body
    %s28 = ssub.s32 %s23, 1
    %s29 = ssub.s32 %s23, 2
    %s30 = sadd.s32 %s23, 1
    %s31 = ssub.s32 %s23, %s30
    %p32 = scmp.eq.s32.totalorder %s31, 0
    %s34 = sadd.s32 %s33, 1
    %s35 = scalar_select %p32, %s33, %s34
    %p38 = pneg %p32
    %p39 = scmp.eq.s32.totalorder %s23, 1
    %p40 = por %p38, %p39
    %p41 = scmp.ne.s32.totalorder %s33, %s36
    %p42 = scmp.eq.s32.totalorder %s23, 0
    %p43 = por %p41, %p42
    %p44 = scmp.ne.s32.totalorder %s33, %s36
    %p45 = scmp.eq.s32.totalorder %s28, 1
    %p46 = por %p44, %p45
    %p47 = scmp.ne.s32.totalorder %s36, %s37
    %p48 = scmp.eq.s32.totalorder %s28, 0
    %p49 = por %p47, %p48
    %p50 = scmp.ne.s32.totalorder %s36, %s37
    %p51 = scmp.eq.s32.totalorder %s29, 1
    %p52 = por %p50, %p51
    %p54 = scmp.ne.s32.totalorder %s37, %s53
    %p55 = scmp.eq.s32.totalorder %s29, 0
    %p56 = por %p54, %p55
    %s58 = sadd.s32 %s57, 1
    %p61 = scmp.eq.s32.totalorder %s23, 1
    %p62 = scmp.ne.s32.totalorder %s57, %s59
    %p63 = scmp.eq.s32.totalorder %s23, 0
    %p64 = por %p62, %p63
    %p65 = scmp.ne.s32.totalorder %s57, %s59
    %p66 = scmp.eq.s32.totalorder %s28, 1
    %p67 = por %p65, %p66
    %p68 = scmp.ne.s32.totalorder %s59, %s60
    %p69 = scmp.eq.s32.totalorder %s28, 0
    %p70 = por %p68, %p69
    %p71 = scmp.ne.s32.totalorder %s59, %s60
    %p72 = scmp.eq.s32.totalorder %s29, 1
    %p73 = por %p71, %p72
    %p75 = scmp.ne.s32.totalorder %s60, %s74
    %p76 = scmp.eq.s32.totalorder %s29, 0
    %p77 = por %p75, %p76
    %s79 = sadd.s32 %s78, 1
    %p82 = scmp.eq.s32.totalorder %s23, 1
    %p83 = scmp.ne.s32.totalorder %s78, %s80
    %p84 = scmp.eq.s32.totalorder %s23, 0
    %p85 = por %p83, %p84
    %p86 = scmp.ne.s32.totalorder %s78, %s80
    %p87 = scmp.eq.s32.totalorder %s28, 1
    %p88 = por %p86, %p87
    %p89 = scmp.ne.s32.totalorder %s80, %s81
    %p90 = scmp.eq.s32.totalorder %s28, 0
    %p91 = por %p89, %p90
    %p92 = scmp.ne.s32.totalorder %s80, %s81
    %p93 = scmp.eq.s32.totalorder %s29, 1
    %p94 = por %p92, %p93
    %p96 = scmp.ne.s32.totalorder %s81, %s95
    %p97 = scmp.eq.s32.totalorder %s29, 0
    %p98 = por %p96, %p97
    %s100 = sadd.s32 %s99, 1
    %p103 = scmp.eq.s32.totalorder %s23, 1
    %p104 = scmp.ne.s32.totalorder %s99, %s101
    %p105 = scmp.eq.s32.totalorder %s23, 0
    %p106 = por %p104, %p105
    %p107 = scmp.ne.s32.totalorder %s99, %s101
    %p108 = scmp.eq.s32.totalorder %s28, 1
    %p109 = por %p107, %p108
    %p110 = scmp.ne.s32.totalorder %s101, %s102
    %p111 = scmp.eq.s32.totalorder %s28, 0
    %p112 = por %p110, %p111
    %p113 = scmp.ne.s32.totalorder %s101, %s102
    %p114 = scmp.eq.s32.totalorder %s29, 1
    %p115 = por %p113, %p114
    %p117 = scmp.ne.s32.totalorder %s102, %s116
    %p118 = scmp.eq.s32.totalorder %s29, 0
    %p119 = por %p117, %p118
    %s121 = sadd.s32 %s120, 1
    %p124 = scmp.eq.s32.totalorder %s23, 1
    %p125 = scmp.ne.s32.totalorder %s120, %s122
    %p126 = scmp.eq.s32.totalorder %s23, 0
    %p127 = por %p125, %p126
    %p128 = scmp.ne.s32.totalorder %s120, %s122
    %p129 = scmp.eq.s32.totalorder %s28, 1
    %p130 = por %p128, %p129
    %p131 = scmp.ne.s32.totalorder %s122, %s123
    %p132 = scmp.eq.s32.totalorder %s28, 0
    %p133 = por %p131, %p132
    %p134 = scmp.ne.s32.totalorder %s122, %s123
    %p135 = scmp.eq.s32.totalorder %s29, 1
    %p136 = por %p134, %p135
    %p138 = scmp.ne.s32.totalorder %s123, %s137
    %p139 = scmp.eq.s32.totalorder %s29, 0
    %p140 = por %p138, %p139
    %s142 = sadd.s32 %s141, 1
    %p145 = scmp.eq.s32.totalorder %s23, 1
    %p146 = scmp.ne.s32.totalorder %s141, %s143
    %p147 = scmp.eq.s32.totalorder %s23, 0
    %p148 = por %p146, %p147
    %p149 = scmp.ne.s32.totalorder %s141, %s143
    %p150 = scmp.eq.s32.totalorder %s28, 1
    %p151 = por %p149, %p150
    %p152 = scmp.ne.s32.totalorder %s143, %s144
    %p153 = scmp.eq.s32.totalorder %s28, 0
    %p154 = por %p152, %p153
    %p155 = scmp.ne.s32.totalorder %s143, %s144
    %p156 = scmp.eq.s32.totalorder %s29, 1
    %p157 = por %p155, %p156
    %p159 = scmp.ne.s32.totalorder %s144, %s158
    %p160 = scmp.eq.s32.totalorder %s29, 0
    %p161 = por %p159, %p160
    %s163 = sadd.s32 %s162, 1
    %p166 = scmp.eq.s32.totalorder %s23, 1
    %p167 = scmp.ne.s32.totalorder %s162, %s164
    %p168 = scmp.eq.s32.totalorder %s23, 0
    %p169 = por %p167, %p168
    %p170 = scmp.ne.s32.totalorder %s162, %s164
    %p171 = scmp.eq.s32.totalorder %s28, 1
    %p172 = por %p170, %p171
    %p173 = scmp.ne.s32.totalorder %s164, %s165
    %p174 = scmp.eq.s32.totalorder %s28, 0
    %p175 = por %p173, %p174
    %p176 = scmp.ne.s32.totalorder %s164, %s165
    %p177 = scmp.eq.s32.totalorder %s29, 1
    %p178 = por %p176, %p177
    %p180 = scmp.ne.s32.totalorder %s165, %s179
    %p181 = scmp.eq.s32.totalorder %s29, 0
    %p182 = por %p180, %p181
    %s184 = sadd.s32 %s183, 1
    %p187 = scmp.eq.s32.totalorder %s23, 1
    %p188 = scmp.ne.s32.totalorder %s183, %s185
    %p189 = scmp.eq.s32.totalorder %s23, 0
    %p190 = por %p188, %p189
    %p191 = scmp.ne.s32.totalorder %s183, %s185
    %p192 = scmp.eq.s32.totalorder %s28, 1
    %p193 = por %p191, %p192
    %p194 = scmp.ne.s32.totalorder %s185, %s186
    %p195 = scmp.eq.s32.totalorder %s28, 0
    %p196 = por %p194, %p195
    %p197 = scmp.ne.s32.totalorder %s185, %s186
    %p198 = scmp.eq.s32.totalorder %s29, 1
    %p199 = por %p197, %p198
    %p201 = scmp.ne.s32.totalorder %s186, %s200
    %p202 = scmp.eq.s32.totalorder %s29, 0
    %p203 = por %p201, %p202
    %s205 = sadd.s32 %s204, 1
    %p208 = scmp.eq.s32.totalorder %s23, 1
    %p209 = scmp.ne.s32.totalorder %s204, %s206
    %p210 = scmp.eq.s32.totalorder %s23, 0
    %p211 = por %p209, %p210
    %p212 = scmp.ne.s32.totalorder %s204, %s206
    %p213 = scmp.eq.s32.totalorder %s28, 1
    %p214 = por %p212, %p213
    %p215 = scmp.ne.s32.totalorder %s206, %s207
    %p216 = scmp.eq.s32.totalorder %s28, 0
    %p217 = por %p215, %p216
    %p218 = scmp.ne.s32.totalorder %s206, %s207
    %p219 = scmp.eq.s32.totalorder %s29, 1
    %p220 = por %p218, %p219
    %p222 = scmp.ne.s32.totalorder %s207, %s221
    %p223 = scmp.eq.s32.totalorder %s29, 0
    %p224 = por %p222, %p223
    %s226 = sadd.s32 %s225, 1
    %p229 = scmp.eq.s32.totalorder %s23, 1
    %p230 = scmp.ne.s32.totalorder %s225, %s227
    %p231 = scmp.eq.s32.totalorder %s23, 0
    %p232 = por %p230, %p231
    %p233 = scmp.ne.s32.totalorder %s225, %s227
    %p234 = scmp.eq.s32.totalorder %s28, 1
    %p235 = por %p233, %p234
    %p236 = scmp.ne.s32.totalorder %s227, %s228
    %p237 = scmp.eq.s32.totalorder %s28, 0
    %p238 = por %p236, %p237
    %p239 = scmp.ne.s32.totalorder %s227, %s228
    %p240 = scmp.eq.s32.totalorder %s29, 1
    %p241 = por %p239, %p240
    %p243 = scmp.ne.s32.totalorder %s228, %s242
    %p244 = scmp.eq.s32.totalorder %s29, 0
    %p245 = por %p243, %p244
    %s247 = sadd.s32 %s246, 1
    %p250 = scmp.eq.s32.totalorder %s23, 1
    %p251 = scmp.ne.s32.totalorder %s246, %s248
    %p252 = scmp.eq.s32.totalorder %s23, 0
    %p253 = por %p251, %p252
    %p254 = scmp.ne.s32.totalorder %s246, %s248
    %p255 = scmp.eq.s32.totalorder %s28, 1
    %p256 = por %p254, %p255
    %p257 = scmp.ne.s32.totalorder %s248, %s249
    %p258 = scmp.eq.s32.totalorder %s28, 0
    %p259 = por %p257, %p258
    %p260 = scmp.ne.s32.totalorder %s248, %s249
    %p261 = scmp.eq.s32.totalorder %s29, 1
    %p262 = por %p260, %p261
    %p264 = scmp.ne.s32.totalorder %s249, %s263
    %p265 = scmp.eq.s32.totalorder %s29, 0
    %p266 = por %p264, %p265
    %s268 = sadd.s32 %s267, 1
    %p271 = scmp.eq.s32.totalorder %s23, 1
    %p272 = scmp.ne.s32.totalorder %s267, %s269
    %p273 = scmp.eq.s32.totalorder %s23, 0
    %p274 = por %p272, %p273
    %p275 = scmp.ne.s32.totalorder %s267, %s269
    %p276 = scmp.eq.s32.totalorder %s28, 1
    %p277 = por %p275, %p276
    %p278 = scmp.ne.s32.totalorder %s269, %s270
    %p279 = scmp.eq.s32.totalorder %s28, 0
    %p280 = por %p278, %p279
    %p281 = scmp.ne.s32.totalorder %s269, %s270
    %p282 = scmp.eq.s32.totalorder %s29, 1
    %p283 = por %p281, %p282
    %p285 = scmp.ne.s32.totalorder %s270, %s284
    %p286 = scmp.eq.s32.totalorder %s29, 0
    %p287 = por %p285, %p286
    %s289 = sadd.s32 %s288, 1
    %p292 = scmp.eq.s32.totalorder %s23, 1
    %p293 = scmp.ne.s32.totalorder %s288, %s290
    %p294 = scmp.eq.s32.totalorder %s23, 0
    %p295 = por %p293, %p294
    %p296 = scmp.ne.s32.totalorder %s288, %s290
    %p297 = scmp.eq.s32.totalorder %s28, 1
    %p298 = por %p296, %p297
    %p299 = scmp.ne.s32.totalorder %s290, %s291
    %p300 = scmp.eq.s32.totalorder %s28, 0
    %p301 = por %p299, %p300
    %p302 = scmp.ne.s32.totalorder %s290, %s291
    %p303 = scmp.eq.s32.totalorder %s29, 1
    %p304 = por %p302, %p303
    %p306 = scmp.ne.s32.totalorder %s291, %s305
    %p307 = scmp.eq.s32.totalorder %s29, 0
    %p308 = por %p306, %p307
    %s310 = sadd.s32 %s309, 1
    %p313 = scmp.eq.s32.totalorder %s23, 1
    %p314 = scmp.ne.s32.totalorder %s309, %s311
    %p315 = scmp.eq.s32.totalorder %s23, 0
    %p316 = por %p314, %p315
    %p317 = scmp.ne.s32.totalorder %s309, %s311
    %p318 = scmp.eq.s32.totalorder %s28, 1
    %p319 = por %p317, %p318
    %p320 = scmp.ne.s32.totalorder %s311, %s312
    %p321 = scmp.eq.s32.totalorder %s28, 0
    %p322 = por %p320, %p321
    %p323 = scmp.ne.s32.totalorder %s311, %s312
    %p324 = scmp.eq.s32.totalorder %s29, 1
    %p325 = por %p323, %p324
    %p327 = scmp.ne.s32.totalorder %s312, %s326
    %p328 = scmp.eq.s32.totalorder %s29, 0
    %p329 = por %p327, %p328
    %s331 = sadd.s32 %s330, 1
    %p334 = scmp.eq.s32.totalorder %s23, 1
    %p335 = scmp.ne.s32.totalorder %s330, %s332
    %p336 = scmp.eq.s32.totalorder %s23, 0
    %p337 = por %p335, %p336
    %p338 = scmp.ne.s32.totalorder %s330, %s332
    %p339 = scmp.eq.s32.totalorder %s28, 1
    %p340 = por %p338, %p339
    %p341 = scmp.ne.s32.totalorder %s332, %s333
    %p342 = scmp.eq.s32.totalorder %s28, 0
    %p343 = por %p341, %p342
    %p344 = scmp.ne.s32.totalorder %s332, %s333
    %p345 = scmp.eq.s32.totalorder %s29, 1
    %p346 = por %p344, %p345
    %p348 = scmp.ne.s32.totalorder %s333, %s347
    %p349 = scmp.eq.s32.totalorder %s29, 0
    %p350 = por %p348, %p349
    %s352 = sadd.s32 %s351, 1
    %p355 = scmp.eq.s32.totalorder %s23, 1
    %p356 = scmp.ne.s32.totalorder %s351, %s353
    %p357 = scmp.eq.s32.totalorder %s23, 0
    %p358 = por %p356, %p357
    %p359 = scmp.ne.s32.totalorder %s351, %s353
    %p360 = scmp.eq.s32.totalorder %s28, 1
    %p361 = por %p359, %p360
    %p362 = scmp.ne.s32.totalorder %s353, %s354
    %p363 = scmp.eq.s32.totalorder %s28, 0
    %p364 = por %p362, %p363
    %p365 = scmp.ne.s32.totalorder %s353, %s354
    %p366 = scmp.eq.s32.totalorder %s29, 1
    %p367 = por %p365, %p366
    %p369 = scmp.ne.s32.totalorder %s354, %s368
    %p370 = scmp.eq.s32.totalorder %s29, 0
    %p371 = por %p369, %p370
    %s373 = sadd.s32 %s372, 1
    %p376 = scmp.eq.s32.totalorder %s23, 1
    %p377 = scmp.ne.s32.totalorder %s372, %s374
    %p378 = scmp.eq.s32.totalorder %s23, 0
    %p379 = por %p377, %p378
    %p380 = scmp.ne.s32.totalorder %s372, %s374
    %p381 = scmp.eq.s32.totalorder %s28, 1
    %p382 = por %p380, %p381
    %p383 = scmp.ne.s32.totalorder %s374, %s375
    %p384 = scmp.eq.s32.totalorder %s28, 0
    %p385 = por %p383, %p384
    %p386 = scmp.ne.s32.totalorder %s374, %s375
    %p387 = scmp.eq.s32.totalorder %s29, 1
    %p388 = por %p386, %p387
    %p390 = scmp.ne.s32.totalorder %s375, %s389
    %p391 = scmp.eq.s32.totalorder %s29, 0
    %p392 = por %p390, %p391
    %s393 = ssub.s32 %s23, %s30
    %p394 = scmp.eq.s32.totalorder %s393, 0
    %s396 = sadd.s32 %s395, 1
    %s397 = scalar_select %p394, %s395, %s396
    %p400 = pneg %p394
    %p401 = scmp.eq.s32.totalorder %s23, 1
    %p402 = por %p400, %p401
    %p403 = scmp.ne.s32.totalorder %s395, %s398
    %p404 = scmp.eq.s32.totalorder %s23, 0
    %p405 = por %p403, %p404
    %p406 = scmp.ne.s32.totalorder %s395, %s398
    %p407 = scmp.eq.s32.totalorder %s28, 1
    %p408 = por %p406, %p407
    %p409 = scmp.ne.s32.totalorder %s398, %s399
    %p410 = scmp.eq.s32.totalorder %s28, 0
    %p411 = por %p409, %p410
    %p412 = scmp.ne.s32.totalorder %s398, %s399
    %p413 = scmp.eq.s32.totalorder %s29, 1
    %p414 = por %p412, %p413
    %p416 = scmp.ne.s32.totalorder %s399, %s415
    %p417 = scmp.eq.s32.totalorder %s29, 0
    %p418 = por %p416, %p417
    %p419 = scmp.le.s32.totalorder 1, %s23
    %p420 = scmp.lt.s32.totalorder %s23, 3
    %p421 = pnand %p419, %p420
    %p422 = pneg %p421
    // Predicated region
    $region9: #{run.5} parent=5 // pred_check
      _
    $region10: #{run.5} parent=5 // pred_check_branch
      %424 = sbr.rel (%p421) target = $region12
    $region11: #{run.5} parent=5 // pred_region
      %s425 = ssub.s32 %s23, 1
      // Predicated region
      $region13: #{run.5} parent=11 // pred_check
        %p426 = pneg %p70
      $region14: #{run.5} parent=11 // pred_check_branch
        %428 = sbr.rel (%p426) target = $region16
      $region15: #{run.5} parent=11 // pred_region
        _
      $region16: #{run.5} parent=11 // pred_fallthru
        _
      // Predicated region
      $region17: #{run.5} parent=11 // pred_check
        %p429 = pneg %p91
      $region18: #{run.5} parent=11 // pred_check_branch
        %431 = sbr.rel (%p429) target = $region20
      $region19: #{run.5} parent=11 // pred_region
        _
      $region20: #{run.5} parent=11 // pred_fallthru
        _
      // Predicated region
      $region21: #{run.5} parent=11 // pred_check
        %p432 = pneg %p112
      $region22: #{run.5} parent=11 // pred_check_branch
        %434 = sbr.rel (%p432) target = $region24
      $region23: #{run.5} parent=11 // pred_region
        _
      $region24: #{run.5} parent=11 // pred_fallthru
        _
      // Predicated region
      $region25: #{run.5} parent=11 // pred_check
        %p435 = pneg %p133
      $region26: #{run.5} parent=11 // pred_check_branch
        %437 = sbr.rel (%p435) target = $region28
      $region27: #{run.5} parent=11 // pred_region
        _
      $region28: #{run.5} parent=11 // pred_fallthru
        _
      // Predicated region
      $region29: #{run.5} parent=11 // pred_check
        %p438 = pneg %p154
      $region30: #{run.5} parent=11 // pred_check_branch
        %440 = sbr.rel (%p438) target = $region32
      $region31: #{run.5} parent=11 // pred_region
        _
      $region32: #{run.5} parent=11 // pred_fallthru
        _
      // Predicated region
      $region33: #{run.5} parent=11 // pred_check
        %p441 = pneg %p175
      $region34: #{run.5} parent=11 // pred_check_branch
        %443 = sbr.rel (%p441) target = $region36
      $region35: #{run.5} parent=11 // pred_region
        _
      $region36: #{run.5} parent=11 // pred_fallthru
        _
      // Predicated region
      $region37: #{run.5} parent=11 // pred_check
        %p444 = pneg %p196
      $region38: #{run.5} parent=11 // pred_check_branch
        %446 = sbr.rel (%p444) target = $region40
      $region39: #{run.5} parent=11 // pred_region
        _
      $region40: #{run.5} parent=11 // pred_fallthru
        _
      // Predicated region
      $region41: #{run.5} parent=11 // pred_check
        %p447 = pneg %p217
      $region42: #{run.5} parent=11 // pred_check_branch
        %449 = sbr.rel (%p447) target = $region44
      $region43: #{run.5} parent=11 // pred_region
        _
      $region44: #{run.5} parent=11 // pred_fallthru
        _
      // Predicated region
      $region45: #{run.5} parent=11 // pred_check
        %p450 = pneg %p238
      $region46: #{run.5} parent=11 // pred_check_branch
        %452 = sbr.rel (%p450) target = $region48
      $region47: #{run.5} parent=11 // pred_region
        _
      $region48: #{run.5} parent=11 // pred_fallthru
        _
      // Predicated region
      $region49: #{run.5} parent=11 // pred_check
        %p453 = pneg %p259
      $region50: #{run.5} parent=11 // pred_check_branch
        %455 = sbr.rel (%p453) target = $region52
      $region51: #{run.5} parent=11 // pred_region
        _
      $region52: #{run.5} parent=11 // pred_fallthru
        _
      // Predicated region
      $region53: #{run.5} parent=11 // pred_check
        %p456 = pneg %p280
      $region54: #{run.5} parent=11 // pred_check_branch
        %458 = sbr.rel (%p456) target = $region56
      $region55: #{run.5} parent=11 // pred_region
        _
      $region56: #{run.5} parent=11 // pred_fallthru
        _
      // Predicated region
      $region57: #{run.5} parent=11 // pred_check
        %p459 = pneg %p301
      $region58: #{run.5} parent=11 // pred_check_branch
        %461 = sbr.rel (%p459) target = $region60
      $region59: #{run.5} parent=11 // pred_region
        _
      $region60: #{run.5} parent=11 // pred_fallthru
        _
      // Predicated region
      $region61: #{run.5} parent=11 // pred_check
        %p462 = pneg %p322
      $region62: #{run.5} parent=11 // pred_check_branch
        %464 = sbr.rel (%p462) target = $region64
      $region63: #{run.5} parent=11 // pred_region
        _
      $region64: #{run.5} parent=11 // pred_fallthru
        _
      // Predicated region
      $region65: #{run.5} parent=11 // pred_check
        %p465 = pneg %p343
      $region66: #{run.5} parent=11 // pred_check_branch
        %467 = sbr.rel (%p465) target = $region68
      $region67: #{run.5} parent=11 // pred_region
        _
      $region68: #{run.5} parent=11 // pred_fallthru
        _
      // Predicated region
      $region69: #{run.5} parent=11 // pred_check
        %p468 = pneg %p364
      $region70: #{run.5} parent=11 // pred_check_branch
        %470 = sbr.rel (%p468) target = $region72
      $region71: #{run.5} parent=11 // pred_region
        _
      $region72: #{run.5} parent=11 // pred_fallthru
        _
      // Predicated region
      $region73: #{run.5} parent=11 // pred_check
        %p471 = pneg %p385
      $region74: #{run.5} parent=11 // pred_check_branch
        %473 = sbr.rel (%p471) target = $region76
      $region75: #{run.5} parent=11 // pred_region
        _
      $region76: #{run.5} parent=11 // pred_fallthru
        _
    $region12: #{run.5} parent=5 // pred_fallthru
      _
    %p474 = scmp.lt.s32.totalorder %s23, 2
    // Predicated region
    $region77: #{run.5} parent=5 // pred_check
      %p475 = pneg %p474
    $region78: #{run.5} parent=5 // pred_check_branch
      %477 = sbr.rel (%p475) target = $region80
    $region79: #{run.5} parent=5 // pred_region
      // Predicated region
      $region81: #{run.5} parent=79 // pred_check
        %p478 = pneg %p43
      $region82: #{run.5} parent=79 // pred_check_branch
        %480 = sbr.rel (%p478) target = $region84
      $region83: #{run.5} parent=79 // pred_region
        %p481 = scmp.lt.s32.totalorder %s23, 1
        %s482 = scalar_select %p481, %s23, 1
        %s483 = smul.addr %s482, 2
        %s484 = smul.addr %s483, 4
        %s485 = scalar_lea.vmem %s0, %s484
      $region84: #{run.5} parent=79 // pred_fallthru
        _
    $region80: #{run.5} parent=5 // pred_fallthru
      _
    %p486 = scmp.le.s32.totalorder 1, %s23
    %p487 = scmp.lt.s32.totalorder %s23, 3
    %p488 = pnand %p486, %p487
    %p489 = pneg %p488
    // Predicated region
    $region85: #{run.5} parent=5 // pred_check
      _
    $region86: #{run.5} parent=5 // pred_check_branch
      %491 = sbr.rel (%p488) target = $region88
    $region87: #{run.5} parent=5 // pred_region
      %s492 = ssub.s32 %s23, 1
      %p493 = scmp.lt.s32.totalorder %s28, 1
      %s494 = scalar_select %p493, %s28, 1
      %s495 = smul.addr %s494, 2
      %s496 = smul.addr %s495, 4
      %s497 = scalar_lea.vmem %s0, %s496
      %p498 = pneg %p49
      %p499 = pneg %p46
      %p500 = pneg %p70
      %p501 = pneg %p67
      %p502 = pneg %p91
      %p503 = pneg %p88
      %p504 = pneg %p112
      %p505 = pneg %p109
      %p506 = pneg %p133
      %p507 = pneg %p130
      %p508 = pneg %p154
      %p509 = pneg %p151
      %p510 = pneg %p175
      %p511 = pneg %p172
      %p512 = pneg %p196
      %p513 = pneg %p193
      %p514 = pneg %p217
      %p515 = pneg %p214
      %p516 = pneg %p238
      %p517 = pneg %p235
      %p518 = pneg %p259
      %p519 = pneg %p256
      %p520 = pneg %p280
      %p521 = pneg %p277
      %p522 = pneg %p301
      %p523 = pneg %p298
      %p524 = pneg %p322
      %p525 = pneg %p319
      %p526 = pneg %p343
      %p527 = pneg %p340
      %p528 = pneg %p364
      %p529 = pneg %p361
      %p530 = pneg %p385
      %p531 = pneg %p382
      %p532 = pneg %p411
      %p533 = pneg %p408
      %p534 = scmp.lt.s32.totalorder %s28, 1
      %s535 = scalar_select %p534, %s28, 1
      %s536 = smul.addr %s535, 2
      %s537 = smul.addr %s536, 4
      %s538 = scalar_lea.vmem %s17, %s537
      %p539 = scmp.lt.s32.totalorder %s28, 1
      %s540 = scalar_select %p539, %s28, 1
      %s541 = smul.addr %s540, 2
      %s542 = smul.addr %s541, 4
      %s543 = scalar_lea.vmem %s0, %s542
      %p544 = scmp.lt.s32.totalorder %s28, 1
      %s545 = scalar_select %p544, %s28, 1
      %s546 = smul.addr %s545, 2
      %s547 = smul.addr %s546, 4
      %s548 = scalar_lea.vmem %s17, %s547
      %v550 = vld [vmem:[%s543] sm:$0xf]
      %v551 = vld [vmem:[%s543 + $0x4] sm:$0x1]
      %v552 = vunpack.c.l.bf16 %v550
      %v553 = vunpack.c.l.bf16 %v551
      %v554 = vld [vmem:[%s3] sm:$0xf]
      %v555 = vld [vmem:[%s3 + $0x4] sm:$0xf]
      %v556 = vld [vmem:[%s3 + $0x8] sm:$0xf]
      %v557 = vld [vmem:[%s3 + $0xc] sm:$0xf]
      %v558 = vld [vmem:[%s4] sm:$0x1]
      %v560 = vlaneseq
      %v561 = vshrl.u32 %v560, 7
      %v562 = vsub.s32 0, %v561
      %v563 = vrot.slane %v558, %v562
      %v567 = vunpack.c.l.b16 %v550
      %v568 = vunpack.c.l.b16 %v551
      %v569 = vpack.c.b16 %v568, %v567
      %v574 = vunpack.c.l.b16 %v554
      %v575 = vunpack.c.l.b16 %v555
      %v576 = vunpack.c.l.b16 %v556
      %v577 = vunpack.c.l.b16 %v557
      %v578 = vpack.c.b16 %v575, %v574
      %v579 = vpack.c.b16 %v577, %v576
      %vm582 = vcmask 261120
      %v584 = vsel %vm582, %v569, 0
      %586 = vmatprep.subr.bf16.mxu0 0
      %587 = vmatpush1.bf16.msra.mxu0 0
      %588 = vmatprep.subr.bf16.mxu0 0
      %589 = vmatpush1.bf16.msra.mxu0 0
      %590 = vmatprep.subr.bf16.mxu0 0
      %591 = vmatpush1.bf16.msra.mxu0 0
      %592 = vmatprep.subr.bf16.mxu0 0
      %593 = vmatpush1.bf16.msra.mxu0 0
      %594 = vmatprep.subr.bf16.mxu0 0
      %595 = vmatpush1.bf16.msra.mxu0 0
      %596 = vmatprep.subr.bf16.mxu0 0
      %597 = vmatpush1.bf16.msra.mxu0 0
      %598 = vmatprep.subr.bf16.mxu0 0
      %599 = vmatpush1.bf16.msra.mxu0 %v579
      %600 = vmatprep.subr.bf16.mxu0 0
      %601 = vmatpush1.bf16.msra.mxu0 %v578
      %602 = vmatprep.subr.bf16.mxu0 0
      %603 = vmatpush2.bf16.msra.mxu0 0
      %604 = vmatprep.subr.bf16.mxu0 0
      %605 = vmatpush2.bf16.msra.mxu0 0
      %606 = vmatprep.subr.bf16.mxu0 0
      %607 = vmatpush2.bf16.msra.mxu0 0
      %608 = vmatprep.subr.bf16.mxu0 0
      %609 = vmatpush2.bf16.msra.mxu0 0
      %610 = vmatprep.subr.bf16.mxu0 0
      %611 = vmatpush2.bf16.msra.mxu0 0
      %612 = vmatprep.subr.bf16.mxu0 0
      %613 = vmatpush2.bf16.msra.mxu0 0
      %614 = vmatprep.subr.bf16.mxu0 0
      %615 = vmatpush2.bf16.msra.mxu0 0
      %616 = vmatprep.subr.bf16.mxu0 0
      %617 = vmatpush2.bf16.msra.mxu0 0
      %618 = vmatprep.mubr.bf16.mxu0 0
      %619 = vmatmul.mubr.bf16.gmra.mxu0 %v584
      %v620 = vpop.f32.mrf.mxu0
      %v621 = vadd.f32 %v563, %v620
      %v622 = vpop.f32.mrf.mxu0
      %v623 = vpop.f32.mrf.mxu0
      %v624 = vadd.f32 %v563, %v623
      %v625 = vpop.f32.mrf.mxu0
      %626 = vdwg.mxu0
      %v627 = vld [vmem:[%s1] sm:$0xff]
      %v628 = vld [vmem:[%s1 + $0x8] sm:$0x3]
      %s629 = scalar_lea.vmem %s2, %s28
      %v630 = vld [vmem:[%s629] sm:$0x1]
      %v631 = vlaneseq
      %v632 = vshrl.u32 %v631, 7
      %v633 = vsub.s32 0, %v632
      %v634 = vrot.slane %v630, %v633
      %v635 = vadd.f32 %v627, %v634
      %v636 = vadd.f32 %v628, %v634
      %v637 = vmul.f32 %v621, 0.35355338
      %v638 = vmul.f32 %v624, 0.35355338
      %v639 = vpack.c.bf16 %v638, %v637
      %v640 = vpack.c.bf16 %v624, %v621
      %642 = vrot.lane.b32.xlu0 %v640, 96
      %v643 = vpop.permute.xlu0 %642
      %vm644 = vcmask 64512
      %v646 = vsel %vm644, %v639, 0
      %v649 = vsel %vm644, %v643, 0
      %651 = vmatprep.subr.bf16.mxu0 0
      %652 = vmatpush1.bf16.xpose.msra.mxu0 0
      %653 = vmatprep.subr.bf16.mxu0 0
      %654 = vmatpush1.bf16.xpose.msra.mxu0 0
      %655 = vmatprep.subr.bf16.mxu0 0
      %656 = vmatpush1.bf16.xpose.msra.mxu0 0
      %657 = vmatprep.subr.bf16.mxu0 0
      %658 = vmatpush1.bf16.xpose.msra.mxu0 0
      %659 = vmatprep.subr.bf16.mxu0 0
      %660 = vmatpush1.bf16.xpose.msra.mxu0 0
      %661 = vmatprep.subr.bf16.mxu0 0
      %662 = vmatpush1.bf16.xpose.msra.mxu0 0
      %663 = vmatprep.subr.bf16.mxu0 0
      %664 = vmatpush1.bf16.xpose.msra.mxu0 0
      %665 = vmatprep.subr.bf16.mxu0 0
      %666 = vmatpush1.bf16.xpose.msra.mxu0 %v649
      %667 = vmatprep.subr.bf16.mxu0 0
      %668 = vmatpush2.bf16.xpose.msra.mxu0 0
      %669 = vmatprep.subr.bf16.mxu0 0
      %670 = vmatpush2.bf16.xpose.msra.mxu0 0
      %671 = vmatprep.subr.bf16.mxu0 0
      %672 = vmatpush2.bf16.xpose.msra.mxu0 0
      %673 = vmatprep.subr.bf16.mxu0 0
      %674 = vmatpush2.bf16.xpose.msra.mxu0 0
      %675 = vmatprep.subr.bf16.mxu0 0
      %676 = vmatpush2.bf16.xpose.msra.mxu0 0
      %677 = vmatprep.subr.bf16.mxu0 0
      %678 = vmatpush2.bf16.xpose.msra.mxu0 0
      %679 = vmatprep.subr.bf16.mxu0 0
      %680 = vmatpush2.bf16.xpose.msra.mxu0 0
      %681 = vmatprep.subr.bf16.mxu0 0
      %682 = vmatpush2.bf16.xpose.msra.mxu0 0
      %683 = vmatprep.mubr.bf16.mxu0 0
      %684 = vmatmul.mubr.bf16.gmra.mxu0 %v646
      %v685 = vpop.f32.mrf.mxu0
      %v686 = vadd.f32 %v635, %v685
      %v687 = vpop.f32.mrf.mxu0
      %v688 = vpop.f32.mrf.mxu0
      %v689 = vadd.f32 %v636, %v688
      %v690 = vpop.f32.mrf.mxu0
      %691 = vdwg.mxu0
      %vm692 = vcmask 80896
      %v693 = vsel %vm692, %v686, -inf
      %694 = vmax.xlane.f32.xlu0 %v693
      %v695 = vpop.xlane.xlu0 %694
      %vm696 = vcmask 74752
      %v697 = vsel %vm696, %v689, -inf
      %698 = vmax.xlane.f32.xlu0 %v697
      %v699 = vpop.xlane.xlu0 %698
      %v700 = vsub.f32 %v686, %v695
      %v701 = vsub.f32 %v689, %v699
      %v702 = vmul.f32 %v700, 1.442695
      %v703 = vpow.pop %v702
      %v704 = vmul.f32 %v701, 1.442695
      %v705 = vpow.pop %v704
      %v706 = vsel %vm692, %v703, 0.0
      %707 = vadd.xlane.f32.xlu0 %v706
      %v708 = vpop.xlane.xlu0 %707
      %v709 = vsel %vm696, %v705, 0.0
      %710 = vadd.xlane.f32.xlu0 %v709
      %v711 = vpop.xlane.xlu0 %710
      %v712 = vrcp.pop %v708
      %v713 = vrcp.pop %v711
      %v714 = vmul.f32 %v703, %v712
      %v715 = vmul.f32 %v705, %v713
      %v716 = vpack.c.bf16 %v715, %v714
      %717 = vrot.lane.b32.xlu0 %v640, 64
      %v718 = vpop.permute.xlu0 %717
      %v720 = vsel %vm692, %v716, 0
      %vm722 = vcmask 1044480
      %v724 = vsel %vm722, %v718, 0
      %726 = vmatprep.subr.bf16.mxu0 0
      %727 = vmatpush1.bf16.msra.mxu0 0
      %728 = vmatprep.subr.bf16.mxu0 0
      %729 = vmatpush1.bf16.msra.mxu0 0
      %730 = vmatprep.subr.bf16.mxu0 0
      %731 = vmatpush1.bf16.msra.mxu0 0
      %732 = vmatprep.subr.bf16.mxu0 0
      %733 = vmatpush1.bf16.msra.mxu0 0
      %734 = vmatprep.subr.bf16.mxu0 0
      %735 = vmatpush1.bf16.msra.mxu0 0
      %736 = vmatprep.subr.bf16.mxu0 0
      %737 = vmatpush1.bf16.msra.mxu0 0
      %738 = vmatprep.subr.bf16.mxu0 0
      %739 = vmatpush1.bf16.msra.mxu0 0
      %740 = vmatprep.subr.bf16.mxu0 0
      %741 = vmatpush1.bf16.msra.mxu0 %v724
      %742 = vmatprep.subr.bf16.mxu0 0
      %743 = vmatpush2.bf16.msra.mxu0 0
      %744 = vmatprep.subr.bf16.mxu0 0
      %745 = vmatpush2.bf16.msra.mxu0 0
      %746 = vmatprep.subr.bf16.mxu0 0
      %747 = vmatpush2.bf16.msra.mxu0 0
      %748 = vmatprep.subr.bf16.mxu0 0
      %749 = vmatpush2.bf16.msra.mxu0 0
      %750 = vmatprep.subr.bf16.mxu0 0
      %751 = vmatpush2.bf16.msra.mxu0 0
      %752 = vmatprep.subr.bf16.mxu0 0
      %753 = vmatpush2.bf16.msra.mxu0 0
      %754 = vmatprep.subr.bf16.mxu0 0
      %755 = vmatpush2.bf16.msra.mxu0 0
      %756 = vmatprep.subr.bf16.mxu0 0
      %757 = vmatpush2.bf16.msra.mxu0 0
      %758 = vmatprep.mubr.bf16.mxu0 0
      %759 = vmatmul.mubr.bf16.gmra.mxu0 %v720
      %v760 = vpop.f32.mrf.mxu0
      %v761 = vadd.f32 0.0, %v760
      %v762 = vpop.f32.mrf.mxu0
      %v763 = vpop.f32.mrf.mxu0
      %v764 = vadd.f32 0.0, %v763
      %v765 = vpop.f32.mrf.mxu0
      %766 = vdwg.mxu0
      %767 = vst.msk [vmem:[#allocation2] sm:$0xff] %vm644, %v761
      %vm768 = vcmask 58368
      %769 = vst.msk [vmem:[#allocation2 + $0x8] sm:$0x3] %vm768, %v764
      %771 = vrot.lane.b32.xlu0 %v639, 120
      %v772 = vpop.permute.xlu0 %771
      %773 = vrot.lane.b32.xlu0 %v640, 88
      %v774 = vpop.permute.xlu0 %773
      %v776 = vsel %vm644, %v772, 0
      %v779 = vsel %vm644, %v774, 0
      %781 = vmatprep.subr.bf16.mxu0 0
      %782 = vmatpush1.bf16.xpose.msra.mxu0 0
      %783 = vmatprep.subr.bf16.mxu0 0
      %784 = vmatpush1.bf16.xpose.msra.mxu0 0
      %785 = vmatprep.subr.bf16.mxu0 0
      %786 = vmatpush1.bf16.xpose.msra.mxu0 0
      %787 = vmatprep.subr.bf16.mxu0 0
      %788 = vmatpush1.bf16.xpose.msra.mxu0 0
      %789 = vmatprep.subr.bf16.mxu0 0
      %790 = vmatpush1.bf16.xpose.msra.mxu0 0
      %791 = vmatprep.subr.bf16.mxu0 0
      %792 = vmatpush1.bf16.xpose.msra.mxu0 0
      %793 = vmatprep.subr.bf16.mxu0 0
      %794 = vmatpush1.bf16.xpose.msra.mxu0 0
      %795 = vmatprep.subr.bf16.mxu0 0
      %796 = vmatpush1.bf16.xpose.msra.mxu0 %v779
      %797 = vmatprep.subr.bf16.mxu0 0
      %798 = vmatpush2.bf16.xpose.msra.mxu0 0
      %799 = vmatprep.subr.bf16.mxu0 0
      %800 = vmatpush2.bf16.xpose.msra.mxu0 0
      %801 = vmatprep.subr.bf16.mxu0 0
      %802 = vmatpush2.bf16.xpose.msra.mxu0 0
      %803 = vmatprep.subr.bf16.mxu0 0
      %804 = vmatpush2.bf16.xpose.msra.mxu0 0
      %805 = vmatprep.subr.bf16.mxu0 0
      %806 = vmatpush2.bf16.xpose.msra.mxu0 0
      %807 = vmatprep.subr.bf16.mxu0 0
      %808 = vmatpush2.bf16.xpose.msra.mxu0 0
      %809 = vmatprep.subr.bf16.mxu0 0
      %810 = vmatpush2.bf16.xpose.msra.mxu0 0
      %811 = vmatprep.subr.bf16.mxu0 0
      %812 = vmatpush2.bf16.xpose.msra.mxu0 0
      %813 = vmatprep.mubr.bf16.mxu0 0
      %814 = vmatmul.mubr.bf16.gmra.mxu0 %v776
      %v815 = vpop.f32.mrf.mxu0
      %v816 = vadd.f32 %v635, %v815
      %v817 = vpop.f32.mrf.mxu0
      %v818 = vpop.f32.mrf.mxu0
      %v819 = vadd.f32 %v636, %v818
      %v820 = vpop.f32.mrf.mxu0
      %821 = vdwg.mxu0
      %v822 = vsel %vm692, %v816, -inf
      %823 = vmax.xlane.f32.xlu0 %v822
      %v824 = vpop.xlane.xlu0 %823
      %v825 = vsel %vm696, %v819, -inf
      %826 = vmax.xlane.f32.xlu0 %v825
      %v827 = vpop.xlane.xlu0 %826
      %v828 = vsub.f32 %v816, %v824
      %v829 = vsub.f32 %v819, %v827
      %v830 = vmul.f32 %v828, 1.442695
      %v831 = vpow.pop %v830
      %v832 = vmul.f32 %v829, 1.442695
      %v833 = vpow.pop %v832
      %v834 = vsel %vm692, %v831, 0.0
      %835 = vadd.xlane.f32.xlu0 %v834
      %v836 = vpop.xlane.xlu0 %835
      %v837 = vsel %vm696, %v833, 0.0
      %838 = vadd.xlane.f32.xlu0 %v837
      %v839 = vpop.xlane.xlu0 %838
      %v840 = vrcp.pop %v836
      %v841 = vrcp.pop %v839
      %v842 = vmul.f32 %v831, %v840
      %v843 = vmul.f32 %v833, %v841
      %v844 = vpack.c.bf16 %v843, %v842
      %845 = vrot.lane.b32.xlu0 %v640, 56
      %v846 = vpop.permute.xlu0 %845
      %v848 = vsel %vm692, %v844, 0
      %v851 = vsel %vm722, %v846, 0
      %853 = vmatprep.subr.bf16.mxu0 0
      %854 = vmatpush1.bf16.msra.mxu0 0
      %855 = vmatprep.subr.bf16.mxu0 0
      %856 = vmatpush1.bf16.msra.mxu0 0
      %857 = vmatprep.subr.bf16.mxu0 0
      %858 = vmatpush1.bf16.msra.mxu0 0
      %859 = vmatprep.subr.bf16.mxu0 0
      %860 = vmatpush1.bf16.msra.mxu0 0
      %861 = vmatprep.subr.bf16.mxu0 0
      %862 = vmatpush1.bf16.msra.mxu0 0
      %863 = vmatprep.subr.bf16.mxu0 0
      %864 = vmatpush1.bf16.msra.mxu0 0
      %865 = vmatprep.subr.bf16.mxu0 0
      %866 = vmatpush1.bf16.msra.mxu0 0
      %867 = vmatprep.subr.bf16.mxu0 0
      %868 = vmatpush1.bf16.msra.mxu0 %v851
      %869 = vmatprep.subr.bf16.mxu0 0
      %870 = vmatpush2.bf16.msra.mxu0 0
      %871 = vmatprep.subr.bf16.mxu0 0
      %872 = vmatpush2.bf16.msra.mxu0 0
      %873 = vmatprep.subr.bf16.mxu0 0
      %874 = vmatpush2.bf16.msra.mxu0 0
      %875 = vmatprep.subr.bf16.mxu0 0
      %876 = vmatpush2.bf16.msra.mxu0 0
      %877 = vmatprep.subr.bf16.mxu0 0
      %878 = vmatpush2.bf16.msra.mxu0 0
      %879 = vmatprep.subr.bf16.mxu0 0
      %880 = vmatpush2.bf16.msra.mxu0 0
      %881 = vmatprep.subr.bf16.mxu0 0
      %882 = vmatpush2.bf16.msra.mxu0 0
      %883 = vmatprep.subr.bf16.mxu0 0
      %884 = vmatpush2.bf16.msra.mxu0 0
      %885 = vmatprep.mubr.bf16.mxu0 0
      %886 = vmatmul.mubr.bf16.gmra.mxu0 %v848
      %v887 = vpop.f32.mrf.mxu0
      %v888 = vadd.f32 0.0, %v887
      %v889 = vpop.f32.mrf.mxu0
      %v890 = vpop.f32.mrf.mxu0
      %v891 = vadd.f32 0.0, %v890
      %v892 = vpop.f32.mrf.mxu0
      %893 = vdwg.mxu0
      %896 = vrot.lane.b32.xlu0 %v888, 8
      %v897 = vpop.permute.xlu0 %896
      %898 = vrot.lane.b32.xlu0 %v891, 8
      %v899 = vpop.permute.xlu0 %898
      %vm902 = vcmask 130112
      %903 = vst.msk [vmem:[#allocation2] sm:$0xff] %vm902, %v897
      %vm904 = vcmask 123968
      %905 = vst.msk [vmem:[#allocation2 + $0x8] sm:$0x3] %vm904, %v899
      %906 = vrot.lane.b32.xlu0 %v639, 112
      %v907 = vpop.permute.xlu0 %906
      %908 = vrot.lane.b32.xlu0 %v640, 80
      %v909 = vpop.permute.xlu0 %908
      %v911 = vsel %vm644, %v907, 0
      %v914 = vsel %vm644, %v909, 0
      %916 = vmatprep.subr.bf16.mxu0 0
      %917 = vmatpush1.bf16.xpose.msra.mxu0 0
      %918 = vmatprep.subr.bf16.mxu0 0
      %919 = vmatpush1.bf16.xpose.msra.mxu0 0
      %920 = vmatprep.subr.bf16.mxu0 0
      %921 = vmatpush1.bf16.xpose.msra.mxu0 0
      %922 = vmatprep.subr.bf16.mxu0 0
      %923 = vmatpush1.bf16.xpose.msra.mxu0 0
      %924 = vmatprep.subr.bf16.mxu0 0
      %925 = vmatpush1.bf16.xpose.msra.mxu0 0
      %926 = vmatprep.subr.bf16.mxu0 0
      %927 = vmatpush1.bf16.xpose.msra.mxu0 0
      %928 = vmatprep.subr.bf16.mxu0 0
      %929 = vmatpush1.bf16.xpose.msra.mxu0 0
      %930 = vmatprep.subr.bf16.mxu0 0
      %931 = vmatpush1.bf16.xpose.msra.mxu0 %v914
      %932 = vmatprep.subr.bf16.mxu0 0
      %933 = vmatpush2.bf16.xpose.msra.mxu0 0
      %934 = vmatprep.subr.bf16.mxu0 0
      %935 = vmatpush2.bf16.xpose.msra.mxu0 0
      %936 = vmatprep.subr.bf16.mxu0 0
      %937 = vmatpush2.bf16.xpose.msra.mxu0 0
      %938 = vmatprep.subr.bf16.mxu0 0
      %939 = vmatpush2.bf16.xpose.msra.mxu0 0
      %940 = vmatprep.subr.bf16.mxu0 0
      %941 = vmatpush2.bf16.xpose.msra.mxu0 0
      %942 = vmatprep.subr.bf16.mxu0 0
      %943 = vmatpush2.bf16.xpose.msra.mxu0 0
      %944 = vmatprep.subr.bf16.mxu0 0
      %945 = vmatpush2.bf16.xpose.msra.mxu0 0
      %946 = vmatprep.subr.bf16.mxu0 0
      %947 = vmatpush2.bf16.xpose.msra.mxu0 0
      %948 = vmatprep.mubr.bf16.mxu0 0
      %949 = vmatmul.mubr.bf16.gmra.mxu0 %v911
      %v950 = vpop.f32.mrf.mxu0
      %v951 = vadd.f32 %v635, %v950
      %v952 = vpop.f32.mrf.mxu0
      %v953 = vpop.f32.mrf.mxu0
      %v954 = vadd.f32 %v636, %v953
      %v955 = vpop.f32.mrf.mxu0
      %956 = vdwg.mxu0
      %v957 = vsel %vm692, %v951, -inf
      %958 = vmax.xlane.f32.xlu0 %v957
      %v959 = vpop.xlane.xlu0 %958
      %v960 = vsel %vm696, %v954, -inf
      %961 = vmax.xlane.f32.xlu0 %v960
      %v962 = vpop.xlane.xlu0 %961
      %v963 = vsub.f32 %v951, %v959
      %v964 = vsub.f32 %v954, %v962
      %v965 = vmul.f32 %v963, 1.442695
      %v966 = vpow.pop %v965
      %v967 = vmul.f32 %v964, 1.442695
      %v968 = vpow.pop %v967
      %v969 = vsel %vm692, %v966, 0.0
      %970 = vadd.xlane.f32.xlu0 %v969
      %v971 = vpop.xlane.xlu0 %970
      %v972 = vsel %vm696, %v968, 0.0
      %973 = vadd.xlane.f32.xlu0 %v972
      %v974 = vpop.xlane.xlu0 %973
      %v975 = vrcp.pop %v971
      %v976 = vrcp.pop %v974
      %v977 = vmul.f32 %v966, %v975
      %v978 = vmul.f32 %v968, %v976
      %v979 = vpack.c.bf16 %v978, %v977
      %980 = vrot.lane.b32.xlu0 %v640, 48
      %v981 = vpop.permute.xlu0 %980
      %v983 = vsel %vm692, %v979, 0
      %v986 = vsel %vm722, %v981, 0
      %988 = vmatprep.subr.bf16.mxu0 0
      %989 = vmatpush1.bf16.msra.mxu0 0
      %990 = vmatprep.subr.bf16.mxu0 0
      %991 = vmatpush1.bf16.msra.mxu0 0
      %992 = vmatprep.subr.bf16.mxu0 0
      %993 = vmatpush1.bf16.msra.mxu0 0
      %994 = vmatprep.subr.bf16.mxu0 0
      %995 = vmatpush1.bf16.msra.mxu0 0
      %996 = vmatprep.subr.bf16.mxu0 0
      %997 = vmatpush1.bf16.msra.mxu0 0
      %998 = vmatprep.subr.bf16.mxu0 0
      %999 = vmatpush1.bf16.msra.mxu0 0
      %1000 = vmatprep.subr.bf16.mxu0 0
      %1001 = vmatpush1.bf16.msra.mxu0 0
      %1002 = vmatprep.subr.bf16.mxu0 0
      %1003 = vmatpush1.bf16.msra.mxu0 %v986
      %1004 = vmatprep.subr.bf16.mxu0 0
      %1005 = vmatpush2.bf16.msra.mxu0 0
      %1006 = vmatprep.subr.bf16.mxu0 0
      %1007 = vmatpush2.bf16.msra.mxu0 0
      %1008 = vmatprep.subr.bf16.mxu0 0
      %1009 = vmatpush2.bf16.msra.mxu0 0
      %1010 = vmatprep.subr.bf16.mxu0 0
      %1011 = vmatpush2.bf16.msra.mxu0 0
      %1012 = vmatprep.subr.bf16.mxu0 0
      %1013 = vmatpush2.bf16.msra.mxu0 0
      %1014 = vmatprep.subr.bf16.mxu0 0
      %1015 = vmatpush2.bf16.msra.mxu0 0
      %1016 = vmatprep.subr.bf16.mxu0 0
      %1017 = vmatpush2.bf16.msra.mxu0 0
      %1018 = vmatprep.subr.bf16.mxu0 0
      %1019 = vmatpush2.bf16.msra.mxu0 0
      %1020 = vmatprep.mubr.bf16.mxu0 0
      %1021 = vmatmul.mubr.bf16.gmra.mxu0 %v983
      %v1022 = vpop.f32.mrf.mxu0
      %v1023 = vadd.f32 0.0, %v1022
      %v1024 = vpop.f32.mrf.mxu0
      %v1025 = vpop.f32.mrf.mxu0
      %v1026 = vadd.f32 0.0, %v1025
      %v1027 = vpop.f32.mrf.mxu0
      %1028 = vdwg.mxu0
      %1031 = vrot.lane.b32.xlu0 %v1023, 16
      %v1032 = vpop.permute.xlu0 %1031
      %1033 = vrot.lane.b32.xlu0 %v1026, 16
      %v1034 = vpop.permute.xlu0 %1033
      %vm1037 = vcmask 195712
      %1038 = vst.msk [vmem:[#allocation2] sm:$0xff] %vm1037, %v1032
      %vm1039 = vcmask 189568
      %1040 = vst.msk [vmem:[#allocation2 + $0x8] sm:$0x3] %vm1039, %v1034
      %1041 = vrot.lane.b32.xlu0 %v639, 104
      %v1042 = vpop.permute.xlu0 %1041
      %1043 = vrot.lane.b32.xlu0 %v640, 72
      %v1044 = vpop.permute.xlu0 %1043
      %v1046 = vsel %vm644, %v1042, 0
      %v1049 = vsel %vm644, %v1044, 0
      %1051 = vmatprep.subr.bf16.mxu0 0
      %1052 = vmatpush1.bf16.xpose.msra.mxu0 0
      %1053 = vmatprep.subr.bf16.mxu0 0
      %1054 = vmatpush1.bf16.xpose.msra.mxu0 0
      %1055 = vmatprep.subr.bf16.mxu0 0
      %1056 = vmatpush1.bf16.xpose.msra.mxu0 0
      %1057 = vmatprep.subr.bf16.mxu0 0
      %1058 = vmatpush1.bf16.xpose.msra.mxu0 0
      %1059 = vmatprep.subr.bf16.mxu0 0
      %1060 = vmatpush1.bf16.xpose.msra.mxu0 0
      %1061 = vmatprep.subr.bf16.mxu0 0
      %1062 = vmatpush1.bf16.xpose.msra.mxu0 0
      %1063 = vmatprep.subr.bf16.mxu0 0
      %1064 = vmatpush1.bf16.xpose.msra.mxu0 0
      %1065 = vmatprep.subr.bf16.mxu0 0
      %1066 = vmatpush1.bf16.xpose.msra.mxu0 %v1049
      %1067 = vmatprep.subr.bf16.mxu0 0
      %1068 = vmatpush2.bf16.xpose.msra.mxu0 0
      %1069 = vmatprep.subr.bf16.mxu0 0
      %1070 = vmatpush2.bf16.xpose.msra.mxu0 0
      %1071 = vmatprep.subr.bf16.mxu0 0
      %1072 = vmatpush2.bf16.xpose.msra.mxu0 0
      %1073 = vmatprep.subr.bf16.mxu0 0
      %1074 = vmatpush2.bf16.xpose.msra.mxu0 0
      %1075 = vmatprep.subr.bf16.mxu0 0
      %1076 = vmatpush2.bf16.xpose.msra.mxu0 0
      %1077 = vmatprep.subr.bf16.mxu0 0
      %1078 = vmatpush2.bf16.xpose.msra.mxu0 0
      %1079 = vmatprep.subr.bf16.mxu0 0
      %1080 = vmatpush2.bf16.xpose.msra.mxu0 0
      %1081 = vmatprep.subr.bf16.mxu0 0
      %1082 = vmatpush2.bf16.xpose.msra.mxu0 0
      %1083 = vmatprep.mubr.bf16.mxu0 0
      %1084 = vmatmul.mubr.bf16.gmra.mxu0 %v1046
      %v1085 = vpop.f32.mrf.mxu0
      %v1086 = vadd.f32 %v635, %v1085
      %v1087 = vpop.f32.mrf.mxu0
      %v1088 = vpop.f32.mrf.mxu0
      %v1089 = vadd.f32 %v636, %v1088
      %v1090 = vpop.f32.mrf.mxu0
      %1091 = vdwg.mxu0
      %v1092 = vsel %vm692, %v1086, -inf
      %1093 = vmax.xlane.f32.xlu0 %v1092
      %v1094 = vpop.xlane.xlu0 %1093
      %v1095 = vsel %vm696, %v1089, -inf
      %1096 = vmax.xlane.f32.xlu0 %v1095
      %v1097 = vpop.xlane.xlu0 %1096
      %v1098 = vsub.f32 %v1086, %v1094
      %v1099 = vsub.f32 %v1089, %v1097
      %v1100 = vmul.f32 %v1098, 1.442695
      %v1101 = vpow.pop %v1100
      %v1102 = vmul.f32 %v1099, 1.442695
      %v1103 = vpow.pop %v1102
      %v1104 = vsel %vm692, %v1101, 0.0
      %1105 = vadd.xlane.f32.xlu0 %v1104
      %v1106 = vpop.xlane.xlu0 %1105
      %v1107 = vsel %vm696, %v1103, 0.0
      %1108 = vadd.xlane.f32.xlu0 %v1107
      %v1109 = vpop.xlane.xlu0 %1108
      %v1110 = vrcp.pop %v1106
      %v1111 = vrcp.pop %v1109
      %v1112 = vmul.f32 %v1101, %v1110
      %v1113 = vmul.f32 %v1103, %v1111
      %v1114 = vpack.c.bf16 %v1113, %v1112
      %1115 = vrot.lane.b32.xlu0 %v640, 40
      %v1116 = vpop.permute.xlu0 %1115
      %v1118 = vsel %vm692, %v1114, 0
      %v1121 = vsel %vm722, %v1116, 0
      %1123 = vmatprep.subr.bf16.mxu0 0
      %1124 = vmatpush1.bf16.msra.mxu0 0
      %1125 = vmatprep.subr.bf16.mxu0 0
      %1126 = vmatpush1.bf16.msra.mxu0 0
      %1127 = vmatprep.subr.bf16.mxu0 0
      %1128 = vmatpush1.bf16.msra.mxu0 0
      %1129 = vmatprep.subr.bf16.mxu0 0
      %1130 = vmatpush1.bf16.msra.mxu0 0
      %1131 = vmatprep.subr.bf16.mxu0 0
      %1132 = vmatpush1.bf16.msra.mxu0 0
      %1133 = vmatprep.subr.bf16.mxu0 0
      %1134 = vmatpush1.bf16.msra.mxu0 0
      %1135 = vmatprep.subr.bf16.mxu0 0
      %1136 = vmatpush1.bf16.msra.mxu0 0
      %1137 = vmatprep.subr.bf16.mxu0 0
      %1138 = vmatpush1.bf16.msra.mxu0 %v1121
      %1139 = vmatprep.subr.bf16.mxu0 0
      %1140 = vmatpush2.bf16.msra.mxu0 0
      %1141 = vmatprep.subr.bf16.mxu0 0
      %1142 = vmatpush2.bf16.msra.mxu0 0
      %1143 = vmatprep.subr.bf16.mxu0 0
      %1144 = vmatpush2.bf16.msra.mxu0 0
      %1145 = vmatprep.subr.bf16.mxu0 0
      %1146 = vmatpush2.bf16.msra.mxu0 0
      %1147 = vmatprep.subr.bf16.mxu0 0
      %1148 = vmatpush2.bf16.msra.mxu0 0
      %1149 = vmatprep.subr.bf16.mxu0 0
      %1150 = vmatpush2.bf16.msra.mxu0 0
      %1151 = vmatprep.subr.bf16.mxu0 0
      %1152 = vmatpush2.bf16.msra.mxu0 0
      %1153 = vmatprep.subr.bf16.mxu0 0
      %1154 = vmatpush2.bf16.msra.mxu0 0
      %1155 = vmatprep.mubr.bf16.mxu0 0
      %1156 = vmatmul.mubr.bf16.gmra.mxu0 %v1118
      %v1157 = vpop.f32.mrf.mxu0
      %v1158 = vadd.f32 0.0, %v1157
      %v1159 = vpop.f32.mrf.mxu0
      %v1160 = vpop.f32.mrf.mxu0
      %v1161 = vadd.f32 0.0, %v1160
      %v1162 = vpop.f32.mrf.mxu0
      %1163 = vdwg.mxu0
      %1166 = vrot.lane.b32.xlu0 %v1158, 24
      %v1167 = vpop.permute.xlu0 %1166
      %1168 = vrot.lane.b32.xlu0 %v1161, 24
      %v1169 = vpop.permute.xlu0 %1168
      %vm1172 = vcmask 261312
      %1173 = vst.msk [vmem:[#allocation2] sm:$0xff] %vm1172, %v1167
      %vm1174 = vcmask 255168
      %1175 = vst.msk [vmem:[#allocation2 + $0x8] sm:$0x3] %vm1174, %v1169
      %v1176 = vld [vmem:[#allocation2] sm:$0xff]
      %v1177 = vld [vmem:[#allocation2 + $0x8] sm:$0x3]
      %v1178 = vpack.c.bf16 %v1177, %v1176
      %v1179 = vld [vmem:[%s5] sm:$0xf]
      %v1180 = vld [vmem:[%s5 + $0x4] sm:$0xf]
      %v1181 = vld [vmem:[%s5 + $0x8] sm:$0xf]
      %v1182 = vld [vmem:[%s5 + $0xc] sm:$0xf]
      %v1183 = vld [vmem:[%s6] sm:$0x1]
      %v1185 = vlaneseq
      %v1186 = vshrl.u32 %v1185, 7
      %v1187 = vsub.s32 0, %v1186
      %v1188 = vrot.slane %v1183, %v1187
      %v1194 = vunpack.c.l.b16 %v1179
      %v1195 = vunpack.c.l.b16 %v1180
      %v1196 = vunpack.c.l.b16 %v1181
      %v1197 = vunpack.c.l.b16 %v1182
      %v1198 = vpack.c.b16 %v1195, %v1194
      %v1199 = vpack.c.b16 %v1197, %v1196
      %v1203 = vsel %vm582, %v1178, 0
      %1205 = vmatprep.subr.bf16.mxu0 0
      %1206 = vmatpush1.bf16.msra.mxu0 0
      %1207 = vmatprep.subr.bf16.mxu0 0
      %1208 = vmatpush1.bf16.msra.mxu0 0
      %1209 = vmatprep.subr.bf16.mxu0 0
      %1210 = vmatpush1.bf16.msra.mxu0 0
      %1211 = vmatprep.subr.bf16.mxu0 0
      %1212 = vmatpush1.bf16.msra.mxu0 0
      %1213 = vmatprep.subr.bf16.mxu0 0
      %1214 = vmatpush1.bf16.msra.mxu0 0
      %1215 = vmatprep.subr.bf16.mxu0 0
      %1216 = vmatpush1.bf16.msra.mxu0 0
      %1217 = vmatprep.subr.bf16.mxu0 0
      %1218 = vmatpush1.bf16.msra.mxu0 %v1199
      %1219 = vmatprep.subr.bf16.mxu0 0
      %1220 = vmatpush1.bf16.msra.mxu0 %v1198
      %1221 = vmatprep.subr.bf16.mxu0 0
      %1222 = vmatpush2.bf16.msra.mxu0 0
      %1223 = vmatprep.subr.bf16.mxu0 0
      %1224 = vmatpush2.bf16.msra.mxu0 0
      %1225 = vmatprep.subr.bf16.mxu0 0
      %1226 = vmatpush2.bf16.msra.mxu0 0
      %1227 = vmatprep.subr.bf16.mxu0 0
      %1228 = vmatpush2.bf16.msra.mxu0 0
      %1229 = vmatprep.subr.bf16.mxu0 0
      %1230 = vmatpush2.bf16.msra.mxu0 0
      %1231 = vmatprep.subr.bf16.mxu0 0
      %1232 = vmatpush2.bf16.msra.mxu0 0
      %1233 = vmatprep.subr.bf16.mxu0 0
      %1234 = vmatpush2.bf16.msra.mxu0 0
      %1235 = vmatprep.subr.bf16.mxu0 0
      %1236 = vmatpush2.bf16.msra.mxu0 0
      %1237 = vmatprep.mubr.bf16.mxu0 0
      %1238 = vmatmul.mubr.bf16.gmra.mxu0 %v1203
      %v1239 = vpop.f32.mrf.mxu0
      %v1240 = vadd.f32 %v1188, %v1239
      %v1241 = vpop.f32.mrf.mxu0
      %v1242 = vpop.f32.mrf.mxu0
      %v1243 = vadd.f32 %v1188, %v1242
      %v1244 = vpop.f32.mrf.mxu0
      %1245 = vdwg.mxu0
      %v1246 = vadd.f32 %v552, %v1240
      %v1247 = vadd.f32 %v553, %v1243
      %v1248 = vld [vmem:[%s7] sm:$0x1]
      %v1249 = vld [vmem:[%s8] sm:$0x1]
      %v1250 = vsel %vm582, %v1246, 0.0
      %1251 = vadd.xlane.f32.xlu0 %v1250
      %v1252 = vpop.xlane.xlu0 %1251
      %vm1253 = vcmask 254976
      %v1254 = vsel %vm1253, %v1247, 0.0
      %1255 = vadd.xlane.f32.xlu0 %v1254
      %v1256 = vpop.xlane.xlu0 %1255
      %v1257 = vrcp.pop 32.0
      %v1258 = vmul.f32 %v1252, %v1257
      %v1259 = vmul.f32 %v1256, %v1257
      %v1260 = vsub.f32 %v1246, %v1258
      %v1261 = vsub.f32 %v1247, %v1259
      %v1262 = vmul.f32 %v1260, %v1260
      %v1263 = vmul.f32 %v1261, %v1261
      %v1264 = vsel %vm582, %v1262, 0.0
      %1265 = vadd.xlane.f32.xlu0 %v1264
      %v1266 = vpop.xlane.xlu0 %1265
      %v1267 = vsel %vm1253, %v1263, 0.0
      %1268 = vadd.xlane.f32.xlu0 %v1267
      %v1269 = vpop.xlane.xlu0 %1268
      %v1270 = vmul.f32 %v1266, %v1257
      %v1271 = vmul.f32 %v1269, %v1257
      %v1272 = vadd.f32 %v1270, 1e-05
      %v1273 = vadd.f32 %v1271, 1e-05
      %v1274 = vrsqrt.pop %v1272
      %v1275 = vrsqrt.pop %v1273
      %v1276 = vmul.f32 %v1260, %v1274
      %v1277 = vmul.f32 %v1261, %v1275
      %v1279 = vlaneseq
      %v1280 = vshrl.u32 %v1279, 7
      %v1281 = vsub.s32 0, %v1280
      %v1282 = vrot.slane %v1248, %v1281
      %v1284 = vmul.f32 %v1276, %v1282
      %v1285 = vmul.f32 %v1277, %v1282
      %v1287 = vlaneseq
      %v1288 = vshrl.u32 %v1287, 7
      %v1289 = vsub.s32 0, %v1288
      %v1290 = vrot.slane %v1249, %v1289
      %v1292 = vadd.f32 %v1284, %v1290
      %v1293 = vadd.f32 %v1285, %v1290
      %v1294 = vpack.c.bf16 %v1293, %v1292
      %v1295 = vld [vmem:[%s9] sm:$0xf]
      %v1296 = vld [vmem:[%s9 + $0x4] sm:$0xf]
      %v1297 = vld [vmem:[%s9 + $0x8] sm:$0xf]
      %v1298 = vld [vmem:[%s9 + $0xc] sm:$0xf]
      %v1299 = vld [vmem:[%s10] sm:$0x1]
      %v1301 = vlaneseq
      %v1302 = vshrl.u32 %v1301, 7
      %v1303 = vsub.s32 0, %v1302
      %v1304 = vrot.slane %v1299, %v1303
      %v1310 = vunpack.c.l.b16 %v1295
      %v1311 = vunpack.c.l.b16 %v1296
      %v1312 = vunpack.c.l.b16 %v1297
      %v1313 = vunpack.c.l.b16 %v1298
      %v1314 = vpack.c.b16 %v1311, %v1310
      %v1315 = vpack.c.b16 %v1313, %v1312
      %v1319 = vsel %vm582, %v1294, 0
      %1321 = vmatprep.subr.bf16.mxu0 0
      %1322 = vmatpush1.bf16.msra.mxu0 0
      %1323 = vmatprep.subr.bf16.mxu0 0
      %1324 = vmatpush1.bf16.msra.mxu0 0
      %1325 = vmatprep.subr.bf16.mxu0 0
      %1326 = vmatpush1.bf16.msra.mxu0 0
      %1327 = vmatprep.subr.bf16.mxu0 0
      %1328 = vmatpush1.bf16.msra.mxu0 0
      %1329 = vmatprep.subr.bf16.mxu0 0
      %1330 = vmatpush1.bf16.msra.mxu0 0
      %1331 = vmatprep.subr.bf16.mxu0 0
      %1332 = vmatpush1.bf16.msra.mxu0 0
      %1333 = vmatprep.subr.bf16.mxu0 0
      %1334 = vmatpush1.bf16.msra.mxu0 %v1315
      %1335 = vmatprep.subr.bf16.mxu0 0
      %1336 = vmatpush1.bf16.msra.mxu0 %v1314
      %1337 = vmatprep.subr.bf16.mxu0 0
      %1338 = vmatpush2.bf16.msra.mxu0 0
      %1339 = vmatprep.subr.bf16.mxu0 0
      %1340 = vmatpush2.bf16.msra.mxu0 0
      %1341 = vmatprep.subr.bf16.mxu0 0
      %1342 = vmatpush2.bf16.msra.mxu0 0
      %1343 = vmatprep.subr.bf16.mxu0 0
      %1344 = vmatpush2.bf16.msra.mxu0 0
      %1345 = vmatprep.subr.bf16.mxu0 0
      %1346 = vmatpush2.bf16.msra.mxu0 0
      %1347 = vmatprep.subr.bf16.mxu0 0
      %1348 = vmatpush2.bf16.msra.mxu0 0
      %1349 = vmatprep.subr.bf16.mxu0 0
      %1350 = vmatpush2.bf16.msra.mxu0 0
      %1351 = vmatprep.subr.bf16.mxu0 0
      %1352 = vmatpush2.bf16.msra.mxu0 0
      %1353 = vmatprep.mubr.bf16.mxu0 0
      %1354 = vmatmul.mubr.bf16.gmra.mxu0 %v1319
      %v1355 = vpop.f32.mrf.mxu0
      %v1356 = vadd.f32 %v1304, %v1355
      %v1357 = vpop.f32.mrf.mxu0
      %v1358 = vpop.f32.mrf.mxu0
      %v1359 = vadd.f32 %v1304, %v1358
      %v1360 = vpop.f32.mrf.mxu0
      %1361 = vdwg.mxu0
      %v1362 = vmax.f32 %v1356, 0.0
      %v1363 = vmax.f32 %v1359, 0.0
      %v1364 = vpack.c.bf16 %v1363, %v1362
      %v1365 = vld [vmem:[%s11] sm:$0xf]
      %v1366 = vld [vmem:[%s11 + $0x4] sm:$0xf]
      %v1367 = vld [vmem:[%s11 + $0x8] sm:$0xf]
      %v1368 = vld [vmem:[%s11 + $0xc] sm:$0xf]
      %v1369 = vld [vmem:[%s11 + $0x10] sm:$0xf]
      %v1370 = vld [vmem:[%s11 + $0x14] sm:$0xf]
      %v1371 = vld [vmem:[%s11 + $0x18] sm:$0xf]
      %v1372 = vld [vmem:[%s11 + $0x1c] sm:$0xf]
      %v1373 = vld [vmem:[%s12] sm:$0x1]
      %v1375 = vlaneseq
      %v1376 = vshrl.u32 %v1375, 7
      %v1377 = vsub.s32 0, %v1376
      %v1378 = vrot.slane %v1373, %v1377
      %v1388 = vunpack.c.l.b16 %v1365
      %v1389 = vunpack.c.l.b16 %v1366
      %v1390 = vunpack.c.l.b16 %v1367
      %v1391 = vunpack.c.l.b16 %v1368
      %v1392 = vunpack.c.l.b16 %v1369
      %v1393 = vunpack.c.l.b16 %v1370
      %v1394 = vunpack.c.l.b16 %v1371
      %v1395 = vunpack.c.l.b16 %v1372
      %v1396 = vpack.c.b16 %v1389, %v1388
      %v1397 = vpack.c.b16 %v1391, %v1390
      %v1398 = vpack.c.b16 %v1393, %v1392
      %v1399 = vpack.c.b16 %v1395, %v1394
      %vm1404 = vcmask 523264
      %v1406 = vsel %vm1404, %v1364, 0
      %1408 = vmatprep.subr.bf16.mxu0 0
      %1409 = vmatpush1.bf16.msra.mxu0 0
      %1410 = vmatprep.subr.bf16.mxu0 0
      %1411 = vmatpush1.bf16.msra.mxu0 0
      %1412 = vmatprep.subr.bf16.mxu0 0
      %1413 = vmatpush1.bf16.msra.mxu0 0
      %1414 = vmatprep.subr.bf16.mxu0 0
      %1415 = vmatpush1.bf16.msra.mxu0 0
      %1416 = vmatprep.subr.bf16.mxu0 0
      %1417 = vmatpush1.bf16.msra.mxu0 %v1399
      %1418 = vmatprep.subr.bf16.mxu0 0
      %1419 = vmatpush1.bf16.msra.mxu0 %v1398
      %1420 = vmatprep.subr.bf16.mxu0 0
      %1421 = vmatpush1.bf16.msra.mxu0 %v1397
      %1422 = vmatprep.subr.bf16.mxu0 0
      %1423 = vmatpush1.bf16.msra.mxu0 %v1396
      %1424 = vmatprep.subr.bf16.mxu0 0
      %1425 = vmatpush2.bf16.msra.mxu0 0
      %1426 = vmatprep.subr.bf16.mxu0 0
      %1427 = vmatpush2.bf16.msra.mxu0 0
      %1428 = vmatprep.subr.bf16.mxu0 0
      %1429 = vmatpush2.bf16.msra.mxu0 0
      %1430 = vmatprep.subr.bf16.mxu0 0
      %1431 = vmatpush2.bf16.msra.mxu0 0
      %1432 = vmatprep.subr.bf16.mxu0 0
      %1433 = vmatpush2.bf16.msra.mxu0 0
      %1434 = vmatprep.subr.bf16.mxu0 0
      %1435 = vmatpush2.bf16.msra.mxu0 0
      %1436 = vmatprep.subr.bf16.mxu0 0
      %1437 = vmatpush2.bf16.msra.mxu0 0
      %1438 = vmatprep.subr.bf16.mxu0 0
      %1439 = vmatpush2.bf16.msra.mxu0 0
      %1440 = vmatprep.mubr.bf16.mxu0 0
      %1441 = vmatmul.mubr.bf16.gmra.mxu0 %v1406
      %v1442 = vpop.f32.mrf.mxu0
      %v1443 = vadd.f32 %v1378, %v1442
      %v1444 = vpop.f32.mrf.mxu0
      %v1445 = vpop.f32.mrf.mxu0
      %v1446 = vadd.f32 %v1378, %v1445
      %v1447 = vpop.f32.mrf.mxu0
      %1448 = vdwg.mxu0
      %v1449 = vadd.f32 %v1292, %v1443
      %v1450 = vadd.f32 %v1293, %v1446
      %v1451 = vld [vmem:[%s13] sm:$0x1]
      %v1452 = vld [vmem:[%s14] sm:$0x1]
      %v1453 = vsel %vm582, %v1449, 0.0
      %1454 = vadd.xlane.f32.xlu0 %v1453
      %v1455 = vpop.xlane.xlu0 %1454
      %v1456 = vsel %vm1253, %v1450, 0.0
      %1457 = vadd.xlane.f32.xlu0 %v1456
      %v1458 = vpop.xlane.xlu0 %1457
      %v1459 = vmul.f32 %v1455, %v1257
      %v1460 = vmul.f32 %v1458, %v1257
      %v1461 = vsub.f32 %v1449, %v1459
      %v1462 = vsub.f32 %v1450, %v1460
      %v1463 = vmul.f32 %v1461, %v1461
      %v1464 = vmul.f32 %v1462, %v1462
      %v1465 = vsel %vm582, %v1463, 0.0
      %1466 = vadd.xlane.f32.xlu0 %v1465
      %v1467 = vpop.xlane.xlu0 %1466
      %v1468 = vsel %vm1253, %v1464, 0.0
      %1469 = vadd.xlane.f32.xlu0 %v1468
      %v1470 = vpop.xlane.xlu0 %1469
      %v1471 = vmul.f32 %v1467, %v1257
      %v1472 = vmul.f32 %v1470, %v1257
      %v1473 = vadd.f32 %v1471, 1e-05
      %v1474 = vadd.f32 %v1472, 1e-05
      %v1475 = vrsqrt.pop %v1473
      %v1476 = vrsqrt.pop %v1474
      %v1477 = vmul.f32 %v1461, %v1475
      %v1478 = vmul.f32 %v1462, %v1476
      %v1480 = vlaneseq
      %v1481 = vshrl.u32 %v1480, 7
      %v1482 = vsub.s32 0, %v1481
      %v1483 = vrot.slane %v1451, %v1482
      %v1485 = vmul.f32 %v1477, %v1483
      %v1486 = vmul.f32 %v1478, %v1483
      %v1488 = vlaneseq
      %v1489 = vshrl.u32 %v1488, 7
      %v1490 = vsub.s32 0, %v1489
      %v1491 = vrot.slane %v1452, %v1490
      %v1493 = vadd.f32 %v1485, %v1491
      %v1494 = vadd.f32 %v1486, %v1491
      %v1495 = vpack.c.bf16 %v1494, %v1493
      %v1497 = vunpack.c.l.b16 %v1495
      %v1498 = vunpack.c.h.b16 %v1495
      %v1499 = vpack.c.b16 %v1497, %v1497
      %v1500 = vpack.c.b16 %v1498, %v1498
      %vm1503 = vcmask 257024
      %1504 = vst.msk [vmem:[%s548] sm:$0xf] %vm1503, %v1499
      %vm1505 = vcmask 253952
      %1506 = vst.msk [vmem:[%s548 + $0x4] sm:$0x1] %vm1505, %v1500
      %p1507 = scmp.lt.s32.totalorder %s28, 1
      %s1508 = scalar_select %p1507, %s28, 1
      %s1509 = smul.addr %s1508, 2
      %s1510 = smul.addr %s1509, 4
      %s1511 = scalar_lea.vmem %s17, %s1510
      // Predicated region
      $region89: #{run.5} parent=87 // pred_check
        %p1512 = pneg %p408
      $region90: #{run.5} parent=87 // pred_check_branch
        %1514 = sbr.rel (%p1512) target = $region92
      $region91: #{run.5} parent=87 // pred_region
        _
      $region92: #{run.5} parent=87 // pred_fallthru
        _
    $region88: #{run.5} parent=5 // pred_fallthru
      _
    %p1515 = scmp.le.s32.totalorder 2, %s23
    // Predicated region
    $region93: #{run.5} parent=5 // pred_check
      %p1516 = pneg %p1515
    $region94: #{run.5} parent=5 // pred_check_branch
      %1518 = sbr.rel (%p1516) target = $region96
    $region95: #{run.5} parent=5 // pred_region
      %s1519 = ssub.s32 %s23, 2
      // Predicated region
      $region97: #{run.5} parent=95 // pred_check
        %p1520 = pneg %p414
      $region98: #{run.5} parent=95 // pred_check_branch
        %1522 = sbr.rel (%p1520) target = $region100
      $region99: #{run.5} parent=95 // pred_region
        %p1523 = scmp.lt.s32.totalorder %s29, 1
        %s1524 = scalar_select %p1523, %s29, 1
        %s1525 = smul.addr %s1524, 2
        %s1526 = smul.addr %s1525, 4
        %s1527 = scalar_lea.vmem %s17, %s1526
      $region100: #{run.5} parent=95 // pred_fallthru
        _
    $region96: #{run.5} parent=5 // pred_fallthru
      _
  $region6: #{run.5} parent=0 // loop_footer
    %s27 = sadd.s32 1, %s23
  $region7: #{run.5} parent=0 // loop_footer_branch
    %22 = sbr.rel target = $region3
  $region8: #{run.5} parent=0 // loop_exit
    _

// kernel: run.7
$region0: #{run.7}
  #allocation0 [shape = 'u32[]', space=smem, size = 0x4, offset = 0x4, fixed_abs, tag = 'smem constant byte address 0x4 - core index']
  #allocation1 [shape = 'u32[144,128]{1,0:T(1,128)}', space=vmem, size = 0x12000, scoped, tag = 'internal scratch']
  #allocation2 [shape = 'f32[8,32]{1,0:T(8,128)}', space=vmem, size = 0x1000, scoped, tag = 'scratch operand']
  %s0 = inlined_call_operand.vmem [shape: bf16[2,8,32], index: 0, kind: input, shape index: {}]
  %s1 = inlined_call_operand.vmem [shape: bf16[2,10,32], index: 1, kind: input, shape index: {}]
  %s2 = inlined_call_operand.vmem [shape: f32[8,8], index: 2, kind: input, shape index: {}]
  %s3 = inlined_call_operand.vmem [shape: f32[2,8], index: 3, kind: input, shape index: {}]
  %s4 = inlined_call_operand.vmem [shape: f32[2,10], index: 4, kind: input, shape index: {}]
  %s5 = inlined_call_operand.vmem [shape: bf16[32,96], index: 5, kind: input, shape index: {}]
  %s6 = inlined_call_operand.vmem [shape: f32[1,96], index: 6, kind: input, shape index: {}]
  %s7 = inlined_call_operand.vmem [shape: bf16[32,32], index: 7, kind: input, shape index: {}]
  %s8 = inlined_call_operand.vmem [shape: f32[1,32], index: 8, kind: input, shape index: {}]
  %s9 = inlined_call_operand.vmem [shape: f32[1,32], index: 9, kind: input, shape index: {}]
  %s10 = inlined_call_operand.vmem [shape: f32[1,32], index: 10, kind: input, shape index: {}]
  %s11 = inlined_call_operand.vmem [shape: bf16[32,96], index: 11, kind: input, shape index: {}]
  %s12 = inlined_call_operand.vmem [shape: f32[1,96], index: 12, kind: input, shape index: {}]
  %s13 = inlined_call_operand.vmem [shape: bf16[32,32], index: 13, kind: input, shape index: {}]
  %s14 = inlined_call_operand.vmem [shape: f32[1,32], index: 14, kind: input, shape index: {}]
  %s15 = inlined_call_operand.vmem [shape: f32[1,32], index: 15, kind: input, shape index: {}]
  %s16 = inlined_call_operand.vmem [shape: f32[1,32], index: 16, kind: input, shape index: {}]
  %s17 = inlined_call_operand.vmem [shape: bf16[32,64], index: 17, kind: input, shape index: {}]
  %s18 = inlined_call_operand.vmem [shape: f32[1,64], index: 18, kind: input, shape index: {}]
  %s19 = inlined_call_operand.vmem [shape: bf16[64,32], index: 19, kind: input, shape index: {}]
  %s20 = inlined_call_operand.vmem [shape: f32[1,32], index: 20, kind: input, shape index: {}]
  %s21 = inlined_call_operand.vmem [shape: f32[1,32], index: 21, kind: input, shape index: {}, may-alias: {21,23}]
  %s22 = inlined_call_operand.vmem [shape: f32[1,32], index: 22, kind: input, shape index: {}, may-alias: {22,24}]
  %s23 = inlined_call_operand.vmem [shape: f32[1,32], index: 23, kind: input, shape index: {}, may-alias: {21,23}]
  %s24 = inlined_call_operand.vmem [shape: f32[1,32], index: 24, kind: input, shape index: {}, may-alias: {22,24}]
  %s25 = inlined_call_operand.vmem [shape: bf16[2,8,32], index: 25, kind: output, shape index: {}]
  %s26 = sld [smem:[#allocation0]]
  $region133: #{run.7} parent=0
    _
  %s28 = ssub.s32 1, %s26
  %s29 = scalar_select 0, %s28, %s26
  loop: start=0, step=1, limit=4
  $region2: #{run.7} parent=0 // loop_pre_header
    _
  $region3: #{run.7} parent=0 // loop_header
    %s31 = sphi 0, %s35
    %p32 = scmp.ge.s32.totalorder %s31, 4
    %s41 = sphi 0, %s43
    %s44 = sphi 0, %s41
    %s45 = sphi 0, %s44
    %s61 = sphi 0, %s45
    %s67 = sphi 0, %s69
    %s70 = sphi 0, %s67
    %s71 = sphi 0, %s70
    %s87 = sphi 0, %s71
    %s91 = sphi 0, %s91
    %s93 = sphi 0, %s91
    %s94 = sphi 0, %s93
    %s108 = sphi 0, %s94
    %s112 = sphi 0, %s112
    %s114 = sphi 0, %s112
    %s115 = sphi 0, %s114
    %s129 = sphi 0, %s115
    %s133 = sphi 0, %s133
    %s135 = sphi 0, %s133
    %s136 = sphi 0, %s135
    %s150 = sphi 0, %s136
    %s154 = sphi 0, %s154
    %s156 = sphi 0, %s154
    %s157 = sphi 0, %s156
    %s171 = sphi 0, %s157
    %s175 = sphi 0, %s175
    %s177 = sphi 0, %s175
    %s178 = sphi 0, %s177
    %s192 = sphi 0, %s178
    %s196 = sphi 0, %s196
    %s198 = sphi 0, %s196
    %s199 = sphi 0, %s198
    %s213 = sphi 0, %s199
    %s217 = sphi 0, %s217
    %s219 = sphi 0, %s217
    %s220 = sphi 0, %s219
    %s234 = sphi 0, %s220
    %s238 = sphi 0, %s238
    %s240 = sphi 0, %s238
    %s241 = sphi 0, %s240
    %s255 = sphi 0, %s241
    %s259 = sphi 0, %s259
    %s261 = sphi 0, %s259
    %s262 = sphi 0, %s261
    %s276 = sphi 0, %s262
    %s280 = sphi 0, %s280
    %s282 = sphi 0, %s280
    %s283 = sphi 0, %s282
    %s297 = sphi 0, %s283
    %s301 = sphi 0, %s301
    %s303 = sphi 0, %s301
    %s304 = sphi 0, %s303
    %s318 = sphi 0, %s304
    %s322 = sphi 0, %s322
    %s324 = sphi 0, %s322
    %s325 = sphi 0, %s324
    %s339 = sphi 0, %s325
    %s343 = sphi 0, %s343
    %s345 = sphi 0, %s343
    %s346 = sphi 0, %s345
    %s360 = sphi 0, %s346
    %s364 = sphi 0, %s364
    %s366 = sphi 0, %s364
    %s367 = sphi 0, %s366
    %s381 = sphi 0, %s367
    %s385 = sphi 0, %s385
    %s387 = sphi 0, %s385
    %s388 = sphi 0, %s387
    %s402 = sphi 0, %s388
    %s406 = sphi 0, %s406
    %s408 = sphi 0, %s406
    %s409 = sphi 0, %s408
    %s423 = sphi 0, %s409
    %s427 = sphi 0, %s427
    %s429 = sphi 0, %s427
    %s430 = sphi 0, %s429
    %s444 = sphi 0, %s430
    %s448 = sphi 0, %s448
    %s450 = sphi 0, %s448
    %s451 = sphi 0, %s450
    %s465 = sphi 0, %s451
    %s469 = sphi 0, %s469
    %s471 = sphi 0, %s469
    %s472 = sphi 0, %s471
    %s486 = sphi 0, %s472
    %s490 = sphi 0, %s490
    %s492 = sphi 0, %s490
    %s493 = sphi 0, %s492
    %s507 = sphi 0, %s493
    %s511 = sphi 0, %s511
    %s513 = sphi 0, %s511
    %s514 = sphi 0, %s513
    %s528 = sphi 0, %s514
    %s532 = sphi 0, %s532
    %s534 = sphi 0, %s532
    %s535 = sphi 0, %s534
    %s549 = sphi 0, %s535
    %s553 = sphi 0, %s553
    %s555 = sphi 0, %s553
    %s556 = sphi 0, %s555
    %s570 = sphi 0, %s556
    %s576 = sphi 0, %s578
    %s579 = sphi 0, %s576
    %s580 = sphi 0, %s579
    %s596 = sphi 0, %s580
  $region4: #{run.7} parent=0 // loop_header_branch
    %34 = sbr.rel (%p32) target = $region8
  $region5: #{run.7} parent=0 // loop_body
    %s36 = ssub.s32 %s31, 1
    %s37 = ssub.s32 %s31, 2
    %s38 = sadd.s32 %s31, 1
    %s39 = ssub.s32 %s31, %s38
    %p40 = scmp.eq.s32.totalorder %s39, 0
    %s42 = sadd.s32 %s41, 1
    %s43 = scalar_select %p40, %s41, %s42
    %p46 = pneg %p40
    %p47 = scmp.eq.s32.totalorder %s31, 1
    %p48 = por %p46, %p47
    %p49 = scmp.ne.s32.totalorder %s41, %s44
    %p50 = scmp.eq.s32.totalorder %s31, 0
    %p51 = por %p49, %p50
    %p52 = scmp.ne.s32.totalorder %s41, %s44
    %p53 = scmp.eq.s32.totalorder %s36, 1
    %p54 = por %p52, %p53
    %p55 = scmp.ne.s32.totalorder %s44, %s45
    %p56 = scmp.eq.s32.totalorder %s36, 0
    %p57 = por %p55, %p56
    %p58 = scmp.ne.s32.totalorder %s44, %s45
    %p59 = scmp.eq.s32.totalorder %s37, 1
    %p60 = por %p58, %p59
    %p62 = scmp.ne.s32.totalorder %s45, %s61
    %p63 = scmp.eq.s32.totalorder %s37, 0
    %p64 = por %p62, %p63
    %s65 = ssub.s32 %s31, %s38
    %p66 = scmp.eq.s32.totalorder %s65, 0
    %s68 = sadd.s32 %s67, 1
    %s69 = scalar_select %p66, %s67, %s68
    %p72 = pneg %p66
    %p73 = scmp.eq.s32.totalorder %s31, 1
    %p74 = por %p72, %p73
    %p75 = scmp.ne.s32.totalorder %s67, %s70
    %p76 = scmp.eq.s32.totalorder %s31, 0
    %p77 = por %p75, %p76
    %p78 = scmp.ne.s32.totalorder %s67, %s70
    %p79 = scmp.eq.s32.totalorder %s36, 1
    %p80 = por %p78, %p79
    %p81 = scmp.ne.s32.totalorder %s70, %s71
    %p82 = scmp.eq.s32.totalorder %s36, 0
    %p83 = por %p81, %p82
    %p84 = scmp.ne.s32.totalorder %s70, %s71
    %p85 = scmp.eq.s32.totalorder %s37, 1
    %p86 = por %p84, %p85
    %p88 = scmp.ne.s32.totalorder %s71, %s87
    %p89 = scmp.eq.s32.totalorder %s37, 0
    %p90 = por %p88, %p89
    %s92 = sadd.s32 %s91, 1
    %p95 = scmp.eq.s32.totalorder %s31, 1
    %p96 = scmp.ne.s32.totalorder %s91, %s93
    %p97 = scmp.eq.s32.totalorder %s31, 0
    %p98 = por %p96, %p97
    %p99 = scmp.ne.s32.totalorder %s91, %s93
    %p100 = scmp.eq.s32.totalorder %s36, 1
    %p101 = por %p99, %p100
    %p102 = scmp.ne.s32.totalorder %s93, %s94
    %p103 = scmp.eq.s32.totalorder %s36, 0
    %p104 = por %p102, %p103
    %p105 = scmp.ne.s32.totalorder %s93, %s94
    %p106 = scmp.eq.s32.totalorder %s37, 1
    %p107 = por %p105, %p106
    %p109 = scmp.ne.s32.totalorder %s94, %s108
    %p110 = scmp.eq.s32.totalorder %s37, 0
    %p111 = por %p109, %p110
    %s113 = sadd.s32 %s112, 1
    %p116 = scmp.eq.s32.totalorder %s31, 1
    %p117 = scmp.ne.s32.totalorder %s112, %s114
    %p118 = scmp.eq.s32.totalorder %s31, 0
    %p119 = por %p117, %p118
    %p120 = scmp.ne.s32.totalorder %s112, %s114
    %p121 = scmp.eq.s32.totalorder %s36, 1
    %p122 = por %p120, %p121
    %p123 = scmp.ne.s32.totalorder %s114, %s115
    %p124 = scmp.eq.s32.totalorder %s36, 0
    %p125 = por %p123, %p124
    %p126 = scmp.ne.s32.totalorder %s114, %s115
    %p127 = scmp.eq.s32.totalorder %s37, 1
    %p128 = por %p126, %p127
    %p130 = scmp.ne.s32.totalorder %s115, %s129
    %p131 = scmp.eq.s32.totalorder %s37, 0
    %p132 = por %p130, %p131
    %s134 = sadd.s32 %s133, 1
    %p137 = scmp.eq.s32.totalorder %s31, 1
    %p138 = scmp.ne.s32.totalorder %s133, %s135
    %p139 = scmp.eq.s32.totalorder %s31, 0
    %p140 = por %p138, %p139
    %p141 = scmp.ne.s32.totalorder %s133, %s135
    %p142 = scmp.eq.s32.totalorder %s36, 1
    %p143 = por %p141, %p142
    %p144 = scmp.ne.s32.totalorder %s135, %s136
    %p145 = scmp.eq.s32.totalorder %s36, 0
    %p146 = por %p144, %p145
    %p147 = scmp.ne.s32.totalorder %s135, %s136
    %p148 = scmp.eq.s32.totalorder %s37, 1
    %p149 = por %p147, %p148
    %p151 = scmp.ne.s32.totalorder %s136, %s150
    %p152 = scmp.eq.s32.totalorder %s37, 0
    %p153 = por %p151, %p152
    %s155 = sadd.s32 %s154, 1
    %p158 = scmp.eq.s32.totalorder %s31, 1
    %p159 = scmp.ne.s32.totalorder %s154, %s156
    %p160 = scmp.eq.s32.totalorder %s31, 0
    %p161 = por %p159, %p160
    %p162 = scmp.ne.s32.totalorder %s154, %s156
    %p163 = scmp.eq.s32.totalorder %s36, 1
    %p164 = por %p162, %p163
    %p165 = scmp.ne.s32.totalorder %s156, %s157
    %p166 = scmp.eq.s32.totalorder %s36, 0
    %p167 = por %p165, %p166
    %p168 = scmp.ne.s32.totalorder %s156, %s157
    %p169 = scmp.eq.s32.totalorder %s37, 1
    %p170 = por %p168, %p169
    %p172 = scmp.ne.s32.totalorder %s157, %s171
    %p173 = scmp.eq.s32.totalorder %s37, 0
    %p174 = por %p172, %p173
    %s176 = sadd.s32 %s175, 1
    %p179 = scmp.eq.s32.totalorder %s31, 1
    %p180 = scmp.ne.s32.totalorder %s175, %s177
    %p181 = scmp.eq.s32.totalorder %s31, 0
    %p182 = por %p180, %p181
    %p183 = scmp.ne.s32.totalorder %s175, %s177
    %p184 = scmp.eq.s32.totalorder %s36, 1
    %p185 = por %p183, %p184
    %p186 = scmp.ne.s32.totalorder %s177, %s178
    %p187 = scmp.eq.s32.totalorder %s36, 0
    %p188 = por %p186, %p187
    %p189 = scmp.ne.s32.totalorder %s177, %s178
    %p190 = scmp.eq.s32.totalorder %s37, 1
    %p191 = por %p189, %p190
    %p193 = scmp.ne.s32.totalorder %s178, %s192
    %p194 = scmp.eq.s32.totalorder %s37, 0
    %p195 = por %p193, %p194
    %s197 = sadd.s32 %s196, 1
    %p200 = scmp.eq.s32.totalorder %s31, 1
    %p201 = scmp.ne.s32.totalorder %s196, %s198
    %p202 = scmp.eq.s32.totalorder %s31, 0
    %p203 = por %p201, %p202
    %p204 = scmp.ne.s32.totalorder %s196, %s198
    %p205 = scmp.eq.s32.totalorder %s36, 1
    %p206 = por %p204, %p205
    %p207 = scmp.ne.s32.totalorder %s198, %s199
    %p208 = scmp.eq.s32.totalorder %s36, 0
    %p209 = por %p207, %p208
    %p210 = scmp.ne.s32.totalorder %s198, %s199
    %p211 = scmp.eq.s32.totalorder %s37, 1
    %p212 = por %p210, %p211
    %p214 = scmp.ne.s32.totalorder %s199, %s213
    %p215 = scmp.eq.s32.totalorder %s37, 0
    %p216 = por %p214, %p215
    %s218 = sadd.s32 %s217, 1
    %p221 = scmp.eq.s32.totalorder %s31, 1
    %p222 = scmp.ne.s32.totalorder %s217, %s219
    %p223 = scmp.eq.s32.totalorder %s31, 0
    %p224 = por %p222, %p223
    %p225 = scmp.ne.s32.totalorder %s217, %s219
    %p226 = scmp.eq.s32.totalorder %s36, 1
    %p227 = por %p225, %p226
    %p228 = scmp.ne.s32.totalorder %s219, %s220
    %p229 = scmp.eq.s32.totalorder %s36, 0
    %p230 = por %p228, %p229
    %p231 = scmp.ne.s32.totalorder %s219, %s220
    %p232 = scmp.eq.s32.totalorder %s37, 1
    %p233 = por %p231, %p232
    %p235 = scmp.ne.s32.totalorder %s220, %s234
    %p236 = scmp.eq.s32.totalorder %s37, 0
    %p237 = por %p235, %p236
    %s239 = sadd.s32 %s238, 1
    %p242 = scmp.eq.s32.totalorder %s31, 1
    %p243 = scmp.ne.s32.totalorder %s238, %s240
    %p244 = scmp.eq.s32.totalorder %s31, 0
    %p245 = por %p243, %p244
    %p246 = scmp.ne.s32.totalorder %s238, %s240
    %p247 = scmp.eq.s32.totalorder %s36, 1
    %p248 = por %p246, %p247
    %p249 = scmp.ne.s32.totalorder %s240, %s241
    %p250 = scmp.eq.s32.totalorder %s36, 0
    %p251 = por %p249, %p250
    %p252 = scmp.ne.s32.totalorder %s240, %s241
    %p253 = scmp.eq.s32.totalorder %s37, 1
    %p254 = por %p252, %p253
    %p256 = scmp.ne.s32.totalorder %s241, %s255
    %p257 = scmp.eq.s32.totalorder %s37, 0
    %p258 = por %p256, %p257
    %s260 = sadd.s32 %s259, 1
    %p263 = scmp.eq.s32.totalorder %s31, 1
    %p264 = scmp.ne.s32.totalorder %s259, %s261
    %p265 = scmp.eq.s32.totalorder %s31, 0
    %p266 = por %p264, %p265
    %p267 = scmp.ne.s32.totalorder %s259, %s261
    %p268 = scmp.eq.s32.totalorder %s36, 1
    %p269 = por %p267, %p268
    %p270 = scmp.ne.s32.totalorder %s261, %s262
    %p271 = scmp.eq.s32.totalorder %s36, 0
    %p272 = por %p270, %p271
    %p273 = scmp.ne.s32.totalorder %s261, %s262
    %p274 = scmp.eq.s32.totalorder %s37, 1
    %p275 = por %p273, %p274
    %p277 = scmp.ne.s32.totalorder %s262, %s276
    %p278 = scmp.eq.s32.totalorder %s37, 0
    %p279 = por %p277, %p278
    %s281 = sadd.s32 %s280, 1
    %p284 = scmp.eq.s32.totalorder %s31, 1
    %p285 = scmp.ne.s32.totalorder %s280, %s282
    %p286 = scmp.eq.s32.totalorder %s31, 0
    %p287 = por %p285, %p286
    %p288 = scmp.ne.s32.totalorder %s280, %s282
    %p289 = scmp.eq.s32.totalorder %s36, 1
    %p290 = por %p288, %p289
    %p291 = scmp.ne.s32.totalorder %s282, %s283
    %p292 = scmp.eq.s32.totalorder %s36, 0
    %p293 = por %p291, %p292
    %p294 = scmp.ne.s32.totalorder %s282, %s283
    %p295 = scmp.eq.s32.totalorder %s37, 1
    %p296 = por %p294, %p295
    %p298 = scmp.ne.s32.totalorder %s283, %s297
    %p299 = scmp.eq.s32.totalorder %s37, 0
    %p300 = por %p298, %p299
    %s302 = sadd.s32 %s301, 1
    %p305 = scmp.eq.s32.totalorder %s31, 1
    %p306 = scmp.ne.s32.totalorder %s301, %s303
    %p307 = scmp.eq.s32.totalorder %s31, 0
    %p308 = por %p306, %p307
    %p309 = scmp.ne.s32.totalorder %s301, %s303
    %p310 = scmp.eq.s32.totalorder %s36, 1
    %p311 = por %p309, %p310
    %p312 = scmp.ne.s32.totalorder %s303, %s304
    %p313 = scmp.eq.s32.totalorder %s36, 0
    %p314 = por %p312, %p313
    %p315 = scmp.ne.s32.totalorder %s303, %s304
    %p316 = scmp.eq.s32.totalorder %s37, 1
    %p317 = por %p315, %p316
    %p319 = scmp.ne.s32.totalorder %s304, %s318
    %p320 = scmp.eq.s32.totalorder %s37, 0
    %p321 = por %p319, %p320
    %s323 = sadd.s32 %s322, 1
    %p326 = scmp.eq.s32.totalorder %s31, 1
    %p327 = scmp.ne.s32.totalorder %s322, %s324
    %p328 = scmp.eq.s32.totalorder %s31, 0
    %p329 = por %p327, %p328
    %p330 = scmp.ne.s32.totalorder %s322, %s324
    %p331 = scmp.eq.s32.totalorder %s36, 1
    %p332 = por %p330, %p331
    %p333 = scmp.ne.s32.totalorder %s324, %s325
    %p334 = scmp.eq.s32.totalorder %s36, 0
    %p335 = por %p333, %p334
    %p336 = scmp.ne.s32.totalorder %s324, %s325
    %p337 = scmp.eq.s32.totalorder %s37, 1
    %p338 = por %p336, %p337
    %p340 = scmp.ne.s32.totalorder %s325, %s339
    %p341 = scmp.eq.s32.totalorder %s37, 0
    %p342 = por %p340, %p341
    %s344 = sadd.s32 %s343, 1
    %p347 = scmp.eq.s32.totalorder %s31, 1
    %p348 = scmp.ne.s32.totalorder %s343, %s345
    %p349 = scmp.eq.s32.totalorder %s31, 0
    %p350 = por %p348, %p349
    %p351 = scmp.ne.s32.totalorder %s343, %s345
    %p352 = scmp.eq.s32.totalorder %s36, 1
    %p353 = por %p351, %p352
    %p354 = scmp.ne.s32.totalorder %s345, %s346
    %p355 = scmp.eq.s32.totalorder %s36, 0
    %p356 = por %p354, %p355
    %p357 = scmp.ne.s32.totalorder %s345, %s346
    %p358 = scmp.eq.s32.totalorder %s37, 1
    %p359 = por %p357, %p358
    %p361 = scmp.ne.s32.totalorder %s346, %s360
    %p362 = scmp.eq.s32.totalorder %s37, 0
    %p363 = por %p361, %p362
    %s365 = sadd.s32 %s364, 1
    %p368 = scmp.eq.s32.totalorder %s31, 1
    %p369 = scmp.ne.s32.totalorder %s364, %s366
    %p370 = scmp.eq.s32.totalorder %s31, 0
    %p371 = por %p369, %p370
    %p372 = scmp.ne.s32.totalorder %s364, %s366
    %p373 = scmp.eq.s32.totalorder %s36, 1
    %p374 = por %p372, %p373
    %p375 = scmp.ne.s32.totalorder %s366, %s367
    %p376 = scmp.eq.s32.totalorder %s36, 0
    %p377 = por %p375, %p376
    %p378 = scmp.ne.s32.totalorder %s366, %s367
    %p379 = scmp.eq.s32.totalorder %s37, 1
    %p380 = por %p378, %p379
    %p382 = scmp.ne.s32.totalorder %s367, %s381
    %p383 = scmp.eq.s32.totalorder %s37, 0
    %p384 = por %p382, %p383
    %s386 = sadd.s32 %s385, 1
    %p389 = scmp.eq.s32.totalorder %s31, 1
    %p390 = scmp.ne.s32.totalorder %s385, %s387
    %p391 = scmp.eq.s32.totalorder %s31, 0
    %p392 = por %p390, %p391
    %p393 = scmp.ne.s32.totalorder %s385, %s387
    %p394 = scmp.eq.s32.totalorder %s36, 1
    %p395 = por %p393, %p394
    %p396 = scmp.ne.s32.totalorder %s387, %s388
    %p397 = scmp.eq.s32.totalorder %s36, 0
    %p398 = por %p396, %p397
    %p399 = scmp.ne.s32.totalorder %s387, %s388
    %p400 = scmp.eq.s32.totalorder %s37, 1
    %p401 = por %p399, %p400
    %p403 = scmp.ne.s32.totalorder %s388, %s402
    %p404 = scmp.eq.s32.totalorder %s37, 0
    %p405 = por %p403, %p404
    %s407 = sadd.s32 %s406, 1
    %p410 = scmp.eq.s32.totalorder %s31, 1
    %p411 = scmp.ne.s32.totalorder %s406, %s408
    %p412 = scmp.eq.s32.totalorder %s31, 0
    %p413 = por %p411, %p412
    %p414 = scmp.ne.s32.totalorder %s406, %s408
    %p415 = scmp.eq.s32.totalorder %s36, 1
    %p416 = por %p414, %p415
    %p417 = scmp.ne.s32.totalorder %s408, %s409
    %p418 = scmp.eq.s32.totalorder %s36, 0
    %p419 = por %p417, %p418
    %p420 = scmp.ne.s32.totalorder %s408, %s409
    %p421 = scmp.eq.s32.totalorder %s37, 1
    %p422 = por %p420, %p421
    %p424 = scmp.ne.s32.totalorder %s409, %s423
    %p425 = scmp.eq.s32.totalorder %s37, 0
    %p426 = por %p424, %p425
    %s428 = sadd.s32 %s427, 1
    %p431 = scmp.eq.s32.totalorder %s31, 1
    %p432 = scmp.ne.s32.totalorder %s427, %s429
    %p433 = scmp.eq.s32.totalorder %s31, 0
    %p434 = por %p432, %p433
    %p435 = scmp.ne.s32.totalorder %s427, %s429
    %p436 = scmp.eq.s32.totalorder %s36, 1
    %p437 = por %p435, %p436
    %p438 = scmp.ne.s32.totalorder %s429, %s430
    %p439 = scmp.eq.s32.totalorder %s36, 0
    %p440 = por %p438, %p439
    %p441 = scmp.ne.s32.totalorder %s429, %s430
    %p442 = scmp.eq.s32.totalorder %s37, 1
    %p443 = por %p441, %p442
    %p445 = scmp.ne.s32.totalorder %s430, %s444
    %p446 = scmp.eq.s32.totalorder %s37, 0
    %p447 = por %p445, %p446
    %s449 = sadd.s32 %s448, 1
    %p452 = scmp.eq.s32.totalorder %s31, 1
    %p453 = scmp.ne.s32.totalorder %s448, %s450
    %p454 = scmp.eq.s32.totalorder %s31, 0
    %p455 = por %p453, %p454
    %p456 = scmp.ne.s32.totalorder %s448, %s450
    %p457 = scmp.eq.s32.totalorder %s36, 1
    %p458 = por %p456, %p457
    %p459 = scmp.ne.s32.totalorder %s450, %s451
    %p460 = scmp.eq.s32.totalorder %s36, 0
    %p461 = por %p459, %p460
    %p462 = scmp.ne.s32.totalorder %s450, %s451
    %p463 = scmp.eq.s32.totalorder %s37, 1
    %p464 = por %p462, %p463
    %p466 = scmp.ne.s32.totalorder %s451, %s465
    %p467 = scmp.eq.s32.totalorder %s37, 0
    %p468 = por %p466, %p467
    %s470 = sadd.s32 %s469, 1
    %p473 = scmp.eq.s32.totalorder %s31, 1
    %p474 = scmp.ne.s32.totalorder %s469, %s471
    %p475 = scmp.eq.s32.totalorder %s31, 0
    %p476 = por %p474, %p475
    %p477 = scmp.ne.s32.totalorder %s469, %s471
    %p478 = scmp.eq.s32.totalorder %s36, 1
    %p479 = por %p477, %p478
    %p480 = scmp.ne.s32.totalorder %s471, %s472
    %p481 = scmp.eq.s32.totalorder %s36, 0
    %p482 = por %p480, %p481
    %p483 = scmp.ne.s32.totalorder %s471, %s472
    %p484 = scmp.eq.s32.totalorder %s37, 1
    %p485 = por %p483, %p484
    %p487 = scmp.ne.s32.totalorder %s472, %s486
    %p488 = scmp.eq.s32.totalorder %s37, 0
    %p489 = por %p487, %p488
    %s491 = sadd.s32 %s490, 1
    %p494 = scmp.eq.s32.totalorder %s31, 1
    %p495 = scmp.ne.s32.totalorder %s490, %s492
    %p496 = scmp.eq.s32.totalorder %s31, 0
    %p497 = por %p495, %p496
    %p498 = scmp.ne.s32.totalorder %s490, %s492
    %p499 = scmp.eq.s32.totalorder %s36, 1
    %p500 = por %p498, %p499
    %p501 = scmp.ne.s32.totalorder %s492, %s493
    %p502 = scmp.eq.s32.totalorder %s36, 0
    %p503 = por %p501, %p502
    %p504 = scmp.ne.s32.totalorder %s492, %s493
    %p505 = scmp.eq.s32.totalorder %s37, 1
    %p506 = por %p504, %p505
    %p508 = scmp.ne.s32.totalorder %s493, %s507
    %p509 = scmp.eq.s32.totalorder %s37, 0
    %p510 = por %p508, %p509
    %s512 = sadd.s32 %s511, 1
    %p515 = scmp.eq.s32.totalorder %s31, 1
    %p516 = scmp.ne.s32.totalorder %s511, %s513
    %p517 = scmp.eq.s32.totalorder %s31, 0
    %p518 = por %p516, %p517
    %p519 = scmp.ne.s32.totalorder %s511, %s513
    %p520 = scmp.eq.s32.totalorder %s36, 1
    %p521 = por %p519, %p520
    %p522 = scmp.ne.s32.totalorder %s513, %s514
    %p523 = scmp.eq.s32.totalorder %s36, 0
    %p524 = por %p522, %p523
    %p525 = scmp.ne.s32.totalorder %s513, %s514
    %p526 = scmp.eq.s32.totalorder %s37, 1
    %p527 = por %p525, %p526
    %p529 = scmp.ne.s32.totalorder %s514, %s528
    %p530 = scmp.eq.s32.totalorder %s37, 0
    %p531 = por %p529, %p530
    %s533 = sadd.s32 %s532, 1
    %p536 = scmp.eq.s32.totalorder %s31, 1
    %p537 = scmp.ne.s32.totalorder %s532, %s534
    %p538 = scmp.eq.s32.totalorder %s31, 0
    %p539 = por %p537, %p538
    %p540 = scmp.ne.s32.totalorder %s532, %s534
    %p541 = scmp.eq.s32.totalorder %s36, 1
    %p542 = por %p540, %p541
    %p543 = scmp.ne.s32.totalorder %s534, %s535
    %p544 = scmp.eq.s32.totalorder %s36, 0
    %p545 = por %p543, %p544
    %p546 = scmp.ne.s32.totalorder %s534, %s535
    %p547 = scmp.eq.s32.totalorder %s37, 1
    %p548 = por %p546, %p547
    %p550 = scmp.ne.s32.totalorder %s535, %s549
    %p551 = scmp.eq.s32.totalorder %s37, 0
    %p552 = por %p550, %p551
    %s554 = sadd.s32 %s553, 1
    %p557 = scmp.eq.s32.totalorder %s31, 1
    %p558 = scmp.ne.s32.totalorder %s553, %s555
    %p559 = scmp.eq.s32.totalorder %s31, 0
    %p560 = por %p558, %p559
    %p561 = scmp.ne.s32.totalorder %s553, %s555
    %p562 = scmp.eq.s32.totalorder %s36, 1
    %p563 = por %p561, %p562
    %p564 = scmp.ne.s32.totalorder %s555, %s556
    %p565 = scmp.eq.s32.totalorder %s36, 0
    %p566 = por %p564, %p565
    %p567 = scmp.ne.s32.totalorder %s555, %s556
    %p568 = scmp.eq.s32.totalorder %s37, 1
    %p569 = por %p567, %p568
    %p571 = scmp.ne.s32.totalorder %s556, %s570
    %p572 = scmp.eq.s32.totalorder %s37, 0
    %p573 = por %p571, %p572
    %s574 = ssub.s32 %s31, %s38
    %p575 = scmp.eq.s32.totalorder %s574, 0
    %s577 = sadd.s32 %s576, 1
    %s578 = scalar_select %p575, %s576, %s577
    %p581 = pneg %p575
    %p582 = scmp.eq.s32.totalorder %s31, 1
    %p583 = por %p581, %p582
    %p584 = scmp.ne.s32.totalorder %s576, %s579
    %p585 = scmp.eq.s32.totalorder %s31, 0
    %p586 = por %p584, %p585
    %p587 = scmp.ne.s32.totalorder %s576, %s579
    %p588 = scmp.eq.s32.totalorder %s36, 1
    %p589 = por %p587, %p588
    %p590 = scmp.ne.s32.totalorder %s579, %s580
    %p591 = scmp.eq.s32.totalorder %s36, 0
    %p592 = por %p590, %p591
    %p593 = scmp.ne.s32.totalorder %s579, %s580
    %p594 = scmp.eq.s32.totalorder %s37, 1
    %p595 = por %p593, %p594
    %p597 = scmp.ne.s32.totalorder %s580, %s596
    %p598 = scmp.eq.s32.totalorder %s37, 0
    %p599 = por %p597, %p598
    %p600 = scmp.le.s32.totalorder 1, %s31
    %p601 = scmp.lt.s32.totalorder %s31, 3
    %p602 = pnand %p600, %p601
    %p603 = pneg %p602
    // Predicated region
    $region9: #{run.7} parent=5 // pred_check
      _
    $region10: #{run.7} parent=5 // pred_check_branch
      %605 = sbr.rel (%p602) target = $region12
    $region11: #{run.7} parent=5 // pred_region
      %s606 = ssub.s32 %s31, 1
      // Predicated region
      $region13: #{run.7} parent=11 // pred_check
        %p607 = pneg %p104
      $region14: #{run.7} parent=11 // pred_check_branch
        %609 = sbr.rel (%p607) target = $region16
      $region15: #{run.7} parent=11 // pred_region
        _
      $region16: #{run.7} parent=11 // pred_fallthru
        _
      // Predicated region
      $region17: #{run.7} parent=11 // pred_check
        %p610 = pneg %p125
      $region18: #{run.7} parent=11 // pred_check_branch
        %612 = sbr.rel (%p610) target = $region20
      $region19: #{run.7} parent=11 // pred_region
        _
      $region20: #{run.7} parent=11 // pred_fallthru
        _
      // Predicated region
      $region21: #{run.7} parent=11 // pred_check
        %p613 = pneg %p146
      $region22: #{run.7} parent=11 // pred_check_branch
        %615 = sbr.rel (%p613) target = $region24
      $region23: #{run.7} parent=11 // pred_region
        _
      $region24: #{run.7} parent=11 // pred_fallthru
        _
      // Predicated region
      $region25: #{run.7} parent=11 // pred_check
        %p616 = pneg %p167
      $region26: #{run.7} parent=11 // pred_check_branch
        %618 = sbr.rel (%p616) target = $region28
      $region27: #{run.7} parent=11 // pred_region
        _
      $region28: #{run.7} parent=11 // pred_fallthru
        _
      // Predicated region
      $region29: #{run.7} parent=11 // pred_check
        %p619 = pneg %p188
      $region30: #{run.7} parent=11 // pred_check_branch
        %621 = sbr.rel (%p619) target = $region32
      $region31: #{run.7} parent=11 // pred_region
        _
      $region32: #{run.7} parent=11 // pred_fallthru
        _
      // Predicated region
      $region33: #{run.7} parent=11 // pred_check
        %p622 = pneg %p209
      $region34: #{run.7} parent=11 // pred_check_branch
        %624 = sbr.rel (%p622) target = $region36
      $region35: #{run.7} parent=11 // pred_region
        _
      $region36: #{run.7} parent=11 // pred_fallthru
        _
      // Predicated region
      $region37: #{run.7} parent=11 // pred_check
        %p625 = pneg %p230
      $region38: #{run.7} parent=11 // pred_check_branch
        %627 = sbr.rel (%p625) target = $region40
      $region39: #{run.7} parent=11 // pred_region
        _
      $region40: #{run.7} parent=11 // pred_fallthru
        _
      // Predicated region
      $region41: #{run.7} parent=11 // pred_check
        %p628 = pneg %p251
      $region42: #{run.7} parent=11 // pred_check_branch
        %630 = sbr.rel (%p628) target = $region44
      $region43: #{run.7} parent=11 // pred_region
        _
      $region44: #{run.7} parent=11 // pred_fallthru
        _
      // Predicated region
      $region45: #{run.7} parent=11 // pred_check
        %p631 = pneg %p272
      $region46: #{run.7} parent=11 // pred_check_branch
        %633 = sbr.rel (%p631) target = $region48
      $region47: #{run.7} parent=11 // pred_region
        _
      $region48: #{run.7} parent=11 // pred_fallthru
        _
      // Predicated region
      $region49: #{run.7} parent=11 // pred_check
        %p634 = pneg %p293
      $region50: #{run.7} parent=11 // pred_check_branch
        %636 = sbr.rel (%p634) target = $region52
      $region51: #{run.7} parent=11 // pred_region
        _
      $region52: #{run.7} parent=11 // pred_fallthru
        _
      // Predicated region
      $region53: #{run.7} parent=11 // pred_check
        %p637 = pneg %p314
      $region54: #{run.7} parent=11 // pred_check_branch
        %639 = sbr.rel (%p637) target = $region56
      $region55: #{run.7} parent=11 // pred_region
        _
      $region56: #{run.7} parent=11 // pred_fallthru
        _
      // Predicated region
      $region57: #{run.7} parent=11 // pred_check
        %p640 = pneg %p335
      $region58: #{run.7} parent=11 // pred_check_branch
        %642 = sbr.rel (%p640) target = $region60
      $region59: #{run.7} parent=11 // pred_region
        _
      $region60: #{run.7} parent=11 // pred_fallthru
        _
      // Predicated region
      $region61: #{run.7} parent=11 // pred_check
        %p643 = pneg %p356
      $region62: #{run.7} parent=11 // pred_check_branch
        %645 = sbr.rel (%p643) target = $region64
      $region63: #{run.7} parent=11 // pred_region
        _
      $region64: #{run.7} parent=11 // pred_fallthru
        _
      // Predicated region
      $region65: #{run.7} parent=11 // pred_check
        %p646 = pneg %p377
      $region66: #{run.7} parent=11 // pred_check_branch
        %648 = sbr.rel (%p646) target = $region68
      $region67: #{run.7} parent=11 // pred_region
        _
      $region68: #{run.7} parent=11 // pred_fallthru
        _
      // Predicated region
      $region69: #{run.7} parent=11 // pred_check
        %p649 = pneg %p398
      $region70: #{run.7} parent=11 // pred_check_branch
        %651 = sbr.rel (%p649) target = $region72
      $region71: #{run.7} parent=11 // pred_region
        _
      $region72: #{run.7} parent=11 // pred_fallthru
        _
      // Predicated region
      $region73: #{run.7} parent=11 // pred_check
        %p652 = pneg %p419
      $region74: #{run.7} parent=11 // pred_check_branch
        %654 = sbr.rel (%p652) target = $region76
      $region75: #{run.7} parent=11 // pred_region
        _
      $region76: #{run.7} parent=11 // pred_fallthru
        _
      // Predicated region
      $region77: #{run.7} parent=11 // pred_check
        %p655 = pneg %p440
      $region78: #{run.7} parent=11 // pred_check_branch
        %657 = sbr.rel (%p655) target = $region80
      $region79: #{run.7} parent=11 // pred_region
        _
      $region80: #{run.7} parent=11 // pred_fallthru
        _
      // Predicated region
      $region81: #{run.7} parent=11 // pred_check
        %p658 = pneg %p461
      $region82: #{run.7} parent=11 // pred_check_branch
        %660 = sbr.rel (%p658) target = $region84
      $region83: #{run.7} parent=11 // pred_region
        _
      $region84: #{run.7} parent=11 // pred_fallthru
        _
      // Predicated region
      $region85: #{run.7} parent=11 // pred_check
        %p661 = pneg %p482
      $region86: #{run.7} parent=11 // pred_check_branch
        %663 = sbr.rel (%p661) target = $region88
      $region87: #{run.7} parent=11 // pred_region
        _
      $region88: #{run.7} parent=11 // pred_fallthru
        _
      // Predicated region
      $region89: #{run.7} parent=11 // pred_check
        %p664 = pneg %p503
      $region90: #{run.7} parent=11 // pred_check_branch
        %666 = sbr.rel (%p664) target = $region92
      $region91: #{run.7} parent=11 // pred_region
        _
      $region92: #{run.7} parent=11 // pred_fallthru
        _
      // Predicated region
      $region93: #{run.7} parent=11 // pred_check
        %p667 = pneg %p524
      $region94: #{run.7} parent=11 // pred_check_branch
        %669 = sbr.rel (%p667) target = $region96
      $region95: #{run.7} parent=11 // pred_region
        _
      $region96: #{run.7} parent=11 // pred_fallthru
        _
      // Predicated region
      $region97: #{run.7} parent=11 // pred_check
        %p670 = pneg %p545
      $region98: #{run.7} parent=11 // pred_check_branch
        %672 = sbr.rel (%p670) target = $region100
      $region99: #{run.7} parent=11 // pred_region
        _
      $region100: #{run.7} parent=11 // pred_fallthru
        _
      // Predicated region
      $region101: #{run.7} parent=11 // pred_check
        %p673 = pneg %p566
      $region102: #{run.7} parent=11 // pred_check_branch
        %675 = sbr.rel (%p673) target = $region104
      $region103: #{run.7} parent=11 // pred_region
        _
      $region104: #{run.7} parent=11 // pred_fallthru
        _
    $region12: #{run.7} parent=5 // pred_fallthru
      _
    %p676 = scmp.lt.s32.totalorder %s31, 2
    // Predicated region
    $region105: #{run.7} parent=5 // pred_check
      %p677 = pneg %p676
    $region106: #{run.7} parent=5 // pred_check_branch
      %679 = sbr.rel (%p677) target = $region108
    $region107: #{run.7} parent=5 // pred_region
      // Predicated region
      $region109: #{run.7} parent=107 // pred_check
        %p680 = pneg %p51
      $region110: #{run.7} parent=107 // pred_check_branch
        %682 = sbr.rel (%p680) target = $region112
      $region111: #{run.7} parent=107 // pred_region
        %p683 = scmp.lt.s32.totalorder %s31, 1
        %s684 = scalar_select %p683, %s31, 1
        %s685 = smul.addr %s684, 4
        %s686 = scalar_lea.vmem %s0, %s685
      $region112: #{run.7} parent=107 // pred_fallthru
        _
      // Predicated region
      $region113: #{run.7} parent=107 // pred_check
        %p687 = pneg %p77
      $region114: #{run.7} parent=107 // pred_check_branch
        %689 = sbr.rel (%p687) target = $region116
      $region115: #{run.7} parent=107 // pred_region
        %p690 = scmp.lt.s32.totalorder %s31, 1
        %s691 = scalar_select %p690, %s31, 1
        %s692 = smul.addr %s691, 2
        %s693 = smul.addr %s692, 4
        %s694 = scalar_lea.vmem %s1, %s693
      $region116: #{run.7} parent=107 // pred_fallthru
        _
    $region108: #{run.7} parent=5 // pred_fallthru
      _
    %p695 = scmp.le.s32.totalorder 1, %s31
    %p696 = scmp.lt.s32.totalorder %s31, 3
    %p697 = pnand %p695, %p696
    %p698 = pneg %p697
    // Predicated region
    $region117: #{run.7} parent=5 // pred_check
      _
    $region118: #{run.7} parent=5 // pred_check_branch
      %700 = sbr.rel (%p697) target = $region120
    $region119: #{run.7} parent=5 // pred_region
      %s701 = ssub.s32 %s31, 1
      %p702 = scmp.lt.s32.totalorder %s36, 1
      %s703 = scalar_select %p702, %s36, 1
      %s704 = smul.addr %s703, 4
      %s705 = scalar_lea.vmem %s0, %s704
      %p706 = pneg %p57
      %p707 = pneg %p54
      %p708 = scmp.lt.s32.totalorder %s36, 1
      %s709 = scalar_select %p708, %s36, 1
      %s710 = smul.addr %s709, 2
      %s711 = smul.addr %s710, 4
      %s712 = scalar_lea.vmem %s1, %s711
      %p713 = pneg %p83
      %p714 = pneg %p80
      %p715 = pneg %p104
      %p716 = pneg %p101
      %p717 = pneg %p125
      %p718 = pneg %p122
      %p719 = pneg %p146
      %p720 = pneg %p143
      %p721 = pneg %p167
      %p722 = pneg %p164
      %p723 = pneg %p188
      %p724 = pneg %p185
      %p725 = pneg %p209
      %p726 = pneg %p206
      %p727 = pneg %p230
      %p728 = pneg %p227
      %p729 = pneg %p251
      %p730 = pneg %p248
      %p731 = pneg %p272
      %p732 = pneg %p269
      %p733 = pneg %p293
      %p734 = pneg %p290
      %p735 = pneg %p314
      %p736 = pneg %p311
      %p737 = pneg %p335
      %p738 = pneg %p332
      %p739 = pneg %p356
      %p740 = pneg %p353
      %p741 = pneg %p377
      %p742 = pneg %p374
      %p743 = pneg %p398
      %p744 = pneg %p395
      %p745 = pneg %p419
      %p746 = pneg %p416
      %p747 = pneg %p440
      %p748 = pneg %p437
      %p749 = pneg %p461
      %p750 = pneg %p458
      %p751 = pneg %p482
      %p752 = pneg %p479
      %p753 = pneg %p503
      %p754 = pneg %p500
      %p755 = pneg %p524
      %p756 = pneg %p521
      %p757 = pneg %p545
      %p758 = pneg %p542
      %p759 = pneg %p566
      %p760 = pneg %p563
      %p761 = pneg %p592
      %p762 = pneg %p589
      %p763 = scmp.lt.s32.totalorder %s36, 1
      %s764 = scalar_select %p763, %s36, 1
      %s765 = smul.addr %s764, 4
      %s766 = scalar_lea.vmem %s25, %s765
      %p767 = scmp.lt.s32.totalorder %s36, 1
      %s768 = scalar_select %p767, %s36, 1
      %s769 = smul.addr %s768, 4
      %s770 = scalar_lea.vmem %s0, %s769
      %p771 = scmp.lt.s32.totalorder %s36, 1
      %s772 = scalar_select %p771, %s36, 1
      %s773 = smul.addr %s772, 2
      %s774 = smul.addr %s773, 4
      %s775 = scalar_lea.vmem %s1, %s774
      %p776 = scmp.lt.s32.totalorder %s36, 1
      %s777 = scalar_select %p776, %s36, 1
      %s778 = smul.addr %s777, 4
      %s779 = scalar_lea.vmem %s25, %s778
      %v781 = vld [vmem:[%s770] sm:$0xf]
      %v782 = vunpack.c.l.bf16 %v781
      %v783 = vld [vmem:[%s775] sm:$0xf]
      %v784 = vld [vmem:[%s775 + $0x4] sm:$0x1]
      %v785 = vld [vmem:[%s5] sm:$0xf]
      %v786 = vld [vmem:[%s5 + $0x4] sm:$0xf]
      %v787 = vld [vmem:[%s5 + $0x8] sm:$0xf]
      %v788 = vld [vmem:[%s5 + $0xc] sm:$0xf]
      %v789 = vld [vmem:[%s6] sm:$0x1]
      %v791 = vlaneseq
      %v792 = vshrl.u32 %v791, 7
      %v793 = vsub.s32 0, %v792
      %v794 = vrot.slane %v789, %v793
      %v800 = vunpack.c.l.b16 %v785
      %v801 = vunpack.c.l.b16 %v786
      %v802 = vunpack.c.l.b16 %v787
      %v803 = vunpack.c.l.b16 %v788
      %v804 = vpack.c.b16 %v801, %v800
      %v805 = vpack.c.b16 %v803, %v802
      %vm808 = vcmask 261120
      %v810 = vsel %vm808, %v781, 0
      %812 = vmatprep.subr.bf16.mxu0 0
      %813 = vmatpush1.bf16.msra.mxu0 0
      %814 = vmatprep.subr.bf16.mxu0 0
      %815 = vmatpush1.bf16.msra.mxu0 0
      %816 = vmatprep.subr.bf16.mxu0 0
      %817 = vmatpush1.bf16.msra.mxu0 0
      %818 = vmatprep.subr.bf16.mxu0 0
      %819 = vmatpush1.bf16.msra.mxu0 0
      %820 = vmatprep.subr.bf16.mxu0 0
      %821 = vmatpush1.bf16.msra.mxu0 0
      %822 = vmatprep.subr.bf16.mxu0 0
      %823 = vmatpush1.bf16.msra.mxu0 0
      %824 = vmatprep.subr.bf16.mxu0 0
      %825 = vmatpush1.bf16.msra.mxu0 %v805
      %826 = vmatprep.subr.bf16.mxu0 0
      %827 = vmatpush1.bf16.msra.mxu0 %v804
      %828 = vmatprep.subr.bf16.mxu0 0
      %829 = vmatpush2.bf16.msra.mxu0 0
      %830 = vmatprep.subr.bf16.mxu0 0
      %831 = vmatpush2.bf16.msra.mxu0 0
      %832 = vmatprep.subr.bf16.mxu0 0
      %833 = vmatpush2.bf16.msra.mxu0 0
      %834 = vmatprep.subr.bf16.mxu0 0
      %835 = vmatpush2.bf16.msra.mxu0 0
      %836 = vmatprep.subr.bf16.mxu0 0
      %837 = vmatpush2.bf16.msra.mxu0 0
      %838 = vmatprep.subr.bf16.mxu0 0
      %839 = vmatpush2.bf16.msra.mxu0 0
      %840 = vmatprep.subr.bf16.mxu0 0
      %841 = vmatpush2.bf16.msra.mxu0 0
      %842 = vmatprep.subr.bf16.mxu0 0
      %843 = vmatpush2.bf16.msra.mxu0 0
      %844 = vmatprep.mubr.bf16.mxu0 0
      %845 = vmatmul.mubr.bf16.gmra.mxu0 %v810
      %v846 = vpop.f32.mrf.mxu0
      %v847 = vadd.f32 %v794, %v846
      %v848 = vpop.f32.mrf.mxu0
      %v849 = vpop.f32.mrf.mxu0
      %v850 = vpop.f32.mrf.mxu0
      %851 = vdwg.mxu0
      %v852 = vld [vmem:[%s2] sm:$0xff]
      %s853 = scalar_lea.vmem %s3, %s36
      %v854 = vld [vmem:[%s853] sm:$0x1]
      %v855 = vlaneseq
      %v856 = vshrl.u32 %v855, 7
      %v857 = vsub.s32 0, %v856
      %v858 = vrot.slane %v854, %v857
      %v859 = vadd.f32 %v852, %v858
      %v860 = vmul.f32 %v847, 0.35355338
      %v861 = vpack.c.bf16 %v860, %v860
      %v862 = vpack.c.bf16 %v847, %v847
      %864 = vrot.lane.b32.xlu0 %v862, 96
      %v865 = vpop.permute.xlu0 %864
      %vm866 = vcmask 64512
      %v868 = vsel %vm866, %v861, 0
      %v871 = vsel %vm866, %v865, 0
      %873 = vmatprep.subr.bf16.mxu0 0
      %874 = vmatpush1.bf16.xpose.msra.mxu0 0
      %875 = vmatprep.subr.bf16.mxu0 0
      %876 = vmatpush1.bf16.xpose.msra.mxu0 0
      %877 = vmatprep.subr.bf16.mxu0 0
      %878 = vmatpush1.bf16.xpose.msra.mxu0 0
      %879 = vmatprep.subr.bf16.mxu0 0
      %880 = vmatpush1.bf16.xpose.msra.mxu0 0
      %881 = vmatprep.subr.bf16.mxu0 0
      %882 = vmatpush1.bf16.xpose.msra.mxu0 0
      %883 = vmatprep.subr.bf16.mxu0 0
      %884 = vmatpush1.bf16.xpose.msra.mxu0 0
      %885 = vmatprep.subr.bf16.mxu0 0
      %886 = vmatpush1.bf16.xpose.msra.mxu0 0
      %887 = vmatprep.subr.bf16.mxu0 0
      %888 = vmatpush1.bf16.xpose.msra.mxu0 %v871
      %889 = vmatprep.subr.bf16.mxu0 0
      %890 = vmatpush2.bf16.xpose.msra.mxu0 0
      %891 = vmatprep.subr.bf16.mxu0 0
      %892 = vmatpush2.bf16.xpose.msra.mxu0 0
      %893 = vmatprep.subr.bf16.mxu0 0
      %894 = vmatpush2.bf16.xpose.msra.mxu0 0
      %895 = vmatprep.subr.bf16.mxu0 0
      %896 = vmatpush2.bf16.xpose.msra.mxu0 0
      %897 = vmatprep.subr.bf16.mxu0 0
      %898 = vmatpush2.bf16.xpose.msra.mxu0 0
      %899 = vmatprep.subr.bf16.mxu0 0
      %900 = vmatpush2.bf16.xpose.msra.mxu0 0
      %901 = vmatprep.subr.bf16.mxu0 0
      %902 = vmatpush2.bf16.xpose.msra.mxu0 0
      %903 = vmatprep.subr.bf16.mxu0 0
      %904 = vmatpush2.bf16.xpose.msra.mxu0 0
      %905 = vmatprep.mubr.bf16.mxu0 0
      %906 = vmatmul.mubr.bf16.gmra.mxu0 %v868
      %v907 = vpop.f32.mrf.mxu0
      %v908 = vadd.f32 %v859, %v907
      %v909 = vpop.f32.mrf.mxu0
      %v910 = vpop.f32.mrf.mxu0
      %v911 = vpop.f32.mrf.mxu0
      %912 = vdwg.mxu0
      %v913 = vsel %vm866, %v908, -inf
      %914 = vmax.xlane.f32.xlu0 %v913
      %v915 = vpop.xlane.xlu0 %914
      %v916 = vsub.f32 %v908, %v915
      %v917 = vmul.f32 %v916, 1.442695
      %v918 = vpow.pop %v917
      %v919 = vsel %vm866, %v918, 0.0
      %920 = vadd.xlane.f32.xlu0 %v919
      %v921 = vpop.xlane.xlu0 %920
      %v922 = vrcp.pop %v921
      %v923 = vmul.f32 %v918, %v922
      %v924 = vpack.c.bf16 %v923, %v923
      %925 = vrot.lane.b32.xlu0 %v862, 64
      %v926 = vpop.permute.xlu0 %925
      %v928 = vsel %vm866, %v924, 0
      %vm930 = vcmask 1043456
      %v932 = vsel %vm930, %v926, 0
      %934 = vmatprep.subr.bf16.mxu0 0
      %935 = vmatpush1.bf16.msra.mxu0 0
      %936 = vmatprep.subr.bf16.mxu0 0
      %937 = vmatpush1.bf16.msra.mxu0 0
      %938 = vmatprep.subr.bf16.mxu0 0
      %939 = vmatpush1.bf16.msra.mxu0 0
      %940 = vmatprep.subr.bf16.mxu0 0
      %941 = vmatpush1.bf16.msra.mxu0 0
      %942 = vmatprep.subr.bf16.mxu0 0
      %943 = vmatpush1.bf16.msra.mxu0 0
      %944 = vmatprep.subr.bf16.mxu0 0
      %945 = vmatpush1.bf16.msra.mxu0 0
      %946 = vmatprep.subr.bf16.mxu0 0
      %947 = vmatpush1.bf16.msra.mxu0 0
      %948 = vmatprep.subr.bf16.mxu0 0
      %949 = vmatpush1.bf16.msra.mxu0 %v932
      %950 = vmatprep.subr.bf16.mxu0 0
      %951 = vmatpush2.bf16.msra.mxu0 0
      %952 = vmatprep.subr.bf16.mxu0 0
      %953 = vmatpush2.bf16.msra.mxu0 0
      %954 = vmatprep.subr.bf16.mxu0 0
      %955 = vmatpush2.bf16.msra.mxu0 0
      %956 = vmatprep.subr.bf16.mxu0 0
      %957 = vmatpush2.bf16.msra.mxu0 0
      %958 = vmatprep.subr.bf16.mxu0 0
      %959 = vmatpush2.bf16.msra.mxu0 0
      %960 = vmatprep.subr.bf16.mxu0 0
      %961 = vmatpush2.bf16.msra.mxu0 0
      %962 = vmatprep.subr.bf16.mxu0 0
      %963 = vmatpush2.bf16.msra.mxu0 0
      %964 = vmatprep.subr.bf16.mxu0 0
      %965 = vmatpush2.bf16.msra.mxu0 0
      %966 = vmatprep.mubr.bf16.mxu0 0
      %967 = vmatmul.mubr.bf16.gmra.mxu0 %v928
      %v968 = vpop.f32.mrf.mxu0
      %v969 = vadd.f32 0.0, %v968
      %v970 = vpop.f32.mrf.mxu0
      %v971 = vpop.f32.mrf.mxu0
      %v972 = vpop.f32.mrf.mxu0
      %973 = vdwg.mxu0
      %974 = vst.msk [vmem:[#allocation2] sm:$0xff] %vm866, %v969
      %976 = vrot.lane.b32.xlu0 %v861, 120
      %v977 = vpop.permute.xlu0 %976
      %978 = vrot.lane.b32.xlu0 %v862, 88
      %v979 = vpop.permute.xlu0 %978
      %v981 = vsel %vm866, %v977, 0
      %v984 = vsel %vm866, %v979, 0
      %986 = vmatprep.subr.bf16.mxu0 0
      %987 = vmatpush1.bf16.xpose.msra.mxu0 0
      %988 = vmatprep.subr.bf16.mxu0 0
      %989 = vmatpush1.bf16.xpose.msra.mxu0 0
      %990 = vmatprep.subr.bf16.mxu0 0
      %991 = vmatpush1.bf16.xpose.msra.mxu0 0
      %992 = vmatprep.subr.bf16.mxu0 0
      %993 = vmatpush1.bf16.xpose.msra.mxu0 0
      %994 = vmatprep.subr.bf16.mxu0 0
      %995 = vmatpush1.bf16.xpose.msra.mxu0 0
      %996 = vmatprep.subr.bf16.mxu0 0
      %997 = vmatpush1.bf16.xpose.msra.mxu0 0
      %998 = vmatprep.subr.bf16.mxu0 0
      %999 = vmatpush1.bf16.xpose.msra.mxu0 0
      %1000 = vmatprep.subr.bf16.mxu0 0
      %1001 = vmatpush1.bf16.xpose.msra.mxu0 %v984
      %1002 = vmatprep.subr.bf16.mxu0 0
      %1003 = vmatpush2.bf16.xpose.msra.mxu0 0
      %1004 = vmatprep.subr.bf16.mxu0 0
      %1005 = vmatpush2.bf16.xpose.msra.mxu0 0
      %1006 = vmatprep.subr.bf16.mxu0 0
      %1007 = vmatpush2.bf16.xpose.msra.mxu0 0
      %1008 = vmatprep.subr.bf16.mxu0 0
      %1009 = vmatpush2.bf16.xpose.msra.mxu0 0
      %1010 = vmatprep.subr.bf16.mxu0 0
      %1011 = vmatpush2.bf16.xpose.msra.mxu0 0
      %1012 = vmatprep.subr.bf16.mxu0 0
      %1013 = vmatpush2.bf16.xpose.msra.mxu0 0
      %1014 = vmatprep.subr.bf16.mxu0 0
      %1015 = vmatpush2.bf16.xpose.msra.mxu0 0
      %1016 = vmatprep.subr.bf16.mxu0 0
      %1017 = vmatpush2.bf16.xpose.msra.mxu0 0
      %1018 = vmatprep.mubr.bf16.mxu0 0
      %1019 = vmatmul.mubr.bf16.gmra.mxu0 %v981
      %v1020 = vpop.f32.mrf.mxu0
      %v1021 = vadd.f32 %v859, %v1020
      %v1022 = vpop.f32.mrf.mxu0
      %v1023 = vpop.f32.mrf.mxu0
      %v1024 = vpop.f32.mrf.mxu0
      %1025 = vdwg.mxu0
      %v1026 = vsel %vm866, %v1021, -inf
      %1027 = vmax.xlane.f32.xlu0 %v1026
      %v1028 = vpop.xlane.xlu0 %1027
      %v1029 = vsub.f32 %v1021, %v1028
      %v1030 = vmul.f32 %v1029, 1.442695
      %v1031 = vpow.pop %v1030
      %v1032 = vsel %vm866, %v1031, 0.0
      %1033 = vadd.xlane.f32.xlu0 %v1032
      %v1034 = vpop.xlane.xlu0 %1033
      %v1035 = vrcp.pop %v1034
      %v1036 = vmul.f32 %v1031, %v1035
      %v1037 = vpack.c.bf16 %v1036, %v1036
      %1038 = vrot.lane.b32.xlu0 %v862, 56
      %v1039 = vpop.permute.xlu0 %1038
      %v1041 = vsel %vm866, %v1037, 0
      %v1044 = vsel %vm930, %v1039, 0
      %1046 = vmatprep.subr.bf16.mxu0 0
      %1047 = vmatpush1.bf16.msra.mxu0 0
      %1048 = vmatprep.subr.bf16.mxu0 0
      %1049 = vmatpush1.bf16.msra.mxu0 0
      %1050 = vmatprep.subr.bf16.mxu0 0
      %1051 = vmatpush1.bf16.msra.mxu0 0
      %1052 = vmatprep.subr.bf16.mxu0 0
      %1053 = vmatpush1.bf16.msra.mxu0 0
      %1054 = vmatprep.subr.bf16.mxu0 0
      %1055 = vmatpush1.bf16.msra.mxu0 0
      %1056 = vmatprep.subr.bf16.mxu0 0
      %1057 = vmatpush1.bf16.msra.mxu0 0
      %1058 = vmatprep.subr.bf16.mxu0 0
      %1059 = vmatpush1.bf16.msra.mxu0 0
      %1060 = vmatprep.subr.bf16.mxu0 0
      %1061 = vmatpush1.bf16.msra.mxu0 %v1044
      %1062 = vmatprep.subr.bf16.mxu0 0
      %1063 = vmatpush2.bf16.msra.mxu0 0
      %1064 = vmatprep.subr.bf16.mxu0 0
      %1065 = vmatpush2.bf16.msra.mxu0 0
      %1066 = vmatprep.subr.bf16.mxu0 0
      %1067 = vmatpush2.bf16.msra.mxu0 0
      %1068 = vmatprep.subr.bf16.mxu0 0
      %1069 = vmatpush2.bf16.msra.mxu0 0
      %1070 = vmatprep.subr.bf16.mxu0 0
      %1071 = vmatpush2.bf16.msra.mxu0 0
      %1072 = vmatprep.subr.bf16.mxu0 0
      %1073 = vmatpush2.bf16.msra.mxu0 0
      %1074 = vmatprep.subr.bf16.mxu0 0
      %1075 = vmatpush2.bf16.msra.mxu0 0
      %1076 = vmatprep.subr.bf16.mxu0 0
      %1077 = vmatpush2.bf16.msra.mxu0 0
      %1078 = vmatprep.mubr.bf16.mxu0 0
      %1079 = vmatmul.mubr.bf16.gmra.mxu0 %v1041
      %v1080 = vpop.f32.mrf.mxu0
      %v1081 = vadd.f32 0.0, %v1080
      %v1082 = vpop.f32.mrf.mxu0
      %v1083 = vpop.f32.mrf.mxu0
      %v1084 = vpop.f32.mrf.mxu0
      %1085 = vdwg.mxu0
      %1087 = vrot.lane.b32.xlu0 %v1081, 8
      %v1088 = vpop.permute.xlu0 %1087
      %vm1090 = vcmask 130112
      %1091 = vst.msk [vmem:[#allocation2] sm:$0xff] %vm1090, %v1088
      %1092 = vrot.lane.b32.xlu0 %v861, 112
      %v1093 = vpop.permute.xlu0 %1092
      %1094 = vrot.lane.b32.xlu0 %v862, 80
      %v1095 = vpop.permute.xlu0 %1094
      %v1097 = vsel %vm866, %v1093, 0
      %v1100 = vsel %vm866, %v1095, 0
      %1102 = vmatprep.subr.bf16.mxu0 0
      %1103 = vmatpush1.bf16.xpose.msra.mxu0 0
      %1104 = vmatprep.subr.bf16.mxu0 0
      %1105 = vmatpush1.bf16.xpose.msra.mxu0 0
      %1106 = vmatprep.subr.bf16.mxu0 0
      %1107 = vmatpush1.bf16.xpose.msra.mxu0 0
      %1108 = vmatprep.subr.bf16.mxu0 0
      %1109 = vmatpush1.bf16.xpose.msra.mxu0 0
      %1110 = vmatprep.subr.bf16.mxu0 0
      %1111 = vmatpush1.bf16.xpose.msra.mxu0 0
      %1112 = vmatprep.subr.bf16.mxu0 0
      %1113 = vmatpush1.bf16.xpose.msra.mxu0 0
      %1114 = vmatprep.subr.bf16.mxu0 0
      %1115 = vmatpush1.bf16.xpose.msra.mxu0 0
      %1116 = vmatprep.subr.bf16.mxu0 0
      %1117 = vmatpush1.bf16.xpose.msra.mxu0 %v1100
      %1118 = vmatprep.subr.bf16.mxu0 0
      %1119 = vmatpush2.bf16.xpose.msra.mxu0 0
      %1120 = vmatprep.subr.bf16.mxu0 0
      %1121 = vmatpush2.bf16.xpose.msra.mxu0 0
      %1122 = vmatprep.subr.bf16.mxu0 0
      %1123 = vmatpush2.bf16.xpose.msra.mxu0 0
      %1124 = vmatprep.subr.bf16.mxu0 0
      %1125 = vmatpush2.bf16.xpose.msra.mxu0 0
      %1126 = vmatprep.subr.bf16.mxu0 0
      %1127 = vmatpush2.bf16.xpose.msra.mxu0 0
      %1128 = vmatprep.subr.bf16.mxu0 0
      %1129 = vmatpush2.bf16.xpose.msra.mxu0 0
      %1130 = vmatprep.subr.bf16.mxu0 0
      %1131 = vmatpush2.bf16.xpose.msra.mxu0 0
      %1132 = vmatprep.subr.bf16.mxu0 0
      %1133 = vmatpush2.bf16.xpose.msra.mxu0 0
      %1134 = vmatprep.mubr.bf16.mxu0 0
      %1135 = vmatmul.mubr.bf16.gmra.mxu0 %v1097
      %v1136 = vpop.f32.mrf.mxu0
      %v1137 = vadd.f32 %v859, %v1136
      %v1138 = vpop.f32.mrf.mxu0
      %v1139 = vpop.f32.mrf.mxu0
      %v1140 = vpop.f32.mrf.mxu0
      %1141 = vdwg.mxu0
      %v1142 = vsel %vm866, %v1137, -inf
      %1143 = vmax.xlane.f32.xlu0 %v1142
      %v1144 = vpop.xlane.xlu0 %1143
      %v1145 = vsub.f32 %v1137, %v1144
      %v1146 = vmul.f32 %v1145, 1.442695
      %v1147 = vpow.pop %v1146
      %v1148 = vsel %vm866, %v1147, 0.0
      %1149 = vadd.xlane.f32.xlu0 %v1148
      %v1150 = vpop.xlane.xlu0 %1149
      %v1151 = vrcp.pop %v1150
      %v1152 = vmul.f32 %v1147, %v1151
      %v1153 = vpack.c.bf16 %v1152, %v1152
      %1154 = vrot.lane.b32.xlu0 %v862, 48
      %v1155 = vpop.permute.xlu0 %1154
      %v1157 = vsel %vm866, %v1153, 0
      %v1160 = vsel %vm930, %v1155, 0
      %1162 = vmatprep.subr.bf16.mxu0 0
      %1163 = vmatpush1.bf16.msra.mxu0 0
      %1164 = vmatprep.subr.bf16.mxu0 0
      %1165 = vmatpush1.bf16.msra.mxu0 0
      %1166 = vmatprep.subr.bf16.mxu0 0
      %1167 = vmatpush1.bf16.msra.mxu0 0
      %1168 = vmatprep.subr.bf16.mxu0 0
      %1169 = vmatpush1.bf16.msra.mxu0 0
      %1170 = vmatprep.subr.bf16.mxu0 0
      %1171 = vmatpush1.bf16.msra.mxu0 0
      %1172 = vmatprep.subr.bf16.mxu0 0
      %1173 = vmatpush1.bf16.msra.mxu0 0
      %1174 = vmatprep.subr.bf16.mxu0 0
      %1175 = vmatpush1.bf16.msra.mxu0 0
      %1176 = vmatprep.subr.bf16.mxu0 0
      %1177 = vmatpush1.bf16.msra.mxu0 %v1160
      %1178 = vmatprep.subr.bf16.mxu0 0
      %1179 = vmatpush2.bf16.msra.mxu0 0
      %1180 = vmatprep.subr.bf16.mxu0 0
      %1181 = vmatpush2.bf16.msra.mxu0 0
      %1182 = vmatprep.subr.bf16.mxu0 0
      %1183 = vmatpush2.bf16.msra.mxu0 0
      %1184 = vmatprep.subr.bf16.mxu0 0
      %1185 = vmatpush2.bf16.msra.mxu0 0
      %1186 = vmatprep.subr.bf16.mxu0 0
      %1187 = vmatpush2.bf16.msra.mxu0 0
      %1188 = vmatprep.subr.bf16.mxu0 0
      %1189 = vmatpush2.bf16.msra.mxu0 0
      %1190 = vmatprep.subr.bf16.mxu0 0
      %1191 = vmatpush2.bf16.msra.mxu0 0
      %1192 = vmatprep.subr.bf16.mxu0 0
      %1193 = vmatpush2.bf16.msra.mxu0 0
      %1194 = vmatprep.mubr.bf16.mxu0 0
      %1195 = vmatmul.mubr.bf16.gmra.mxu0 %v1157
      %v1196 = vpop.f32.mrf.mxu0
      %v1197 = vadd.f32 0.0, %v1196
      %v1198 = vpop.f32.mrf.mxu0
      %v1199 = vpop.f32.mrf.mxu0
      %v1200 = vpop.f32.mrf.mxu0
      %1201 = vdwg.mxu0
      %1203 = vrot.lane.b32.xlu0 %v1197, 16
      %v1204 = vpop.permute.xlu0 %1203
      %vm1206 = vcmask 195712
      %1207 = vst.msk [vmem:[#allocation2] sm:$0xff] %vm1206, %v1204
      %1208 = vrot.lane.b32.xlu0 %v861, 104
      %v1209 = vpop.permute.xlu0 %1208
      %1210 = vrot.lane.b32.xlu0 %v862, 72
      %v1211 = vpop.permute.xlu0 %1210
      %v1213 = vsel %vm866, %v1209, 0
      %v1216 = vsel %vm866, %v1211, 0
      %1218 = vmatprep.subr.bf16.mxu0 0
      %1219 = vmatpush1.bf16.xpose.msra.mxu0 0
      %1220 = vmatprep.subr.bf16.mxu0 0
      %1221 = vmatpush1.bf16.xpose.msra.mxu0 0
      %1222 = vmatprep.subr.bf16.mxu0 0
      %1223 = vmatpush1.bf16.xpose.msra.mxu0 0
      %1224 = vmatprep.subr.bf16.mxu0 0
      %1225 = vmatpush1.bf16.xpose.msra.mxu0 0
      %1226 = vmatprep.subr.bf16.mxu0 0
      %1227 = vmatpush1.bf16.xpose.msra.mxu0 0
      %1228 = vmatprep.subr.bf16.mxu0 0
      %1229 = vmatpush1.bf16.xpose.msra.mxu0 0
      %1230 = vmatprep.subr.bf16.mxu0 0
      %1231 = vmatpush1.bf16.xpose.msra.mxu0 0
      %1232 = vmatprep.subr.bf16.mxu0 0
      %1233 = vmatpush1.bf16.xpose.msra.mxu0 %v1216
      %1234 = vmatprep.subr.bf16.mxu0 0
      %1235 = vmatpush2.bf16.xpose.msra.mxu0 0
      %1236 = vmatprep.subr.bf16.mxu0 0
      %1237 = vmatpush2.bf16.xpose.msra.mxu0 0
      %1238 = vmatprep.subr.bf16.mxu0 0
      %1239 = vmatpush2.bf16.xpose.msra.mxu0 0
      %1240 = vmatprep.subr.bf16.mxu0 0
      %1241 = vmatpush2.bf16.xpose.msra.mxu0 0
      %1242 = vmatprep.subr.bf16.mxu0 0
      %1243 = vmatpush2.bf16.xpose.msra.mxu0 0
      %1244 = vmatprep.subr.bf16.mxu0 0
      %1245 = vmatpush2.bf16.xpose.msra.mxu0 0
      %1246 = vmatprep.subr.bf16.mxu0 0
      %1247 = vmatpush2.bf16.xpose.msra.mxu0 0
      %1248 = vmatprep.subr.bf16.mxu0 0
      %1249 = vmatpush2.bf16.xpose.msra.mxu0 0
      %1250 = vmatprep.mubr.bf16.mxu0 0
      %1251 = vmatmul.mubr.bf16.gmra.mxu0 %v1213
      %v1252 = vpop.f32.mrf.mxu0
      %v1253 = vadd.f32 %v859, %v1252
      %v1254 = vpop.f32.mrf.mxu0
      %v1255 = vpop.f32.mrf.mxu0
      %v1256 = vpop.f32.mrf.mxu0
      %1257 = vdwg.mxu0
      %v1258 = vsel %vm866, %v1253, -inf
      %1259 = vmax.xlane.f32.xlu0 %v1258
      %v1260 = vpop.xlane.xlu0 %1259
      %v1261 = vsub.f32 %v1253, %v1260
      %v1262 = vmul.f32 %v1261, 1.442695
      %v1263 = vpow.pop %v1262
      %v1264 = vsel %vm866, %v1263, 0.0
      %1265 = vadd.xlane.f32.xlu0 %v1264
      %v1266 = vpop.xlane.xlu0 %1265
      %v1267 = vrcp.pop %v1266
      %v1268 = vmul.f32 %v1263, %v1267
      %v1269 = vpack.c.bf16 %v1268, %v1268
      %1270 = vrot.lane.b32.xlu0 %v862, 40
      %v1271 = vpop.permute.xlu0 %1270
      %v1273 = vsel %vm866, %v1269, 0
      %v1276 = vsel %vm930, %v1271, 0
      %1278 = vmatprep.subr.bf16.mxu0 0
      %1279 = vmatpush1.bf16.msra.mxu0 0
      %1280 = vmatprep.subr.bf16.mxu0 0
      %1281 = vmatpush1.bf16.msra.mxu0 0
      %1282 = vmatprep.subr.bf16.mxu0 0
      %1283 = vmatpush1.bf16.msra.mxu0 0
      %1284 = vmatprep.subr.bf16.mxu0 0
      %1285 = vmatpush1.bf16.msra.mxu0 0
      %1286 = vmatprep.subr.bf16.mxu0 0
      %1287 = vmatpush1.bf16.msra.mxu0 0
      %1288 = vmatprep.subr.bf16.mxu0 0
      %1289 = vmatpush1.bf16.msra.mxu0 0
      %1290 = vmatprep.subr.bf16.mxu0 0
      %1291 = vmatpush1.bf16.msra.mxu0 0
      %1292 = vmatprep.subr.bf16.mxu0 0
      %1293 = vmatpush1.bf16.msra.mxu0 %v1276
      %1294 = vmatprep.subr.bf16.mxu0 0
      %1295 = vmatpush2.bf16.msra.mxu0 0
      %1296 = vmatprep.subr.bf16.mxu0 0
      %1297 = vmatpush2.bf16.msra.mxu0 0
      %1298 = vmatprep.subr.bf16.mxu0 0
      %1299 = vmatpush2.bf16.msra.mxu0 0
      %1300 = vmatprep.subr.bf16.mxu0 0
      %1301 = vmatpush2.bf16.msra.mxu0 0
      %1302 = vmatprep.subr.bf16.mxu0 0
      %1303 = vmatpush2.bf16.msra.mxu0 0
      %1304 = vmatprep.subr.bf16.mxu0 0
      %1305 = vmatpush2.bf16.msra.mxu0 0
      %1306 = vmatprep.subr.bf16.mxu0 0
      %1307 = vmatpush2.bf16.msra.mxu0 0
      %1308 = vmatprep.subr.bf16.mxu0 0
      %1309 = vmatpush2.bf16.msra.mxu0 0
      %1310 = vmatprep.mubr.bf16.mxu0 0
      %1311 = vmatmul.mubr.bf16.gmra.mxu0 %v1273
      %v1312 = vpop.f32.mrf.mxu0
      %v1313 = vadd.f32 0.0, %v1312
      %v1314 = vpop.f32.mrf.mxu0
      %v1315 = vpop.f32.mrf.mxu0
      %v1316 = vpop.f32.mrf.mxu0
      %1317 = vdwg.mxu0
      %1319 = vrot.lane.b32.xlu0 %v1313, 24
      %v1320 = vpop.permute.xlu0 %1319
      %vm1322 = vcmask 261312
      %1323 = vst.msk [vmem:[#allocation2] sm:$0xff] %vm1322, %v1320
      %v1324 = vld [vmem:[#allocation2] sm:$0xff]
      %v1325 = vpack.c.bf16 %v1324, %v1324
      %v1326 = vld [vmem:[%s7] sm:$0xf]
      %v1327 = vld [vmem:[%s7 + $0x4] sm:$0xf]
      %v1328 = vld [vmem:[%s7 + $0x8] sm:$0xf]
      %v1329 = vld [vmem:[%s7 + $0xc] sm:$0xf]
      %v1330 = vld [vmem:[%s8] sm:$0x1]
      %v1332 = vlaneseq
      %v1333 = vshrl.u32 %v1332, 7
      %v1334 = vsub.s32 0, %v1333
      %v1335 = vrot.slane %v1330, %v1334
      %v1341 = vunpack.c.l.b16 %v1326
      %v1342 = vunpack.c.l.b16 %v1327
      %v1343 = vunpack.c.l.b16 %v1328
      %v1344 = vunpack.c.l.b16 %v1329
      %v1345 = vpack.c.b16 %v1342, %v1341
      %v1346 = vpack.c.b16 %v1344, %v1343
      %v1350 = vsel %vm808, %v1325, 0
      %1352 = vmatprep.subr.bf16.mxu0 0
      %1353 = vmatpush1.bf16.msra.mxu0 0
      %1354 = vmatprep.subr.bf16.mxu0 0
      %1355 = vmatpush1.bf16.msra.mxu0 0
      %1356 = vmatprep.subr.bf16.mxu0 0
      %1357 = vmatpush1.bf16.msra.mxu0 0
      %1358 = vmatprep.subr.bf16.mxu0 0
      %1359 = vmatpush1.bf16.msra.mxu0 0
      %1360 = vmatprep.subr.bf16.mxu0 0
      %1361 = vmatpush1.bf16.msra.mxu0 0
      %1362 = vmatprep.subr.bf16.mxu0 0
      %1363 = vmatpush1.bf16.msra.mxu0 0
      %1364 = vmatprep.subr.bf16.mxu0 0
      %1365 = vmatpush1.bf16.msra.mxu0 %v1346
      %1366 = vmatprep.subr.bf16.mxu0 0
      %1367 = vmatpush1.bf16.msra.mxu0 %v1345
      %1368 = vmatprep.subr.bf16.mxu0 0
      %1369 = vmatpush2.bf16.msra.mxu0 0
      %1370 = vmatprep.subr.bf16.mxu0 0
      %1371 = vmatpush2.bf16.msra.mxu0 0
      %1372 = vmatprep.subr.bf16.mxu0 0
      %1373 = vmatpush2.bf16.msra.mxu0 0
      %1374 = vmatprep.subr.bf16.mxu0 0
      %1375 = vmatpush2.bf16.msra.mxu0 0
      %1376 = vmatprep.subr.bf16.mxu0 0
      %1377 = vmatpush2.bf16.msra.mxu0 0
      %1378 = vmatprep.subr.bf16.mxu0 0
      %1379 = vmatpush2.bf16.msra.mxu0 0
      %1380 = vmatprep.subr.bf16.mxu0 0
      %1381 = vmatpush2.bf16.msra.mxu0 0
      %1382 = vmatprep.subr.bf16.mxu0 0
      %1383 = vmatpush2.bf16.msra.mxu0 0
      %1384 = vmatprep.mubr.bf16.mxu0 0
      %1385 = vmatmul.mubr.bf16.gmra.mxu0 %v1350
      %v1386 = vpop.f32.mrf.mxu0
      %v1387 = vadd.f32 %v1335, %v1386
      %v1388 = vpop.f32.mrf.mxu0
      %v1389 = vpop.f32.mrf.mxu0
      %v1390 = vpop.f32.mrf.mxu0
      %1391 = vdwg.mxu0
      %v1392 = vadd.f32 %v782, %v1387
      %v1393 = vld [vmem:[%s9] sm:$0x1]
      %v1394 = vld [vmem:[%s10] sm:$0x1]
      %v1395 = vsel %vm808, %v1392, 0.0
      %1396 = vadd.xlane.f32.xlu0 %v1395
      %v1397 = vpop.xlane.xlu0 %1396
      %v1398 = vrcp.pop 32.0
      %v1399 = vmul.f32 %v1397, %v1398
      %v1400 = vsub.f32 %v1392, %v1399
      %v1401 = vmul.f32 %v1400, %v1400
      %v1402 = vsel %vm808, %v1401, 0.0
      %1403 = vadd.xlane.f32.xlu0 %v1402
      %v1404 = vpop.xlane.xlu0 %1403
      %v1405 = vmul.f32 %v1404, %v1398
      %v1406 = vadd.f32 %v1405, 1e-05
      %v1407 = vrsqrt.pop %v1406
      %v1408 = vmul.f32 %v1400, %v1407
      %v1410 = vlaneseq
      %v1411 = vshrl.u32 %v1410, 7
      %v1412 = vsub.s32 0, %v1411
      %v1413 = vrot.slane %v1393, %v1412
      %v1415 = vmul.f32 %v1408, %v1413
      %v1417 = vlaneseq
      %v1418 = vshrl.u32 %v1417, 7
      %v1419 = vsub.s32 0, %v1418
      %v1420 = vrot.slane %v1394, %v1419
      %v1422 = vadd.f32 %v1415, %v1420
      %v1423 = vld [vmem:[%s11] sm:$0xf]
      %v1424 = vld [vmem:[%s11 + $0x4] sm:$0xf]
      %v1425 = vld [vmem:[%s11 + $0x8] sm:$0xf]
      %v1426 = vld [vmem:[%s11 + $0xc] sm:$0xf]
      %v1427 = vld [vmem:[%s12] sm:$0x1]
      %v1428 = vpack.c.bf16 %v1422, %v1422
      %v1430 = vlaneseq
      %v1431 = vshrl.u32 %v1430, 7
      %v1432 = vsub.s32 0, %v1431
      %v1433 = vrot.slane %v1427, %v1432
      %v1439 = vunpack.c.l.b16 %v1423
      %v1440 = vunpack.c.l.b16 %v1424
      %v1441 = vunpack.c.l.b16 %v1425
      %v1442 = vunpack.c.l.b16 %v1426
      %v1443 = vpack.c.b16 %v1440, %v1439
      %v1444 = vpack.c.b16 %v1442, %v1441
      %v1448 = vsel %vm808, %v1428, 0
      %1450 = vmatprep.subr.bf16.mxu0 0
      %1451 = vmatpush1.bf16.msra.mxu0 0
      %1452 = vmatprep.subr.bf16.mxu0 0
      %1453 = vmatpush1.bf16.msra.mxu0 0
      %1454 = vmatprep.subr.bf16.mxu0 0
      %1455 = vmatpush1.bf16.msra.mxu0 0
      %1456 = vmatprep.subr.bf16.mxu0 0
      %1457 = vmatpush1.bf16.msra.mxu0 0
      %1458 = vmatprep.subr.bf16.mxu0 0
      %1459 = vmatpush1.bf16.msra.mxu0 0
      %1460 = vmatprep.subr.bf16.mxu0 0
      %1461 = vmatpush1.bf16.msra.mxu0 0
      %1462 = vmatprep.subr.bf16.mxu0 0
      %1463 = vmatpush1.bf16.msra.mxu0 %v1444
      %1464 = vmatprep.subr.bf16.mxu0 0
      %1465 = vmatpush1.bf16.msra.mxu0 %v1443
      %1466 = vmatprep.subr.bf16.mxu0 0
      %1467 = vmatpush2.bf16.msra.mxu0 0
      %1468 = vmatprep.subr.bf16.mxu0 0
      %1469 = vmatpush2.bf16.msra.mxu0 0
      %1470 = vmatprep.subr.bf16.mxu0 0
      %1471 = vmatpush2.bf16.msra.mxu0 0
      %1472 = vmatprep.subr.bf16.mxu0 0
      %1473 = vmatpush2.bf16.msra.mxu0 0
      %1474 = vmatprep.subr.bf16.mxu0 0
      %1475 = vmatpush2.bf16.msra.mxu0 0
      %1476 = vmatprep.subr.bf16.mxu0 0
      %1477 = vmatpush2.bf16.msra.mxu0 0
      %1478 = vmatprep.subr.bf16.mxu0 0
      %1479 = vmatpush2.bf16.msra.mxu0 0
      %1480 = vmatprep.subr.bf16.mxu0 0
      %1481 = vmatpush2.bf16.msra.mxu0 0
      %1482 = vmatprep.mubr.bf16.mxu0 0
      %1483 = vmatmul.mubr.bf16.gmra.mxu0 %v1448
      %v1484 = vpop.f32.mrf.mxu0
      %v1485 = vadd.f32 %v1433, %v1484
      %v1486 = vpop.f32.mrf.mxu0
      %v1487 = vpop.f32.mrf.mxu0
      %v1488 = vpop.f32.mrf.mxu0
      %1489 = vdwg.mxu0
      %v1492 = vunpack.c.l.b16 %v783
      %v1493 = vunpack.c.l.b16 %v784
      %v1494 = vpack.c.b16 %v1493, %v1492
      %1495 = vrot.lane.b32.xlu0 %v1443, 96
      %v1496 = vpop.permute.xlu0 %1495
      %1497 = vrot.lane.b32.xlu0 %v1444, 96
      %v1498 = vpop.permute.xlu0 %1497
      %1501 = vrot.lane.b32.xlu0 %v1433, 96
      %v1502 = vpop.permute.xlu0 %1501
      %v1505 = vsel %vm808, %v1494, 0
      %1507 = vmatprep.subr.bf16.mxu0 0
      %1508 = vmatpush1.bf16.msra.mxu0 0
      %1509 = vmatprep.subr.bf16.mxu0 0
      %1510 = vmatpush1.bf16.msra.mxu0 0
      %1511 = vmatprep.subr.bf16.mxu0 0
      %1512 = vmatpush1.bf16.msra.mxu0 0
      %1513 = vmatprep.subr.bf16.mxu0 0
      %1514 = vmatpush1.bf16.msra.mxu0 0
      %1515 = vmatprep.subr.bf16.mxu0 0
      %1516 = vmatpush1.bf16.msra.mxu0 0
      %1517 = vmatprep.subr.bf16.mxu0 0
      %1518 = vmatpush1.bf16.msra.mxu0 0
      %1519 = vmatprep.subr.bf16.mxu0 0
      %1520 = vmatpush1.bf16.msra.mxu0 %v1498
      %1521 = vmatprep.subr.bf16.mxu0 0
      %1522 = vmatpush1.bf16.msra.mxu0 %v1496
      %1523 = vmatprep.subr.bf16.mxu0 0
      %1524 = vmatpush2.bf16.msra.mxu0 0
      %1525 = vmatprep.subr.bf16.mxu0 0
      %1526 = vmatpush2.bf16.msra.mxu0 0
      %1527 = vmatprep.subr.bf16.mxu0 0
      %1528 = vmatpush2.bf16.msra.mxu0 0
      %1529 = vmatprep.subr.bf16.mxu0 0
      %1530 = vmatpush2.bf16.msra.mxu0 0
      %1531 = vmatprep.subr.bf16.mxu0 0
      %1532 = vmatpush2.bf16.msra.mxu0 0
      %1533 = vmatprep.subr.bf16.mxu0 0
      %1534 = vmatpush2.bf16.msra.mxu0 0
      %1535 = vmatprep.subr.bf16.mxu0 0
      %1536 = vmatpush2.bf16.msra.mxu0 0
      %1537 = vmatprep.subr.bf16.mxu0 0
      %1538 = vmatpush2.bf16.msra.mxu0 0
      %1539 = vmatprep.mubr.bf16.mxu0 0
      %1540 = vmatmul.mubr.bf16.gmra.mxu0 %v1505
      %v1541 = vpop.f32.mrf.mxu0
      %v1542 = vadd.f32 %v1502, %v1541
      %v1543 = vpop.f32.mrf.mxu0
      %v1544 = vpop.f32.mrf.mxu0
      %v1545 = vadd.f32 %v1502, %v1544
      %v1546 = vpop.f32.mrf.mxu0
      %1547 = vdwg.mxu0
      %s1548 = scalar_lea.vmem %s4, %s36
      %v1549 = vld [vmem:[%s1548] sm:$0x1]
      %v1550 = vmul.f32 %v1485, 0.35355338
      %v1551 = vpack.c.bf16 %v1550, %v1550
      %v1552 = vpack.c.bf16 %v1545, %v1542
      %v1553 = vlaneseq
      %v1554 = vshrl.u32 %v1553, 7
      %v1555 = vsub.s32 0, %v1554
      %v1556 = vrot.slane %v1549, %v1555
      %v1558 = vsel %vm866, %v1551, 0
      %v1561 = vsel %vm866, %v1552, 0
      %1563 = vmatprep.subr.bf16.mxu0 0
      %1564 = vmatpush1.bf16.xpose.msra.mxu0 0
      %1565 = vmatprep.subr.bf16.mxu0 0
      %1566 = vmatpush1.bf16.xpose.msra.mxu0 0
      %1567 = vmatprep.subr.bf16.mxu0 0
      %1568 = vmatpush1.bf16.xpose.msra.mxu0 0
      %1569 = vmatprep.subr.bf16.mxu0 0
      %1570 = vmatpush1.bf16.xpose.msra.mxu0 0
      %1571 = vmatprep.subr.bf16.mxu0 0
      %1572 = vmatpush1.bf16.xpose.msra.mxu0 0
      %1573 = vmatprep.subr.bf16.mxu0 0
      %1574 = vmatpush1.bf16.xpose.msra.mxu0 0
      %1575 = vmatprep.subr.bf16.mxu0 0
      %1576 = vmatpush1.bf16.xpose.msra.mxu0 0
      %1577 = vmatprep.subr.bf16.mxu0 0
      %1578 = vmatpush1.bf16.xpose.msra.mxu0 %v1561
      %1579 = vmatprep.subr.bf16.mxu0 0
      %1580 = vmatpush2.bf16.xpose.msra.mxu0 0
      %1581 = vmatprep.subr.bf16.mxu0 0
      %1582 = vmatpush2.bf16.xpose.msra.mxu0 0
      %1583 = vmatprep.subr.bf16.mxu0 0
      %1584 = vmatpush2.bf16.xpose.msra.mxu0 0
      %1585 = vmatprep.subr.bf16.mxu0 0
      %1586 = vmatpush2.bf16.xpose.msra.mxu0 0
      %1587 = vmatprep.subr.bf16.mxu0 0
      %1588 = vmatpush2.bf16.xpose.msra.mxu0 0
      %1589 = vmatprep.subr.bf16.mxu0 0
      %1590 = vmatpush2.bf16.xpose.msra.mxu0 0
      %1591 = vmatprep.subr.bf16.mxu0 0
      %1592 = vmatpush2.bf16.xpose.msra.mxu0 0
      %1593 = vmatprep.subr.bf16.mxu0 0
      %1594 = vmatpush2.bf16.xpose.msra.mxu0 0
      %1595 = vmatprep.mubr.bf16.mxu0 0
      %1596 = vmatmul.mubr.bf16.gmra.mxu0 %v1558
      %v1597 = vpop.f32.mrf.mxu0
      %v1598 = vadd.f32 %v1556, %v1597
      %v1599 = vpop.f32.mrf.mxu0
      %v1600 = vpop.f32.mrf.mxu0
      %v1601 = vpop.f32.mrf.mxu0
      %1602 = vdwg.mxu0
      %vm1603 = vcmask 80896
      %v1604 = vsel %vm1603, %v1598, -inf
      %1605 = vmax.xlane.f32.xlu0 %v1604
      %v1606 = vpop.xlane.xlu0 %1605
      %v1607 = vsub.f32 %v1598, %v1606
      %v1608 = vmul.f32 %v1607, 1.442695
      %v1609 = vpow.pop %v1608
      %v1610 = vsel %vm1603, %v1609, 0.0
      %1611 = vadd.xlane.f32.xlu0 %v1610
      %v1612 = vpop.xlane.xlu0 %1611
      %v1613 = vrcp.pop %v1612
      %v1614 = vmul.f32 %v1609, %v1613
      %v1615 = vpack.c.bf16 %v1614, %v1614
      %1617 = vrot.lane.b32.xlu0 %v1552, 96
      %v1618 = vpop.permute.xlu0 %1617
      %v1620 = vsel %vm1603, %v1615, 0
      %vm1622 = vcmask 1044480
      %v1624 = vsel %vm1622, %v1618, 0
      %1626 = vmatprep.subr.bf16.mxu0 0
      %1627 = vmatpush1.bf16.msra.mxu0 0
      %1628 = vmatprep.subr.bf16.mxu0 0
      %1629 = vmatpush1.bf16.msra.mxu0 0
      %1630 = vmatprep.subr.bf16.mxu0 0
      %1631 = vmatpush1.bf16.msra.mxu0 0
      %1632 = vmatprep.subr.bf16.mxu0 0
      %1633 = vmatpush1.bf16.msra.mxu0 0
      %1634 = vmatprep.subr.bf16.mxu0 0
      %1635 = vmatpush1.bf16.msra.mxu0 0
      %1636 = vmatprep.subr.bf16.mxu0 0
      %1637 = vmatpush1.bf16.msra.mxu0 0
      %1638 = vmatprep.subr.bf16.mxu0 0
      %1639 = vmatpush1.bf16.msra.mxu0 0
      %1640 = vmatprep.subr.bf16.mxu0 0
      %1641 = vmatpush1.bf16.msra.mxu0 %v1624
      %1642 = vmatprep.subr.bf16.mxu0 0
      %1643 = vmatpush2.bf16.msra.mxu0 0
      %1644 = vmatprep.subr.bf16.mxu0 0
      %1645 = vmatpush2.bf16.msra.mxu0 0
      %1646 = vmatprep.subr.bf16.mxu0 0
      %1647 = vmatpush2.bf16.msra.mxu0 0
      %1648 = vmatprep.subr.bf16.mxu0 0
      %1649 = vmatpush2.bf16.msra.mxu0 0
      %1650 = vmatprep.subr.bf16.mxu0 0
      %1651 = vmatpush2.bf16.msra.mxu0 0
      %1652 = vmatprep.subr.bf16.mxu0 0
      %1653 = vmatpush2.bf16.msra.mxu0 0
      %1654 = vmatprep.subr.bf16.mxu0 0
      %1655 = vmatpush2.bf16.msra.mxu0 0
      %1656 = vmatprep.subr.bf16.mxu0 0
      %1657 = vmatpush2.bf16.msra.mxu0 0
      %1658 = vmatprep.mubr.bf16.mxu0 0
      %1659 = vmatmul.mubr.bf16.gmra.mxu0 %v1620
      %v1660 = vpop.f32.mrf.mxu0
      %v1661 = vadd.f32 0.0, %v1660
      %v1662 = vpop.f32.mrf.mxu0
      %v1663 = vpop.f32.mrf.mxu0
      %v1664 = vpop.f32.mrf.mxu0
      %1665 = vdwg.mxu0
      %1666 = vst.msk [vmem:[#allocation2] sm:$0xff] %vm866, %v1661
      %1668 = vrot.lane.b32.xlu0 %v1551, 120
      %v1669 = vpop.permute.xlu0 %1668
      %1670 = vrot.lane.b32.xlu0 %v1552, 120
      %v1671 = vpop.permute.xlu0 %1670
      %v1673 = vsel %vm866, %v1669, 0
      %v1676 = vsel %vm866, %v1671, 0
      %1678 = vmatprep.subr.bf16.mxu0 0
      %1679 = vmatpush1.bf16.xpose.msra.mxu0 0
      %1680 = vmatprep.subr.bf16.mxu0 0
      %1681 = vmatpush1.bf16.xpose.msra.mxu0 0
      %1682 = vmatprep.subr.bf16.mxu0 0
      %1683 = vmatpush1.bf16.xpose.msra.mxu0 0
      %1684 = vmatprep.subr.bf16.mxu0 0
      %1685 = vmatpush1.bf16.xpose.msra.mxu0 0
      %1686 = vmatprep.subr.bf16.mxu0 0
      %1687 = vmatpush1.bf16.xpose.msra.mxu0 0
      %1688 = vmatprep.subr.bf16.mxu0 0
      %1689 = vmatpush1.bf16.xpose.msra.mxu0 0
      %1690 = vmatprep.subr.bf16.mxu0 0
      %1691 = vmatpush1.bf16.xpose.msra.mxu0 0
      %1692 = vmatprep.subr.bf16.mxu0 0
      %1693 = vmatpush1.bf16.xpose.msra.mxu0 %v1676
      %1694 = vmatprep.subr.bf16.mxu0 0
      %1695 = vmatpush2.bf16.xpose.msra.mxu0 0
      %1696 = vmatprep.subr.bf16.mxu0 0
      %1697 = vmatpush2.bf16.xpose.msra.mxu0 0
      %1698 = vmatprep.subr.bf16.mxu0 0
      %1699 = vmatpush2.bf16.xpose.msra.mxu0 0
      %1700 = vmatprep.subr.bf16.mxu0 0
      %1701 = vmatpush2.bf16.xpose.msra.mxu0 0
      %1702 = vmatprep.subr.bf16.mxu0 0
      %1703 = vmatpush2.bf16.xpose.msra.mxu0 0
      %1704 = vmatprep.subr.bf16.mxu0 0
      %1705 = vmatpush2.bf16.xpose.msra.mxu0 0
      %1706 = vmatprep.subr.bf16.mxu0 0
      %1707 = vmatpush2.bf16.xpose.msra.mxu0 0
      %1708 = vmatprep.subr.bf16.mxu0 0
      %1709 = vmatpush2.bf16.xpose.msra.mxu0 0
      %1710 = vmatprep.mubr.bf16.mxu0 0
      %1711 = vmatmul.mubr.bf16.gmra.mxu0 %v1673
      %v1712 = vpop.f32.mrf.mxu0
      %v1713 = vadd.f32 %v1556, %v1712
      %v1714 = vpop.f32.mrf.mxu0
      %v1715 = vpop.f32.mrf.mxu0
      %v1716 = vpop.f32.mrf.mxu0
      %1717 = vdwg.mxu0
      %v1718 = vsel %vm1603, %v1713, -inf
      %1719 = vmax.xlane.f32.xlu0 %v1718
      %v1720 = vpop.xlane.xlu0 %1719
      %v1721 = vsub.f32 %v1713, %v1720
      %v1722 = vmul.f32 %v1721, 1.442695
      %v1723 = vpow.pop %v1722
      %v1724 = vsel %vm1603, %v1723, 0.0
      %1725 = vadd.xlane.f32.xlu0 %v1724
      %v1726 = vpop.xlane.xlu0 %1725
      %v1727 = vrcp.pop %v1726
      %v1728 = vmul.f32 %v1723, %v1727
      %v1729 = vpack.c.bf16 %v1728, %v1728
      %1730 = vrot.lane.b32.xlu0 %v1552, 88
      %v1731 = vpop.permute.xlu0 %1730
      %v1733 = vsel %vm1603, %v1729, 0
      %v1736 = vsel %vm1622, %v1731, 0
      %1738 = vmatprep.subr.bf16.mxu0 0
      %1739 = vmatpush1.bf16.msra.mxu0 0
      %1740 = vmatprep.subr.bf16.mxu0 0
      %1741 = vmatpush1.bf16.msra.mxu0 0
      %1742 = vmatprep.subr.bf16.mxu0 0
      %1743 = vmatpush1.bf16.msra.mxu0 0
      %1744 = vmatprep.subr.bf16.mxu0 0
      %1745 = vmatpush1.bf16.msra.mxu0 0
      %1746 = vmatprep.subr.bf16.mxu0 0
      %1747 = vmatpush1.bf16.msra.mxu0 0
      %1748 = vmatprep.subr.bf16.mxu0 0
      %1749 = vmatpush1.bf16.msra.mxu0 0
      %1750 = vmatprep.subr.bf16.mxu0 0
      %1751 = vmatpush1.bf16.msra.mxu0 0
      %1752 = vmatprep.subr.bf16.mxu0 0
      %1753 = vmatpush1.bf16.msra.mxu0 %v1736
      %1754 = vmatprep.subr.bf16.mxu0 0
      %1755 = vmatpush2.bf16.msra.mxu0 0
      %1756 = vmatprep.subr.bf16.mxu0 0
      %1757 = vmatpush2.bf16.msra.mxu0 0
      %1758 = vmatprep.subr.bf16.mxu0 0
      %1759 = vmatpush2.bf16.msra.mxu0 0
      %1760 = vmatprep.subr.bf16.mxu0 0
      %1761 = vmatpush2.bf16.msra.mxu0 0
      %1762 = vmatprep.subr.bf16.mxu0 0
      %1763 = vmatpush2.bf16.msra.mxu0 0
      %1764 = vmatprep.subr.bf16.mxu0 0
      %1765 = vmatpush2.bf16.msra.mxu0 0
      %1766 = vmatprep.subr.bf16.mxu0 0
      %1767 = vmatpush2.bf16.msra.mxu0 0
      %1768 = vmatprep.subr.bf16.mxu0 0
      %1769 = vmatpush2.bf16.msra.mxu0 0
      %1770 = vmatprep.mubr.bf16.mxu0 0
      %1771 = vmatmul.mubr.bf16.gmra.mxu0 %v1733
      %v1772 = vpop.f32.mrf.mxu0
      %v1773 = vadd.f32 0.0, %v1772
      %v1774 = vpop.f32.mrf.mxu0
      %v1775 = vpop.f32.mrf.mxu0
      %v1776 = vpop.f32.mrf.mxu0
      %1777 = vdwg.mxu0
      %1779 = vrot.lane.b32.xlu0 %v1773, 8
      %v1780 = vpop.permute.xlu0 %1779
      %1782 = vst.msk [vmem:[#allocation2] sm:$0xff] %vm1090, %v1780
      %1783 = vrot.lane.b32.xlu0 %v1551, 112
      %v1784 = vpop.permute.xlu0 %1783
      %1785 = vrot.lane.b32.xlu0 %v1552, 112
      %v1786 = vpop.permute.xlu0 %1785
      %v1788 = vsel %vm866, %v1784, 0
      %v1791 = vsel %vm866, %v1786, 0
      %1793 = vmatprep.subr.bf16.mxu0 0
      %1794 = vmatpush1.bf16.xpose.msra.mxu0 0
      %1795 = vmatprep.subr.bf16.mxu0 0
      %1796 = vmatpush1.bf16.xpose.msra.mxu0 0
      %1797 = vmatprep.subr.bf16.mxu0 0
      %1798 = vmatpush1.bf16.xpose.msra.mxu0 0
      %1799 = vmatprep.subr.bf16.mxu0 0
      %1800 = vmatpush1.bf16.xpose.msra.mxu0 0
      %1801 = vmatprep.subr.bf16.mxu0 0
      %1802 = vmatpush1.bf16.xpose.msra.mxu0 0
      %1803 = vmatprep.subr.bf16.mxu0 0
      %1804 = vmatpush1.bf16.xpose.msra.mxu0 0
      %1805 = vmatprep.subr.bf16.mxu0 0
      %1806 = vmatpush1.bf16.xpose.msra.mxu0 0
      %1807 = vmatprep.subr.bf16.mxu0 0
      %1808 = vmatpush1.bf16.xpose.msra.mxu0 %v1791
      %1809 = vmatprep.subr.bf16.mxu0 0
      %1810 = vmatpush2.bf16.xpose.msra.mxu0 0
      %1811 = vmatprep.subr.bf16.mxu0 0
      %1812 = vmatpush2.bf16.xpose.msra.mxu0 0
      %1813 = vmatprep.subr.bf16.mxu0 0
      %1814 = vmatpush2.bf16.xpose.msra.mxu0 0
      %1815 = vmatprep.subr.bf16.mxu0 0
      %1816 = vmatpush2.bf16.xpose.msra.mxu0 0
      %1817 = vmatprep.subr.bf16.mxu0 0
      %1818 = vmatpush2.bf16.xpose.msra.mxu0 0
      %1819 = vmatprep.subr.bf16.mxu0 0
      %1820 = vmatpush2.bf16.xpose.msra.mxu0 0
      %1821 = vmatprep.subr.bf16.mxu0 0
      %1822 = vmatpush2.bf16.xpose.msra.mxu0 0
      %1823 = vmatprep.subr.bf16.mxu0 0
      %1824 = vmatpush2.bf16.xpose.msra.mxu0 0
      %1825 = vmatprep.mubr.bf16.mxu0 0
      %1826 = vmatmul.mubr.bf16.gmra.mxu0 %v1788
      %v1827 = vpop.f32.mrf.mxu0
      %v1828 = vadd.f32 %v1556, %v1827
      %v1829 = vpop.f32.mrf.mxu0
      %v1830 = vpop.f32.mrf.mxu0
      %v1831 = vpop.f32.mrf.mxu0
      %1832 = vdwg.mxu0
      %v1833 = vsel %vm1603, %v1828, -inf
      %1834 = vmax.xlane.f32.xlu0 %v1833
      %v1835 = vpop.xlane.xlu0 %1834
      %v1836 = vsub.f32 %v1828, %v1835
      %v1837 = vmul.f32 %v1836, 1.442695
      %v1838 = vpow.pop %v1837
      %v1839 = vsel %vm1603, %v1838, 0.0
      %1840 = vadd.xlane.f32.xlu0 %v1839
      %v1841 = vpop.xlane.xlu0 %1840
      %v1842 = vrcp.pop %v1841
      %v1843 = vmul.f32 %v1838, %v1842
      %v1844 = vpack.c.bf16 %v1843, %v1843
      %1845 = vrot.lane.b32.xlu0 %v1552, 80
      %v1846 = vpop.permute.xlu0 %1845
      %v1848 = vsel %vm1603, %v1844, 0
      %v1851 = vsel %vm1622, %v1846, 0
      %1853 = vmatprep.subr.bf16.mxu0 0
      %1854 = vmatpush1.bf16.msra.mxu0 0
      %1855 = vmatprep.subr.bf16.mxu0 0
      %1856 = vmatpush1.bf16.msra.mxu0 0
      %1857 = vmatprep.subr.bf16.mxu0 0
      %1858 = vmatpush1.bf16.msra.mxu0 0
      %1859 = vmatprep.subr.bf16.mxu0 0
      %1860 = vmatpush1.bf16.msra.mxu0 0
      %1861 = vmatprep.subr.bf16.mxu0 0
      %1862 = vmatpush1.bf16.msra.mxu0 0
      %1863 = vmatprep.subr.bf16.mxu0 0
      %1864 = vmatpush1.bf16.msra.mxu0 0
      %1865 = vmatprep.subr.bf16.mxu0 0
      %1866 = vmatpush1.bf16.msra.mxu0 0
      %1867 = vmatprep.subr.bf16.mxu0 0
      %1868 = vmatpush1.bf16.msra.mxu0 %v1851
      %1869 = vmatprep.subr.bf16.mxu0 0
      %1870 = vmatpush2.bf16.msra.mxu0 0
      %1871 = vmatprep.subr.bf16.mxu0 0
      %1872 = vmatpush2.bf16.msra.mxu0 0
      %1873 = vmatprep.subr.bf16.mxu0 0
      %1874 = vmatpush2.bf16.msra.mxu0 0
      %1875 = vmatprep.subr.bf16.mxu0 0
      %1876 = vmatpush2.bf16.msra.mxu0 0
      %1877 = vmatprep.subr.bf16.mxu0 0
      %1878 = vmatpush2.bf16.msra.mxu0 0
      %1879 = vmatprep.subr.bf16.mxu0 0
      %1880 = vmatpush2.bf16.msra.mxu0 0
      %1881 = vmatprep.subr.bf16.mxu0 0
      %1882 = vmatpush2.bf16.msra.mxu0 0
      %1883 = vmatprep.subr.bf16.mxu0 0
      %1884 = vmatpush2.bf16.msra.mxu0 0
      %1885 = vmatprep.mubr.bf16.mxu0 0
      %1886 = vmatmul.mubr.bf16.gmra.mxu0 %v1848
      %v1887 = vpop.f32.mrf.mxu0
      %v1888 = vadd.f32 0.0, %v1887
      %v1889 = vpop.f32.mrf.mxu0
      %v1890 = vpop.f32.mrf.mxu0
      %v1891 = vpop.f32.mrf.mxu0
      %1892 = vdwg.mxu0
      %1894 = vrot.lane.b32.xlu0 %v1888, 16
      %v1895 = vpop.permute.xlu0 %1894
      %1897 = vst.msk [vmem:[#allocation2] sm:$0xff] %vm1206, %v1895
      %1898 = vrot.lane.b32.xlu0 %v1551, 104
      %v1899 = vpop.permute.xlu0 %1898
      %1900 = vrot.lane.b32.xlu0 %v1552, 104
      %v1901 = vpop.permute.xlu0 %1900
      %v1903 = vsel %vm866, %v1899, 0
      %v1906 = vsel %vm866, %v1901, 0
      %1908 = vmatprep.subr.bf16.mxu0 0
      %1909 = vmatpush1.bf16.xpose.msra.mxu0 0
      %1910 = vmatprep.subr.bf16.mxu0 0
      %1911 = vmatpush1.bf16.xpose.msra.mxu0 0
      %1912 = vmatprep.subr.bf16.mxu0 0
      %1913 = vmatpush1.bf16.xpose.msra.mxu0 0
      %1914 = vmatprep.subr.bf16.mxu0 0
      %1915 = vmatpush1.bf16.xpose.msra.mxu0 0
      %1916 = vmatprep.subr.bf16.mxu0 0
      %1917 = vmatpush1.bf16.xpose.msra.mxu0 0
      %1918 = vmatprep.subr.bf16.mxu0 0
      %1919 = vmatpush1.bf16.xpose.msra.mxu0 0
      %1920 = vmatprep.subr.bf16.mxu0 0
      %1921 = vmatpush1.bf16.xpose.msra.mxu0 0
      %1922 = vmatprep.subr.bf16.mxu0 0
      %1923 = vmatpush1.bf16.xpose.msra.mxu0 %v1906
      %1924 = vmatprep.subr.bf16.mxu0 0
      %1925 = vmatpush2.bf16.xpose.msra.mxu0 0
      %1926 = vmatprep.subr.bf16.mxu0 0
      %1927 = vmatpush2.bf16.xpose.msra.mxu0 0
      %1928 = vmatprep.subr.bf16.mxu0 0
      %1929 = vmatpush2.bf16.xpose.msra.mxu0 0
      %1930 = vmatprep.subr.bf16.mxu0 0
      %1931 = vmatpush2.bf16.xpose.msra.mxu0 0
      %1932 = vmatprep.subr.bf16.mxu0 0
      %1933 = vmatpush2.bf16.xpose.msra.mxu0 0
      %1934 = vmatprep.subr.bf16.mxu0 0
      %1935 = vmatpush2.bf16.xpose.msra.mxu0 0
      %1936 = vmatprep.subr.bf16.mxu0 0
      %1937 = vmatpush2.bf16.xpose.msra.mxu0 0
      %1938 = vmatprep.subr.bf16.mxu0 0
      %1939 = vmatpush2.bf16.xpose.msra.mxu0 0
      %1940 = vmatprep.mubr.bf16.mxu0 0
      %1941 = vmatmul.mubr.bf16.gmra.mxu0 %v1903
      %v1942 = vpop.f32.mrf.mxu0
      %v1943 = vadd.f32 %v1556, %v1942
      %v1944 = vpop.f32.mrf.mxu0
      %v1945 = vpop.f32.mrf.mxu0
      %v1946 = vpop.f32.mrf.mxu0
      %1947 = vdwg.mxu0
      %v1948 = vsel %vm1603, %v1943, -inf
      %1949 = vmax.xlane.f32.xlu0 %v1948
      %v1950 = vpop.xlane.xlu0 %1949
      %v1951 = vsub.f32 %v1943, %v1950
      %v1952 = vmul.f32 %v1951, 1.442695
      %v1953 = vpow.pop %v1952
      %v1954 = vsel %vm1603, %v1953, 0.0
      %1955 = vadd.xlane.f32.xlu0 %v1954
      %v1956 = vpop.xlane.xlu0 %1955
      %v1957 = vrcp.pop %v1956
      %v1958 = vmul.f32 %v1953, %v1957
      %v1959 = vpack.c.bf16 %v1958, %v1958
      %1960 = vrot.lane.b32.xlu0 %v1552, 72
      %v1961 = vpop.permute.xlu0 %1960
      %v1963 = vsel %vm1603, %v1959, 0
      %v1966 = vsel %vm1622, %v1961, 0
      %1968 = vmatprep.subr.bf16.mxu0 0
      %1969 = vmatpush1.bf16.msra.mxu0 0
      %1970 = vmatprep.subr.bf16.mxu0 0
      %1971 = vmatpush1.bf16.msra.mxu0 0
      %1972 = vmatprep.subr.bf16.mxu0 0
      %1973 = vmatpush1.bf16.msra.mxu0 0
      %1974 = vmatprep.subr.bf16.mxu0 0
      %1975 = vmatpush1.bf16.msra.mxu0 0
      %1976 = vmatprep.subr.bf16.mxu0 0
      %1977 = vmatpush1.bf16.msra.mxu0 0
      %1978 = vmatprep.subr.bf16.mxu0 0
      %1979 = vmatpush1.bf16.msra.mxu0 0
      %1980 = vmatprep.subr.bf16.mxu0 0
      %1981 = vmatpush1.bf16.msra.mxu0 0
      %1982 = vmatprep.subr.bf16.mxu0 0
      %1983 = vmatpush1.bf16.msra.mxu0 %v1966
      %1984 = vmatprep.subr.bf16.mxu0 0
      %1985 = vmatpush2.bf16.msra.mxu0 0
      %1986 = vmatprep.subr.bf16.mxu0 0
      %1987 = vmatpush2.bf16.msra.mxu0 0
      %1988 = vmatprep.subr.bf16.mxu0 0
      %1989 = vmatpush2.bf16.msra.mxu0 0
      %1990 = vmatprep.subr.bf16.mxu0 0
      %1991 = vmatpush2.bf16.msra.mxu0 0
      %1992 = vmatprep.subr.bf16.mxu0 0
      %1993 = vmatpush2.bf16.msra.mxu0 0
      %1994 = vmatprep.subr.bf16.mxu0 0
      %1995 = vmatpush2.bf16.msra.mxu0 0
      %1996 = vmatprep.subr.bf16.mxu0 0
      %1997 = vmatpush2.bf16.msra.mxu0 0
      %1998 = vmatprep.subr.bf16.mxu0 0
      %1999 = vmatpush2.bf16.msra.mxu0 0
      %2000 = vmatprep.mubr.bf16.mxu0 0
      %2001 = vmatmul.mubr.bf16.gmra.mxu0 %v1963
      %v2002 = vpop.f32.mrf.mxu0
      %v2003 = vadd.f32 0.0, %v2002
      %v2004 = vpop.f32.mrf.mxu0
      %v2005 = vpop.f32.mrf.mxu0
      %v2006 = vpop.f32.mrf.mxu0
      %2007 = vdwg.mxu0
      %2009 = vrot.lane.b32.xlu0 %v2003, 24
      %v2010 = vpop.permute.xlu0 %2009
      %2012 = vst.msk [vmem:[#allocation2] sm:$0xff] %vm1322, %v2010
      %v2013 = vld [vmem:[#allocation2] sm:$0xff]
      %v2014 = vpack.c.bf16 %v2013, %v2013
      %v2015 = vld [vmem:[%s13] sm:$0xf]
      %v2016 = vld [vmem:[%s13 + $0x4] sm:$0xf]
      %v2017 = vld [vmem:[%s13 + $0x8] sm:$0xf]
      %v2018 = vld [vmem:[%s13 + $0xc] sm:$0xf]
      %v2019 = vld [vmem:[%s14] sm:$0x1]
      %v2021 = vlaneseq
      %v2022 = vshrl.u32 %v2021, 7
      %v2023 = vsub.s32 0, %v2022
      %v2024 = vrot.slane %v2019, %v2023
      %v2030 = vunpack.c.l.b16 %v2015
      %v2031 = vunpack.c.l.b16 %v2016
      %v2032 = vunpack.c.l.b16 %v2017
      %v2033 = vunpack.c.l.b16 %v2018
      %v2034 = vpack.c.b16 %v2031, %v2030
      %v2035 = vpack.c.b16 %v2033, %v2032
      %v2039 = vsel %vm808, %v2014, 0
      %2041 = vmatprep.subr.bf16.mxu0 0
      %2042 = vmatpush1.bf16.msra.mxu0 0
      %2043 = vmatprep.subr.bf16.mxu0 0
      %2044 = vmatpush1.bf16.msra.mxu0 0
      %2045 = vmatprep.subr.bf16.mxu0 0
      %2046 = vmatpush1.bf16.msra.mxu0 0
      %2047 = vmatprep.subr.bf16.mxu0 0
      %2048 = vmatpush1.bf16.msra.mxu0 0
      %2049 = vmatprep.subr.bf16.mxu0 0
      %2050 = vmatpush1.bf16.msra.mxu0 0
      %2051 = vmatprep.subr.bf16.mxu0 0
      %2052 = vmatpush1.bf16.msra.mxu0 0
      %2053 = vmatprep.subr.bf16.mxu0 0
      %2054 = vmatpush1.bf16.msra.mxu0 %v2035
      %2055 = vmatprep.subr.bf16.mxu0 0
      %2056 = vmatpush1.bf16.msra.mxu0 %v2034
      %2057 = vmatprep.subr.bf16.mxu0 0
      %2058 = vmatpush2.bf16.msra.mxu0 0
      %2059 = vmatprep.subr.bf16.mxu0 0
      %2060 = vmatpush2.bf16.msra.mxu0 0
      %2061 = vmatprep.subr.bf16.mxu0 0
      %2062 = vmatpush2.bf16.msra.mxu0 0
      %2063 = vmatprep.subr.bf16.mxu0 0
      %2064 = vmatpush2.bf16.msra.mxu0 0
      %2065 = vmatprep.subr.bf16.mxu0 0
      %2066 = vmatpush2.bf16.msra.mxu0 0
      %2067 = vmatprep.subr.bf16.mxu0 0
      %2068 = vmatpush2.bf16.msra.mxu0 0
      %2069 = vmatprep.subr.bf16.mxu0 0
      %2070 = vmatpush2.bf16.msra.mxu0 0
      %2071 = vmatprep.subr.bf16.mxu0 0
      %2072 = vmatpush2.bf16.msra.mxu0 0
      %2073 = vmatprep.mubr.bf16.mxu0 0
      %2074 = vmatmul.mubr.bf16.gmra.mxu0 %v2039
      %v2075 = vpop.f32.mrf.mxu0
      %v2076 = vadd.f32 %v2024, %v2075
      %v2077 = vpop.f32.mrf.mxu0
      %v2078 = vpop.f32.mrf.mxu0
      %v2079 = vpop.f32.mrf.mxu0
      %2080 = vdwg.mxu0
      %v2081 = vadd.f32 %v1422, %v2076
      %v2082 = vld [vmem:[%s15] sm:$0x1]
      %v2083 = vld [vmem:[%s16] sm:$0x1]
      %v2084 = vsel %vm808, %v2081, 0.0
      %2085 = vadd.xlane.f32.xlu0 %v2084
      %v2086 = vpop.xlane.xlu0 %2085
      %v2087 = vmul.f32 %v2086, %v1398
      %v2088 = vsub.f32 %v2081, %v2087
      %v2089 = vmul.f32 %v2088, %v2088
      %v2090 = vsel %vm808, %v2089, 0.0
      %2091 = vadd.xlane.f32.xlu0 %v2090
      %v2092 = vpop.xlane.xlu0 %2091
      %v2093 = vmul.f32 %v2092, %v1398
      %v2094 = vadd.f32 %v2093, 1e-05
      %v2095 = vrsqrt.pop %v2094
      %v2096 = vmul.f32 %v2088, %v2095
      %v2098 = vlaneseq
      %v2099 = vshrl.u32 %v2098, 7
      %v2100 = vsub.s32 0, %v2099
      %v2101 = vrot.slane %v2082, %v2100
      %v2103 = vmul.f32 %v2096, %v2101
      %v2105 = vlaneseq
      %v2106 = vshrl.u32 %v2105, 7
      %v2107 = vsub.s32 0, %v2106
      %v2108 = vrot.slane %v2083, %v2107
      %v2110 = vadd.f32 %v2103, %v2108
      %v2111 = vpack.c.bf16 %v2110, %v2110
      %v2112 = vld [vmem:[%s17] sm:$0xf]
      %v2113 = vld [vmem:[%s17 + $0x4] sm:$0xf]
      %v2114 = vld [vmem:[%s17 + $0x8] sm:$0xf]
      %v2115 = vld [vmem:[%s17 + $0xc] sm:$0xf]
      %v2116 = vld [vmem:[%s18] sm:$0x1]
      %v2118 = vlaneseq
      %v2119 = vshrl.u32 %v2118, 7
      %v2120 = vsub.s32 0, %v2119
      %v2121 = vrot.slane %v2116, %v2120
      %v2127 = vunpack.c.l.b16 %v2112
      %v2128 = vunpack.c.l.b16 %v2113
      %v2129 = vunpack.c.l.b16 %v2114
      %v2130 = vunpack.c.l.b16 %v2115
      %v2131 = vpack.c.b16 %v2128, %v2127
      %v2132 = vpack.c.b16 %v2130, %v2129
      %v2136 = vsel %vm808, %v2111, 0
      %2138 = vmatprep.subr.bf16.mxu0 0
      %2139 = vmatpush1.bf16.msra.mxu0 0
      %2140 = vmatprep.subr.bf16.mxu0 0
      %2141 = vmatpush1.bf16.msra.mxu0 0
      %2142 = vmatprep.subr.bf16.mxu0 0
      %2143 = vmatpush1.bf16.msra.mxu0 0
      %2144 = vmatprep.subr.bf16.mxu0 0
      %2145 = vmatpush1.bf16.msra.mxu0 0
      %2146 = vmatprep.subr.bf16.mxu0 0
      %2147 = vmatpush1.bf16.msra.mxu0 0
      %2148 = vmatprep.subr.bf16.mxu0 0
      %2149 = vmatpush1.bf16.msra.mxu0 0
      %2150 = vmatprep.subr.bf16.mxu0 0
      %2151 = vmatpush1.bf16.msra.mxu0 %v2132
      %2152 = vmatprep.subr.bf16.mxu0 0
      %2153 = vmatpush1.bf16.msra.mxu0 %v2131
      %2154 = vmatprep.subr.bf16.mxu0 0
      %2155 = vmatpush2.bf16.msra.mxu0 0
      %2156 = vmatprep.subr.bf16.mxu0 0
      %2157 = vmatpush2.bf16.msra.mxu0 0
      %2158 = vmatprep.subr.bf16.mxu0 0
      %2159 = vmatpush2.bf16.msra.mxu0 0
      %2160 = vmatprep.subr.bf16.mxu0 0
      %2161 = vmatpush2.bf16.msra.mxu0 0
      %2162 = vmatprep.subr.bf16.mxu0 0
      %2163 = vmatpush2.bf16.msra.mxu0 0
      %2164 = vmatprep.subr.bf16.mxu0 0
      %2165 = vmatpush2.bf16.msra.mxu0 0
      %2166 = vmatprep.subr.bf16.mxu0 0
      %2167 = vmatpush2.bf16.msra.mxu0 0
      %2168 = vmatprep.subr.bf16.mxu0 0
      %2169 = vmatpush2.bf16.msra.mxu0 0
      %2170 = vmatprep.mubr.bf16.mxu0 0
      %2171 = vmatmul.mubr.bf16.gmra.mxu0 %v2136
      %v2172 = vpop.f32.mrf.mxu0
      %v2173 = vadd.f32 %v2121, %v2172
      %v2174 = vpop.f32.mrf.mxu0
      %v2175 = vpop.f32.mrf.mxu0
      %v2176 = vpop.f32.mrf.mxu0
      %2177 = vdwg.mxu0
      %v2178 = vmax.f32 %v2173, 0.0
      %v2179 = vpack.c.bf16 %v2178, %v2178
      %v2180 = vld [vmem:[%s19] sm:$0xf]
      %v2181 = vld [vmem:[%s19 + $0x4] sm:$0xf]
      %v2182 = vld [vmem:[%s19 + $0x8] sm:$0xf]
      %v2183 = vld [vmem:[%s19 + $0xc] sm:$0xf]
      %v2184 = vld [vmem:[%s19 + $0x10] sm:$0xf]
      %v2185 = vld [vmem:[%s19 + $0x14] sm:$0xf]
      %v2186 = vld [vmem:[%s19 + $0x18] sm:$0xf]
      %v2187 = vld [vmem:[%s19 + $0x1c] sm:$0xf]
      %v2188 = vld [vmem:[%s20] sm:$0x1]
      %v2190 = vlaneseq
      %v2191 = vshrl.u32 %v2190, 7
      %v2192 = vsub.s32 0, %v2191
      %v2193 = vrot.slane %v2188, %v2192
      %v2203 = vunpack.c.l.b16 %v2180
      %v2204 = vunpack.c.l.b16 %v2181
      %v2205 = vunpack.c.l.b16 %v2182
      %v2206 = vunpack.c.l.b16 %v2183
      %v2207 = vunpack.c.l.b16 %v2184
      %v2208 = vunpack.c.l.b16 %v2185
      %v2209 = vunpack.c.l.b16 %v2186
      %v2210 = vunpack.c.l.b16 %v2187
      %v2211 = vpack.c.b16 %v2204, %v2203
      %v2212 = vpack.c.b16 %v2206, %v2205
      %v2213 = vpack.c.b16 %v2208, %v2207
      %v2214 = vpack.c.b16 %v2210, %v2209
      %vm2219 = vcmask 523264
      %v2221 = vsel %vm2219, %v2179, 0
      %2223 = vmatprep.subr.bf16.mxu0 0
      %2224 = vmatpush1.bf16.msra.mxu0 0
      %2225 = vmatprep.subr.bf16.mxu0 0
      %2226 = vmatpush1.bf16.msra.mxu0 0
      %2227 = vmatprep.subr.bf16.mxu0 0
      %2228 = vmatpush1.bf16.msra.mxu0 0
      %2229 = vmatprep.subr.bf16.mxu0 0
      %2230 = vmatpush1.bf16.msra.mxu0 0
      %2231 = vmatprep.subr.bf16.mxu0 0
      %2232 = vmatpush1.bf16.msra.mxu0 %v2214
      %2233 = vmatprep.subr.bf16.mxu0 0
      %2234 = vmatpush1.bf16.msra.mxu0 %v2213
      %2235 = vmatprep.subr.bf16.mxu0 0
      %2236 = vmatpush1.bf16.msra.mxu0 %v2212
      %2237 = vmatprep.subr.bf16.mxu0 0
      %2238 = vmatpush1.bf16.msra.mxu0 %v2211
      %2239 = vmatprep.subr.bf16.mxu0 0
      %2240 = vmatpush2.bf16.msra.mxu0 0
      %2241 = vmatprep.subr.bf16.mxu0 0
      %2242 = vmatpush2.bf16.msra.mxu0 0
      %2243 = vmatprep.subr.bf16.mxu0 0
      %2244 = vmatpush2.bf16.msra.mxu0 0
      %2245 = vmatprep.subr.bf16.mxu0 0
      %2246 = vmatpush2.bf16.msra.mxu0 0
      %2247 = vmatprep.subr.bf16.mxu0 0
      %2248 = vmatpush2.bf16.msra.mxu0 0
      %2249 = vmatprep.subr.bf16.mxu0 0
      %2250 = vmatpush2.bf16.msra.mxu0 0
      %2251 = vmatprep.subr.bf16.mxu0 0
      %2252 = vmatpush2.bf16.msra.mxu0 0
      %2253 = vmatprep.subr.bf16.mxu0 0
      %2254 = vmatpush2.bf16.msra.mxu0 0
      %2255 = vmatprep.mubr.bf16.mxu0 0
      %2256 = vmatmul.mubr.bf16.gmra.mxu0 %v2221
      %v2257 = vpop.f32.mrf.mxu0
      %v2258 = vadd.f32 %v2193, %v2257
      %v2259 = vpop.f32.mrf.mxu0
      %v2260 = vpop.f32.mrf.mxu0
      %v2261 = vpop.f32.mrf.mxu0
      %2262 = vdwg.mxu0
      %v2263 = vadd.f32 %v2110, %v2258
      %v2264 = vld [vmem:[%s21] sm:$0x1]
      %v2265 = vld [vmem:[%s22] sm:$0x1]
      %v2266 = vsel %vm808, %v2263, 0.0
      %2267 = vadd.xlane.f32.xlu0 %v2266
      %v2268 = vpop.xlane.xlu0 %2267
      %v2269 = vmul.f32 %v2268, %v1398
      %v2270 = vsub.f32 %v2263, %v2269
      %v2271 = vmul.f32 %v2270, %v2270
      %v2272 = vsel %vm808, %v2271, 0.0
      %2273 = vadd.xlane.f32.xlu0 %v2272
      %v2274 = vpop.xlane.xlu0 %2273
      %v2275 = vmul.f32 %v2274, %v1398
      %v2276 = vadd.f32 %v2275, 1e-05
      %v2277 = vrsqrt.pop %v2276
      %v2278 = vmul.f32 %v2270, %v2277
      %v2280 = vlaneseq
      %v2281 = vshrl.u32 %v2280, 7
      %v2282 = vsub.s32 0, %v2281
      %v2283 = vrot.slane %v2264, %v2282
      %v2285 = vmul.f32 %v2278, %v2283
      %v2287 = vlaneseq
      %v2288 = vshrl.u32 %v2287, 7
      %v2289 = vsub.s32 0, %v2288
      %v2290 = vrot.slane %v2265, %v2289
      %v2292 = vadd.f32 %v2285, %v2290
      %v2293 = vpack.c.bf16 %v2292, %v2292
      %vm2294 = vcmask 257024
      %2295 = vst.msk [vmem:[%s779] sm:$0xf] %vm2294, %v2293
      %p2296 = scmp.lt.s32.totalorder %s36, 1
      %s2297 = scalar_select %p2296, %s36, 1
      %s2298 = smul.addr %s2297, 4
      %s2299 = scalar_lea.vmem %s25, %s2298
      // Predicated region
      $region121: #{run.7} parent=119 // pred_check
        %p2300 = pneg %p589
      $region122: #{run.7} parent=119 // pred_check_branch
        %2302 = sbr.rel (%p2300) target = $region124
      $region123: #{run.7} parent=119 // pred_region
        _
      $region124: #{run.7} parent=119 // pred_fallthru
        _
    $region120: #{run.7} parent=5 // pred_fallthru
      _
    %p2303 = scmp.le.s32.totalorder 2, %s31
    // Predicated region
    $region125: #{run.7} parent=5 // pred_check
      %p2304 = pneg %p2303
    $region126: #{run.7} parent=5 // pred_check_branch
      %2306 = sbr.rel (%p2304) target = $region128
    $region127: #{run.7} parent=5 // pred_region
      %s2307 = ssub.s32 %s31, 2
      // Predicated region
      $region129: #{run.7} parent=127 // pred_check
        %p2308 = pneg %p595
      $region130: #{run.7} parent=127 // pred_check_branch
        %2310 = sbr.rel (%p2308) target = $region132
      $region131: #{run.7} parent=127 // pred_region
        %p2311 = scmp.lt.s32.totalorder %s37, 1
        %s2312 = scalar_select %p2311, %s37, 1
        %s2313 = smul.addr %s2312, 4
        %s2314 = scalar_lea.vmem %s25, %s2313
      $region132: #{run.7} parent=127 // pred_fallthru
        _
    $region128: #{run.7} parent=5 // pred_fallthru
      _
  $region6: #{run.7} parent=0 // loop_footer
    %s35 = sadd.s32 1, %s31
  $region7: #{run.7} parent=0 // loop_footer_branch
    %30 = sbr.rel target = $region3
  $region8: #{run.7} parent=0 // loop_exit
    _

// kernel: run.8
$region0: #{run.8}
  #allocation0 [shape = 'u32[]', space=smem, size = 0x4, offset = 0x4, fixed_abs, tag = 'smem constant byte address 0x4 - core index']
  #allocation1 [shape = 'u32[144,128]{1,0:T(1,128)}', space=vmem, size = 0x12000, scoped, tag = 'internal scratch']
  #allocation2 [shape = 'f32[8,32]{1,0:T(8,128)}', space=vmem, size = 0x1000, scoped, tag = 'scratch operand']
  %s0 = inlined_call_operand.vmem [shape: bf16[2,8,32], index: 0, kind: input, shape index: {}]
  %s1 = inlined_call_operand.vmem [shape: bf16[2,10,32], index: 1, kind: input, shape index: {}]
  %s2 = inlined_call_operand.vmem [shape: f32[8,8], index: 2, kind: input, shape index: {}]
  %s3 = inlined_call_operand.vmem [shape: f32[2,8], index: 3, kind: input, shape index: {}]
  %s4 = inlined_call_operand.vmem [shape: f32[2,10], index: 4, kind: input, shape index: {}]
  %s5 = inlined_call_operand.vmem [shape: bf16[32,96], index: 5, kind: input, shape index: {}]
  %s6 = inlined_call_operand.vmem [shape: f32[1,96], index: 6, kind: input, shape index: {}]
  %s7 = inlined_call_operand.vmem [shape: bf16[32,32], index: 7, kind: input, shape index: {}]
  %s8 = inlined_call_operand.vmem [shape: f32[1,32], index: 8, kind: input, shape index: {}]
  %s9 = inlined_call_operand.vmem [shape: f32[1,32], index: 9, kind: input, shape index: {}]
  %s10 = inlined_call_operand.vmem [shape: f32[1,32], index: 10, kind: input, shape index: {}]
  %s11 = inlined_call_operand.vmem [shape: bf16[32,96], index: 11, kind: input, shape index: {}]
  %s12 = inlined_call_operand.vmem [shape: f32[1,96], index: 12, kind: input, shape index: {}]
  %s13 = inlined_call_operand.vmem [shape: bf16[32,32], index: 13, kind: input, shape index: {}]
  %s14 = inlined_call_operand.vmem [shape: f32[1,32], index: 14, kind: input, shape index: {}]
  %s15 = inlined_call_operand.vmem [shape: f32[1,32], index: 15, kind: input, shape index: {}]
  %s16 = inlined_call_operand.vmem [shape: f32[1,32], index: 16, kind: input, shape index: {}]
  %s17 = inlined_call_operand.vmem [shape: bf16[32,64], index: 17, kind: input, shape index: {}]
  %s18 = inlined_call_operand.vmem [shape: f32[1,64], index: 18, kind: input, shape index: {}]
  %s19 = inlined_call_operand.vmem [shape: bf16[64,32], index: 19, kind: input, shape index: {}]
  %s20 = inlined_call_operand.vmem [shape: f32[1,32], index: 20, kind: input, shape index: {}]
  %s21 = inlined_call_operand.vmem [shape: f32[1,32], index: 21, kind: input, shape index: {}]
  %s22 = inlined_call_operand.vmem [shape: f32[1,32], index: 22, kind: input, shape index: {}]
  %s23 = inlined_call_operand.vmem [shape: f32[1,32], index: 23, kind: input, shape index: {}]
  %s24 = inlined_call_operand.vmem [shape: f32[1,32], index: 24, kind: input, shape index: {}]
  %s25 = inlined_call_operand.vmem [shape: bf16[2,8,32], index: 25, kind: output, shape index: {}]
  %s26 = sld [smem:[#allocation0]]
  $region133: #{run.8} parent=0
    _
  %s28 = ssub.s32 1, %s26
  %s29 = scalar_select 0, %s28, %s26
  loop: start=0, step=1, limit=4
  $region2: #{run.8} parent=0 // loop_pre_header
    _
  $region3: #{run.8} parent=0 // loop_header
    %s31 = sphi 0, %s35
    %p32 = scmp.ge.s32.totalorder %s31, 4
    %s41 = sphi 0, %s43
    %s44 = sphi 0, %s41
    %s45 = sphi 0, %s44
    %s61 = sphi 0, %s45
    %s67 = sphi 0, %s69
    %s70 = sphi 0, %s67
    %s71 = sphi 0, %s70
    %s87 = sphi 0, %s71
    %s91 = sphi 0, %s91
    %s93 = sphi 0, %s91
    %s94 = sphi 0, %s93
    %s108 = sphi 0, %s94
    %s112 = sphi 0, %s112
    %s114 = sphi 0, %s112
    %s115 = sphi 0, %s114
    %s129 = sphi 0, %s115
    %s133 = sphi 0, %s133
    %s135 = sphi 0, %s133
    %s136 = sphi 0, %s135
    %s150 = sphi 0, %s136
    %s154 = sphi 0, %s154
    %s156 = sphi 0, %s154
    %s157 = sphi 0, %s156
    %s171 = sphi 0, %s157
    %s175 = sphi 0, %s175
    %s177 = sphi 0, %s175
    %s178 = sphi 0, %s177
    %s192 = sphi 0, %s178
    %s196 = sphi 0, %s196
    %s198 = sphi 0, %s196
    %s199 = sphi 0, %s198
    %s213 = sphi 0, %s199
    %s217 = sphi 0, %s217
    %s219 = sphi 0, %s217
    %s220 = sphi 0, %s219
    %s234 = sphi 0, %s220
    %s238 = sphi 0, %s238
    %s240 = sphi 0, %s238
    %s241 = sphi 0, %s240
    %s255 = sphi 0, %s241
    %s259 = sphi 0, %s259
    %s261 = sphi 0, %s259
    %s262 = sphi 0, %s261
    %s276 = sphi 0, %s262
    %s280 = sphi 0, %s280
    %s282 = sphi 0, %s280
    %s283 = sphi 0, %s282
    %s297 = sphi 0, %s283
    %s301 = sphi 0, %s301
    %s303 = sphi 0, %s301
    %s304 = sphi 0, %s303
    %s318 = sphi 0, %s304
    %s322 = sphi 0, %s322
    %s324 = sphi 0, %s322
    %s325 = sphi 0, %s324
    %s339 = sphi 0, %s325
    %s343 = sphi 0, %s343
    %s345 = sphi 0, %s343
    %s346 = sphi 0, %s345
    %s360 = sphi 0, %s346
    %s364 = sphi 0, %s364
    %s366 = sphi 0, %s364
    %s367 = sphi 0, %s366
    %s381 = sphi 0, %s367
    %s385 = sphi 0, %s385
    %s387 = sphi 0, %s385
    %s388 = sphi 0, %s387
    %s402 = sphi 0, %s388
    %s406 = sphi 0, %s406
    %s408 = sphi 0, %s406
    %s409 = sphi 0, %s408
    %s423 = sphi 0, %s409
    %s427 = sphi 0, %s427
    %s429 = sphi 0, %s427
    %s430 = sphi 0, %s429
    %s444 = sphi 0, %s430
    %s448 = sphi 0, %s448
    %s450 = sphi 0, %s448
    %s451 = sphi 0, %s450
    %s465 = sphi 0, %s451
    %s469 = sphi 0, %s469
    %s471 = sphi 0, %s469
    %s472 = sphi 0, %s471
    %s486 = sphi 0, %s472
    %s490 = sphi 0, %s490
    %s492 = sphi 0, %s490
    %s493 = sphi 0, %s492
    %s507 = sphi 0, %s493
    %s511 = sphi 0, %s511
    %s513 = sphi 0, %s511
    %s514 = sphi 0, %s513
    %s528 = sphi 0, %s514
    %s532 = sphi 0, %s532
    %s534 = sphi 0, %s532
    %s535 = sphi 0, %s534
    %s549 = sphi 0, %s535
    %s553 = sphi 0, %s553
    %s555 = sphi 0, %s553
    %s556 = sphi 0, %s555
    %s570 = sphi 0, %s556
    %s576 = sphi 0, %s578
    %s579 = sphi 0, %s576
    %s580 = sphi 0, %s579
    %s596 = sphi 0, %s580
  $region4: #{run.8} parent=0 // loop_header_branch
    %34 = sbr.rel (%p32) target = $region8
  $region5: #{run.8} parent=0 // loop_body
    %s36 = ssub.s32 %s31, 1
    %s37 = ssub.s32 %s31, 2
    %s38 = sadd.s32 %s31, 1
    %s39 = ssub.s32 %s31, %s38
    %p40 = scmp.eq.s32.totalorder %s39, 0
    %s42 = sadd.s32 %s41, 1
    %s43 = scalar_select %p40, %s41, %s42
    %p46 = pneg %p40
    %p47 = scmp.eq.s32.totalorder %s31, 1
    %p48 = por %p46, %p47
    %p49 = scmp.ne.s32.totalorder %s41, %s44
    %p50 = scmp.eq.s32.totalorder %s31, 0
    %p51 = por %p49, %p50
    %p52 = scmp.ne.s32.totalorder %s41, %s44
    %p53 = scmp.eq.s32.totalorder %s36, 1
    %p54 = por %p52, %p53
    %p55 = scmp.ne.s32.totalorder %s44, %s45
    %p56 = scmp.eq.s32.totalorder %s36, 0
    %p57 = por %p55, %p56
    %p58 = scmp.ne.s32.totalorder %s44, %s45
    %p59 = scmp.eq.s32.totalorder %s37, 1
    %p60 = por %p58, %p59
    %p62 = scmp.ne.s32.totalorder %s45, %s61
    %p63 = scmp.eq.s32.totalorder %s37, 0
    %p64 = por %p62, %p63
    %s65 = ssub.s32 %s31, %s38
    %p66 = scmp.eq.s32.totalorder %s65, 0
    %s68 = sadd.s32 %s67, 1
    %s69 = scalar_select %p66, %s67, %s68
    %p72 = pneg %p66
    %p73 = scmp.eq.s32.totalorder %s31, 1
    %p74 = por %p72, %p73
    %p75 = scmp.ne.s32.totalorder %s67, %s70
    %p76 = scmp.eq.s32.totalorder %s31, 0
    %p77 = por %p75, %p76
    %p78 = scmp.ne.s32.totalorder %s67, %s70
    %p79 = scmp.eq.s32.totalorder %s36, 1
    %p80 = por %p78, %p79
    %p81 = scmp.ne.s32.totalorder %s70, %s71
    %p82 = scmp.eq.s32.totalorder %s36, 0
    %p83 = por %p81, %p82
    %p84 = scmp.ne.s32.totalorder %s70, %s71
    %p85 = scmp.eq.s32.totalorder %s37, 1
    %p86 = por %p84, %p85
    %p88 = scmp.ne.s32.totalorder %s71, %s87
    %p89 = scmp.eq.s32.totalorder %s37, 0
    %p90 = por %p88, %p89
    %s92 = sadd.s32 %s91, 1
    %p95 = scmp.eq.s32.totalorder %s31, 1
    %p96 = scmp.ne.s32.totalorder %s91, %s93
    %p97 = scmp.eq.s32.totalorder %s31, 0
    %p98 = por %p96, %p97
    %p99 = scmp.ne.s32.totalorder %s91, %s93
    %p100 = scmp.eq.s32.totalorder %s36, 1
    %p101 = por %p99, %p100
    %p102 = scmp.ne.s32.totalorder %s93, %s94
    %p103 = scmp.eq.s32.totalorder %s36, 0
    %p104 = por %p102, %p103
    %p105 = scmp.ne.s32.totalorder %s93, %s94
    %p106 = scmp.eq.s32.totalorder %s37, 1
    %p107 = por %p105, %p106
    %p109 = scmp.ne.s32.totalorder %s94, %s108
    %p110 = scmp.eq.s32.totalorder %s37, 0
    %p111 = por %p109, %p110
    %s113 = sadd.s32 %s112, 1
    %p116 = scmp.eq.s32.totalorder %s31, 1
    %p117 = scmp.ne.s32.totalorder %s112, %s114
    %p118 = scmp.eq.s32.totalorder %s31, 0
    %p119 = por %p117, %p118
    %p120 = scmp.ne.s32.totalorder %s112, %s114
    %p121 = scmp.eq.s32.totalorder %s36, 1
    %p122 = por %p120, %p121
    %p123 = scmp.ne.s32.totalorder %s114, %s115
    %p124 = scmp.eq.s32.totalorder %s36, 0
    %p125 = por %p123, %p124
    %p126 = scmp.ne.s32.totalorder %s114, %s115
    %p127 = scmp.eq.s32.totalorder %s37, 1
    %p128 = por %p126, %p127
    %p130 = scmp.ne.s32.totalorder %s115, %s129
    %p131 = scmp.eq.s32.totalorder %s37, 0
    %p132 = por %p130, %p131
    %s134 = sadd.s32 %s133, 1
    %p137 = scmp.eq.s32.totalorder %s31, 1
    %p138 = scmp.ne.s32.totalorder %s133, %s135
    %p139 = scmp.eq.s32.totalorder %s31, 0
    %p140 = por %p138, %p139
    %p141 = scmp.ne.s32.totalorder %s133, %s135
    %p142 = scmp.eq.s32.totalorder %s36, 1
    %p143 = por %p141, %p142
    %p144 = scmp.ne.s32.totalorder %s135, %s136
    %p145 = scmp.eq.s32.totalorder %s36, 0
    %p146 = por %p144, %p145
    %p147 = scmp.ne.s32.totalorder %s135, %s136
    %p148 = scmp.eq.s32.totalorder %s37, 1
    %p149 = por %p147, %p148
    %p151 = scmp.ne.s32.totalorder %s136, %s150
    %p152 = scmp.eq.s32.totalorder %s37, 0
    %p153 = por %p151, %p152
    %s155 = sadd.s32 %s154, 1
    %p158 = scmp.eq.s32.totalorder %s31, 1
    %p159 = scmp.ne.s32.totalorder %s154, %s156
    %p160 = scmp.eq.s32.totalorder %s31, 0
    %p161 = por %p159, %p160
    %p162 = scmp.ne.s32.totalorder %s154, %s156
    %p163 = scmp.eq.s32.totalorder %s36, 1
    %p164 = por %p162, %p163
    %p165 = scmp.ne.s32.totalorder %s156, %s157
    %p166 = scmp.eq.s32.totalorder %s36, 0
    %p167 = por %p165, %p166
    %p168 = scmp.ne.s32.totalorder %s156, %s157
    %p169 = scmp.eq.s32.totalorder %s37, 1
    %p170 = por %p168, %p169
    %p172 = scmp.ne.s32.totalorder %s157, %s171
    %p173 = scmp.eq.s32.totalorder %s37, 0
    %p174 = por %p172, %p173
    %s176 = sadd.s32 %s175, 1
    %p179 = scmp.eq.s32.totalorder %s31, 1
    %p180 = scmp.ne.s32.totalorder %s175, %s177
    %p181 = scmp.eq.s32.totalorder %s31, 0
    %p182 = por %p180, %p181
    %p183 = scmp.ne.s32.totalorder %s175, %s177
    %p184 = scmp.eq.s32.totalorder %s36, 1
    %p185 = por %p183, %p184
    %p186 = scmp.ne.s32.totalorder %s177, %s178
    %p187 = scmp.eq.s32.totalorder %s36, 0
    %p188 = por %p186, %p187
    %p189 = scmp.ne.s32.totalorder %s177, %s178
    %p190 = scmp.eq.s32.totalorder %s37, 1
    %p191 = por %p189, %p190
    %p193 = scmp.ne.s32.totalorder %s178, %s192
    %p194 = scmp.eq.s32.totalorder %s37, 0
    %p195 = por %p193, %p194
    %s197 = sadd.s32 %s196, 1
    %p200 = scmp.eq.s32.totalorder %s31, 1
    %p201 = scmp.ne.s32.totalorder %s196, %s198
    %p202 = scmp.eq.s32.totalorder %s31, 0
    %p203 = por %p201, %p202
    %p204 = scmp.ne.s32.totalorder %s196, %s198
    %p205 = scmp.eq.s32.totalorder %s36, 1
    %p206 = por %p204, %p205
    %p207 = scmp.ne.s32.totalorder %s198, %s199
    %p208 = scmp.eq.s32.totalorder %s36, 0
    %p209 = por %p207, %p208
    %p210 = scmp.ne.s32.totalorder %s198, %s199
    %p211 = scmp.eq.s32.totalorder %s37, 1
    %p212 = por %p210, %p211
    %p214 = scmp.ne.s32.totalorder %s199, %s213
    %p215 = scmp.eq.s32.totalorder %s37, 0
    %p216 = por %p214, %p215
    %s218 = sadd.s32 %s217, 1
    %p221 = scmp.eq.s32.totalorder %s31, 1
    %p222 = scmp.ne.s32.totalorder %s217, %s219
    %p223 = scmp.eq.s32.totalorder %s31, 0
    %p224 = por %p222, %p223
    %p225 = scmp.ne.s32.totalorder %s217, %s219
    %p226 = scmp.eq.s32.totalorder %s36, 1
    %p227 = por %p225, %p226
    %p228 = scmp.ne.s32.totalorder %s219, %s220
    %p229 = scmp.eq.s32.totalorder %s36, 0
    %p230 = por %p228, %p229
    %p231 = scmp.ne.s32.totalorder %s219, %s220
    %p232 = scmp.eq.s32.totalorder %s37, 1
    %p233 = por %p231, %p232
    %p235 = scmp.ne.s32.totalorder %s220, %s234
    %p236 = scmp.eq.s32.totalorder %s37, 0
    %p237 = por %p235, %p236
    %s239 = sadd.s32 %s238, 1
    %p242 = scmp.eq.s32.totalorder %s31, 1
    %p243 = scmp.ne.s32.totalorder %s238, %s240
    %p244 = scmp.eq.s32.totalorder %s31, 0
    %p245 = por %p243, %p244
    %p246 = scmp.ne.s32.totalorder %s238, %s240
    %p247 = scmp.eq.s32.totalorder %s36, 1
    %p248 = por %p246, %p247
    %p249 = scmp.ne.s32.totalorder %s240, %s241
    %p250 = scmp.eq.s32.totalorder %s36, 0
    %p251 = por %p249, %p250
    %p252 = scmp.ne.s32.totalorder %s240, %s241
    %p253 = scmp.eq.s32.totalorder %s37, 1
    %p254 = por %p252, %p253
    %p256 = scmp.ne.s32.totalorder %s241, %s255
    %p257 = scmp.eq.s32.totalorder %s37, 0
    %p258 = por %p256, %p257
    %s260 = sadd.s32 %s259, 1
    %p263 = scmp.eq.s32.totalorder %s31, 1
    %p264 = scmp.ne.s32.totalorder %s259, %s261
    %p265 = scmp.eq.s32.totalorder %s31, 0
    %p266 = por %p264, %p265
    %p267 = scmp.ne.s32.totalorder %s259, %s261
    %p268 = scmp.eq.s32.totalorder %s36, 1
    %p269 = por %p267, %p268
    %p270 = scmp.ne.s32.totalorder %s261, %s262
    %p271 = scmp.eq.s32.totalorder %s36, 0
    %p272 = por %p270, %p271
    %p273 = scmp.ne.s32.totalorder %s261, %s262
    %p274 = scmp.eq.s32.totalorder %s37, 1
    %p275 = por %p273, %p274
    %p277 = scmp.ne.s32.totalorder %s262, %s276
    %p278 = scmp.eq.s32.totalorder %s37, 0
    %p279 = por %p277, %p278
    %s281 = sadd.s32 %s280, 1
    %p284 = scmp.eq.s32.totalorder %s31, 1
    %p285 = scmp.ne.s32.totalorder %s280, %s282
    %p286 = scmp.eq.s32.totalorder %s31, 0
    %p287 = por %p285, %p286
    %p288 = scmp.ne.s32.totalorder %s280, %s282
    %p289 = scmp.eq.s32.totalorder %s36, 1
    %p290 = por %p288, %p289
    %p291 = scmp.ne.s32.totalorder %s282, %s283
    %p292 = scmp.eq.s32.totalorder %s36, 0
    %p293 = por %p291, %p292
    %p294 = scmp.ne.s32.totalorder %s282, %s283
    %p295 = scmp.eq.s32.totalorder %s37, 1
    %p296 = por %p294, %p295
    %p298 = scmp.ne.s32.totalorder %s283, %s297
    %p299 = scmp.eq.s32.totalorder %s37, 0
    %p300 = por %p298, %p299
    %s302 = sadd.s32 %s301, 1
    %p305 = scmp.eq.s32.totalorder %s31, 1
    %p306 = scmp.ne.s32.totalorder %s301, %s303
    %p307 = scmp.eq.s32.totalorder %s31, 0
    %p308 = por %p306, %p307
    %p309 = scmp.ne.s32.totalorder %s301, %s303
    %p310 = scmp.eq.s32.totalorder %s36, 1
    %p311 = por %p309, %p310
    %p312 = scmp.ne.s32.totalorder %s303, %s304
    %p313 = scmp.eq.s32.totalorder %s36, 0
    %p314 = por %p312, %p313
    %p315 = scmp.ne.s32.totalorder %s303, %s304
    %p316 = scmp.eq.s32.totalorder %s37, 1
    %p317 = por %p315, %p316
    %p319 = scmp.ne.s32.totalorder %s304, %s318
    %p320 = scmp.eq.s32.totalorder %s37, 0
    %p321 = por %p319, %p320
    %s323 = sadd.s32 %s322, 1
    %p326 = scmp.eq.s32.totalorder %s31, 1
    %p327 = scmp.ne.s32.totalorder %s322, %s324
    %p328 = scmp.eq.s32.totalorder %s31, 0
    %p329 = por %p327, %p328
    %p330 = scmp.ne.s32.totalorder %s322, %s324
    %p331 = scmp.eq.s32.totalorder %s36, 1
    %p332 = por %p330, %p331
    %p333 = scmp.ne.s32.totalorder %s324, %s325
    %p334 = scmp.eq.s32.totalorder %s36, 0
    %p335 = por %p333, %p334
    %p336 = scmp.ne.s32.totalorder %s324, %s325
    %p337 = scmp.eq.s32.totalorder %s37, 1
    %p338 = por %p336, %p337
    %p340 = scmp.ne.s32.totalorder %s325, %s339
    %p341 = scmp.eq.s32.totalorder %s37, 0
    %p342 = por %p340, %p341
    %s344 = sadd.s32 %s343, 1
    %p347 = scmp.eq.s32.totalorder %s31, 1
    %p348 = scmp.ne.s32.totalorder %s343, %s345
    %p349 = scmp.eq.s32.totalorder %s31, 0
    %p350 = por %p348, %p349
    %p351 = scmp.ne.s32.totalorder %s343, %s345
    %p352 = scmp.eq.s32.totalorder %s36, 1
    %p353 = por %p351, %p352
    %p354 = scmp.ne.s32.totalorder %s345, %s346
    %p355 = scmp.eq.s32.totalorder %s36, 0
    %p356 = por %p354, %p355
    %p357 = scmp.ne.s32.totalorder %s345, %s346
    %p358 = scmp.eq.s32.totalorder %s37, 1
    %p359 = por %p357, %p358
    %p361 = scmp.ne.s32.totalorder %s346, %s360
    %p362 = scmp.eq.s32.totalorder %s37, 0
    %p363 = por %p361, %p362
    %s365 = sadd.s32 %s364, 1
    %p368 = scmp.eq.s32.totalorder %s31, 1
    %p369 = scmp.ne.s32.totalorder %s364, %s366
    %p370 = scmp.eq.s32.totalorder %s31, 0
    %p371 = por %p369, %p370
    %p372 = scmp.ne.s32.totalorder %s364, %s366
    %p373 = scmp.eq.s32.totalorder %s36, 1
    %p374 = por %p372, %p373
    %p375 = scmp.ne.s32.totalorder %s366, %s367
    %p376 = scmp.eq.s32.totalorder %s36, 0
    %p377 = por %p375, %p376
    %p378 = scmp.ne.s32.totalorder %s366, %s367
    %p379 = scmp.eq.s32.totalorder %s37, 1
    %p380 = por %p378, %p379
    %p382 = scmp.ne.s32.totalorder %s367, %s381
    %p383 = scmp.eq.s32.totalorder %s37, 0
    %p384 = por %p382, %p383
    %s386 = sadd.s32 %s385, 1
    %p389 = scmp.eq.s32.totalorder %s31, 1
    %p390 = scmp.ne.s32.totalorder %s385, %s387
    %p391 = scmp.eq.s32.totalorder %s31, 0
    %p392 = por %p390, %p391
    %p393 = scmp.ne.s32.totalorder %s385, %s387
    %p394 = scmp.eq.s32.totalorder %s36, 1
    %p395 = por %p393, %p394
    %p396 = scmp.ne.s32.totalorder %s387, %s388
    %p397 = scmp.eq.s32.totalorder %s36, 0
    %p398 = por %p396, %p397
    %p399 = scmp.ne.s32.totalorder %s387, %s388
    %p400 = scmp.eq.s32.totalorder %s37, 1
    %p401 = por %p399, %p400
    %p403 = scmp.ne.s32.totalorder %s388, %s402
    %p404 = scmp.eq.s32.totalorder %s37, 0
    %p405 = por %p403, %p404
    %s407 = sadd.s32 %s406, 1
    %p410 = scmp.eq.s32.totalorder %s31, 1
    %p411 = scmp.ne.s32.totalorder %s406, %s408
    %p412 = scmp.eq.s32.totalorder %s31, 0
    %p413 = por %p411, %p412
    %p414 = scmp.ne.s32.totalorder %s406, %s408
    %p415 = scmp.eq.s32.totalorder %s36, 1
    %p416 = por %p414, %p415
    %p417 = scmp.ne.s32.totalorder %s408, %s409
    %p418 = scmp.eq.s32.totalorder %s36, 0
    %p419 = por %p417, %p418
    %p420 = scmp.ne.s32.totalorder %s408, %s409
    %p421 = scmp.eq.s32.totalorder %s37, 1
    %p422 = por %p420, %p421
    %p424 = scmp.ne.s32.totalorder %s409, %s423
    %p425 = scmp.eq.s32.totalorder %s37, 0
    %p426 = por %p424, %p425
    %s428 = sadd.s32 %s427, 1
    %p431 = scmp.eq.s32.totalorder %s31, 1
    %p432 = scmp.ne.s32.totalorder %s427, %s429
    %p433 = scmp.eq.s32.totalorder %s31, 0
    %p434 = por %p432, %p433
    %p435 = scmp.ne.s32.totalorder %s427, %s429
    %p436 = scmp.eq.s32.totalorder %s36, 1
    %p437 = por %p435, %p436
    %p438 = scmp.ne.s32.totalorder %s429, %s430
    %p439 = scmp.eq.s32.totalorder %s36, 0
    %p440 = por %p438, %p439
    %p441 = scmp.ne.s32.totalorder %s429, %s430
    %p442 = scmp.eq.s32.totalorder %s37, 1
    %p443 = por %p441, %p442
    %p445 = scmp.ne.s32.totalorder %s430, %s444
    %p446 = scmp.eq.s32.totalorder %s37, 0
    %p447 = por %p445, %p446
    %s449 = sadd.s32 %s448, 1
    %p452 = scmp.eq.s32.totalorder %s31, 1
    %p453 = scmp.ne.s32.totalorder %s448, %s450
    %p454 = scmp.eq.s32.totalorder %s31, 0
    %p455 = por %p453, %p454
    %p456 = scmp.ne.s32.totalorder %s448, %s450
    %p457 = scmp.eq.s32.totalorder %s36, 1
    %p458 = por %p456, %p457
    %p459 = scmp.ne.s32.totalorder %s450, %s451
    %p460 = scmp.eq.s32.totalorder %s36, 0
    %p461 = por %p459, %p460
    %p462 = scmp.ne.s32.totalorder %s450, %s451
    %p463 = scmp.eq.s32.totalorder %s37, 1
    %p464 = por %p462, %p463
    %p466 = scmp.ne.s32.totalorder %s451, %s465
    %p467 = scmp.eq.s32.totalorder %s37, 0
    %p468 = por %p466, %p467
    %s470 = sadd.s32 %s469, 1
    %p473 = scmp.eq.s32.totalorder %s31, 1
    %p474 = scmp.ne.s32.totalorder %s469, %s471
    %p475 = scmp.eq.s32.totalorder %s31, 0
    %p476 = por %p474, %p475
    %p477 = scmp.ne.s32.totalorder %s469, %s471
    %p478 = scmp.eq.s32.totalorder %s36, 1
    %p479 = por %p477, %p478
    %p480 = scmp.ne.s32.totalorder %s471, %s472
    %p481 = scmp.eq.s32.totalorder %s36, 0
    %p482 = por %p480, %p481
    %p483 = scmp.ne.s32.totalorder %s471, %s472
    %p484 = scmp.eq.s32.totalorder %s37, 1
    %p485 = por %p483, %p484
    %p487 = scmp.ne.s32.totalorder %s472, %s486
    %p488 = scmp.eq.s32.totalorder %s37, 0
    %p489 = por %p487, %p488
    %s491 = sadd.s32 %s490, 1
    %p494 = scmp.eq.s32.totalorder %s31, 1
    %p495 = scmp.ne.s32.totalorder %s490, %s492
    %p496 = scmp.eq.s32.totalorder %s31, 0
    %p497 = por %p495, %p496
    %p498 = scmp.ne.s32.totalorder %s490, %s492
    %p499 = scmp.eq.s32.totalorder %s36, 1
    %p500 = por %p498, %p499
    %p501 = scmp.ne.s32.totalorder %s492, %s493
    %p502 = scmp.eq.s32.totalorder %s36, 0
    %p503 = por %p501, %p502
    %p504 = scmp.ne.s32.totalorder %s492, %s493
    %p505 = scmp.eq.s32.totalorder %s37, 1
    %p506 = por %p504, %p505
    %p508 = scmp.ne.s32.totalorder %s493, %s507
    %p509 = scmp.eq.s32.totalorder %s37, 0
    %p510 = por %p508, %p509
    %s512 = sadd.s32 %s511, 1
    %p515 = scmp.eq.s32.totalorder %s31, 1
    %p516 = scmp.ne.s32.totalorder %s511, %s513
    %p517 = scmp.eq.s32.totalorder %s31, 0
    %p518 = por %p516, %p517
    %p519 = scmp.ne.s32.totalorder %s511, %s513
    %p520 = scmp.eq.s32.totalorder %s36, 1
    %p521 = por %p519, %p520
    %p522 = scmp.ne.s32.totalorder %s513, %s514
    %p523 = scmp.eq.s32.totalorder %s36, 0
    %p524 = por %p522, %p523
    %p525 = scmp.ne.s32.totalorder %s513, %s514
    %p526 = scmp.eq.s32.totalorder %s37, 1
    %p527 = por %p525, %p526
    %p529 = scmp.ne.s32.totalorder %s514, %s528
    %p530 = scmp.eq.s32.totalorder %s37, 0
    %p531 = por %p529, %p530
    %s533 = sadd.s32 %s532, 1
    %p536 = scmp.eq.s32.totalorder %s31, 1
    %p537 = scmp.ne.s32.totalorder %s532, %s534
    %p538 = scmp.eq.s32.totalorder %s31, 0
    %p539 = por %p537, %p538
    %p540 = scmp.ne.s32.totalorder %s532, %s534
    %p541 = scmp.eq.s32.totalorder %s36, 1
    %p542 = por %p540, %p541
    %p543 = scmp.ne.s32.totalorder %s534, %s535
    %p544 = scmp.eq.s32.totalorder %s36, 0
    %p545 = por %p543, %p544
    %p546 = scmp.ne.s32.totalorder %s534, %s535
    %p547 = scmp.eq.s32.totalorder %s37, 1
    %p548 = por %p546, %p547
    %p550 = scmp.ne.s32.totalorder %s535, %s549
    %p551 = scmp.eq.s32.totalorder %s37, 0
    %p552 = por %p550, %p551
    %s554 = sadd.s32 %s553, 1
    %p557 = scmp.eq.s32.totalorder %s31, 1
    %p558 = scmp.ne.s32.totalorder %s553, %s555
    %p559 = scmp.eq.s32.totalorder %s31, 0
    %p560 = por %p558, %p559
    %p561 = scmp.ne.s32.totalorder %s553, %s555
    %p562 = scmp.eq.s32.totalorder %s36, 1
    %p563 = por %p561, %p562
    %p564 = scmp.ne.s32.totalorder %s555, %s556
    %p565 = scmp.eq.s32.totalorder %s36, 0
    %p566 = por %p564, %p565
    %p567 = scmp.ne.s32.totalorder %s555, %s556
    %p568 = scmp.eq.s32.totalorder %s37, 1
    %p569 = por %p567, %p568
    %p571 = scmp.ne.s32.totalorder %s556, %s570
    %p572 = scmp.eq.s32.totalorder %s37, 0
    %p573 = por %p571, %p572
    %s574 = ssub.s32 %s31, %s38
    %p575 = scmp.eq.s32.totalorder %s574, 0
    %s577 = sadd.s32 %s576, 1
    %s578 = scalar_select %p575, %s576, %s577
    %p581 = pneg %p575
    %p582 = scmp.eq.s32.totalorder %s31, 1
    %p583 = por %p581, %p582
    %p584 = scmp.ne.s32.totalorder %s576, %s579
    %p585 = scmp.eq.s32.totalorder %s31, 0
    %p586 = por %p584, %p585
    %p587 = scmp.ne.s32.totalorder %s576, %s579
    %p588 = scmp.eq.s32.totalorder %s36, 1
    %p589 = por %p587, %p588
    %p590 = scmp.ne.s32.totalorder %s579, %s580
    %p591 = scmp.eq.s32.totalorder %s36, 0
    %p592 = por %p590, %p591
    %p593 = scmp.ne.s32.totalorder %s579, %s580
    %p594 = scmp.eq.s32.totalorder %s37, 1
    %p595 = por %p593, %p594
    %p597 = scmp.ne.s32.totalorder %s580, %s596
    %p598 = scmp.eq.s32.totalorder %s37, 0
    %p599 = por %p597, %p598
    %p600 = scmp.le.s32.totalorder 1, %s31
    %p601 = scmp.lt.s32.totalorder %s31, 3
    %p602 = pnand %p600, %p601
    %p603 = pneg %p602
    // Predicated region
    $region9: #{run.8} parent=5 // pred_check
      _
    $region10: #{run.8} parent=5 // pred_check_branch
      %605 = sbr.rel (%p602) target = $region12
    $region11: #{run.8} parent=5 // pred_region
      %s606 = ssub.s32 %s31, 1
      // Predicated region
      $region13: #{run.8} parent=11 // pred_check
        %p607 = pneg %p104
      $region14: #{run.8} parent=11 // pred_check_branch
        %609 = sbr.rel (%p607) target = $region16
      $region15: #{run.8} parent=11 // pred_region
        _
      $region16: #{run.8} parent=11 // pred_fallthru
        _
      // Predicated region
      $region17: #{run.8} parent=11 // pred_check
        %p610 = pneg %p125
      $region18: #{run.8} parent=11 // pred_check_branch
        %612 = sbr.rel (%p610) target = $region20
      $region19: #{run.8} parent=11 // pred_region
        _
      $region20: #{run.8} parent=11 // pred_fallthru
        _
      // Predicated region
      $region21: #{run.8} parent=11 // pred_check
        %p613 = pneg %p146
      $region22: #{run.8} parent=11 // pred_check_branch
        %615 = sbr.rel (%p613) target = $region24
      $region23: #{run.8} parent=11 // pred_region
        _
      $region24: #{run.8} parent=11 // pred_fallthru
        _
      // Predicated region
      $region25: #{run.8} parent=11 // pred_check
        %p616 = pneg %p167
      $region26: #{run.8} parent=11 // pred_check_branch
        %618 = sbr.rel (%p616) target = $region28
      $region27: #{run.8} parent=11 // pred_region
        _
      $region28: #{run.8} parent=11 // pred_fallthru
        _
      // Predicated region
      $region29: #{run.8} parent=11 // pred_check
        %p619 = pneg %p188
      $region30: #{run.8} parent=11 // pred_check_branch
        %621 = sbr.rel (%p619) target = $region32
      $region31: #{run.8} parent=11 // pred_region
        _
      $region32: #{run.8} parent=11 // pred_fallthru
        _
      // Predicated region
      $region33: #{run.8} parent=11 // pred_check
        %p622 = pneg %p209
      $region34: #{run.8} parent=11 // pred_check_branch
        %624 = sbr.rel (%p622) target = $region36
      $region35: #{run.8} parent=11 // pred_region
        _
      $region36: #{run.8} parent=11 // pred_fallthru
        _
      // Predicated region
      $region37: #{run.8} parent=11 // pred_check
        %p625 = pneg %p230
      $region38: #{run.8} parent=11 // pred_check_branch
        %627 = sbr.rel (%p625) target = $region40
      $region39: #{run.8} parent=11 // pred_region
        _
      $region40: #{run.8} parent=11 // pred_fallthru
        _
      // Predicated region
      $region41: #{run.8} parent=11 // pred_check
        %p628 = pneg %p251
      $region42: #{run.8} parent=11 // pred_check_branch
        %630 = sbr.rel (%p628) target = $region44
      $region43: #{run.8} parent=11 // pred_region
        _
      $region44: #{run.8} parent=11 // pred_fallthru
        _
      // Predicated region
      $region45: #{run.8} parent=11 // pred_check
        %p631 = pneg %p272
      $region46: #{run.8} parent=11 // pred_check_branch
        %633 = sbr.rel (%p631) target = $region48
      $region47: #{run.8} parent=11 // pred_region
        _
      $region48: #{run.8} parent=11 // pred_fallthru
        _
      // Predicated region
      $region49: #{run.8} parent=11 // pred_check
        %p634 = pneg %p293
      $region50: #{run.8} parent=11 // pred_check_branch
        %636 = sbr.rel (%p634) target = $region52
      $region51: #{run.8} parent=11 // pred_region
        _
      $region52: #{run.8} parent=11 // pred_fallthru
        _
      // Predicated region
      $region53: #{run.8} parent=11 // pred_check
        %p637 = pneg %p314
      $region54: #{run.8} parent=11 // pred_check_branch
        %639 = sbr.rel (%p637) target = $region56
      $region55: #{run.8} parent=11 // pred_region
        _
      $region56: #{run.8} parent=11 // pred_fallthru
        _
      // Predicated region
      $region57: #{run.8} parent=11 // pred_check
        %p640 = pneg %p335
      $region58: #{run.8} parent=11 // pred_check_branch
        %642 = sbr.rel (%p640) target = $region60
      $region59: #{run.8} parent=11 // pred_region
        _
      $region60: #{run.8} parent=11 // pred_fallthru
        _
      // Predicated region
      $region61: #{run.8} parent=11 // pred_check
        %p643 = pneg %p356
      $region62: #{run.8} parent=11 // pred_check_branch
        %645 = sbr.rel (%p643) target = $region64
      $region63: #{run.8} parent=11 // pred_region
        _
      $region64: #{run.8} parent=11 // pred_fallthru
        _
      // Predicated region
      $region65: #{run.8} parent=11 // pred_check
        %p646 = pneg %p377
      $region66: #{run.8} parent=11 // pred_check_branch
        %648 = sbr.rel (%p646) target = $region68
      $region67: #{run.8} parent=11 // pred_region
        _
      $region68: #{run.8} parent=11 // pred_fallthru
        _
      // Predicated region
      $region69: #{run.8} parent=11 // pred_check
        %p649 = pneg %p398
      $region70: #{run.8} parent=11 // pred_check_branch
        %651 = sbr.rel (%p649) target = $region72
      $region71: #{run.8} parent=11 // pred_region
        _
      $region72: #{run.8} parent=11 // pred_fallthru
        _
      // Predicated region
      $region73: #{run.8} parent=11 // pred_check
        %p652 = pneg %p419
      $region74: #{run.8} parent=11 // pred_check_branch
        %654 = sbr.rel (%p652) target = $region76
      $region75: #{run.8} parent=11 // pred_region
        _
      $region76: #{run.8} parent=11 // pred_fallthru
        _
      // Predicated region
      $region77: #{run.8} parent=11 // pred_check
        %p655 = pneg %p440
      $region78: #{run.8} parent=11 // pred_check_branch
        %657 = sbr.rel (%p655) target = $region80
      $region79: #{run.8} parent=11 // pred_region
        _
      $region80: #{run.8} parent=11 // pred_fallthru
        _
      // Predicated region
      $region81: #{run.8} parent=11 // pred_check
        %p658 = pneg %p461
      $region82: #{run.8} parent=11 // pred_check_branch
        %660 = sbr.rel (%p658) target = $region84
      $region83: #{run.8} parent=11 // pred_region
        _
      $region84: #{run.8} parent=11 // pred_fallthru
        _
      // Predicated region
      $region85: #{run.8} parent=11 // pred_check
        %p661 = pneg %p482
      $region86: #{run.8} parent=11 // pred_check_branch
        %663 = sbr.rel (%p661) target = $region88
      $region87: #{run.8} parent=11 // pred_region
        _
      $region88: #{run.8} parent=11 // pred_fallthru
        _
      // Predicated region
      $region89: #{run.8} parent=11 // pred_check
        %p664 = pneg %p503
      $region90: #{run.8} parent=11 // pred_check_branch
        %666 = sbr.rel (%p664) target = $region92
      $region91: #{run.8} parent=11 // pred_region
        _
      $region92: #{run.8} parent=11 // pred_fallthru
        _
      // Predicated region
      $region93: #{run.8} parent=11 // pred_check
        %p667 = pneg %p524
      $region94: #{run.8} parent=11 // pred_check_branch
        %669 = sbr.rel (%p667) target = $region96
      $region95: #{run.8} parent=11 // pred_region
        _
      $region96: #{run.8} parent=11 // pred_fallthru
        _
      // Predicated region
      $region97: #{run.8} parent=11 // pred_check
        %p670 = pneg %p545
      $region98: #{run.8} parent=11 // pred_check_branch
        %672 = sbr.rel (%p670) target = $region100
      $region99: #{run.8} parent=11 // pred_region
        _
      $region100: #{run.8} parent=11 // pred_fallthru
        _
      // Predicated region
      $region101: #{run.8} parent=11 // pred_check
        %p673 = pneg %p566
      $region102: #{run.8} parent=11 // pred_check_branch
        %675 = sbr.rel (%p673) target = $region104
      $region103: #{run.8} parent=11 // pred_region
        _
      $region104: #{run.8} parent=11 // pred_fallthru
        _
    $region12: #{run.8} parent=5 // pred_fallthru
      _
    %p676 = scmp.lt.s32.totalorder %s31, 2
    // Predicated region
    $region105: #{run.8} parent=5 // pred_check
      %p677 = pneg %p676
    $region106: #{run.8} parent=5 // pred_check_branch
      %679 = sbr.rel (%p677) target = $region108
    $region107: #{run.8} parent=5 // pred_region
      // Predicated region
      $region109: #{run.8} parent=107 // pred_check
        %p680 = pneg %p51
      $region110: #{run.8} parent=107 // pred_check_branch
        %682 = sbr.rel (%p680) target = $region112
      $region111: #{run.8} parent=107 // pred_region
        %p683 = scmp.lt.s32.totalorder %s31, 1
        %s684 = scalar_select %p683, %s31, 1
        %s685 = smul.addr %s684, 4
        %s686 = scalar_lea.vmem %s0, %s685
      $region112: #{run.8} parent=107 // pred_fallthru
        _
      // Predicated region
      $region113: #{run.8} parent=107 // pred_check
        %p687 = pneg %p77
      $region114: #{run.8} parent=107 // pred_check_branch
        %689 = sbr.rel (%p687) target = $region116
      $region115: #{run.8} parent=107 // pred_region
        %p690 = scmp.lt.s32.totalorder %s31, 1
        %s691 = scalar_select %p690, %s31, 1
        %s692 = smul.addr %s691, 2
        %s693 = smul.addr %s692, 4
        %s694 = scalar_lea.vmem %s1, %s693
      $region116: #{run.8} parent=107 // pred_fallthru
        _
    $region108: #{run.8} parent=5 // pred_fallthru
      _
    %p695 = scmp.le.s32.totalorder 1, %s31
    %p696 = scmp.lt.s32.totalorder %s31, 3
    %p697 = pnand %p695, %p696
    %p698 = pneg %p697
    // Predicated region
    $region117: #{run.8} parent=5 // pred_check
      _
    $region118: #{run.8} parent=5 // pred_check_branch
      %700 = sbr.rel (%p697) target = $region120
    $region119: #{run.8} parent=5 // pred_region
      %s701 = ssub.s32 %s31, 1
      %p702 = scmp.lt.s32.totalorder %s36, 1
      %s703 = scalar_select %p702, %s36, 1
      %s704 = smul.addr %s703, 4
      %s705 = scalar_lea.vmem %s0, %s704
      %p706 = pneg %p57
      %p707 = pneg %p54
      %p708 = scmp.lt.s32.totalorder %s36, 1
      %s709 = scalar_select %p708, %s36, 1
      %s710 = smul.addr %s709, 2
      %s711 = smul.addr %s710, 4
      %s712 = scalar_lea.vmem %s1, %s711
      %p713 = pneg %p83
      %p714 = pneg %p80
      %p715 = pneg %p104
      %p716 = pneg %p101
      %p717 = pneg %p125
      %p718 = pneg %p122
      %p719 = pneg %p146
      %p720 = pneg %p143
      %p721 = pneg %p167
      %p722 = pneg %p164
      %p723 = pneg %p188
      %p724 = pneg %p185
      %p725 = pneg %p209
      %p726 = pneg %p206
      %p727 = pneg %p230
      %p728 = pneg %p227
      %p729 = pneg %p251
      %p730 = pneg %p248
      %p731 = pneg %p272
      %p732 = pneg %p269
      %p733 = pneg %p293
      %p734 = pneg %p290
      %p735 = pneg %p314
      %p736 = pneg %p311
      %p737 = pneg %p335
      %p738 = pneg %p332
      %p739 = pneg %p356
      %p740 = pneg %p353
      %p741 = pneg %p377
      %p742 = pneg %p374
      %p743 = pneg %p398
      %p744 = pneg %p395
      %p745 = pneg %p419
      %p746 = pneg %p416
      %p747 = pneg %p440
      %p748 = pneg %p437
      %p749 = pneg %p461
      %p750 = pneg %p458
      %p751 = pneg %p482
      %p752 = pneg %p479
      %p753 = pneg %p503
      %p754 = pneg %p500
      %p755 = pneg %p524
      %p756 = pneg %p521
      %p757 = pneg %p545
      %p758 = pneg %p542
      %p759 = pneg %p566
      %p760 = pneg %p563
      %p761 = pneg %p592
      %p762 = pneg %p589
      %p763 = scmp.lt.s32.totalorder %s36, 1
      %s764 = scalar_select %p763, %s36, 1
      %s765 = smul.addr %s764, 4
      %s766 = scalar_lea.vmem %s25, %s765
      %p767 = scmp.lt.s32.totalorder %s36, 1
      %s768 = scalar_select %p767, %s36, 1
      %s769 = smul.addr %s768, 4
      %s770 = scalar_lea.vmem %s0, %s769
      %p771 = scmp.lt.s32.totalorder %s36, 1
      %s772 = scalar_select %p771, %s36, 1
      %s773 = smul.addr %s772, 2
      %s774 = smul.addr %s773, 4
      %s775 = scalar_lea.vmem %s1, %s774
      %p776 = scmp.lt.s32.totalorder %s36, 1
      %s777 = scalar_select %p776, %s36, 1
      %s778 = smul.addr %s777, 4
      %s779 = scalar_lea.vmem %s25, %s778
      %v781 = vld [vmem:[%s770] sm:$0xf]
      %v782 = vunpack.c.l.bf16 %v781
      %v783 = vld [vmem:[%s775] sm:$0xf]
      %v784 = vld [vmem:[%s775 + $0x4] sm:$0x1]
      %v785 = vld [vmem:[%s5] sm:$0xf]
      %v786 = vld [vmem:[%s5 + $0x4] sm:$0xf]
      %v787 = vld [vmem:[%s5 + $0x8] sm:$0xf]
      %v788 = vld [vmem:[%s5 + $0xc] sm:$0xf]
      %v789 = vld [vmem:[%s6] sm:$0x1]
      %v791 = vlaneseq
      %v792 = vshrl.u32 %v791, 7
      %v793 = vsub.s32 0, %v792
      %v794 = vrot.slane %v789, %v793
      %v800 = vunpack.c.l.b16 %v785
      %v801 = vunpack.c.l.b16 %v786
      %v802 = vunpack.c.l.b16 %v787
      %v803 = vunpack.c.l.b16 %v788
      %v804 = vpack.c.b16 %v801, %v800
      %v805 = vpack.c.b16 %v803, %v802
      %vm808 = vcmask 261120
      %v810 = vsel %vm808, %v781, 0
      %812 = vmatprep.subr.bf16.mxu0 0
      %813 = vmatpush1.bf16.msra.mxu0 0
      %814 = vmatprep.subr.bf16.mxu0 0
      %815 = vmatpush1.bf16.msra.mxu0 0
      %816 = vmatprep.subr.bf16.mxu0 0
      %817 = vmatpush1.bf16.msra.mxu0 0
      %818 = vmatprep.subr.bf16.mxu0 0
      %819 = vmatpush1.bf16.msra.mxu0 0
      %820 = vmatprep.subr.bf16.mxu0 0
      %821 = vmatpush1.bf16.msra.mxu0 0
      %822 = vmatprep.subr.bf16.mxu0 0
      %823 = vmatpush1.bf16.msra.mxu0 0
      %824 = vmatprep.subr.bf16.mxu0 0
      %825 = vmatpush1.bf16.msra.mxu0 %v805
      %826 = vmatprep.subr.bf16.mxu0 0
      %827 = vmatpush1.bf16.msra.mxu0 %v804
      %828 = vmatprep.subr.bf16.mxu0 0
      %829 = vmatpush2.bf16.msra.mxu0 0
      %830 = vmatprep.subr.bf16.mxu0 0
      %831 = vmatpush2.bf16.msra.mxu0 0
      %832 = vmatprep.subr.bf16.mxu0 0
      %833 = vmatpush2.bf16.msra.mxu0 0
      %834 = vmatprep.subr.bf16.mxu0 0
      %835 = vmatpush2.bf16.msra.mxu0 0
      %836 = vmatprep.subr.bf16.mxu0 0
      %837 = vmatpush2.bf16.msra.mxu0 0
      %838 = vmatprep.subr.bf16.mxu0 0
      %839 = vmatpush2.bf16.msra.mxu0 0
      %840 = vmatprep.subr.bf16.mxu0 0
      %841 = vmatpush2.bf16.msra.mxu0 0
      %842 = vmatprep.subr.bf16.mxu0 0
      %843 = vmatpush2.bf16.msra.mxu0 0
      %844 = vmatprep.mubr.bf16.mxu0 0
      %845 = vmatmul.mubr.bf16.gmra.mxu0 %v810
      %v846 = vpop.f32.mrf.mxu0
      %v847 = vadd.f32 %v794, %v846
      %v848 = vpop.f32.mrf.mxu0
      %v849 = vpop.f32.mrf.mxu0
      %v850 = vpop.f32.mrf.mxu0
      %851 = vdwg.mxu0
      %v852 = vld [vmem:[%s2] sm:$0xff]
      %s853 = scalar_lea.vmem %s3, %s36
      %v854 = vld [vmem:[%s853] sm:$0x1]
      %v855 = vlaneseq
      %v856 = vshrl.u32 %v855, 7
      %v857 = vsub.s32 0, %v856
      %v858 = vrot.slane %v854, %v857
      %v859 = vadd.f32 %v852, %v858
      %v860 = vmul.f32 %v847, 0.35355338
      %v861 = vpack.c.bf16 %v860, %v860
      %v862 = vpack.c.bf16 %v847, %v847
      %864 = vrot.lane.b32.xlu0 %v862, 96
      %v865 = vpop.permute.xlu0 %864
      %vm866 = vcmask 64512
      %v868 = vsel %vm866, %v861, 0
      %v871 = vsel %vm866, %v865, 0
      %873 = vmatprep.subr.bf16.mxu0 0
      %874 = vmatpush1.bf16.xpose.msra.mxu0 0
      %875 = vmatprep.subr.bf16.mxu0 0
      %876 = vmatpush1.bf16.xpose.msra.mxu0 0
      %877 = vmatprep.subr.bf16.mxu0 0
      %878 = vmatpush1.bf16.xpose.msra.mxu0 0
      %879 = vmatprep.subr.bf16.mxu0 0
      %880 = vmatpush1.bf16.xpose.msra.mxu0 0
      %881 = vmatprep.subr.bf16.mxu0 0
      %882 = vmatpush1.bf16.xpose.msra.mxu0 0
      %883 = vmatprep.subr.bf16.mxu0 0
      %884 = vmatpush1.bf16.xpose.msra.mxu0 0
      %885 = vmatprep.subr.bf16.mxu0 0
      %886 = vmatpush1.bf16.xpose.msra.mxu0 0
      %887 = vmatprep.subr.bf16.mxu0 0
      %888 = vmatpush1.bf16.xpose.msra.mxu0 %v871
      %889 = vmatprep.subr.bf16.mxu0 0
      %890 = vmatpush2.bf16.xpose.msra.mxu0 0
      %891 = vmatprep.subr.bf16.mxu0 0
      %892 = vmatpush2.bf16.xpose.msra.mxu0 0
      %893 = vmatprep.subr.bf16.mxu0 0
      %894 = vmatpush2.bf16.xpose.msra.mxu0 0
      %895 = vmatprep.subr.bf16.mxu0 0
      %896 = vmatpush2.bf16.xpose.msra.mxu0 0
      %897 = vmatprep.subr.bf16.mxu0 0
      %898 = vmatpush2.bf16.xpose.msra.mxu0 0
      %899 = vmatprep.subr.bf16.mxu0 0
      %900 = vmatpush2.bf16.xpose.msra.mxu0 0
      %901 = vmatprep.subr.bf16.mxu0 0
      %902 = vmatpush2.bf16.xpose.msra.mxu0 0
      %903 = vmatprep.subr.bf16.mxu0 0
      %904 = vmatpush2.bf16.xpose.msra.mxu0 0
      %905 = vmatprep.mubr.bf16.mxu0 0
      %906 = vmatmul.mubr.bf16.gmra.mxu0 %v868
      %v907 = vpop.f32.mrf.mxu0
      %v908 = vadd.f32 %v859, %v907
      %v909 = vpop.f32.mrf.mxu0
      %v910 = vpop.f32.mrf.mxu0
      %v911 = vpop.f32.mrf.mxu0
      %912 = vdwg.mxu0
      %v913 = vsel %vm866, %v908, -inf
      %914 = vmax.xlane.f32.xlu0 %v913
      %v915 = vpop.xlane.xlu0 %914
      %v916 = vsub.f32 %v908, %v915
      %v917 = vmul.f32 %v916, 1.442695
      %v918 = vpow.pop %v917
      %v919 = vsel %vm866, %v918, 0.0
      %920 = vadd.xlane.f32.xlu0 %v919
      %v921 = vpop.xlane.xlu0 %920
      %v922 = vrcp.pop %v921
      %v923 = vmul.f32 %v918, %v922
      %v924 = vpack.c.bf16 %v923, %v923
      %925 = vrot.lane.b32.xlu0 %v862, 64
      %v926 = vpop.permute.xlu0 %925
      %v928 = vsel %vm866, %v924, 0
      %vm930 = vcmask 1043456
      %v932 = vsel %vm930, %v926, 0
      %934 = vmatprep.subr.bf16.mxu0 0
      %935 = vmatpush1.bf16.msra.mxu0 0
      %936 = vmatprep.subr.bf16.mxu0 0
      %937 = vmatpush1.bf16.msra.mxu0 0
      %938 = vmatprep.subr.bf16.mxu0 0
      %939 = vmatpush1.bf16.msra.mxu0 0
      %940 = vmatprep.subr.bf16.mxu0 0
      %941 = vmatpush1.bf16.msra.mxu0 0
      %942 = vmatprep.subr.bf16.mxu0 0
      %943 = vmatpush1.bf16.msra.mxu0 0
      %944 = vmatprep.subr.bf16.mxu0 0
      %945 = vmatpush1.bf16.msra.mxu0 0
      %946 = vmatprep.subr.bf16.mxu0 0
      %947 = vmatpush1.bf16.msra.mxu0 0
      %948 = vmatprep.subr.bf16.mxu0 0
      %949 = vmatpush1.bf16.msra.mxu0 %v932
      %950 = vmatprep.subr.bf16.mxu0 0
      %951 = vmatpush2.bf16.msra.mxu0 0
      %952 = vmatprep.subr.bf16.mxu0 0
      %953 = vmatpush2.bf16.msra.mxu0 0
      %954 = vmatprep.subr.bf16.mxu0 0
      %955 = vmatpush2.bf16.msra.mxu0 0
      %956 = vmatprep.subr.bf16.mxu0 0
      %957 = vmatpush2.bf16.msra.mxu0 0
      %958 = vmatprep.subr.bf16.mxu0 0
      %959 = vmatpush2.bf16.msra.mxu0 0
      %960 = vmatprep.subr.bf16.mxu0 0
      %961 = vmatpush2.bf16.msra.mxu0 0
      %962 = vmatprep.subr.bf16.mxu0 0
      %963 = vmatpush2.bf16.msra.mxu0 0
      %964 = vmatprep.subr.bf16.mxu0 0
      %965 = vmatpush2.bf16.msra.mxu0 0
      %966 = vmatprep.mubr.bf16.mxu0 0
      %967 = vmatmul.mubr.bf16.gmra.mxu0 %v928
      %v968 = vpop.f32.mrf.mxu0
      %v969 = vadd.f32 0.0, %v968
      %v970 = vpop.f32.mrf.mxu0
      %v971 = vpop.f32.mrf.mxu0
      %v972 = vpop.f32.mrf.mxu0
      %973 = vdwg.mxu0
      %974 = vst.msk [vmem:[#allocation2] sm:$0xff] %vm866, %v969
      %976 = vrot.lane.b32.xlu0 %v861, 120
      %v977 = vpop.permute.xlu0 %976
      %978 = vrot.lane.b32.xlu0 %v862, 88
      %v979 = vpop.permute.xlu0 %978
      %v981 = vsel %vm866, %v977, 0
      %v984 = vsel %vm866, %v979, 0
      %986 = vmatprep.subr.bf16.mxu0 0
      %987 = vmatpush1.bf16.xpose.msra.mxu0 0
      %988 = vmatprep.subr.bf16.mxu0 0
      %989 = vmatpush1.bf16.xpose.msra.mxu0 0
      %990 = vmatprep.subr.bf16.mxu0 0
      %991 = vmatpush1.bf16.xpose.msra.mxu0 0
      %992 = vmatprep.subr.bf16.mxu0 0
      %993 = vmatpush1.bf16.xpose.msra.mxu0 0
      %994 = vmatprep.subr.bf16.mxu0 0
      %995 = vmatpush1.bf16.xpose.msra.mxu0 0
      %996 = vmatprep.subr.bf16.mxu0 0
      %997 = vmatpush1.bf16.xpose.msra.mxu0 0
      %998 = vmatprep.subr.bf16.mxu0 0
      %999 = vmatpush1.bf16.xpose.msra.mxu0 0
      %1000 = vmatprep.subr.bf16.mxu0 0
      %1001 = vmatpush1.bf16.xpose.msra.mxu0 %v984
      %1002 = vmatprep.subr.bf16.mxu0 0
      %1003 = vmatpush2.bf16.xpose.msra.mxu0 0
      %1004 = vmatprep.subr.bf16.mxu0 0
      %1005 = vmatpush2.bf16.xpose.msra.mxu0 0
      %1006 = vmatprep.subr.bf16.mxu0 0
      %1007 = vmatpush2.bf16.xpose.msra.mxu0 0
      %1008 = vmatprep.subr.bf16.mxu0 0
      %1009 = vmatpush2.bf16.xpose.msra.mxu0 0
      %1010 = vmatprep.subr.bf16.mxu0 0
      %1011 = vmatpush2.bf16.xpose.msra.mxu0 0
      %1012 = vmatprep.subr.bf16.mxu0 0
      %1013 = vmatpush2.bf16.xpose.msra.mxu0 0
      %1014 = vmatprep.subr.bf16.mxu0 0
      %1015 = vmatpush2.bf16.xpose.msra.mxu0 0
      %1016 = vmatprep.subr.bf16.mxu0 0
      %1017 = vmatpush2.bf16.xpose.msra.mxu0 0
      %1018 = vmatprep.mubr.bf16.mxu0 0
      %1019 = vmatmul.mubr.bf16.gmra.mxu0 %v981
      %v1020 = vpop.f32.mrf.mxu0
      %v1021 = vadd.f32 %v859, %v1020
      %v1022 = vpop.f32.mrf.mxu0
      %v1023 = vpop.f32.mrf.mxu0
      %v1024 = vpop.f32.mrf.mxu0
      %1025 = vdwg.mxu0
      %v1026 = vsel %vm866, %v1021, -inf
      %1027 = vmax.xlane.f32.xlu0 %v1026
      %v1028 = vpop.xlane.xlu0 %1027
      %v1029 = vsub.f32 %v1021, %v1028
      %v1030 = vmul.f32 %v1029, 1.442695
      %v1031 = vpow.pop %v1030
      %v1032 = vsel %vm866, %v1031, 0.0
      %1033 = vadd.xlane.f32.xlu0 %v1032
      %v1034 = vpop.xlane.xlu0 %1033
      %v1035 = vrcp.pop %v1034
      %v1036 = vmul.f32 %v1031, %v1035
      %v1037 = vpack.c.bf16 %v1036, %v1036
      %1038 = vrot.lane.b32.xlu0 %v862, 56
      %v1039 = vpop.permute.xlu0 %1038
      %v1041 = vsel %vm866, %v1037, 0
      %v1044 = vsel %vm930, %v1039, 0
      %1046 = vmatprep.subr.bf16.mxu0 0
      %1047 = vmatpush1.bf16.msra.mxu0 0
      %1048 = vmatprep.subr.bf16.mxu0 0
      %1049 = vmatpush1.bf16.msra.mxu0 0
      %1050 = vmatprep.subr.bf16.mxu0 0
      %1051 = vmatpush1.bf16.msra.mxu0 0
      %1052 = vmatprep.subr.bf16.mxu0 0
      %1053 = vmatpush1.bf16.msra.mxu0 0
      %1054 = vmatprep.subr.bf16.mxu0 0
      %1055 = vmatpush1.bf16.msra.mxu0 0
      %1056 = vmatprep.subr.bf16.mxu0 0
      %1057 = vmatpush1.bf16.msra.mxu0 0
      %1058 = vmatprep.subr.bf16.mxu0 0
      %1059 = vmatpush1.bf16.msra.mxu0 0
      %1060 = vmatprep.subr.bf16.mxu0 0
      %1061 = vmatpush1.bf16.msra.mxu0 %v1044
      %1062 = vmatprep.subr.bf16.mxu0 0
      %1063 = vmatpush2.bf16.msra.mxu0 0
      %1064 = vmatprep.subr.bf16.mxu0 0
      %1065 = vmatpush2.bf16.msra.mxu0 0
      %1066 = vmatprep.subr.bf16.mxu0 0
      %1067 = vmatpush2.bf16.msra.mxu0 0
      %1068 = vmatprep.subr.bf16.mxu0 0
      %1069 = vmatpush2.bf16.msra.mxu0 0
      %1070 = vmatprep.subr.bf16.mxu0 0
      %1071 = vmatpush2.bf16.msra.mxu0 0
      %1072 = vmatprep.subr.bf16.mxu0 0
      %1073 = vmatpush2.bf16.msra.mxu0 0
      %1074 = vmatprep.subr.bf16.mxu0 0
      %1075 = vmatpush2.bf16.msra.mxu0 0
      %1076 = vmatprep.subr.bf16.mxu0 0
      %1077 = vmatpush2.bf16.msra.mxu0 0
      %1078 = vmatprep.mubr.bf16.mxu0 0
      %1079 = vmatmul.mubr.bf16.gmra.mxu0 %v1041
      %v1080 = vpop.f32.mrf.mxu0
      %v1081 = vadd.f32 0.0, %v1080
      %v1082 = vpop.f32.mrf.mxu0
      %v1083 = vpop.f32.mrf.mxu0
      %v1084 = vpop.f32.mrf.mxu0
      %1085 = vdwg.mxu0
      %1087 = vrot.lane.b32.xlu0 %v1081, 8
      %v1088 = vpop.permute.xlu0 %1087
      %vm1090 = vcmask 130112
      %1091 = vst.msk [vmem:[#allocation2] sm:$0xff] %vm1090, %v1088
      %1092 = vrot.lane.b32.xlu0 %v861, 112
      %v1093 = vpop.permute.xlu0 %1092
      %1094 = vrot.lane.b32.xlu0 %v862, 80
      %v1095 = vpop.permute.xlu0 %1094
      %v1097 = vsel %vm866, %v1093, 0
      %v1100 = vsel %vm866, %v1095, 0
      %1102 = vmatprep.subr.bf16.mxu0 0
      %1103 = vmatpush1.bf16.xpose.msra.mxu0 0
      %1104 = vmatprep.subr.bf16.mxu0 0
      %1105 = vmatpush1.bf16.xpose.msra.mxu0 0
      %1106 = vmatprep.subr.bf16.mxu0 0
      %1107 = vmatpush1.bf16.xpose.msra.mxu0 0
      %1108 = vmatprep.subr.bf16.mxu0 0
      %1109 = vmatpush1.bf16.xpose.msra.mxu0 0
      %1110 = vmatprep.subr.bf16.mxu0 0
      %1111 = vmatpush1.bf16.xpose.msra.mxu0 0
      %1112 = vmatprep.subr.bf16.mxu0 0
      %1113 = vmatpush1.bf16.xpose.msra.mxu0 0
      %1114 = vmatprep.subr.bf16.mxu0 0
      %1115 = vmatpush1.bf16.xpose.msra.mxu0 0
      %1116 = vmatprep.subr.bf16.mxu0 0
      %1117 = vmatpush1.bf16.xpose.msra.mxu0 %v1100
      %1118 = vmatprep.subr.bf16.mxu0 0
      %1119 = vmatpush2.bf16.xpose.msra.mxu0 0
      %1120 = vmatprep.subr.bf16.mxu0 0
      %1121 = vmatpush2.bf16.xpose.msra.mxu0 0
      %1122 = vmatprep.subr.bf16.mxu0 0
      %1123 = vmatpush2.bf16.xpose.msra.mxu0 0
      %1124 = vmatprep.subr.bf16.mxu0 0
      %1125 = vmatpush2.bf16.xpose.msra.mxu0 0
      %1126 = vmatprep.subr.bf16.mxu0 0
      %1127 = vmatpush2.bf16.xpose.msra.mxu0 0
      %1128 = vmatprep.subr.bf16.mxu0 0
      %1129 = vmatpush2.bf16.xpose.msra.mxu0 0
      %1130 = vmatprep.subr.bf16.mxu0 0
      %1131 = vmatpush2.bf16.xpose.msra.mxu0 0
      %1132 = vmatprep.subr.bf16.mxu0 0
      %1133 = vmatpush2.bf16.xpose.msra.mxu0 0
      %1134 = vmatprep.mubr.bf16.mxu0 0
      %1135 = vmatmul.mubr.bf16.gmra.mxu0 %v1097
      %v1136 = vpop.f32.mrf.mxu0
      %v1137 = vadd.f32 %v859, %v1136
      %v1138 = vpop.f32.mrf.mxu0
      %v1139 = vpop.f32.mrf.mxu0
      %v1140 = vpop.f32.mrf.mxu0
      %1141 = vdwg.mxu0
      %v1142 = vsel %vm866, %v1137, -inf
      %1143 = vmax.xlane.f32.xlu0 %v1142
      %v1144 = vpop.xlane.xlu0 %1143
      %v1145 = vsub.f32 %v1137, %v1144
      %v1146 = vmul.f32 %v1145, 1.442695
      %v1147 = vpow.pop %v1146
      %v1148 = vsel %vm866, %v1147, 0.0
      %1149 = vadd.xlane.f32.xlu0 %v1148
      %v1150 = vpop.xlane.xlu0 %1149
      %v1151 = vrcp.pop %v1150
      %v1152 = vmul.f32 %v1147, %v1151
      %v1153 = vpack.c.bf16 %v1152, %v1152
      %1154 = vrot.lane.b32.xlu0 %v862, 48
      %v1155 = vpop.permute.xlu0 %1154
      %v1157 = vsel %vm866, %v1153, 0
      %v1160 = vsel %vm930, %v1155, 0
      %1162 = vmatprep.subr.bf16.mxu0 0
      %1163 = vmatpush1.bf16.msra.mxu0 0
      %1164 = vmatprep.subr.bf16.mxu0 0
      %1165 = vmatpush1.bf16.msra.mxu0 0
      %1166 = vmatprep.subr.bf16.mxu0 0
      %1167 = vmatpush1.bf16.msra.mxu0 0
      %1168 = vmatprep.subr.bf16.mxu0 0
      %1169 = vmatpush1.bf16.msra.mxu0 0
      %1170 = vmatprep.subr.bf16.mxu0 0
      %1171 = vmatpush1.bf16.msra.mxu0 0
      %1172 = vmatprep.subr.bf16.mxu0 0
      %1173 = vmatpush1.bf16.msra.mxu0 0
      %1174 = vmatprep.subr.bf16.mxu0 0
      %1175 = vmatpush1.bf16.msra.mxu0 0
      %1176 = vmatprep.subr.bf16.mxu0 0
      %1177 = vmatpush1.bf16.msra.mxu0 %v1160
      %1178 = vmatprep.subr.bf16.mxu0 0
      %1179 = vmatpush2.bf16.msra.mxu0 0
      %1180 = vmatprep.subr.bf16.mxu0 0
      %1181 = vmatpush2.bf16.msra.mxu0 0
      %1182 = vmatprep.subr.bf16.mxu0 0
      %1183 = vmatpush2.bf16.msra.mxu0 0
      %1184 = vmatprep.subr.bf16.mxu0 0
      %1185 = vmatpush2.bf16.msra.mxu0 0
      %1186 = vmatprep.subr.bf16.mxu0 0
      %1187 = vmatpush2.bf16.msra.mxu0 0
      %1188 = vmatprep.subr.bf16.mxu0 0
      %1189 = vmatpush2.bf16.msra.mxu0 0
      %1190 = vmatprep.subr.bf16.mxu0 0
      %1191 = vmatpush2.bf16.msra.mxu0 0
      %1192 = vmatprep.subr.bf16.mxu0 0
      %1193 = vmatpush2.bf16.msra.mxu0 0
      %1194 = vmatprep.mubr.bf16.mxu0 0
      %1195 = vmatmul.mubr.bf16.gmra.mxu0 %v1157
      %v1196 = vpop.f32.mrf.mxu0
      %v1197 = vadd.f32 0.0, %v1196
      %v1198 = vpop.f32.mrf.mxu0
      %v1199 = vpop.f32.mrf.mxu0
      %v1200 = vpop.f32.mrf.mxu0
      %1201 = vdwg.mxu0
      %1203 = vrot.lane.b32.xlu0 %v1197, 16
      %v1204 = vpop.permute.xlu0 %1203
      %vm1206 = vcmask 195712
      %1207 = vst.msk [vmem:[#allocation2] sm:$0xff] %vm1206, %v1204
      %1208 = vrot.lane.b32.xlu0 %v861, 104
      %v1209 = vpop.permute.xlu0 %1208
      %1210 = vrot.lane.b32.xlu0 %v862, 72
      %v1211 = vpop.permute.xlu0 %1210
      %v1213 = vsel %vm866, %v1209, 0
      %v1216 = vsel %vm866, %v1211, 0
      %1218 = vmatprep.subr.bf16.mxu0 0
      %1219 = vmatpush1.bf16.xpose.msra.mxu0 0
      %1220 = vmatprep.subr.bf16.mxu0 0
      %1221 = vmatpush1.bf16.xpose.msra.mxu0 0
      %1222 = vmatprep.subr.bf16.mxu0 0
      %1223 = vmatpush1.bf16.xpose.msra.mxu0 0
      %1224 = vmatprep.subr.bf16.mxu0 0
      %1225 = vmatpush1.bf16.xpose.msra.mxu0 0
      %1226 = vmatprep.subr.bf16.mxu0 0
      %1227 = vmatpush1.bf16.xpose.msra.mxu0 0
      %1228 = vmatprep.subr.bf16.mxu0 0
      %1229 = vmatpush1.bf16.xpose.msra.mxu0 0
      %1230 = vmatprep.subr.bf16.mxu0 0
      %1231 = vmatpush1.bf16.xpose.msra.mxu0 0
      %1232 = vmatprep.subr.bf16.mxu0 0
      %1233 = vmatpush1.bf16.xpose.msra.mxu0 %v1216
      %1234 = vmatprep.subr.bf16.mxu0 0
      %1235 = vmatpush2.bf16.xpose.msra.mxu0 0
      %1236 = vmatprep.subr.bf16.mxu0 0
      %1237 = vmatpush2.bf16.xpose.msra.mxu0 0
      %1238 = vmatprep.subr.bf16.mxu0 0
      %1239 = vmatpush2.bf16.xpose.msra.mxu0 0
      %1240 = vmatprep.subr.bf16.mxu0 0
      %1241 = vmatpush2.bf16.xpose.msra.mxu0 0
      %1242 = vmatprep.subr.bf16.mxu0 0
      %1243 = vmatpush2.bf16.xpose.msra.mxu0 0
      %1244 = vmatprep.subr.bf16.mxu0 0
      %1245 = vmatpush2.bf16.xpose.msra.mxu0 0
      %1246 = vmatprep.subr.bf16.mxu0 0
      %1247 = vmatpush2.bf16.xpose.msra.mxu0 0
      %1248 = vmatprep.subr.bf16.mxu0 0
      %1249 = vmatpush2.bf16.xpose.msra.mxu0 0
      %1250 = vmatprep.mubr.bf16.mxu0 0
      %1251 = vmatmul.mubr.bf16.gmra.mxu0 %v1213
      %v1252 = vpop.f32.mrf.mxu0
      %v1253 = vadd.f32 %v859, %v1252
      %v1254 = vpop.f32.mrf.mxu0
      %v1255 = vpop.f32.mrf.mxu0
      %v1256 = vpop.f32.mrf.mxu0
      %1257 = vdwg.mxu0
      %v1258 = vsel %vm866, %v1253, -inf
      %1259 = vmax.xlane.f32.xlu0 %v1258
      %v1260 = vpop.xlane.xlu0 %1259
      %v1261 = vsub.f32 %v1253, %v1260
      %v1262 = vmul.f32 %v1261, 1.442695
      %v1263 = vpow.pop %v1262
      %v1264 = vsel %vm866, %v1263, 0.0
      %1265 = vadd.xlane.f32.xlu0 %v1264
      %v1266 = vpop.xlane.xlu0 %1265
      %v1267 = vrcp.pop %v1266
      %v1268 = vmul.f32 %v1263, %v1267
      %v1269 = vpack.c.bf16 %v1268, %v1268
      %1270 = vrot.lane.b32.xlu0 %v862, 40
      %v1271 = vpop.permute.xlu0 %1270
      %v1273 = vsel %vm866, %v1269, 0
      %v1276 = vsel %vm930, %v1271, 0
      %1278 = vmatprep.subr.bf16.mxu0 0
      %1279 = vmatpush1.bf16.msra.mxu0 0
      %1280 = vmatprep.subr.bf16.mxu0 0
      %1281 = vmatpush1.bf16.msra.mxu0 0
      %1282 = vmatprep.subr.bf16.mxu0 0
      %1283 = vmatpush1.bf16.msra.mxu0 0
      %1284 = vmatprep.subr.bf16.mxu0 0
      %1285 = vmatpush1.bf16.msra.mxu0 0
      %1286 = vmatprep.subr.bf16.mxu0 0
      %1287 = vmatpush1.bf16.msra.mxu0 0
      %1288 = vmatprep.subr.bf16.mxu0 0
      %1289 = vmatpush1.bf16.msra.mxu0 0
      %1290 = vmatprep.subr.bf16.mxu0 0
      %1291 = vmatpush1.bf16.msra.mxu0 0
      %1292 = vmatprep.subr.bf16.mxu0 0
      %1293 = vmatpush1.bf16.msra.mxu0 %v1276
      %1294 = vmatprep.subr.bf16.mxu0 0
      %1295 = vmatpush2.bf16.msra.mxu0 0
      %1296 = vmatprep.subr.bf16.mxu0 0
      %1297 = vmatpush2.bf16.msra.mxu0 0
      %1298 = vmatprep.subr.bf16.mxu0 0
      %1299 = vmatpush2.bf16.msra.mxu0 0
      %1300 = vmatprep.subr.bf16.mxu0 0
      %1301 = vmatpush2.bf16.msra.mxu0 0
      %1302 = vmatprep.subr.bf16.mxu0 0
      %1303 = vmatpush2.bf16.msra.mxu0 0
      %1304 = vmatprep.subr.bf16.mxu0 0
      %1305 = vmatpush2.bf16.msra.mxu0 0
      %1306 = vmatprep.subr.bf16.mxu0 0
      %1307 = vmatpush2.bf16.msra.mxu0 0
      %1308 = vmatprep.subr.bf16.mxu0 0
      %1309 = vmatpush2.bf16.msra.mxu0 0
      %1310 = vmatprep.mubr.bf16.mxu0 0
      %1311 = vmatmul.mubr.bf16.gmra.mxu0 %v1273
      %v1312 = vpop.f32.mrf.mxu0
      %v1313 = vadd.f32 0.0, %v1312
      %v1314 = vpop.f32.mrf.mxu0
      %v1315 = vpop.f32.mrf.mxu0
      %v1316 = vpop.f32.mrf.mxu0
      %1317 = vdwg.mxu0
      %1319 = vrot.lane.b32.xlu0 %v1313, 24
      %v1320 = vpop.permute.xlu0 %1319
      %vm1322 = vcmask 261312
      %1323 = vst.msk [vmem:[#allocation2] sm:$0xff] %vm1322, %v1320
      %v1324 = vld [vmem:[#allocation2] sm:$0xff]
      %v1325 = vpack.c.bf16 %v1324, %v1324
      %v1326 = vld [vmem:[%s7] sm:$0xf]
      %v1327 = vld [vmem:[%s7 + $0x4] sm:$0xf]
      %v1328 = vld [vmem:[%s7 + $0x8] sm:$0xf]
      %v1329 = vld [vmem:[%s7 + $0xc] sm:$0xf]
      %v1330 = vld [vmem:[%s8] sm:$0x1]
      %v1332 = vlaneseq
      %v1333 = vshrl.u32 %v1332, 7
      %v1334 = vsub.s32 0, %v1333
      %v1335 = vrot.slane %v1330, %v1334
      %v1341 = vunpack.c.l.b16 %v1326
      %v1342 = vunpack.c.l.b16 %v1327
      %v1343 = vunpack.c.l.b16 %v1328
      %v1344 = vunpack.c.l.b16 %v1329
      %v1345 = vpack.c.b16 %v1342, %v1341
      %v1346 = vpack.c.b16 %v1344, %v1343
      %v1350 = vsel %vm808, %v1325, 0
      %1352 = vmatprep.subr.bf16.mxu0 0
      %1353 = vmatpush1.bf16.msra.mxu0 0
      %1354 = vmatprep.subr.bf16.mxu0 0
      %1355 = vmatpush1.bf16.msra.mxu0 0
      %1356 = vmatprep.subr.bf16.mxu0 0
      %1357 = vmatpush1.bf16.msra.mxu0 0
      %1358 = vmatprep.subr.bf16.mxu0 0
      %1359 = vmatpush1.bf16.msra.mxu0 0
      %1360 = vmatprep.subr.bf16.mxu0 0
      %1361 = vmatpush1.bf16.msra.mxu0 0
      %1362 = vmatprep.subr.bf16.mxu0 0
      %1363 = vmatpush1.bf16.msra.mxu0 0
      %1364 = vmatprep.subr.bf16.mxu0 0
      %1365 = vmatpush1.bf16.msra.mxu0 %v1346
      %1366 = vmatprep.subr.bf16.mxu0 0
      %1367 = vmatpush1.bf16.msra.mxu0 %v1345
      %1368 = vmatprep.subr.bf16.mxu0 0
      %1369 = vmatpush2.bf16.msra.mxu0 0
      %1370 = vmatprep.subr.bf16.mxu0 0
      %1371 = vmatpush2.bf16.msra.mxu0 0
      %1372 = vmatprep.subr.bf16.mxu0 0
      %1373 = vmatpush2.bf16.msra.mxu0 0
      %1374 = vmatprep.subr.bf16.mxu0 0
      %1375 = vmatpush2.bf16.msra.mxu0 0
      %1376 = vmatprep.subr.bf16.mxu0 0
      %1377 = vmatpush2.bf16.msra.mxu0 0
      %1378 = vmatprep.subr.bf16.mxu0 0
      %1379 = vmatpush2.bf16.msra.mxu0 0
      %1380 = vmatprep.subr.bf16.mxu0 0
      %1381 = vmatpush2.bf16.msra.mxu0 0
      %1382 = vmatprep.subr.bf16.mxu0 0
      %1383 = vmatpush2.bf16.msra.mxu0 0
      %1384 = vmatprep.mubr.bf16.mxu0 0
      %1385 = vmatmul.mubr.bf16.gmra.mxu0 %v1350
      %v1386 = vpop.f32.mrf.mxu0
      %v1387 = vadd.f32 %v1335, %v1386
      %v1388 = vpop.f32.mrf.mxu0
      %v1389 = vpop.f32.mrf.mxu0
      %v1390 = vpop.f32.mrf.mxu0
      %1391 = vdwg.mxu0
      %v1392 = vadd.f32 %v782, %v1387
      %v1393 = vld [vmem:[%s9] sm:$0x1]
      %v1394 = vld [vmem:[%s10] sm:$0x1]
      %v1395 = vsel %vm808, %v1392, 0.0
      %1396 = vadd.xlane.f32.xlu0 %v1395
      %v1397 = vpop.xlane.xlu0 %1396
      %v1398 = vrcp.pop 32.0
      %v1399 = vmul.f32 %v1397, %v1398
      %v1400 = vsub.f32 %v1392, %v1399
      %v1401 = vmul.f32 %v1400, %v1400
      %v1402 = vsel %vm808, %v1401, 0.0
      %1403 = vadd.xlane.f32.xlu0 %v1402
      %v1404 = vpop.xlane.xlu0 %1403
      %v1405 = vmul.f32 %v1404, %v1398
      %v1406 = vadd.f32 %v1405, 1e-05
      %v1407 = vrsqrt.pop %v1406
      %v1408 = vmul.f32 %v1400, %v1407
      %v1410 = vlaneseq
      %v1411 = vshrl.u32 %v1410, 7
      %v1412 = vsub.s32 0, %v1411
      %v1413 = vrot.slane %v1393, %v1412
      %v1415 = vmul.f32 %v1408, %v1413
      %v1417 = vlaneseq
      %v1418 = vshrl.u32 %v1417, 7
      %v1419 = vsub.s32 0, %v1418
      %v1420 = vrot.slane %v1394, %v1419
      %v1422 = vadd.f32 %v1415, %v1420
      %v1423 = vld [vmem:[%s11] sm:$0xf]
      %v1424 = vld [vmem:[%s11 + $0x4] sm:$0xf]
      %v1425 = vld [vmem:[%s11 + $0x8] sm:$0xf]
      %v1426 = vld [vmem:[%s11 + $0xc] sm:$0xf]
      %v1427 = vld [vmem:[%s12] sm:$0x1]
      %v1428 = vpack.c.bf16 %v1422, %v1422
      %v1430 = vlaneseq
      %v1431 = vshrl.u32 %v1430, 7
      %v1432 = vsub.s32 0, %v1431
      %v1433 = vrot.slane %v1427, %v1432
      %v1439 = vunpack.c.l.b16 %v1423
      %v1440 = vunpack.c.l.b16 %v1424
      %v1441 = vunpack.c.l.b16 %v1425
      %v1442 = vunpack.c.l.b16 %v1426
      %v1443 = vpack.c.b16 %v1440, %v1439
      %v1444 = vpack.c.b16 %v1442, %v1441
      %v1448 = vsel %vm808, %v1428, 0
      %1450 = vmatprep.subr.bf16.mxu0 0
      %1451 = vmatpush1.bf16.msra.mxu0 0
      %1452 = vmatprep.subr.bf16.mxu0 0
      %1453 = vmatpush1.bf16.msra.mxu0 0
      %1454 = vmatprep.subr.bf16.mxu0 0
      %1455 = vmatpush1.bf16.msra.mxu0 0
      %1456 = vmatprep.subr.bf16.mxu0 0
      %1457 = vmatpush1.bf16.msra.mxu0 0
      %1458 = vmatprep.subr.bf16.mxu0 0
      %1459 = vmatpush1.bf16.msra.mxu0 0
      %1460 = vmatprep.subr.bf16.mxu0 0
      %1461 = vmatpush1.bf16.msra.mxu0 0
      %1462 = vmatprep.subr.bf16.mxu0 0
      %1463 = vmatpush1.bf16.msra.mxu0 %v1444
      %1464 = vmatprep.subr.bf16.mxu0 0
      %1465 = vmatpush1.bf16.msra.mxu0 %v1443
      %1466 = vmatprep.subr.bf16.mxu0 0
      %1467 = vmatpush2.bf16.msra.mxu0 0
      %1468 = vmatprep.subr.bf16.mxu0 0
      %1469 = vmatpush2.bf16.msra.mxu0 0
      %1470 = vmatprep.subr.bf16.mxu0 0
      %1471 = vmatpush2.bf16.msra.mxu0 0
      %1472 = vmatprep.subr.bf16.mxu0 0
      %1473 = vmatpush2.bf16.msra.mxu0 0
      %1474 = vmatprep.subr.bf16.mxu0 0
      %1475 = vmatpush2.bf16.msra.mxu0 0
      %1476 = vmatprep.subr.bf16.mxu0 0
      %1477 = vmatpush2.bf16.msra.mxu0 0
      %1478 = vmatprep.subr.bf16.mxu0 0
      %1479 = vmatpush2.bf16.msra.mxu0 0
      %1480 = vmatprep.subr.bf16.mxu0 0
      %1481 = vmatpush2.bf16.msra.mxu0 0
      %1482 = vmatprep.mubr.bf16.mxu0 0
      %1483 = vmatmul.mubr.bf16.gmra.mxu0 %v1448
      %v1484 = vpop.f32.mrf.mxu0
      %v1485 = vadd.f32 %v1433, %v1484
      %v1486 = vpop.f32.mrf.mxu0
      %v1487 = vpop.f32.mrf.mxu0
      %v1488 = vpop.f32.mrf.mxu0
      %1489 = vdwg.mxu0
      %v1492 = vunpack.c.l.b16 %v783
      %v1493 = vunpack.c.l.b16 %v784
      %v1494 = vpack.c.b16 %v1493, %v1492
      %1495 = vrot.lane.b32.xlu0 %v1443, 96
      %v1496 = vpop.permute.xlu0 %1495
      %1497 = vrot.lane.b32.xlu0 %v1444, 96
      %v1498 = vpop.permute.xlu0 %1497
      %1501 = vrot.lane.b32.xlu0 %v1433, 96
      %v1502 = vpop.permute.xlu0 %1501
      %v1505 = vsel %vm808, %v1494, 0
      %1507 = vmatprep.subr.bf16.mxu0 0
      %1508 = vmatpush1.bf16.msra.mxu0 0
      %1509 = vmatprep.subr.bf16.mxu0 0
      %1510 = vmatpush1.bf16.msra.mxu0 0
      %1511 = vmatprep.subr.bf16.mxu0 0
      %1512 = vmatpush1.bf16.msra.mxu0 0
      %1513 = vmatprep.subr.bf16.mxu0 0
      %1514 = vmatpush1.bf16.msra.mxu0 0
      %1515 = vmatprep.subr.bf16.mxu0 0
      %1516 = vmatpush1.bf16.msra.mxu0 0
      %1517 = vmatprep.subr.bf16.mxu0 0
      %1518 = vmatpush1.bf16.msra.mxu0 0
      %1519 = vmatprep.subr.bf16.mxu0 0
      %1520 = vmatpush1.bf16.msra.mxu0 %v1498
      %1521 = vmatprep.subr.bf16.mxu0 0
      %1522 = vmatpush1.bf16.msra.mxu0 %v1496
      %1523 = vmatprep.subr.bf16.mxu0 0
      %1524 = vmatpush2.bf16.msra.mxu0 0
      %1525 = vmatprep.subr.bf16.mxu0 0
      %1526 = vmatpush2.bf16.msra.mxu0 0
      %1527 = vmatprep.subr.bf16.mxu0 0
      %1528 = vmatpush2.bf16.msra.mxu0 0
      %1529 = vmatprep.subr.bf16.mxu0 0
      %1530 = vmatpush2.bf16.msra.mxu0 0
      %1531 = vmatprep.subr.bf16.mxu0 0
      %1532 = vmatpush2.bf16.msra.mxu0 0
      %1533 = vmatprep.subr.bf16.mxu0 0
      %1534 = vmatpush2.bf16.msra.mxu0 0
      %1535 = vmatprep.subr.bf16.mxu0 0
      %1536 = vmatpush2.bf16.msra.mxu0 0
      %1537 = vmatprep.subr.bf16.mxu0 0
      %1538 = vmatpush2.bf16.msra.mxu0 0
      %1539 = vmatprep.mubr.bf16.mxu0 0
      %1540 = vmatmul.mubr.bf16.gmra.mxu0 %v1505
      %v1541 = vpop.f32.mrf.mxu0
      %v1542 = vadd.f32 %v1502, %v1541
      %v1543 = vpop.f32.mrf.mxu0
      %v1544 = vpop.f32.mrf.mxu0
      %v1545 = vadd.f32 %v1502, %v1544
      %v1546 = vpop.f32.mrf.mxu0
      %1547 = vdwg.mxu0
      %s1548 = scalar_lea.vmem %s4, %s36
      %v1549 = vld [vmem:[%s1548] sm:$0x1]
      %v1550 = vmul.f32 %v1485, 0.35355338
      %v1551 = vpack.c.bf16 %v1550, %v1550
      %v1552 = vpack.c.bf16 %v1545, %v1542
      %v1553 = vlaneseq
      %v1554 = vshrl.u32 %v1553, 7
      %v1555 = vsub.s32 0, %v1554
      %v1556 = vrot.slane %v1549, %v1555
      %v1558 = vsel %vm866, %v1551, 0
      %v1561 = vsel %vm866, %v1552, 0
      %1563 = vmatprep.subr.bf16.mxu0 0
      %1564 = vmatpush1.bf16.xpose.msra.mxu0 0
      %1565 = vmatprep.subr.bf16.mxu0 0
      %1566 = vmatpush1.bf16.xpose.msra.mxu0 0
      %1567 = vmatprep.subr.bf16.mxu0 0
      %1568 = vmatpush1.bf16.xpose.msra.mxu0 0
      %1569 = vmatprep.subr.bf16.mxu0 0
      %1570 = vmatpush1.bf16.xpose.msra.mxu0 0
      %1571 = vmatprep.subr.bf16.mxu0 0
      %1572 = vmatpush1.bf16.xpose.msra.mxu0 0
      %1573 = vmatprep.subr.bf16.mxu0 0
      %1574 = vmatpush1.bf16.xpose.msra.mxu0 0
      %1575 = vmatprep.subr.bf16.mxu0 0
      %1576 = vmatpush1.bf16.xpose.msra.mxu0 0
      %1577 = vmatprep.subr.bf16.mxu0 0
      %1578 = vmatpush1.bf16.xpose.msra.mxu0 %v1561
      %1579 = vmatprep.subr.bf16.mxu0 0
      %1580 = vmatpush2.bf16.xpose.msra.mxu0 0
      %1581 = vmatprep.subr.bf16.mxu0 0
      %1582 = vmatpush2.bf16.xpose.msra.mxu0 0
      %1583 = vmatprep.subr.bf16.mxu0 0
      %1584 = vmatpush2.bf16.xpose.msra.mxu0 0
      %1585 = vmatprep.subr.bf16.mxu0 0
      %1586 = vmatpush2.bf16.xpose.msra.mxu0 0
      %1587 = vmatprep.subr.bf16.mxu0 0
      %1588 = vmatpush2.bf16.xpose.msra.mxu0 0
      %1589 = vmatprep.subr.bf16.mxu0 0
      %1590 = vmatpush2.bf16.xpose.msra.mxu0 0
      %1591 = vmatprep.subr.bf16.mxu0 0
      %1592 = vmatpush2.bf16.xpose.msra.mxu0 0
      %1593 = vmatprep.subr.bf16.mxu0 0
      %1594 = vmatpush2.bf16.xpose.msra.mxu0 0
      %1595 = vmatprep.mubr.bf16.mxu0 0
      %1596 = vmatmul.mubr.bf16.gmra.mxu0 %v1558
      %v1597 = vpop.f32.mrf.mxu0
      %v1598 = vadd.f32 %v1556, %v1597
      %v1599 = vpop.f32.mrf.mxu0
      %v1600 = vpop.f32.mrf.mxu0
      %v1601 = vpop.f32.mrf.mxu0
      %1602 = vdwg.mxu0
      %vm1603 = vcmask 80896
      %v1604 = vsel %vm1603, %v1598, -inf
      %1605 = vmax.xlane.f32.xlu0 %v1604
      %v1606 = vpop.xlane.xlu0 %1605
      %v1607 = vsub.f32 %v1598, %v1606
      %v1608 = vmul.f32 %v1607, 1.442695
      %v1609 = vpow.pop %v1608
      %v1610 = vsel %vm1603, %v1609, 0.0
      %1611 = vadd.xlane.f32.xlu0 %v1610
      %v1612 = vpop.xlane.xlu0 %1611
      %v1613 = vrcp.pop %v1612
      %v1614 = vmul.f32 %v1609, %v1613
      %v1615 = vpack.c.bf16 %v1614, %v1614
      %1617 = vrot.lane.b32.xlu0 %v1552, 96
      %v1618 = vpop.permute.xlu0 %1617
      %v1620 = vsel %vm1603, %v1615, 0
      %vm1622 = vcmask 1044480
      %v1624 = vsel %vm1622, %v1618, 0
      %1626 = vmatprep.subr.bf16.mxu0 0
      %1627 = vmatpush1.bf16.msra.mxu0 0
      %1628 = vmatprep.subr.bf16.mxu0 0
      %1629 = vmatpush1.bf16.msra.mxu0 0
      %1630 = vmatprep.subr.bf16.mxu0 0
      %1631 = vmatpush1.bf16.msra.mxu0 0
      %1632 = vmatprep.subr.bf16.mxu0 0
      %1633 = vmatpush1.bf16.msra.mxu0 0
      %1634 = vmatprep.subr.bf16.mxu0 0
      %1635 = vmatpush1.bf16.msra.mxu0 0
      %1636 = vmatprep.subr.bf16.mxu0 0
      %1637 = vmatpush1.bf16.msra.mxu0 0
      %1638 = vmatprep.subr.bf16.mxu0 0
      %1639 = vmatpush1.bf16.msra.mxu0 0
      %1640 = vmatprep.subr.bf16.mxu0 0
      %1641 = vmatpush1.bf16.msra.mxu0 %v1624
      %1642 = vmatprep.subr.bf16.mxu0 0
      %1643 = vmatpush2.bf16.msra.mxu0 0
      %1644 = vmatprep.subr.bf16.mxu0 0
      %1645 = vmatpush2.bf16.msra.mxu0 0
      %1646 = vmatprep.subr.bf16.mxu0 0
      %1647 = vmatpush2.bf16.msra.mxu0 0
      %1648 = vmatprep.subr.bf16.mxu0 0
      %1649 = vmatpush2.bf16.msra.mxu0 0
      %1650 = vmatprep.subr.bf16.mxu0 0
      %1651 = vmatpush2.bf16.msra.mxu0 0
      %1652 = vmatprep.subr.bf16.mxu0 0
      %1653 = vmatpush2.bf16.msra.mxu0 0
      %1654 = vmatprep.subr.bf16.mxu0 0
      %1655 = vmatpush2.bf16.msra.mxu0 0
      %1656 = vmatprep.subr.bf16.mxu0 0
      %1657 = vmatpush2.bf16.msra.mxu0 0
      %1658 = vmatprep.mubr.bf16.mxu0 0
      %1659 = vmatmul.mubr.bf16.gmra.mxu0 %v1620
      %v1660 = vpop.f32.mrf.mxu0
      %v1661 = vadd.f32 0.0, %v1660
      %v1662 = vpop.f32.mrf.mxu0
      %v1663 = vpop.f32.mrf.mxu0
      %v1664 = vpop.f32.mrf.mxu0
      %1665 = vdwg.mxu0
      %1666 = vst.msk [vmem:[#allocation2] sm:$0xff] %vm866, %v1661
      %1668 = vrot.lane.b32.xlu0 %v1551, 120
      %v1669 = vpop.permute.xlu0 %1668
      %1670 = vrot.lane.b32.xlu0 %v1552, 120
      %v1671 = vpop.permute.xlu0 %1670
      %v1673 = vsel %vm866, %v1669, 0
      %v1676 = vsel %vm866, %v1671, 0
      %1678 = vmatprep.subr.bf16.mxu0 0
      %1679 = vmatpush1.bf16.xpose.msra.mxu0 0
      %1680 = vmatprep.subr.bf16.mxu0 0
      %1681 = vmatpush1.bf16.xpose.msra.mxu0 0
      %1682 = vmatprep.subr.bf16.mxu0 0
      %1683 = vmatpush1.bf16.xpose.msra.mxu0 0
      %1684 = vmatprep.subr.bf16.mxu0 0
      %1685 = vmatpush1.bf16.xpose.msra.mxu0 0
      %1686 = vmatprep.subr.bf16.mxu0 0
      %1687 = vmatpush1.bf16.xpose.msra.mxu0 0
      %1688 = vmatprep.subr.bf16.mxu0 0
      %1689 = vmatpush1.bf16.xpose.msra.mxu0 0
      %1690 = vmatprep.subr.bf16.mxu0 0
      %1691 = vmatpush1.bf16.xpose.msra.mxu0 0
      %1692 = vmatprep.subr.bf16.mxu0 0
      %1693 = vmatpush1.bf16.xpose.msra.mxu0 %v1676
      %1694 = vmatprep.subr.bf16.mxu0 0
      %1695 = vmatpush2.bf16.xpose.msra.mxu0 0
      %1696 = vmatprep.subr.bf16.mxu0 0
      %1697 = vmatpush2.bf16.xpose.msra.mxu0 0
      %1698 = vmatprep.subr.bf16.mxu0 0
      %1699 = vmatpush2.bf16.xpose.msra.mxu0 0
      %1700 = vmatprep.subr.bf16.mxu0 0
      %1701 = vmatpush2.bf16.xpose.msra.mxu0 0
      %1702 = vmatprep.subr.bf16.mxu0 0
      %1703 = vmatpush2.bf16.xpose.msra.mxu0 0
      %1704 = vmatprep.subr.bf16.mxu0 0
      %1705 = vmatpush2.bf16.xpose.msra.mxu0 0
      %1706 = vmatprep.subr.bf16.mxu0 0
      %1707 = vmatpush2.bf16.xpose.msra.mxu0 0
      %1708 = vmatprep.subr.bf16.mxu0 0
      %1709 = vmatpush2.bf16.xpose.msra.mxu0 0
      %1710 = vmatprep.mubr.bf16.mxu0 0
      %1711 = vmatmul.mubr.bf16.gmra.mxu0 %v1673
      %v1712 = vpop.f32.mrf.mxu0
      %v1713 = vadd.f32 %v1556, %v1712
      %v1714 = vpop.f32.mrf.mxu0
      %v1715 = vpop.f32.mrf.mxu0
      %v1716 = vpop.f32.mrf.mxu0
      %1717 = vdwg.mxu0
      %v1718 = vsel %vm1603, %v1713, -inf
      %1719 = vmax.xlane.f32.xlu0 %v1718
      %v1720 = vpop.xlane.xlu0 %1719
      %v1721 = vsub.f32 %v1713, %v1720
      %v1722 = vmul.f32 %v1721, 1.442695
      %v1723 = vpow.pop %v1722
      %v1724 = vsel %vm1603, %v1723, 0.0
      %1725 = vadd.xlane.f32.xlu0 %v1724
      %v1726 = vpop.xlane.xlu0 %1725
      %v1727 = vrcp.pop %v1726
      %v1728 = vmul.f32 %v1723, %v1727
      %v1729 = vpack.c.bf16 %v1728, %v1728
      %1730 = vrot.lane.b32.xlu0 %v1552, 88
      %v1731 = vpop.permute.xlu0 %1730
      %v1733 = vsel %vm1603, %v1729, 0
      %v1736 = vsel %vm1622, %v1731, 0
      %1738 = vmatprep.subr.bf16.mxu0 0
      %1739 = vmatpush1.bf16.msra.mxu0 0
      %1740 = vmatprep.subr.bf16.mxu0 0
      %1741 = vmatpush1.bf16.msra.mxu0 0
      %1742 = vmatprep.subr.bf16.mxu0 0
      %1743 = vmatpush1.bf16.msra.mxu0 0
      %1744 = vmatprep.subr.bf16.mxu0 0
      %1745 = vmatpush1.bf16.msra.mxu0 0
      %1746 = vmatprep.subr.bf16.mxu0 0
      %1747 = vmatpush1.bf16.msra.mxu0 0
      %1748 = vmatprep.subr.bf16.mxu0 0
      %1749 = vmatpush1.bf16.msra.mxu0 0
      %1750 = vmatprep.subr.bf16.mxu0 0
      %1751 = vmatpush1.bf16.msra.mxu0 0
      %1752 = vmatprep.subr.bf16.mxu0 0
      %1753 = vmatpush1.bf16.msra.mxu0 %v1736
      %1754 = vmatprep.subr.bf16.mxu0 0
      %1755 = vmatpush2.bf16.msra.mxu0 0
      %1756 = vmatprep.subr.bf16.mxu0 0
      %1757 = vmatpush2.bf16.msra.mxu0 0
      %1758 = vmatprep.subr.bf16.mxu0 0
      %1759 = vmatpush2.bf16.msra.mxu0 0
      %1760 = vmatprep.subr.bf16.mxu0 0
      %1761 = vmatpush2.bf16.msra.mxu0 0
      %1762 = vmatprep.subr.bf16.mxu0 0
      %1763 = vmatpush2.bf16.msra.mxu0 0
      %1764 = vmatprep.subr.bf16.mxu0 0
      %1765 = vmatpush2.bf16.msra.mxu0 0
      %1766 = vmatprep.subr.bf16.mxu0 0
      %1767 = vmatpush2.bf16.msra.mxu0 0
      %1768 = vmatprep.subr.bf16.mxu0 0
      %1769 = vmatpush2.bf16.msra.mxu0 0
      %1770 = vmatprep.mubr.bf16.mxu0 0
      %1771 = vmatmul.mubr.bf16.gmra.mxu0 %v1733
      %v1772 = vpop.f32.mrf.mxu0
      %v1773 = vadd.f32 0.0, %v1772
      %v1774 = vpop.f32.mrf.mxu0
      %v1775 = vpop.f32.mrf.mxu0
      %v1776 = vpop.f32.mrf.mxu0
      %1777 = vdwg.mxu0
      %1779 = vrot.lane.b32.xlu0 %v1773, 8
      %v1780 = vpop.permute.xlu0 %1779
      %1782 = vst.msk [vmem:[#allocation2] sm:$0xff] %vm1090, %v1780
      %1783 = vrot.lane.b32.xlu0 %v1551, 112
      %v1784 = vpop.permute.xlu0 %1783
      %1785 = vrot.lane.b32.xlu0 %v1552, 112
      %v1786 = vpop.permute.xlu0 %1785
      %v1788 = vsel %vm866, %v1784, 0
      %v1791 = vsel %vm866, %v1786, 0
      %1793 = vmatprep.subr.bf16.mxu0 0
      %1794 = vmatpush1.bf16.xpose.msra.mxu0 0
      %1795 = vmatprep.subr.bf16.mxu0 0
      %1796 = vmatpush1.bf16.xpose.msra.mxu0 0
      %1797 = vmatprep.subr.bf16.mxu0 0
      %1798 = vmatpush1.bf16.xpose.msra.mxu0 0
      %1799 = vmatprep.subr.bf16.mxu0 0
      %1800 = vmatpush1.bf16.xpose.msra.mxu0 0
      %1801 = vmatprep.subr.bf16.mxu0 0
      %1802 = vmatpush1.bf16.xpose.msra.mxu0 0
      %1803 = vmatprep.subr.bf16.mxu0 0
      %1804 = vmatpush1.bf16.xpose.msra.mxu0 0
      %1805 = vmatprep.subr.bf16.mxu0 0
      %1806 = vmatpush1.bf16.xpose.msra.mxu0 0
      %1807 = vmatprep.subr.bf16.mxu0 0
      %1808 = vmatpush1.bf16.xpose.msra.mxu0 %v1791
      %1809 = vmatprep.subr.bf16.mxu0 0
      %1810 = vmatpush2.bf16.xpose.msra.mxu0 0
      %1811 = vmatprep.subr.bf16.mxu0 0
      %1812 = vmatpush2.bf16.xpose.msra.mxu0 0
      %1813 = vmatprep.subr.bf16.mxu0 0
      %1814 = vmatpush2.bf16.xpose.msra.mxu0 0
      %1815 = vmatprep.subr.bf16.mxu0 0
      %1816 = vmatpush2.bf16.xpose.msra.mxu0 0
      %1817 = vmatprep.subr.bf16.mxu0 0
      %1818 = vmatpush2.bf16.xpose.msra.mxu0 0
      %1819 = vmatprep.subr.bf16.mxu0 0
      %1820 = vmatpush2.bf16.xpose.msra.mxu0 0
      %1821 = vmatprep.subr.bf16.mxu0 0
      %1822 = vmatpush2.bf16.xpose.msra.mxu0 0
      %1823 = vmatprep.subr.bf16.mxu0 0
      %1824 = vmatpush2.bf16.xpose.msra.mxu0 0
      %1825 = vmatprep.mubr.bf16.mxu0 0
      %1826 = vmatmul.mubr.bf16.gmra.mxu0 %v1788
      %v1827 = vpop.f32.mrf.mxu0
      %v1828 = vadd.f32 %v1556, %v1827
      %v1829 = vpop.f32.mrf.mxu0
      %v1830 = vpop.f32.mrf.mxu0
      %v1831 = vpop.f32.mrf.mxu0
      %1832 = vdwg.mxu0
      %v1833 = vsel %vm1603, %v1828, -inf
      %1834 = vmax.xlane.f32.xlu0 %v1833
      %v1835 = vpop.xlane.xlu0 %1834
      %v1836 = vsub.f32 %v1828, %v1835
      %v1837 = vmul.f32 %v1836, 1.442695
      %v1838 = vpow.pop %v1837
      %v1839 = vsel %vm1603, %v1838, 0.0
      %1840 = vadd.xlane.f32.xlu0 %v1839
      %v1841 = vpop.xlane.xlu0 %1840
      %v1842 = vrcp.pop %v1841
      %v1843 = vmul.f32 %v1838, %v1842
      %v1844 = vpack.c.bf16 %v1843, %v1843
      %1845 = vrot.lane.b32.xlu0 %v1552, 80
      %v1846 = vpop.permute.xlu0 %1845
      %v1848 = vsel %vm1603, %v1844, 0
      %v1851 = vsel %vm1622, %v1846, 0
      %1853 = vmatprep.subr.bf16.mxu0 0
      %1854 = vmatpush1.bf16.msra.mxu0 0
      %1855 = vmatprep.subr.bf16.mxu0 0
      %1856 = vmatpush1.bf16.msra.mxu0 0
      %1857 = vmatprep.subr.bf16.mxu0 0
      %1858 = vmatpush1.bf16.msra.mxu0 0
      %1859 = vmatprep.subr.bf16.mxu0 0
      %1860 = vmatpush1.bf16.msra.mxu0 0
      %1861 = vmatprep.subr.bf16.mxu0 0
      %1862 = vmatpush1.bf16.msra.mxu0 0
      %1863 = vmatprep.subr.bf16.mxu0 0
      %1864 = vmatpush1.bf16.msra.mxu0 0
      %1865 = vmatprep.subr.bf16.mxu0 0
      %1866 = vmatpush1.bf16.msra.mxu0 0
      %1867 = vmatprep.subr.bf16.mxu0 0
      %1868 = vmatpush1.bf16.msra.mxu0 %v1851
      %1869 = vmatprep.subr.bf16.mxu0 0
      %1870 = vmatpush2.bf16.msra.mxu0 0
      %1871 = vmatprep.subr.bf16.mxu0 0
      %1872 = vmatpush2.bf16.msra.mxu0 0
      %1873 = vmatprep.subr.bf16.mxu0 0
      %1874 = vmatpush2.bf16.msra.mxu0 0
      %1875 = vmatprep.subr.bf16.mxu0 0
      %1876 = vmatpush2.bf16.msra.mxu0 0
      %1877 = vmatprep.subr.bf16.mxu0 0
      %1878 = vmatpush2.bf16.msra.mxu0 0
      %1879 = vmatprep.subr.bf16.mxu0 0
      %1880 = vmatpush2.bf16.msra.mxu0 0
      %1881 = vmatprep.subr.bf16.mxu0 0
      %1882 = vmatpush2.bf16.msra.mxu0 0
      %1883 = vmatprep.subr.bf16.mxu0 0
      %1884 = vmatpush2.bf16.msra.mxu0 0
      %1885 = vmatprep.mubr.bf16.mxu0 0
      %1886 = vmatmul.mubr.bf16.gmra.mxu0 %v1848
      %v1887 = vpop.f32.mrf.mxu0
      %v1888 = vadd.f32 0.0, %v1887
      %v1889 = vpop.f32.mrf.mxu0
      %v1890 = vpop.f32.mrf.mxu0
      %v1891 = vpop.f32.mrf.mxu0
      %1892 = vdwg.mxu0
      %1894 = vrot.lane.b32.xlu0 %v1888, 16
      %v1895 = vpop.permute.xlu0 %1894
      %1897 = vst.msk [vmem:[#allocation2] sm:$0xff] %vm1206, %v1895
      %1898 = vrot.lane.b32.xlu0 %v1551, 104
      %v1899 = vpop.permute.xlu0 %1898
      %1900 = vrot.lane.b32.xlu0 %v1552, 104
      %v1901 = vpop.permute.xlu0 %1900
      %v1903 = vsel %vm866, %v1899, 0
      %v1906 = vsel %vm866, %v1901, 0
      %1908 = vmatprep.subr.bf16.mxu0 0
      %1909 = vmatpush1.bf16.xpose.msra.mxu0 0
      %1910 = vmatprep.subr.bf16.mxu0 0
      %1911 = vmatpush1.bf16.xpose.msra.mxu0 0
      %1912 = vmatprep.subr.bf16.mxu0 0
      %1913 = vmatpush1.bf16.xpose.msra.mxu0 0
      %1914 = vmatprep.subr.bf16.mxu0 0
      %1915 = vmatpush1.bf16.xpose.msra.mxu0 0
      %1916 = vmatprep.subr.bf16.mxu0 0
      %1917 = vmatpush1.bf16.xpose.msra.mxu0 0
      %1918 = vmatprep.subr.bf16.mxu0 0
      %1919 = vmatpush1.bf16.xpose.msra.mxu0 0
      %1920 = vmatprep.subr.bf16.mxu0 0
      %1921 = vmatpush1.bf16.xpose.msra.mxu0 0
      %1922 = vmatprep.subr.bf16.mxu0 0
      %1923 = vmatpush1.bf16.xpose.msra.mxu0 %v1906
      %1924 = vmatprep.subr.bf16.mxu0 0
      %1925 = vmatpush2.bf16.xpose.msra.mxu0 0
      %1926 = vmatprep.subr.bf16.mxu0 0
      %1927 = vmatpush2.bf16.xpose.msra.mxu0 0
      %1928 = vmatprep.subr.bf16.mxu0 0
      %1929 = vmatpush2.bf16.xpose.msra.mxu0 0
      %1930 = vmatprep.subr.bf16.mxu0 0
      %1931 = vmatpush2.bf16.xpose.msra.mxu0 0
      %1932 = vmatprep.subr.bf16.mxu0 0
      %1933 = vmatpush2.bf16.xpose.msra.mxu0 0
      %1934 = vmatprep.subr.bf16.mxu0 0
      %1935 = vmatpush2.bf16.xpose.msra.mxu0 0
      %1936 = vmatprep.subr.bf16.mxu0 0
      %1937 = vmatpush2.bf16.xpose.msra.mxu0 0
      %1938 = vmatprep.subr.bf16.mxu0 0
      %1939 = vmatpush2.bf16.xpose.msra.mxu0 0
      %1940 = vmatprep.mubr.bf16.mxu0 0
      %1941 = vmatmul.mubr.bf16.gmra.mxu0 %v1903
      %v1942 = vpop.f32.mrf.mxu0
      %v1943 = vadd.f32 %v1556, %v1942
      %v1944 = vpop.f32.mrf.mxu0
      %v1945 = vpop.f32.mrf.mxu0
      %v1946 = vpop.f32.mrf.mxu0
      %1947 = vdwg.mxu0
      %v1948 = vsel %vm1603, %v1943, -inf
      %1949 = vmax.xlane.f32.xlu0 %v1948
      %v1950 = vpop.xlane.xlu0 %1949
      %v1951 = vsub.f32 %v1943, %v1950
      %v1952 = vmul.f32 %v1951, 1.442695
      %v1953 = vpow.pop %v1952
      %v1954 = vsel %vm1603, %v1953, 0.0
      %1955 = vadd.xlane.f32.xlu0 %v1954
      %v1956 = vpop.xlane.xlu0 %1955
      %v1957 = vrcp.pop %v1956
      %v1958 = vmul.f32 %v1953, %v1957
      %v1959 = vpack.c.bf16 %v1958, %v1958
      %1960 = vrot.lane.b32.xlu0 %v1552, 72
      %v1961 = vpop.permute.xlu0 %1960
      %v1963 = vsel %vm1603, %v1959, 0
      %v1966 = vsel %vm1622, %v1961, 0
      %1968 = vmatprep.subr.bf16.mxu0 0
      %1969 = vmatpush1.bf16.msra.mxu0 0
      %1970 = vmatprep.subr.bf16.mxu0 0
      %1971 = vmatpush1.bf16.msra.mxu0 0
      %1972 = vmatprep.subr.bf16.mxu0 0
      %1973 = vmatpush1.bf16.msra.mxu0 0
      %1974 = vmatprep.subr.bf16.mxu0 0
      %1975 = vmatpush1.bf16.msra.mxu0 0
      %1976 = vmatprep.subr.bf16.mxu0 0
      %1977 = vmatpush1.bf16.msra.mxu0 0
      %1978 = vmatprep.subr.bf16.mxu0 0
      %1979 = vmatpush1.bf16.msra.mxu0 0
      %1980 = vmatprep.subr.bf16.mxu0 0
      %1981 = vmatpush1.bf16.msra.mxu0 0
      %1982 = vmatprep.subr.bf16.mxu0 0
      %1983 = vmatpush1.bf16.msra.mxu0 %v1966
      %1984 = vmatprep.subr.bf16.mxu0 0
      %1985 = vmatpush2.bf16.msra.mxu0 0
      %1986 = vmatprep.subr.bf16.mxu0 0
      %1987 = vmatpush2.bf16.msra.mxu0 0
      %1988 = vmatprep.subr.bf16.mxu0 0
      %1989 = vmatpush2.bf16.msra.mxu0 0
      %1990 = vmatprep.subr.bf16.mxu0 0
      %1991 = vmatpush2.bf16.msra.mxu0 0
      %1992 = vmatprep.subr.bf16.mxu0 0
      %1993 = vmatpush2.bf16.msra.mxu0 0
      %1994 = vmatprep.subr.bf16.mxu0 0
      %1995 = vmatpush2.bf16.msra.mxu0 0
      %1996 = vmatprep.subr.bf16.mxu0 0
      %1997 = vmatpush2.bf16.msra.mxu0 0
      %1998 = vmatprep.subr.bf16.mxu0 0
      %1999 = vmatpush2.bf16.msra.mxu0 0
      %2000 = vmatprep.mubr.bf16.mxu0 0
      %2001 = vmatmul.mubr.bf16.gmra.mxu0 %v1963
      %v2002 = vpop.f32.mrf.mxu0
      %v2003 = vadd.f32 0.0, %v2002
      %v2004 = vpop.f32.mrf.mxu0
      %v2005 = vpop.f32.mrf.mxu0
      %v2006 = vpop.f32.mrf.mxu0
      %2007 = vdwg.mxu0
      %2009 = vrot.lane.b32.xlu0 %v2003, 24
      %v2010 = vpop.permute.xlu0 %2009
      %2012 = vst.msk [vmem:[#allocation2] sm:$0xff] %vm1322, %v2010
      %v2013 = vld [vmem:[#allocation2] sm:$0xff]
      %v2014 = vpack.c.bf16 %v2013, %v2013
      %v2015 = vld [vmem:[%s13] sm:$0xf]
      %v2016 = vld [vmem:[%s13 + $0x4] sm:$0xf]
      %v2017 = vld [vmem:[%s13 + $0x8] sm:$0xf]
      %v2018 = vld [vmem:[%s13 + $0xc] sm:$0xf]
      %v2019 = vld [vmem:[%s14] sm:$0x1]
      %v2021 = vlaneseq
      %v2022 = vshrl.u32 %v2021, 7
      %v2023 = vsub.s32 0, %v2022
      %v2024 = vrot.slane %v2019, %v2023
      %v2030 = vunpack.c.l.b16 %v2015
      %v2031 = vunpack.c.l.b16 %v2016
      %v2032 = vunpack.c.l.b16 %v2017
      %v2033 = vunpack.c.l.b16 %v2018
      %v2034 = vpack.c.b16 %v2031, %v2030
      %v2035 = vpack.c.b16 %v2033, %v2032
      %v2039 = vsel %vm808, %v2014, 0
      %2041 = vmatprep.subr.bf16.mxu0 0
      %2042 = vmatpush1.bf16.msra.mxu0 0
      %2043 = vmatprep.subr.bf16.mxu0 0
      %2044 = vmatpush1.bf16.msra.mxu0 0
      %2045 = vmatprep.subr.bf16.mxu0 0
      %2046 = vmatpush1.bf16.msra.mxu0 0
      %2047 = vmatprep.subr.bf16.mxu0 0
      %2048 = vmatpush1.bf16.msra.mxu0 0
      %2049 = vmatprep.subr.bf16.mxu0 0
      %2050 = vmatpush1.bf16.msra.mxu0 0
      %2051 = vmatprep.subr.bf16.mxu0 0
      %2052 = vmatpush1.bf16.msra.mxu0 0
      %2053 = vmatprep.subr.bf16.mxu0 0
      %2054 = vmatpush1.bf16.msra.mxu0 %v2035
      %2055 = vmatprep.subr.bf16.mxu0 0
      %2056 = vmatpush1.bf16.msra.mxu0 %v2034
      %2057 = vmatprep.subr.bf16.mxu0 0
      %2058 = vmatpush2.bf16.msra.mxu0 0
      %2059 = vmatprep.subr.bf16.mxu0 0
      %2060 = vmatpush2.bf16.msra.mxu0 0
      %2061 = vmatprep.subr.bf16.mxu0 0
      %2062 = vmatpush2.bf16.msra.mxu0 0
      %2063 = vmatprep.subr.bf16.mxu0 0
      %2064 = vmatpush2.bf16.msra.mxu0 0
      %2065 = vmatprep.subr.bf16.mxu0 0
      %2066 = vmatpush2.bf16.msra.mxu0 0
      %2067 = vmatprep.subr.bf16.mxu0 0
      %2068 = vmatpush2.bf16.msra.mxu0 0
      %2069 = vmatprep.subr.bf16.mxu0 0
      %2070 = vmatpush2.bf16.msra.mxu0 0
      %2071 = vmatprep.subr.bf16.mxu0 0
      %2072 = vmatpush2.bf16.msra.mxu0 0
      %2073 = vmatprep.mubr.bf16.mxu0 0
      %2074 = vmatmul.mubr.bf16.gmra.mxu0 %v2039
      %v2075 = vpop.f32.mrf.mxu0
      %v2076 = vadd.f32 %v2024, %v2075
      %v2077 = vpop.f32.mrf.mxu0
      %v2078 = vpop.f32.mrf.mxu0
      %v2079 = vpop.f32.mrf.mxu0
      %2080 = vdwg.mxu0
      %v2081 = vadd.f32 %v1422, %v2076
      %v2082 = vld [vmem:[%s15] sm:$0x1]
      %v2083 = vld [vmem:[%s16] sm:$0x1]
      %v2084 = vsel %vm808, %v2081, 0.0
      %2085 = vadd.xlane.f32.xlu0 %v2084
      %v2086 = vpop.xlane.xlu0 %2085
      %v2087 = vmul.f32 %v2086, %v1398
      %v2088 = vsub.f32 %v2081, %v2087
      %v2089 = vmul.f32 %v2088, %v2088
      %v2090 = vsel %vm808, %v2089, 0.0
      %2091 = vadd.xlane.f32.xlu0 %v2090
      %v2092 = vpop.xlane.xlu0 %2091
      %v2093 = vmul.f32 %v2092, %v1398
      %v2094 = vadd.f32 %v2093, 1e-05
      %v2095 = vrsqrt.pop %v2094
      %v2096 = vmul.f32 %v2088, %v2095
      %v2098 = vlaneseq
      %v2099 = vshrl.u32 %v2098, 7
      %v2100 = vsub.s32 0, %v2099
      %v2101 = vrot.slane %v2082, %v2100
      %v2103 = vmul.f32 %v2096, %v2101
      %v2105 = vlaneseq
      %v2106 = vshrl.u32 %v2105, 7
      %v2107 = vsub.s32 0, %v2106
      %v2108 = vrot.slane %v2083, %v2107
      %v2110 = vadd.f32 %v2103, %v2108
      %v2111 = vpack.c.bf16 %v2110, %v2110
      %v2112 = vld [vmem:[%s17] sm:$0xf]
      %v2113 = vld [vmem:[%s17 + $0x4] sm:$0xf]
      %v2114 = vld [vmem:[%s17 + $0x8] sm:$0xf]
      %v2115 = vld [vmem:[%s17 + $0xc] sm:$0xf]
      %v2116 = vld [vmem:[%s18] sm:$0x1]
      %v2118 = vlaneseq
      %v2119 = vshrl.u32 %v2118, 7
      %v2120 = vsub.s32 0, %v2119
      %v2121 = vrot.slane %v2116, %v2120
      %v2127 = vunpack.c.l.b16 %v2112
      %v2128 = vunpack.c.l.b16 %v2113
      %v2129 = vunpack.c.l.b16 %v2114
      %v2130 = vunpack.c.l.b16 %v2115
      %v2131 = vpack.c.b16 %v2128, %v2127
      %v2132 = vpack.c.b16 %v2130, %v2129
      %v2136 = vsel %vm808, %v2111, 0
      %2138 = vmatprep.subr.bf16.mxu0 0
      %2139 = vmatpush1.bf16.msra.mxu0 0
      %2140 = vmatprep.subr.bf16.mxu0 0
      %2141 = vmatpush1.bf16.msra.mxu0 0
      %2142 = vmatprep.subr.bf16.mxu0 0
      %2143 = vmatpush1.bf16.msra.mxu0 0
      %2144 = vmatprep.subr.bf16.mxu0 0
      %2145 = vmatpush1.bf16.msra.mxu0 0
      %2146 = vmatprep.subr.bf16.mxu0 0
      %2147 = vmatpush1.bf16.msra.mxu0 0
      %2148 = vmatprep.subr.bf16.mxu0 0
      %2149 = vmatpush1.bf16.msra.mxu0 0
      %2150 = vmatprep.subr.bf16.mxu0 0
      %2151 = vmatpush1.bf16.msra.mxu0 %v2132
      %2152 = vmatprep.subr.bf16.mxu0 0
      %2153 = vmatpush1.bf16.msra.mxu0 %v2131
      %2154 = vmatprep.subr.bf16.mxu0 0
      %2155 = vmatpush2.bf16.msra.mxu0 0
      %2156 = vmatprep.subr.bf16.mxu0 0
      %2157 = vmatpush2.bf16.msra.mxu0 0
      %2158 = vmatprep.subr.bf16.mxu0 0
      %2159 = vmatpush2.bf16.msra.mxu0 0
      %2160 = vmatprep.subr.bf16.mxu0 0
      %2161 = vmatpush2.bf16.msra.mxu0 0
      %2162 = vmatprep.subr.bf16.mxu0 0
      %2163 = vmatpush2.bf16.msra.mxu0 0
      %2164 = vmatprep.subr.bf16.mxu0 0
      %2165 = vmatpush2.bf16.msra.mxu0 0
      %2166 = vmatprep.subr.bf16.mxu0 0
      %2167 = vmatpush2.bf16.msra.mxu0 0
      %2168 = vmatprep.subr.bf16.mxu0 0
      %2169 = vmatpush2.bf16.msra.mxu0 0
      %2170 = vmatprep.mubr.bf16.mxu0 0
      %2171 = vmatmul.mubr.bf16.gmra.mxu0 %v2136
      %v2172 = vpop.f32.mrf.mxu0
      %v2173 = vadd.f32 %v2121, %v2172
      %v2174 = vpop.f32.mrf.mxu0
      %v2175 = vpop.f32.mrf.mxu0
      %v2176 = vpop.f32.mrf.mxu0
      %2177 = vdwg.mxu0
      %v2178 = vmax.f32 %v2173, 0.0
      %v2179 = vpack.c.bf16 %v2178, %v2178
      %v2180 = vld [vmem:[%s19] sm:$0xf]
      %v2181 = vld [vmem:[%s19 + $0x4] sm:$0xf]
      %v2182 = vld [vmem:[%s19 + $0x8] sm:$0xf]
      %v2183 = vld [vmem:[%s19 + $0xc] sm:$0xf]
      %v2184 = vld [vmem:[%s19 + $0x10] sm:$0xf]
      %v2185 = vld [vmem:[%s19 + $0x14] sm:$0xf]
      %v2186 = vld [vmem:[%s19 + $0x18] sm:$0xf]
      %v2187 = vld [vmem:[%s19 + $0x1c] sm:$0xf]
      %v2188 = vld [vmem:[%s20] sm:$0x1]
      %v2190 = vlaneseq
      %v2191 = vshrl.u32 %v2190, 7
      %v2192 = vsub.s32 0, %v2191
      %v2193 = vrot.slane %v2188, %v2192
      %v2203 = vunpack.c.l.b16 %v2180
      %v2204 = vunpack.c.l.b16 %v2181
      %v2205 = vunpack.c.l.b16 %v2182
      %v2206 = vunpack.c.l.b16 %v2183
      %v2207 = vunpack.c.l.b16 %v2184
      %v2208 = vunpack.c.l.b16 %v2185
      %v2209 = vunpack.c.l.b16 %v2186
      %v2210 = vunpack.c.l.b16 %v2187
      %v2211 = vpack.c.b16 %v2204, %v2203
      %v2212 = vpack.c.b16 %v2206, %v2205
      %v2213 = vpack.c.b16 %v2208, %v2207
      %v2214 = vpack.c.b16 %v2210, %v2209
      %vm2219 = vcmask 523264
      %v2221 = vsel %vm2219, %v2179, 0
      %2223 = vmatprep.subr.bf16.mxu0 0
      %2224 = vmatpush1.bf16.msra.mxu0 0
      %2225 = vmatprep.subr.bf16.mxu0 0
      %2226 = vmatpush1.bf16.msra.mxu0 0
      %2227 = vmatprep.subr.bf16.mxu0 0
      %2228 = vmatpush1.bf16.msra.mxu0 0
      %2229 = vmatprep.subr.bf16.mxu0 0
      %2230 = vmatpush1.bf16.msra.mxu0 0
      %2231 = vmatprep.subr.bf16.mxu0 0
      %2232 = vmatpush1.bf16.msra.mxu0 %v2214
      %2233 = vmatprep.subr.bf16.mxu0 0
      %2234 = vmatpush1.bf16.msra.mxu0 %v2213
      %2235 = vmatprep.subr.bf16.mxu0 0
      %2236 = vmatpush1.bf16.msra.mxu0 %v2212
      %2237 = vmatprep.subr.bf16.mxu0 0
      %2238 = vmatpush1.bf16.msra.mxu0 %v2211
      %2239 = vmatprep.subr.bf16.mxu0 0
      %2240 = vmatpush2.bf16.msra.mxu0 0
      %2241 = vmatprep.subr.bf16.mxu0 0
      %2242 = vmatpush2.bf16.msra.mxu0 0
      %2243 = vmatprep.subr.bf16.mxu0 0
      %2244 = vmatpush2.bf16.msra.mxu0 0
      %2245 = vmatprep.subr.bf16.mxu0 0
      %2246 = vmatpush2.bf16.msra.mxu0 0
      %2247 = vmatprep.subr.bf16.mxu0 0
      %2248 = vmatpush2.bf16.msra.mxu0 0
      %2249 = vmatprep.subr.bf16.mxu0 0
      %2250 = vmatpush2.bf16.msra.mxu0 0
      %2251 = vmatprep.subr.bf16.mxu0 0
      %2252 = vmatpush2.bf16.msra.mxu0 0
      %2253 = vmatprep.subr.bf16.mxu0 0
      %2254 = vmatpush2.bf16.msra.mxu0 0
      %2255 = vmatprep.mubr.bf16.mxu0 0
      %2256 = vmatmul.mubr.bf16.gmra.mxu0 %v2221
      %v2257 = vpop.f32.mrf.mxu0
      %v2258 = vadd.f32 %v2193, %v2257
      %v2259 = vpop.f32.mrf.mxu0
      %v2260 = vpop.f32.mrf.mxu0
      %v2261 = vpop.f32.mrf.mxu0
      %2262 = vdwg.mxu0
      %v2263 = vadd.f32 %v2110, %v2258
      %v2264 = vld [vmem:[%s21] sm:$0x1]
      %v2265 = vld [vmem:[%s22] sm:$0x1]
      %v2266 = vsel %vm808, %v2263, 0.0
      %2267 = vadd.xlane.f32.xlu0 %v2266
      %v2268 = vpop.xlane.xlu0 %2267
      %v2269 = vmul.f32 %v2268, %v1398
      %v2270 = vsub.f32 %v2263, %v2269
      %v2271 = vmul.f32 %v2270, %v2270
      %v2272 = vsel %vm808, %v2271, 0.0
      %2273 = vadd.xlane.f32.xlu0 %v2272
      %v2274 = vpop.xlane.xlu0 %2273
      %v2275 = vmul.f32 %v2274, %v1398
      %v2276 = vadd.f32 %v2275, 1e-05
      %v2277 = vrsqrt.pop %v2276
      %v2278 = vmul.f32 %v2270, %v2277
      %v2280 = vlaneseq
      %v2281 = vshrl.u32 %v2280, 7
      %v2282 = vsub.s32 0, %v2281
      %v2283 = vrot.slane %v2264, %v2282
      %v2285 = vmul.f32 %v2278, %v2283
      %v2287 = vlaneseq
      %v2288 = vshrl.u32 %v2287, 7
      %v2289 = vsub.s32 0, %v2288
      %v2290 = vrot.slane %v2265, %v2289
      %v2292 = vadd.f32 %v2285, %v2290
      %v2293 = vld [vmem:[%s23] sm:$0x1]
      %v2294 = vld [vmem:[%s24] sm:$0x1]
      %v2295 = vsel %vm808, %v2292, 0.0
      %2296 = vadd.xlane.f32.xlu0 %v2295
      %v2297 = vpop.xlane.xlu0 %2296
      %v2298 = vmul.f32 %v2297, %v1398
      %v2299 = vsub.f32 %v2292, %v2298
      %v2300 = vmul.f32 %v2299, %v2299
      %v2301 = vsel %vm808, %v2300, 0.0
      %2302 = vadd.xlane.f32.xlu0 %v2301
      %v2303 = vpop.xlane.xlu0 %2302
      %v2304 = vmul.f32 %v2303, %v1398
      %v2305 = vadd.f32 %v2304, 1e-05
      %v2306 = vrsqrt.pop %v2305
      %v2307 = vmul.f32 %v2299, %v2306
      %v2309 = vlaneseq
      %v2310 = vshrl.u32 %v2309, 7
      %v2311 = vsub.s32 0, %v2310
      %v2312 = vrot.slane %v2293, %v2311
      %v2314 = vmul.f32 %v2307, %v2312
      %v2316 = vlaneseq
      %v2317 = vshrl.u32 %v2316, 7
      %v2318 = vsub.s32 0, %v2317
      %v2319 = vrot.slane %v2294, %v2318
      %v2321 = vadd.f32 %v2314, %v2319
      %v2322 = vpack.c.bf16 %v2321, %v2321
      %vm2323 = vcmask 257024
      %2324 = vst.msk [vmem:[%s779] sm:$0xf] %vm2323, %v2322
      %p2325 = scmp.lt.s32.totalorder %s36, 1
      %s2326 = scalar_select %p2325, %s36, 1
      %s2327 = smul.addr %s2326, 4
      %s2328 = scalar_lea.vmem %s25, %s2327
      // Predicated region
      $region121: #{run.8} parent=119 // pred_check
        %p2329 = pneg %p589
      $region122: #{run.8} parent=119 // pred_check_branch
        %2331 = sbr.rel (%p2329) target = $region124
      $region123: #{run.8} parent=119 // pred_region
        _
      $region124: #{run.8} parent=119 // pred_fallthru
        _
    $region120: #{run.8} parent=5 // pred_fallthru
      _
    %p2332 = scmp.le.s32.totalorder 2, %s31
    // Predicated region
    $region125: #{run.8} parent=5 // pred_check
      %p2333 = pneg %p2332
    $region126: #{run.8} parent=5 // pred_check_branch
      %2335 = sbr.rel (%p2333) target = $region128
    $region127: #{run.8} parent=5 // pred_region
      %s2336 = ssub.s32 %s31, 2
      // Predicated region
      $region129: #{run.8} parent=127 // pred_check
        %p2337 = pneg %p595
      $region130: #{run.8} parent=127 // pred_check_branch
        %2339 = sbr.rel (%p2337) target = $region132
      $region131: #{run.8} parent=127 // pred_region
        %p2340 = scmp.lt.s32.totalorder %s37, 1
        %s2341 = scalar_select %p2340, %s37, 1
        %s2342 = smul.addr %s2341, 4
        %s2343 = scalar_lea.vmem %s25, %s2342
      $region132: #{run.8} parent=127 // pred_fallthru
        _
    $region128: #{run.8} parent=5 // pred_fallthru
      _
  $region6: #{run.8} parent=0 // loop_footer
    %s35 = sadd.s32 1, %s31
  $region7: #{run.8} parent=0 // loop_footer_branch
    %30 = sbr.rel target = $region3
  $region8: #{run.8} parent=0 // loop_exit
    _

// kernel: run.9
$region0: #{run.9}
  #allocation0 [shape = 'u32[]', space=smem, size = 0x4, offset = 0x4, fixed_abs, tag = 'smem constant byte address 0x4 - core index']
  #allocation1 [shape = 'u32[144,128]{1,0:T(1,128)}', space=vmem, size = 0x12000, scoped, tag = 'internal scratch']
  %s0 = inlined_call_operand.vmem [shape: bf16[16,32], index: 0, kind: input, shape index: {}]
  %s1 = inlined_call_operand.vmem [shape: bf16[32,128], index: 1, kind: input, shape index: {}]
  %s2 = inlined_call_operand.vmem [shape: f32[1,128], index: 2, kind: input, shape index: {}]
  %s3 = inlined_call_operand.vmem [shape: f32[16,128], index: 3, kind: output, shape index: {}]
  %s4 = sld [smem:[#allocation0]]
  $region22: #{run.9} parent=0
    _
  %s6 = ssub.s32 1, %s4
  %s7 = scalar_select 0, %s6, %s4
  // Predicated region
  $region2: #{run.9} parent=0 // pred_check
    _
  $region3: #{run.9} parent=0 // pred_check_branch
    %9 = sbr.rel (0) target = $region5
  $region4: #{run.9} parent=0 // pred_region
    _
  $region5: #{run.9} parent=0 // pred_fallthru
    _
  // Predicated region
  $region6: #{run.9} parent=0 // pred_check
    _
  $region7: #{run.9} parent=0 // pred_check_branch
    %11 = sbr.rel (0) target = $region9
  $region8: #{run.9} parent=0 // pred_region
    _
  $region9: #{run.9} parent=0 // pred_fallthru
    _
  // Predicated region
  $region10: #{run.9} parent=0 // pred_check
    _
  $region11: #{run.9} parent=0 // pred_check_branch
    %13 = sbr.rel (0) target = $region13
  $region12: #{run.9} parent=0 // pred_region
    _
  $region13: #{run.9} parent=0 // pred_fallthru
    _
  %v15 = vld [vmem:[%s0] sm:$0xf]
  %v16 = vld [vmem:[%s0 + $0x4] sm:$0xf]
  %v17 = vld [vmem:[%s1] sm:$0xf]
  %v18 = vld [vmem:[%s1 + $0x4] sm:$0xf]
  %v19 = vld [vmem:[%s1 + $0x8] sm:$0xf]
  %v20 = vld [vmem:[%s1 + $0xc] sm:$0xf]
  %v21 = vld [vmem:[%s2] sm:$0x1]
  %v23 = vlaneseq
  %v24 = vshrl.u32 %v23, 7
  %v25 = vsub.s32 0, %v24
  %v26 = vrot.slane %v21, %v25
  %v30 = vunpack.c.l.b16 %v15
  %v31 = vunpack.c.l.b16 %v16
  %v32 = vpack.c.b16 %v31, %v30
  %v37 = vunpack.c.l.b16 %v17
  %v38 = vunpack.c.l.b16 %v18
  %v39 = vunpack.c.l.b16 %v19
  %v40 = vunpack.c.l.b16 %v20
  %v41 = vpack.c.b16 %v38, %v37
  %v42 = vpack.c.b16 %v40, %v39
  %vm45 = vcmask 261120
  %v47 = vsel %vm45, %v32, 0
  %49 = vmatprep.subr.bf16.mxu0 0
  %50 = vmatpush1.bf16.msra.mxu0 0
  %51 = vmatprep.subr.bf16.mxu0 0
  %52 = vmatpush1.bf16.msra.mxu0 0
  %53 = vmatprep.subr.bf16.mxu0 0
  %54 = vmatpush1.bf16.msra.mxu0 0
  %55 = vmatprep.subr.bf16.mxu0 0
  %56 = vmatpush1.bf16.msra.mxu0 0
  %57 = vmatprep.subr.bf16.mxu0 0
  %58 = vmatpush1.bf16.msra.mxu0 0
  %59 = vmatprep.subr.bf16.mxu0 0
  %60 = vmatpush1.bf16.msra.mxu0 0
  %61 = vmatprep.subr.bf16.mxu0 0
  %62 = vmatpush1.bf16.msra.mxu0 %v42
  %63 = vmatprep.subr.bf16.mxu0 0
  %64 = vmatpush1.bf16.msra.mxu0 %v41
  %65 = vmatprep.subr.bf16.mxu0 0
  %66 = vmatpush2.bf16.msra.mxu0 0
  %67 = vmatprep.subr.bf16.mxu0 0
  %68 = vmatpush2.bf16.msra.mxu0 0
  %69 = vmatprep.subr.bf16.mxu0 0
  %70 = vmatpush2.bf16.msra.mxu0 0
  %71 = vmatprep.subr.bf16.mxu0 0
  %72 = vmatpush2.bf16.msra.mxu0 0
  %73 = vmatprep.subr.bf16.mxu0 0
  %74 = vmatpush2.bf16.msra.mxu0 0
  %75 = vmatprep.subr.bf16.mxu0 0
  %76 = vmatpush2.bf16.msra.mxu0 0
  %77 = vmatprep.subr.bf16.mxu0 0
  %78 = vmatpush2.bf16.msra.mxu0 0
  %79 = vmatprep.subr.bf16.mxu0 0
  %80 = vmatpush2.bf16.msra.mxu0 0
  %81 = vmatprep.mubr.bf16.mxu0 0
  %82 = vmatmul.mubr.bf16.gmra.mxu0 %v47
  %v83 = vpop.f32.mrf.mxu0
  %v84 = vadd.f32 %v26, %v83
  %v85 = vpop.f32.mrf.mxu0
  %v86 = vpop.f32.mrf.mxu0
  %v87 = vadd.f32 %v26, %v86
  %v88 = vpop.f32.mrf.mxu0
  %89 = vdwg.mxu0
  %90 = vst [vmem:[%s3] sm:$0xff] %v84
  %91 = vst [vmem:[%s3 + $0x8] sm:$0xff] %v87
  // Predicated region
  $region14: #{run.9} parent=0 // pred_check
    _
  $region15: #{run.9} parent=0 // pred_check_branch
    %93 = sbr.rel (0) target = $region17
  $region16: #{run.9} parent=0 // pred_region
    _
  $region17: #{run.9} parent=0 // pred_fallthru
    _
  // Predicated region
  $region18: #{run.9} parent=0 // pred_check
    _
  $region19: #{run.9} parent=0 // pred_check_branch
    %95 = sbr.rel (0) target = $region21
  $region20: #{run.9} parent=0 // pred_region
    _
  $region21: #{run.9} parent=0 // pred_fallthru
    _

</llo_original>
